<compile_context>
chip_gen: v7x
topology: tpu7x:2x2x1
jax: 0.10.0
libtpu: 0.0.40
codegen_flags: <defaults>
</compile_context>

<pallas_src>
import math
import functools

import jax
import jax.numpy as jnp
from jax import lax
from jax.experimental import pallas as pl
from jax.experimental.pallas import tpu as pltpu


# Large-but-finite additive mask value: identical to -inf for any row with at
# least one unmasked entry, but avoids exp(-inf - (-inf)) = NaN on fully
# masked rows (possible with arbitrary user masks).
_MASK_VALUE = -0.7 * float(jnp.finfo(jnp.float32).max)

# Contract the last dim of both operands (q @ k.T without materializing the
# transpose -- the MXU consumes the transposed RHS natively, no XLU vxpose).
_DN_TRANS_RHS = (((1,), (1,)), ((), ()))


# ----------------------------- in-kernel helpers -----------------------------

def _layernorm(x, gamma, beta, eps):
    mean = jnp.mean(x, axis=-1, keepdims=True)
    var = jnp.mean(jnp.square(x - mean), axis=-1, keepdims=True)
    return (x - mean) / jnp.sqrt(var + eps) * gamma + beta


def _erf(x):
    # Abramowitz & Stegun 7.1.26 (|err| <= 1.5e-7, i.e. float32-exact).
    # Uses only VPU ops + one EUP exp, so it lowers on every TPU generation.
    a1, a2, a3, a4, a5 = (0.254829592, -0.284496736, 1.421413741,
                          -1.453152027, 1.061405429)
    p = 0.3275911
    ax = jnp.abs(x)
    t = 1.0 / (1.0 + p * ax)
    poly = ((((a5 * t + a4) * t + a3) * t + a2) * t + a1) * t
    y = 1.0 - poly * jnp.exp(-ax * ax)
    return jnp.where(x < 0.0, -y, y)


def _gelu_exact(x):
    # nn.GELU() default: exact erf-based GELU (f32-accurate polynomial erf).
    return 0.5 * x * (1.0 + _erf(x * (1.0 / math.sqrt(2.0))))


def _softmax_last(s):
    m = jnp.max(s, axis=-1, keepdims=True)
    e = jnp.exp(s - m)
    return e * pl.reciprocal(jnp.sum(e, axis=-1, keepdims=True), approx=True)


# --------------------------------- kernel ------------------------------------

def cross_block_kernel(
    nhead, tq,
    # inputs
    x_ref, x2_ref, mask_ref,
    wq12_ref, bq12_ref, wkv1_ref, bkv1_ref, wo1_ref, bo1_ref,
    wk2_ref, bk2_ref, wt_ref, bt_ref, w1_ref, b1_ref, w2_ref, b2_ref,
    g1_ref, be1_ref, g2_ref, be2_ref,
    # outputs
    h1_out_ref, h2_ff_ref, attnw_ref, attn1_ref, attn2_ref,
    # VMEM scratch (persists across the sequential q axis of the grid)
    kv1_scr, k2_scr,
):
    L = x_ref.shape[1]
    D = x_ref.shape[2]
    hd = D // nhead
    q_idx = pl.program_id(1)

    # ---- once per batch index: project K/V of the full sequence into scratch
    # (hoisted out of the query-tile loop; the q axis is "arbitrary"). --------
    @pl.when(q_idx == 0)
    def _():
        x_full = x_ref[0].astype(jnp.bfloat16)                      # (L, D)
        kv1 = jnp.dot(x_full, wkv1_ref[...],
                      preferred_element_type=jnp.float32) + bkv1_ref[...]
        kv1_scr[...] = kv1.astype(jnp.bfloat16)                     # (L, 2D) K|V
        x2_full = x2_ref[0].astype(jnp.bfloat16)
        k2 = jnp.dot(x2_full, wk2_ref[...],
                     preferred_element_type=jnp.float32) + bk2_ref[...]
        k2_scr[...] = k2.astype(jnp.bfloat16)                       # (L, D)

    # ---- query-tile rows, sliced from the already-resident full-seq slabs
    # (no separate query operands / DMAs). ------------------------------------
    row0 = pl.multiple_of(q_idx * tq, tq)
    xq = x_ref[0, pl.ds(row0, tq), :]                               # (TQ, D) f32
    x2q = x2_ref[0, pl.ds(row0, tq), :]                             # (TQ, D) f32
    mask = mask_ref[...].astype(jnp.float32)                        # (TQ, L)

    # Fused Q projections for both attentions; 1/sqrt(hd) is already folded
    # into the packed weights / bias host-side.
    q12 = jnp.dot(xq.astype(jnp.bfloat16), wq12_ref[...],
                  preferred_element_type=jnp.float32) + bq12_ref[...]
    q12 = q12.astype(jnp.bfloat16)                                  # (TQ, 2D)

    # ---- head loop: only (TQ, L)-sized live state; per-head slices are static
    # and hd-aligned (no stack / concat copies, no 3-D einsums -> no vxpose).
    # The out-projection of self_attn1 is folded into the loop per head. ------
    attn1_acc = jnp.zeros((tq, L), jnp.float32)
    attn2_acc = jnp.zeros((tq, L), jnp.float32)
    h_attn = jnp.zeros((tq, D), jnp.float32)
    for h in range(nhead):
        lo, hi = h * hd, (h + 1) * hd
        q1 = q12[:, lo:hi]                       # (TQ, hd) bf16
        q2 = q12[:, D + lo:D + hi]
        k1 = kv1_scr[:, lo:hi]                   # (L, hd)  bf16
        v1 = kv1_scr[:, D + lo:D + hi]
        k2 = k2_scr[:, lo:hi]

        # self_attn1(x, x, x)
        s1 = lax.dot_general(q1, k1, _DN_TRANS_RHS,
                             preferred_element_type=jnp.float32) + mask
        p1 = _softmax_last(s1)
        attn1_acc += p1
        ctx = jnp.dot(p1.astype(jnp.bfloat16), v1,
                      preferred_element_type=jnp.float32)           # (TQ, hd)
        h_attn += jnp.dot(ctx.astype(jnp.bfloat16), wo1_ref[lo:hi, :],
                          preferred_element_type=jnp.float32)

        # self_attn2(x, x2, x2): its attention *output* is discarded by the
        # module, so only its softmax weights are computed (no V / out-proj).
        s2 = lax.dot_general(q2, k2, _DN_TRANS_RHS,
                             preferred_element_type=jnp.float32) + mask
        attn2_acc += _softmax_last(s2)

    inv_h = 1.0 / nhead
    attn1 = attn1_acc * inv_h                    # head-averaged weights (TQ, L)
    attn2 = attn2_acc * inv_h
    h_attn = h_attn + bo1_ref[...]

    # TODO(synk): all nn.Dropout layers run as identity (inference semantics).
    h2_ff = jnp.dot(x2q.astype(jnp.bfloat16), wt_ref[...],
                    preferred_element_type=jnp.float32) + bt_ref[...]

    h1 = _layernorm(xq + h_attn, g1_ref[...], be1_ref[...], 1e-9)
    ff = jnp.dot(h1.astype(jnp.bfloat16), w1_ref[...],
                 preferred_element_type=jnp.float32) + b1_ref[...]
    ff = _gelu_exact(ff)
    ff = jnp.dot(ff.astype(jnp.bfloat16), w2_ref[...],
                 preferred_element_type=jnp.float32) + b2_ref[...]
    h1_out = _layernorm(h1 + ff, g2_ref[...], be2_ref[...], 1e-9)

    attn_sum = attn1 + attn2
    attnw = attn_sum * pl.reciprocal(
        jnp.sum(attn_sum, axis=-1, keepdims=True), approx=True)

    h1_out_ref[0] = h1_out.astype(h1_out_ref.dtype)
    h2_ff_ref[0] = h2_ff.astype(h2_ff_ref.dtype)
    attnw_ref[0] = attnw.astype(attnw_ref.dtype)
    attn1_ref[0] = attn1.astype(attn1_ref.dtype)
    attn2_ref[0] = attn2.astype(attn2_ref.dtype)


# --------------------------------- wrapper -----------------------------------

def _pick_query_tile(L, max_tq=256):
    """Largest divisor of L that is <= max_tq, preferring multiples of 16 so
    blocked dims stay tileable (bf16 sublane tile) for any L."""
    if L <= max_tq:
        return L
    best, best16 = 1, None
    for t in range(1, max_tq + 1):
        if L % t == 0:
            best = t
            if t % 16 == 0:
                best16 = t
    return best16 if best16 is not None else best


def cross_block(x, x2, mask_add, pp, nhead, tq=None, attn_dtype=jnp.bfloat16):
    """One TransformerCrossBlock. Returns (h1_out, h2_ff, attn_w, attn_1, attn_2)."""
    B, L, D = x.shape
    if tq is None:
        tq = _pick_query_tile(L)
    nq = L // tq

    # x / x2 stay resident for a whole batch index (same block revisited along q).
    # TODO(synk): pipeline_mode=pl.Buffered(1) on these two specs would drop the
    # redundant second pipeline buffer on v7x once single-buffering is exposed here.
    kv_spec = pl.BlockSpec((1, L, D), lambda b, q: (b, 0, 0))
    mask_spec = pl.BlockSpec((tq, L), lambda b, q: (q, 0))
    out_d = pl.BlockSpec((1, tq, D), lambda b, q: (b, q, 0))
    out_l = pl.BlockSpec((1, tq, L), lambda b, q: (b, q, 0))

    weight_order = [
        "wq12_t", "bq12", "wkv1_t", "bkv1", "wo1_t", "bo1",
        "wk2_t", "bk2", "wt_t", "bt", "w1_t", "b1", "w2_t", "b2",
        "g1", "be1", "g2", "be2",
    ]
    weight_args = [pp[k] for k in weight_order]

    out_shape = (
        jax.ShapeDtypeStruct((B, L, D), jnp.float32),   # h1_out
        jax.ShapeDtypeStruct((B, L, D), jnp.float32),   # h2_ff
        jax.ShapeDtypeStruct((B, L, L), attn_dtype),    # attn_weights (renormalized)
        jax.ShapeDtypeStruct((B, L, L), attn_dtype),    # attn_1
        jax.ShapeDtypeStruct((B, L, L), attn_dtype),    # attn_2
    )
    out_specs = (out_d, out_d, out_l, out_l, out_l)

    def call(single_buffer_weights):
        if single_buffer_weights:
            # Whole-array, single-copy VMEM residency for grid-invariant weights:
            # no per-step DMA and no double buffering (v7x VMEM headroom).
            wspecs = [pl.BlockSpec(memory_space=pltpu.MemorySpace.VMEM)
                      for _ in weight_args]
        else:
            # Fallback: grid-invariant blocked specs (double-buffered, but the
            # block index never changes so the DMA is still issued only once).
            wspecs = [pl.BlockSpec(tuple(w.shape),
                                   lambda b, q, _n=w.ndim: (0,) * _n)
                      for w in weight_args]
        fn = pl.pallas_call(
            functools.partial(cross_block_kernel, nhead, tq),
            grid=(B, nq),
            in_specs=[kv_spec, kv_spec, mask_spec] + wspecs,
            out_specs=out_specs,
            out_shape=out_shape,
            scratch_shapes=[
                pltpu.VMEM((L, 2 * D), jnp.bfloat16),   # K|V of self_attn1
                pltpu.VMEM((L, D), jnp.bfloat16),       # K   of self_attn2
            ],
            compiler_params=pltpu.CompilerParams(
                # b is the parallel (megacore) axis; q must be sequential so the
                # per-batch K/V scratch computed at q == 0 stays valid.
                dimension_semantics=("parallel", "arbitrary"),
                vmem_limit_bytes=64 * 1024 * 1024,
            ),
        )
        return fn(x, x2, mask_add, *weight_args)

    try:
        return call(True)
    except Exception:  # conservative fallback: keep running even if whole-array
        return call(False)  # VMEM operand placement is unavailable on this jax.


def transformer_cross_encoder(x, x2, mask_bool, packed_params_list, nhead):
    # PyTorch's _canonical_mask: bool mask, True => masked => additive -inf.
    # Shipped as bf16 (halves the mask HBM reads); large finite value instead of
    # -inf so fully-masked rows stay finite.
    mask_add = jnp.where(mask_bool, _MASK_VALUE, 0.0).astype(jnp.bfloat16)
    attn_weights, attn_scores1, attn_scores12 = [], [], []
    for pp in packed_params_list:
        x, x2, aw, a1, a2 = cross_block(x, x2, mask_add, pp, nhead)
        attn_weights.append(aw)
        attn_scores1.append(a1)
        attn_scores12.append(a2)
    return x, attn_weights, attn_scores1, attn_scores12


# ---------------------------- parameter handling ------------------------------

def _xavier_normal(key, shape):
    fan_out, fan_in = shape
    std = math.sqrt(2.0 / (fan_in + fan_out))
    return std * jax.random.normal(key, shape, jnp.float32)


def init_layer_params(key, D, dff):
    ks = iter(jax.random.split(key, 16))

    def w(shape):
        return _xavier_normal(next(ks), shape)

    def b(n):
        return 0.02 * jax.random.normal(next(ks), (n,), jnp.float32)

    return {
        # self_attn1 / self_attn2: PyTorch-style fused in_proj (3D, D) + out_proj
        "attn1_in_w": w((3 * D, D)), "attn1_in_b": b(3 * D),
        "attn1_out_w": w((D, D)), "attn1_out_b": b(D),
        "attn2_in_w": w((3 * D, D)), "attn2_in_b": b(3 * D),
        "attn2_out_w": w((D, D)), "attn2_out_b": b(D),
        # linear_time, linear1, linear2
        "wt": w((D, D)), "bt": b(D),
        "w1": w((dff, D)), "b1": b(dff),
        "w2": w((D, dff)), "b2": b(D),
        # layernorms (eps=1e-9 as in the module)
        "g1": jnp.ones((D,), jnp.float32), "be1": jnp.zeros((D,), jnp.float32),
        "g2": jnp.ones((D,), jnp.float32), "be2": jnp.zeros((D,), jnp.float32),
    }


def pack_layer_params(p, nhead):
    """Host-side fusion, pre-transposition, scale folding and bf16 cast of the
    PyTorch-layout parameters (all one-time, free)."""
    D = p["attn1_out_w"].shape[0]
    hd = D // nhead
    scale = 1.0 / math.sqrt(hd)

    wq1, wk1, wv1 = jnp.split(p["attn1_in_w"], 3, axis=0)
    bq1, bk1, bv1 = jnp.split(p["attn1_in_b"], 3)
    wq2, wk2, _wv2 = jnp.split(p["attn2_in_w"], 3, axis=0)
    bq2, bk2, _bv2 = jnp.split(p["attn2_in_b"], 3)

    def bf(a):
        return a.astype(jnp.bfloat16)

    def row(v):
        return v.reshape(1, -1).astype(jnp.float32)

    # self_attn2's V / out_proj never influence the module's outputs (its
    # attention output is discarded), so they are not packed or passed.
    return {
        # 1/sqrt(hd) attention scale folded into the Q projections.
        "wq12_t": bf(jnp.concatenate([(scale * wq1).T, (scale * wq2).T], axis=1)),
        "bq12": row(scale * jnp.concatenate([bq1, bq2])),             # (1, 2D)
        "wkv1_t": bf(jnp.concatenate([wk1.T, wv1.T], axis=1)),        # (D, 2D)
        "bkv1": row(jnp.concatenate([bk1, bv1])),                     # (1, 2D)
        "wo1_t": bf(p["attn1_out_w"].T), "bo1": row(p["attn1_out_b"]),
        "wk2_t": bf(wk2.T), "bk2": row(bk2),
        "wt_t": bf(p["wt"].T), "bt": row(p["bt"]),
        "w1_t": bf(p["w1"].T), "b1": row(p["b1"]),
        "w2_t": bf(p["w2"].T), "b2": row(p["b2"]),
        "g1": row(p["g1"]), "be1": row(p["be1"]),
        "g2": row(p["g2"]), "be2": row(p["be2"]),
    }


# ------------------------------------ main ------------------------------------

if __name__ == "__main__":
    B, L, D, H, DFF, NUM_LAYERS = 2, 8, 32, 4, 64, 2

    key = jax.random.PRNGKey(0)
    kx, kx2, kp = jax.random.split(key, 3)
    x = jax.random.normal(kx, (B, L, D), jnp.float32)
    x2 = jax.random.normal(kx2, (B, L, D), jnp.float32)

    # causal look-ahead mask: True above the diagonal => masked
    mask_bool = jnp.triu(jnp.ones((L, L), jnp.bool_), k=1)

    layer_keys = jax.random.split(kp, NUM_LAYERS)
    packed = [pack_layer_params(init_layer_params(k, D, DFF), H)
              for k in layer_keys]

    x_out, attn_ws, attn_s1, attn_s12 = transformer_cross_encoder(
        x, x2, mask_bool, packed, H)

    jax.block_until_ready(x_out)
    for a in attn_ws + attn_s1 + attn_s12:
        jax.block_until_ready(a)

    print("KERNEL_OK")
</pallas_src>

<mosaic_0001>
module attributes {stable_mosaic.version = 11 : i64} {
  func.func @cross_block_kernel(%arg0: i32, %arg1: i32, %arg2: memref<1x8x32xf32, #tpu.memory_space<vmem>>, %arg3: memref<1x8x32xf32, #tpu.memory_space<vmem>>, %arg4: memref<8x8xbf16, #tpu.memory_space<vmem>>, %arg5: memref<32x64xbf16, #tpu.memory_space<vmem>>, %arg6: memref<1x64xf32, #tpu.memory_space<vmem>>, %arg7: memref<32x64xbf16, #tpu.memory_space<vmem>>, %arg8: memref<1x64xf32, #tpu.memory_space<vmem>>, %arg9: memref<32x32xbf16, #tpu.memory_space<vmem>>, %arg10: memref<1x32xf32, #tpu.memory_space<vmem>>, %arg11: memref<32x32xbf16, #tpu.memory_space<vmem>>, %arg12: memref<1x32xf32, #tpu.memory_space<vmem>>, %arg13: memref<32x32xbf16, #tpu.memory_space<vmem>>, %arg14: memref<1x32xf32, #tpu.memory_space<vmem>>, %arg15: memref<32x64xbf16, #tpu.memory_space<vmem>>, %arg16: memref<1x64xf32, #tpu.memory_space<vmem>>, %arg17: memref<64x32xbf16, #tpu.memory_space<vmem>>, %arg18: memref<1x32xf32, #tpu.memory_space<vmem>>, %arg19: memref<1x32xf32, #tpu.memory_space<vmem>>, %arg20: memref<1x32xf32, #tpu.memory_space<vmem>>, %arg21: memref<1x32xf32, #tpu.memory_space<vmem>>, %arg22: memref<1x32xf32, #tpu.memory_space<vmem>>, %arg23: memref<1x8x32xf32, #tpu.memory_space<vmem>>, %arg24: memref<1x8x32xf32, #tpu.memory_space<vmem>>, %arg25: memref<1x8x8xbf16, #tpu.memory_space<vmem>>, %arg26: memref<1x8x8xbf16, #tpu.memory_space<vmem>>, %arg27: memref<1x8x8xbf16, #tpu.memory_space<vmem>>, %arg28: memref<8x64xbf16, #tpu.memory_space<vmem>>, %arg29: memref<8x32xbf16, #tpu.memory_space<vmem>>) attributes {dimension_semantics = [#tpu.dimension_semantics<parallel>, #tpu.dimension_semantics<arbitrary>], iteration_bounds = array<i64: 2, 1>, scalar_prefetch = 0 : i64, scratch_operands = 2 : i64, tpu.core_type = #tpu.core_type<tc>, window_params = [{transform_indices = @transform_0, window_bounds = array<i64: 1, 8, 32>}, {transform_indices = @transform_1, window_bounds = array<i64: 1, 8, 32>}, {transform_indices = @transform_2, window_bounds = array<i64: 8, 8>}, {pipeline_mode = #tpu.pipeline_mode<synchronous>, transform_indices = @transform_3, window_bounds = array<i64: 32, 64>}, {pipeline_mode = #tpu.pipeline_mode<synchronous>, transform_indices = @transform_4, window_bounds = array<i64: 1, 64>}, {pipeline_mode = #tpu.pipeline_mode<synchronous>, transform_indices = @transform_5, window_bounds = array<i64: 32, 64>}, {pipeline_mode = #tpu.pipeline_mode<synchronous>, transform_indices = @transform_6, window_bounds = array<i64: 1, 64>}, {pipeline_mode = #tpu.pipeline_mode<synchronous>, transform_indices = @transform_7, window_bounds = array<i64: 32, 32>}, {pipeline_mode = #tpu.pipeline_mode<synchronous>, transform_indices = @transform_8, window_bounds = array<i64: 1, 32>}, {pipeline_mode = #tpu.pipeline_mode<synchronous>, transform_indices = @transform_9, window_bounds = array<i64: 32, 32>}, {pipeline_mode = #tpu.pipeline_mode<synchronous>, transform_indices = @transform_10, window_bounds = array<i64: 1, 32>}, {pipeline_mode = #tpu.pipeline_mode<synchronous>, transform_indices = @transform_11, window_bounds = array<i64: 32, 32>}, {pipeline_mode = #tpu.pipeline_mode<synchronous>, transform_indices = @transform_12, window_bounds = array<i64: 1, 32>}, {pipeline_mode = #tpu.pipeline_mode<synchronous>, transform_indices = @transform_13, window_bounds = array<i64: 32, 64>}, {pipeline_mode = #tpu.pipeline_mode<synchronous>, transform_indices = @transform_14, window_bounds = array<i64: 1, 64>}, {pipeline_mode = #tpu.pipeline_mode<synchronous>, transform_indices = @transform_15, window_bounds = array<i64: 64, 32>}, {pipeline_mode = #tpu.pipeline_mode<synchronous>, transform_indices = @transform_16, window_bounds = array<i64: 1, 32>}, {pipeline_mode = #tpu.pipeline_mode<synchronous>, transform_indices = @transform_17, window_bounds = array<i64: 1, 32>}, {pipeline_mode = #tpu.pipeline_mode<synchronous>, transform_indices = @transform_18, window_bounds = array<i64: 1, 32>}, {pipeline_mode = #tpu.pipeline_mode<synchronous>, transform_indices = @transform_19, window_bounds = array<i64: 1, 32>}, {pipeline_mode = #tpu.pipeline_mode<synchronous>, transform_indices = @transform_20, window_bounds = array<i64: 1, 32>}, {transform_indices = @transform_21, window_bounds = array<i64: 1, 8, 32>}, {transform_indices = @transform_22, window_bounds = array<i64: 1, 8, 32>}, {transform_indices = @transform_23, window_bounds = array<i64: 1, 8, 8>}, {transform_indices = @transform_24, window_bounds = array<i64: 1, 8, 8>}, {transform_indices = @transform_25, window_bounds = array<i64: 1, 8, 8>}]} {
    %c0_i32 = arith.constant 0 : i32
    %0 = arith.cmpi eq, %arg1, %c0_i32 : i32
    %1 = arith.extui %0 : i1 to i32
    %c0_i32_0 = arith.constant 0 : i32
    %2 = arith.cmpi ne, %1, %c0_i32_0 : i32
    scf.if %2 {
      %c0_138 = arith.constant 0 : index
      %c0_139 = arith.constant 0 : index
      %c0_140 = arith.constant 0 : index
      %310 = vector.load %arg2[%c0_138, %c0_139, %c0_140] : memref<1x8x32xf32, #tpu.memory_space<vmem>>, vector<1x8x32xf32>
      %311 = vector.shape_cast %310 : vector<1x8x32xf32> to vector<8x32xf32>
      %312 = arith.truncf %311 : vector<8x32xf32> to vector<8x32xbf16>
      %c0_141 = arith.constant 0 : index
      %c0_142 = arith.constant 0 : index
      %313 = vector.load %arg7[%c0_141, %c0_142] : memref<32x64xbf16, #tpu.memory_space<vmem>>, vector<32x64xbf16>
      %cst_143 = arith.constant dense<0.000000e+00> : vector<8x64xf32>
      %314 = tpu.matmul %312, %313, %cst_143 {dimension_numbers = #tpu.dot_dimension_numbers<[1], [0], [0], [1], [0, 0, 1, 1], [], []>} : vector<8x32xbf16>, vector<32x64xbf16>, vector<8x64xf32> -> vector<8x64xf32>
      %c0_144 = arith.constant 0 : index
      %c0_145 = arith.constant 0 : index
      %315 = vector.load %arg8[%c0_144, %c0_145] : memref<1x64xf32, #tpu.memory_space<vmem>>, vector<1x64xf32>
      %316 = vector.broadcast %315 : vector<1x64xf32> to vector<8x64xf32>
      %317 = arith.addf %314, %316 : vector<8x64xf32>
      %318 = arith.truncf %317 : vector<8x64xf32> to vector<8x64xbf16>
      %c0_146 = arith.constant 0 : index
      %c0_147 = arith.constant 0 : index
      %319 = vector.load %arg28[%c0_146, %c0_147] : memref<8x64xbf16, #tpu.memory_space<vmem>>, vector<8x64xbf16>
      tpu.vector_store %arg28[%c0_146, %c0_147], %318 {strides = array<i32>} : memref<8x64xbf16, #tpu.memory_space<vmem>>, vector<8x64xbf16>,
      %c0_148 = arith.constant 0 : index
      %c0_149 = arith.constant 0 : index
      %c0_150 = arith.constant 0 : index
      %320 = vector.load %arg3[%c0_148, %c0_149, %c0_150] : memref<1x8x32xf32, #tpu.memory_space<vmem>>, vector<1x8x32xf32>
      %321 = vector.shape_cast %320 : vector<1x8x32xf32> to vector<8x32xf32>
      %322 = arith.truncf %321 : vector<8x32xf32> to vector<8x32xbf16>
      %c0_151 = arith.constant 0 : index
      %c0_152 = arith.constant 0 : index
      %323 = vector.load %arg11[%c0_151, %c0_152] : memref<32x32xbf16, #tpu.memory_space<vmem>>, vector<32x32xbf16>
      %cst_153 = arith.constant dense<0.000000e+00> : vector<8x32xf32>
      %324 = tpu.matmul %322, %323, %cst_153 {dimension_numbers = #tpu.dot_dimension_numbers<[1], [0], [0], [1], [0, 0, 1, 1], [], []>} : vector<8x32xbf16>, vector<32x32xbf16>, vector<8x32xf32> -> vector<8x32xf32>
      %c0_154 = arith.constant 0 : index
      %c0_155 = arith.constant 0 : index
      %325 = vector.load %arg12[%c0_154, %c0_155] : memref<1x32xf32, #tpu.memory_space<vmem>>, vector<1x32xf32>
      %326 = vector.broadcast %325 : vector<1x32xf32> to vector<8x32xf32>
      %327 = arith.addf %324, %326 : vector<8x32xf32>
      %328 = arith.truncf %327 : vector<8x32xf32> to vector<8x32xbf16>
      %c0_156 = arith.constant 0 : index
      %c0_157 = arith.constant 0 : index
      %329 = vector.load %arg29[%c0_156, %c0_157] : memref<8x32xbf16, #tpu.memory_space<vmem>>, vector<8x32xbf16>
      tpu.vector_store %arg29[%c0_156, %c0_157], %328 {strides = array<i32>} : memref<8x32xbf16, #tpu.memory_space<vmem>>, vector<8x32xbf16>,
    } else {
    }
    %c8_i32 = arith.constant 8 : i32
    %3 = arith.muli %arg1, %c8_i32 : i32
    %4 = tpu.assume_multiple %3, 8 : i32
    %c0 = arith.constant 0 : index
    %5 = arith.index_cast %4 : i32 to index
    %c0_1 = arith.constant 0 : index
    %6 = vector.load %arg2[%c0, %5, %c0_1] : memref<1x8x32xf32, #tpu.memory_space<vmem>>, vector<1x8x32xf32>
    %7 = vector.shape_cast %6 : vector<1x8x32xf32> to vector<8x32xf32>
    %c0_2 = arith.constant 0 : index
    %8 = arith.index_cast %4 : i32 to index
    %c0_3 = arith.constant 0 : index
    %9 = vector.load %arg3[%c0_2, %8, %c0_3] : memref<1x8x32xf32, #tpu.memory_space<vmem>>, vector<1x8x32xf32>
    %10 = vector.shape_cast %9 : vector<1x8x32xf32> to vector<8x32xf32>
    %c0_4 = arith.constant 0 : index
    %c0_5 = arith.constant 0 : index
    %11 = vector.load %arg4[%c0_4, %c0_5] : memref<8x8xbf16, #tpu.memory_space<vmem>>, vector<8x8xbf16>
    %12 = arith.extf %11 : vector<8x8xbf16> to vector<8x8xf32>
    %13 = arith.truncf %7 : vector<8x32xf32> to vector<8x32xbf16>
    %c0_6 = arith.constant 0 : index
    %c0_7 = arith.constant 0 : index
    %14 = vector.load %arg5[%c0_6, %c0_7] : memref<32x64xbf16, #tpu.memory_space<vmem>>, vector<32x64xbf16>
    %cst = arith.constant dense<0.000000e+00> : vector<8x64xf32>
    %15 = tpu.matmul %13, %14, %cst {dimension_numbers = #tpu.dot_dimension_numbers<[1], [0], [0], [1], [0, 0, 1, 1], [], []>} : vector<8x32xbf16>, vector<32x64xbf16>, vector<8x64xf32> -> vector<8x64xf32>
    %c0_8 = arith.constant 0 : index
    %c0_9 = arith.constant 0 : index
    %16 = vector.load %arg6[%c0_8, %c0_9] : memref<1x64xf32, #tpu.memory_space<vmem>>, vector<1x64xf32>
    %17 = vector.broadcast %16 : vector<1x64xf32> to vector<8x64xf32>
    %18 = arith.addf %15, %17 : vector<8x64xf32>
    %19 = arith.truncf %18 : vector<8x64xf32> to vector<8x64xbf16>
    %cst_10 = arith.constant 0.000000e+00 : f32
    %20 = vector.broadcast %cst_10 : f32 to vector<8x8xf32>
    %cst_11 = arith.constant 0.000000e+00 : f32
    %21 = vector.broadcast %cst_11 : f32 to vector<8x8xf32>
    %cst_12 = arith.constant 0.000000e+00 : f32
    %22 = vector.broadcast %cst_12 : f32 to vector<8x32xf32>
    %23 = vector.extract_strided_slice %19 {offsets = [0, 0], sizes = [8, 8], strides = [1, 1]} : vector<8x64xbf16> to vector<8x8xbf16>
    %24 = vector.extract_strided_slice %19 {offsets = [0, 32], sizes = [8, 8], strides = [1, 1]} : vector<8x64xbf16> to vector<8x8xbf16>
    %c0_13 = arith.constant 0 : index
    %c0_14 = arith.constant 0 : index
    %25 = vector.load %arg28[%c0_13, %c0_14] : memref<8x64xbf16, #tpu.memory_space<vmem>>, vector<8x8xbf16>
    %c0_15 = arith.constant 0 : index
    %c32 = arith.constant 32 : index
    %26 = vector.load %arg28[%c0_15, %c32] : memref<8x64xbf16, #tpu.memory_space<vmem>>, vector<8x8xbf16>
    %c0_16 = arith.constant 0 : index
    %c0_17 = arith.constant 0 : index
    %27 = vector.load %arg29[%c0_16, %c0_17] : memref<8x32xbf16, #tpu.memory_space<vmem>>, vector<8x8xbf16>
    %cst_18 = arith.constant dense<0.000000e+00> : vector<8x8xf32>
    %28 = tpu.matmul %23, %25, %cst_18 {dimension_numbers = #tpu.dot_dimension_numbers<[1], [1], [0], [0], [0, 0, 1, 0], [], []>} : vector<8x8xbf16>, vector<8x8xbf16>, vector<8x8xf32> -> vector<8x8xf32>
    %29 = arith.addf %28, %12 : vector<8x8xf32>
    %cst_19 = arith.constant dense<0xFF800000> : vector<8xf32>
    %30 = vector.multi_reduction <maximumf>, %29, %cst_19 [1] : vector<8x8xf32> to vector<8xf32>
    %31 = vector.shape_cast %30 : vector<8xf32> to vector<8x1xf32>
    %32 = vector.broadcast %31 : vector<8x1xf32> to vector<8x8xf32>
    %33 = arith.subf %29, %32 : vector<8x8xf32>
    %34 = math.exp %33 : vector<8x8xf32>
    %cst_20 = arith.constant dense<0.000000e+00> : vector<8xf32>
    %35 = vector.multi_reduction <add>, %34, %cst_20 [1] : vector<8x8xf32> to vector<8xf32>
    %36 = vector.shape_cast %35 : vector<8xf32> to vector<8x1xf32>
    %37 = tpu.reciprocal %36 {approx = true} : vector<8x1xf32> -> vector<8x1xf32>
    %38 = vector.broadcast %37 : vector<8x1xf32> to vector<8x8xf32>
    %39 = arith.mulf %34, %38 : vector<8x8xf32>
    %40 = arith.addf %20, %39 : vector<8x8xf32>
    %41 = arith.truncf %39 : vector<8x8xf32> to vector<8x8xbf16>
    %cst_21 = arith.constant dense<0.000000e+00> : vector<8x8xf32>
    %42 = tpu.matmul %41, %26, %cst_21 {dimension_numbers = #tpu.dot_dimension_numbers<[1], [0], [0], [1], [0, 0, 1, 1], [], []>} : vector<8x8xbf16>, vector<8x8xbf16>, vector<8x8xf32> -> vector<8x8xf32>
    %43 = arith.truncf %42 : vector<8x8xf32> to vector<8x8xbf16>
    %c0_22 = arith.constant 0 : index
    %c0_23 = arith.constant 0 : index
    %44 = vector.load %arg9[%c0_22, %c0_23] : memref<32x32xbf16, #tpu.memory_space<vmem>>, vector<8x32xbf16>
    %cst_24 = arith.constant dense<0.000000e+00> : vector<8x32xf32>
    %45 = tpu.matmul %43, %44, %cst_24 {dimension_numbers = #tpu.dot_dimension_numbers<[1], [0], [0], [1], [0, 0, 1, 1], [], []>} : vector<8x8xbf16>, vector<8x32xbf16>, vector<8x32xf32> -> vector<8x32xf32>
    %46 = arith.addf %22, %45 : vector<8x32xf32>
    %cst_25 = arith.constant dense<0.000000e+00> : vector<8x8xf32>
    %47 = tpu.matmul %24, %27, %cst_25 {dimension_numbers = #tpu.dot_dimension_numbers<[1], [1], [0], [0], [0, 0, 1, 0], [], []>} : vector<8x8xbf16>, vector<8x8xbf16>, vector<8x8xf32> -> vector<8x8xf32>
    %48 = arith.addf %47, %12 : vector<8x8xf32>
    %cst_26 = arith.constant dense<0xFF800000> : vector<8xf32>
    %49 = vector.multi_reduction <maximumf>, %48, %cst_26 [1] : vector<8x8xf32> to vector<8xf32>
    %50 = vector.shape_cast %49 : vector<8xf32> to vector<8x1xf32>
    %51 = vector.broadcast %50 : vector<8x1xf32> to vector<8x8xf32>
    %52 = arith.subf %48, %51 : vector<8x8xf32>
    %53 = math.exp %52 : vector<8x8xf32>
    %cst_27 = arith.constant dense<0.000000e+00> : vector<8xf32>
    %54 = vector.multi_reduction <add>, %53, %cst_27 [1] : vector<8x8xf32> to vector<8xf32>
    %55 = vector.shape_cast %54 : vector<8xf32> to vector<8x1xf32>
    %56 = tpu.reciprocal %55 {approx = true} : vector<8x1xf32> -> vector<8x1xf32>
    %57 = vector.broadcast %56 : vector<8x1xf32> to vector<8x8xf32>
    %58 = arith.mulf %53, %57 : vector<8x8xf32>
    %59 = arith.addf %21, %58 : vector<8x8xf32>
    %60 = vector.extract_strided_slice %19 {offsets = [0, 8], sizes = [8, 8], strides = [1, 1]} : vector<8x64xbf16> to vector<8x8xbf16>
    %61 = vector.extract_strided_slice %19 {offsets = [0, 40], sizes = [8, 8], strides = [1, 1]} : vector<8x64xbf16> to vector<8x8xbf16>
    %c0_28 = arith.constant 0 : index
    %c8 = arith.constant 8 : index
    %62 = vector.load %arg28[%c0_28, %c8] : memref<8x64xbf16, #tpu.memory_space<vmem>>, vector<8x8xbf16>
    %c0_29 = arith.constant 0 : index
    %c40 = arith.constant 40 : index
    %63 = vector.load %arg28[%c0_29, %c40] : memref<8x64xbf16, #tpu.memory_space<vmem>>, vector<8x8xbf16>
    %c0_30 = arith.constant 0 : index
    %c8_31 = arith.constant 8 : index
    %64 = vector.load %arg29[%c0_30, %c8_31] : memref<8x32xbf16, #tpu.memory_space<vmem>>, vector<8x8xbf16>
    %cst_32 = arith.constant dense<0.000000e+00> : vector<8x8xf32>
    %65 = tpu.matmul %60, %62, %cst_32 {dimension_numbers = #tpu.dot_dimension_numbers<[1], [1], [0], [0], [0, 0, 1, 0], [], []>} : vector<8x8xbf16>, vector<8x8xbf16>, vector<8x8xf32> -> vector<8x8xf32>
    %66 = arith.addf %65, %12 : vector<8x8xf32>
    %cst_33 = arith.constant dense<0xFF800000> : vector<8xf32>
    %67 = vector.multi_reduction <maximumf>, %66, %cst_33 [1] : vector<8x8xf32> to vector<8xf32>
    %68 = vector.shape_cast %67 : vector<8xf32> to vector<8x1xf32>
    %69 = vector.broadcast %68 : vector<8x1xf32> to vector<8x8xf32>
    %70 = arith.subf %66, %69 : vector<8x8xf32>
    %71 = math.exp %70 : vector<8x8xf32>
    %cst_34 = arith.constant dense<0.000000e+00> : vector<8xf32>
    %72 = vector.multi_reduction <add>, %71, %cst_34 [1] : vector<8x8xf32> to vector<8xf32>
    %73 = vector.shape_cast %72 : vector<8xf32> to vector<8x1xf32>
    %74 = tpu.reciprocal %73 {approx = true} : vector<8x1xf32> -> vector<8x1xf32>
    %75 = vector.broadcast %74 : vector<8x1xf32> to vector<8x8xf32>
    %76 = arith.mulf %71, %75 : vector<8x8xf32>
    %77 = arith.addf %40, %76 : vector<8x8xf32>
    %78 = arith.truncf %76 : vector<8x8xf32> to vector<8x8xbf16>
    %cst_35 = arith.constant dense<0.000000e+00> : vector<8x8xf32>
    %79 = tpu.matmul %78, %63, %cst_35 {dimension_numbers = #tpu.dot_dimension_numbers<[1], [0], [0], [1], [0, 0, 1, 1], [], []>} : vector<8x8xbf16>, vector<8x8xbf16>, vector<8x8xf32> -> vector<8x8xf32>
    %80 = arith.truncf %79 : vector<8x8xf32> to vector<8x8xbf16>
    %c8_36 = arith.constant 8 : index
    %c0_37 = arith.constant 0 : index
    %81 = vector.load %arg9[%c8_36, %c0_37] : memref<32x32xbf16, #tpu.memory_space<vmem>>, vector<8x32xbf16>
    %cst_38 = arith.constant dense<0.000000e+00> : vector<8x32xf32>
    %82 = tpu.matmul %80, %81, %cst_38 {dimension_numbers = #tpu.dot_dimension_numbers<[1], [0], [0], [1], [0, 0, 1, 1], [], []>} : vector<8x8xbf16>, vector<8x32xbf16>, vector<8x32xf32> -> vector<8x32xf32>
    %83 = arith.addf %46, %82 : vector<8x32xf32>
    %cst_39 = arith.constant dense<0.000000e+00> : vector<8x8xf32>
    %84 = tpu.matmul %61, %64, %cst_39 {dimension_numbers = #tpu.dot_dimension_numbers<[1], [1], [0], [0], [0, 0, 1, 0], [], []>} : vector<8x8xbf16>, vector<8x8xbf16>, vector<8x8xf32> -> vector<8x8xf32>
    %85 = arith.addf %84, %12 : vector<8x8xf32>
    %cst_40 = arith.constant dense<0xFF800000> : vector<8xf32>
    %86 = vector.multi_reduction <maximumf>, %85, %cst_40 [1] : vector<8x8xf32> to vector<8xf32>
    %87 = vector.shape_cast %86 : vector<8xf32> to vector<8x1xf32>
    %88 = vector.broadcast %87 : vector<8x1xf32> to vector<8x8xf32>
    %89 = arith.subf %85, %88 : vector<8x8xf32>
    %90 = math.exp %89 : vector<8x8xf32>
    %cst_41 = arith.constant dense<0.000000e+00> : vector<8xf32>
    %91 = vector.multi_reduction <add>, %90, %cst_41 [1] : vector<8x8xf32> to vector<8xf32>
    %92 = vector.shape_cast %91 : vector<8xf32> to vector<8x1xf32>
    %93 = tpu.reciprocal %92 {approx = true} : vector<8x1xf32> -> vector<8x1xf32>
    %94 = vector.broadcast %93 : vector<8x1xf32> to vector<8x8xf32>
    %95 = arith.mulf %90, %94 : vector<8x8xf32>
    %96 = arith.addf %59, %95 : vector<8x8xf32>
    %97 = vector.extract_strided_slice %19 {offsets = [0, 16], sizes = [8, 8], strides = [1, 1]} : vector<8x64xbf16> to vector<8x8xbf16>
    %98 = vector.extract_strided_slice %19 {offsets = [0, 48], sizes = [8, 8], strides = [1, 1]} : vector<8x64xbf16> to vector<8x8xbf16>
    %c0_42 = arith.constant 0 : index
    %c16 = arith.constant 16 : index
    %99 = vector.load %arg28[%c0_42, %c16] : memref<8x64xbf16, #tpu.memory_space<vmem>>, vector<8x8xbf16>
    %c0_43 = arith.constant 0 : index
    %c48 = arith.constant 48 : index
    %100 = vector.load %arg28[%c0_43, %c48] : memref<8x64xbf16, #tpu.memory_space<vmem>>, vector<8x8xbf16>
    %c0_44 = arith.constant 0 : index
    %c16_45 = arith.constant 16 : index
    %101 = vector.load %arg29[%c0_44, %c16_45] : memref<8x32xbf16, #tpu.memory_space<vmem>>, vector<8x8xbf16>
    %cst_46 = arith.constant dense<0.000000e+00> : vector<8x8xf32>
    %102 = tpu.matmul %97, %99, %cst_46 {dimension_numbers = #tpu.dot_dimension_numbers<[1], [1], [0], [0], [0, 0, 1, 0], [], []>} : vector<8x8xbf16>, vector<8x8xbf16>, vector<8x8xf32> -> vector<8x8xf32>
    %103 = arith.addf %102, %12 : vector<8x8xf32>
    %cst_47 = arith.constant dense<0xFF800000> : vector<8xf32>
    %104 = vector.multi_reduction <maximumf>, %103, %cst_47 [1] : vector<8x8xf32> to vector<8xf32>
    %105 = vector.shape_cast %104 : vector<8xf32> to vector<8x1xf32>
    %106 = vector.broadcast %105 : vector<8x1xf32> to vector<8x8xf32>
    %107 = arith.subf %103, %106 : vector<8x8xf32>
    %108 = math.exp %107 : vector<8x8xf32>
    %cst_48 = arith.constant dense<0.000000e+00> : vector<8xf32>
    %109 = vector.multi_reduction <add>, %108, %cst_48 [1] : vector<8x8xf32> to vector<8xf32>
    %110 = vector.shape_cast %109 : vector<8xf32> to vector<8x1xf32>
    %111 = tpu.reciprocal %110 {approx = true} : vector<8x1xf32> -> vector<8x1xf32>
    %112 = vector.broadcast %111 : vector<8x1xf32> to vector<8x8xf32>
    %113 = arith.mulf %108, %112 : vector<8x8xf32>
    %114 = arith.addf %77, %113 : vector<8x8xf32>
    %115 = arith.truncf %113 : vector<8x8xf32> to vector<8x8xbf16>
    %cst_49 = arith.constant dense<0.000000e+00> : vector<8x8xf32>
    %116 = tpu.matmul %115, %100, %cst_49 {dimension_numbers = #tpu.dot_dimension_numbers<[1], [0], [0], [1], [0, 0, 1, 1], [], []>} : vector<8x8xbf16>, vector<8x8xbf16>, vector<8x8xf32> -> vector<8x8xf32>
    %117 = arith.truncf %116 : vector<8x8xf32> to vector<8x8xbf16>
    %c16_50 = arith.constant 16 : index
    %c0_51 = arith.constant 0 : index
    %118 = vector.load %arg9[%c16_50, %c0_51] : memref<32x32xbf16, #tpu.memory_space<vmem>>, vector<8x32xbf16>
    %cst_52 = arith.constant dense<0.000000e+00> : vector<8x32xf32>
    %119 = tpu.matmul %117, %118, %cst_52 {dimension_numbers = #tpu.dot_dimension_numbers<[1], [0], [0], [1], [0, 0, 1, 1], [], []>} : vector<8x8xbf16>, vector<8x32xbf16>, vector<8x32xf32> -> vector<8x32xf32>
    %120 = arith.addf %83, %119 : vector<8x32xf32>
    %cst_53 = arith.constant dense<0.000000e+00> : vector<8x8xf32>
    %121 = tpu.matmul %98, %101, %cst_53 {dimension_numbers = #tpu.dot_dimension_numbers<[1], [1], [0], [0], [0, 0, 1, 0], [], []>} : vector<8x8xbf16>, vector<8x8xbf16>, vector<8x8xf32> -> vector<8x8xf32>
    %122 = arith.addf %121, %12 : vector<8x8xf32>
    %cst_54 = arith.constant dense<0xFF800000> : vector<8xf32>
    %123 = vector.multi_reduction <maximumf>, %122, %cst_54 [1] : vector<8x8xf32> to vector<8xf32>
    %124 = vector.shape_cast %123 : vector<8xf32> to vector<8x1xf32>
    %125 = vector.broadcast %124 : vector<8x1xf32> to vector<8x8xf32>
    %126 = arith.subf %122, %125 : vector<8x8xf32>
    %127 = math.exp %126 : vector<8x8xf32>
    %cst_55 = arith.constant dense<0.000000e+00> : vector<8xf32>
    %128 = vector.multi_reduction <add>, %127, %cst_55 [1] : vector<8x8xf32> to vector<8xf32>
    %129 = vector.shape_cast %128 : vector<8xf32> to vector<8x1xf32>
    %130 = tpu.reciprocal %129 {approx = true} : vector<8x1xf32> -> vector<8x1xf32>
    %131 = vector.broadcast %130 : vector<8x1xf32> to vector<8x8xf32>
    %132 = arith.mulf %127, %131 : vector<8x8xf32>
    %133 = arith.addf %96, %132 : vector<8x8xf32>
    %134 = vector.extract_strided_slice %19 {offsets = [0, 24], sizes = [8, 8], strides = [1, 1]} : vector<8x64xbf16> to vector<8x8xbf16>
    %135 = vector.extract_strided_slice %19 {offsets = [0, 56], sizes = [8, 8], strides = [1, 1]} : vector<8x64xbf16> to vector<8x8xbf16>
    %c0_56 = arith.constant 0 : index
    %c24 = arith.constant 24 : index
    %136 = vector.load %arg28[%c0_56, %c24] : memref<8x64xbf16, #tpu.memory_space<vmem>>, vector<8x8xbf16>
    %c0_57 = arith.constant 0 : index
    %c56 = arith.constant 56 : index
    %137 = vector.load %arg28[%c0_57, %c56] : memref<8x64xbf16, #tpu.memory_space<vmem>>, vector<8x8xbf16>
    %c0_58 = arith.constant 0 : index
    %c24_59 = arith.constant 24 : index
    %138 = vector.load %arg29[%c0_58, %c24_59] : memref<8x32xbf16, #tpu.memory_space<vmem>>, vector<8x8xbf16>
    %cst_60 = arith.constant dense<0.000000e+00> : vector<8x8xf32>
    %139 = tpu.matmul %134, %136, %cst_60 {dimension_numbers = #tpu.dot_dimension_numbers<[1], [1], [0], [0], [0, 0, 1, 0], [], []>} : vector<8x8xbf16>, vector<8x8xbf16>, vector<8x8xf32> -> vector<8x8xf32>
    %140 = arith.addf %139, %12 : vector<8x8xf32>
    %cst_61 = arith.constant dense<0xFF800000> : vector<8xf32>
    %141 = vector.multi_reduction <maximumf>, %140, %cst_61 [1] : vector<8x8xf32> to vector<8xf32>
    %142 = vector.shape_cast %141 : vector<8xf32> to vector<8x1xf32>
    %143 = vector.broadcast %142 : vector<8x1xf32> to vector<8x8xf32>
    %144 = arith.subf %140, %143 : vector<8x8xf32>
    %145 = math.exp %144 : vector<8x8xf32>
    %cst_62 = arith.constant dense<0.000000e+00> : vector<8xf32>
    %146 = vector.multi_reduction <add>, %145, %cst_62 [1] : vector<8x8xf32> to vector<8xf32>
    %147 = vector.shape_cast %146 : vector<8xf32> to vector<8x1xf32>
    %148 = tpu.reciprocal %147 {approx = true} : vector<8x1xf32> -> vector<8x1xf32>
    %149 = vector.broadcast %148 : vector<8x1xf32> to vector<8x8xf32>
    %150 = arith.mulf %145, %149 : vector<8x8xf32>
    %151 = arith.addf %114, %150 : vector<8x8xf32>
    %152 = arith.truncf %150 : vector<8x8xf32> to vector<8x8xbf16>
    %cst_63 = arith.constant dense<0.000000e+00> : vector<8x8xf32>
    %153 = tpu.matmul %152, %137, %cst_63 {dimension_numbers = #tpu.dot_dimension_numbers<[1], [0], [0], [1], [0, 0, 1, 1], [], []>} : vector<8x8xbf16>, vector<8x8xbf16>, vector<8x8xf32> -> vector<8x8xf32>
    %154 = arith.truncf %153 : vector<8x8xf32> to vector<8x8xbf16>
    %c24_64 = arith.constant 24 : index
    %c0_65 = arith.constant 0 : index
    %155 = vector.load %arg9[%c24_64, %c0_65] : memref<32x32xbf16, #tpu.memory_space<vmem>>, vector<8x32xbf16>
    %cst_66 = arith.constant dense<0.000000e+00> : vector<8x32xf32>
    %156 = tpu.matmul %154, %155, %cst_66 {dimension_numbers = #tpu.dot_dimension_numbers<[1], [0], [0], [1], [0, 0, 1, 1], [], []>} : vector<8x8xbf16>, vector<8x32xbf16>, vector<8x32xf32> -> vector<8x32xf32>
    %157 = arith.addf %120, %156 : vector<8x32xf32>
    %cst_67 = arith.constant dense<0.000000e+00> : vector<8x8xf32>
    %158 = tpu.matmul %135, %138, %cst_67 {dimension_numbers = #tpu.dot_dimension_numbers<[1], [1], [0], [0], [0, 0, 1, 0], [], []>} : vector<8x8xbf16>, vector<8x8xbf16>, vector<8x8xf32> -> vector<8x8xf32>
    %159 = arith.addf %158, %12 : vector<8x8xf32>
    %cst_68 = arith.constant dense<0xFF800000> : vector<8xf32>
    %160 = vector.multi_reduction <maximumf>, %159, %cst_68 [1] : vector<8x8xf32> to vector<8xf32>
    %161 = vector.shape_cast %160 : vector<8xf32> to vector<8x1xf32>
    %162 = vector.broadcast %161 : vector<8x1xf32> to vector<8x8xf32>
    %163 = arith.subf %159, %162 : vector<8x8xf32>
    %164 = math.exp %163 : vector<8x8xf32>
    %cst_69 = arith.constant dense<0.000000e+00> : vector<8xf32>
    %165 = vector.multi_reduction <add>, %164, %cst_69 [1] : vector<8x8xf32> to vector<8xf32>
    %166 = vector.shape_cast %165 : vector<8xf32> to vector<8x1xf32>
    %167 = tpu.reciprocal %166 {approx = true} : vector<8x1xf32> -> vector<8x1xf32>
    %168 = vector.broadcast %167 : vector<8x1xf32> to vector<8x8xf32>
    %169 = arith.mulf %164, %168 : vector<8x8xf32>
    %170 = arith.addf %133, %169 : vector<8x8xf32>
    %cst_70 = arith.constant 2.500000e-01 : f32
    %171 = vector.broadcast %cst_70 : f32 to vector<8x8xf32>
    %172 = arith.mulf %151, %171 : vector<8x8xf32>
    %cst_71 = arith.constant 2.500000e-01 : f32
    %173 = vector.broadcast %cst_71 : f32 to vector<8x8xf32>
    %174 = arith.mulf %170, %173 : vector<8x8xf32>
    %c0_72 = arith.constant 0 : index
    %c0_73 = arith.constant 0 : index
    %175 = vector.load %arg10[%c0_72, %c0_73] : memref<1x32xf32, #tpu.memory_space<vmem>>, vector<1x32xf32>
    %176 = vector.broadcast %175 : vector<1x32xf32> to vector<8x32xf32>
    %177 = arith.addf %157, %176 : vector<8x32xf32>
    %178 = arith.truncf %10 : vector<8x32xf32> to vector<8x32xbf16>
    %c0_74 = arith.constant 0 : index
    %c0_75 = arith.constant 0 : index
    %179 = vector.load %arg13[%c0_74, %c0_75] : memref<32x32xbf16, #tpu.memory_space<vmem>>, vector<32x32xbf16>
    %cst_76 = arith.constant dense<0.000000e+00> : vector<8x32xf32>
    %180 = tpu.matmul %178, %179, %cst_76 {dimension_numbers = #tpu.dot_dimension_numbers<[1], [0], [0], [1], [0, 0, 1, 1], [], []>} : vector<8x32xbf16>, vector<32x32xbf16>, vector<8x32xf32> -> vector<8x32xf32>
    %c0_77 = arith.constant 0 : index
    %c0_78 = arith.constant 0 : index
    %181 = vector.load %arg14[%c0_77, %c0_78] : memref<1x32xf32, #tpu.memory_space<vmem>>, vector<1x32xf32>
    %182 = vector.broadcast %181 : vector<1x32xf32> to vector<8x32xf32>
    %183 = arith.addf %180, %182 : vector<8x32xf32>
    %184 = arith.addf %7, %177 : vector<8x32xf32>
    %c0_79 = arith.constant 0 : index
    %c0_80 = arith.constant 0 : index
    %185 = vector.load %arg19[%c0_79, %c0_80] : memref<1x32xf32, #tpu.memory_space<vmem>>, vector<1x32xf32>
    %c0_81 = arith.constant 0 : index
    %c0_82 = arith.constant 0 : index
    %186 = vector.load %arg20[%c0_81, %c0_82] : memref<1x32xf32, #tpu.memory_space<vmem>>, vector<1x32xf32>
    %cst_83 = arith.constant dense<0.000000e+00> : vector<8xf32>
    %187 = vector.multi_reduction <add>, %184, %cst_83 [1] : vector<8x32xf32> to vector<8xf32>
    %188 = vector.shape_cast %187 : vector<8xf32> to vector<8x1xf32>
    %cst_84 = arith.constant 3.200000e+01 : f32
    %189 = vector.broadcast %cst_84 : f32 to vector<8x1xf32>
    %190 = arith.divf %188, %189 : vector<8x1xf32>
    %191 = vector.broadcast %190 : vector<8x1xf32> to vector<8x32xf32>
    %192 = arith.subf %184, %191 : vector<8x32xf32>
    %193 = arith.mulf %192, %192 : vector<8x32xf32>
    %cst_85 = arith.constant dense<0.000000e+00> : vector<8xf32>
    %194 = vector.multi_reduction <add>, %193, %cst_85 [1] : vector<8x32xf32> to vector<8xf32>
    %195 = vector.shape_cast %194 : vector<8xf32> to vector<8x1xf32>
    %cst_86 = arith.constant 3.200000e+01 : f32
    %196 = vector.broadcast %cst_86 : f32 to vector<8x1xf32>
    %197 = arith.divf %195, %196 : vector<8x1xf32>
    %198 = vector.broadcast %190 : vector<8x1xf32> to vector<8x32xf32>
    %199 = arith.subf %184, %198 : vector<8x32xf32>
    %cst_87 = arith.constant 9.99999971E-10 : f32
    %200 = vector.broadcast %cst_87 : f32 to vector<8x1xf32>
    %201 = arith.addf %197, %200 : vector<8x1xf32>
    %202 = math.sqrt %201 : vector<8x1xf32>
    %203 = vector.broadcast %202 : vector<8x1xf32> to vector<8x32xf32>
    %204 = arith.divf %199, %203 : vector<8x32xf32>
    %205 = vector.broadcast %185 : vector<1x32xf32> to vector<8x32xf32>
    %206 = arith.mulf %204, %205 : vector<8x32xf32>
    %207 = vector.broadcast %186 : vector<1x32xf32> to vector<8x32xf32>
    %208 = arith.addf %206, %207 : vector<8x32xf32>
    %209 = arith.truncf %208 : vector<8x32xf32> to vector<8x32xbf16>
    %c0_88 = arith.constant 0 : index
    %c0_89 = arith.constant 0 : index
    %210 = vector.load %arg15[%c0_88, %c0_89] : memref<32x64xbf16, #tpu.memory_space<vmem>>, vector<32x64xbf16>
    %cst_90 = arith.constant dense<0.000000e+00> : vector<8x64xf32>
    %211 = tpu.matmul %209, %210, %cst_90 {dimension_numbers = #tpu.dot_dimension_numbers<[1], [0], [0], [1], [0, 0, 1, 1], [], []>} : vector<8x32xbf16>, vector<32x64xbf16>, vector<8x64xf32> -> vector<8x64xf32>
    %c0_91 = arith.constant 0 : index
    %c0_92 = arith.constant 0 : index
    %212 = vector.load %arg16[%c0_91, %c0_92] : memref<1x64xf32, #tpu.memory_space<vmem>>, vector<1x64xf32>
    %213 = vector.broadcast %212 : vector<1x64xf32> to vector<8x64xf32>
    %214 = arith.addf %211, %213 : vector<8x64xf32>
    %cst_93 = arith.constant 5.000000e-01 : f32
    %215 = vector.broadcast %cst_93 : f32 to vector<8x64xf32>
    %216 = arith.mulf %215, %214 : vector<8x64xf32>
    %cst_94 = arith.constant 0.707106769 : f32
    %217 = vector.broadcast %cst_94 : f32 to vector<8x64xf32>
    %218 = arith.mulf %214, %217 : vector<8x64xf32>
    %219 = math.absf %218 : vector<8x64xf32>
    %cst_95 = arith.constant 0.327591091 : f32
    %220 = vector.broadcast %cst_95 : f32 to vector<8x64xf32>
    %221 = arith.mulf %220, %219 : vector<8x64xf32>
    %cst_96 = arith.constant 1.000000e+00 : f32
    %222 = vector.broadcast %cst_96 : f32 to vector<8x64xf32>
    %223 = arith.addf %222, %221 : vector<8x64xf32>
    %cst_97 = arith.constant 1.000000e+00 : f32
    %224 = vector.broadcast %cst_97 : f32 to vector<8x64xf32>
    %225 = arith.divf %224, %223 : vector<8x64xf32>
    %cst_98 = arith.constant 1.06140542 : f32
    %226 = vector.broadcast %cst_98 : f32 to vector<8x64xf32>
    %227 = arith.mulf %226, %225 : vector<8x64xf32>
    %cst_99 = arith.constant -1.45315206 : f32
    %228 = vector.broadcast %cst_99 : f32 to vector<8x64xf32>
    %229 = arith.addf %227, %228 : vector<8x64xf32>
    %230 = arith.mulf %229, %225 : vector<8x64xf32>
    %cst_100 = arith.constant 1.42141378 : f32
    %231 = vector.broadcast %cst_100 : f32 to vector<8x64xf32>
    %232 = arith.addf %230, %231 : vector<8x64xf32>
    %233 = arith.mulf %232, %225 : vector<8x64xf32>
    %cst_101 = arith.constant -0.284496725 : f32
    %234 = vector.broadcast %cst_101 : f32 to vector<8x64xf32>
    %235 = arith.addf %233, %234 : vector<8x64xf32>
    %236 = arith.mulf %235, %225 : vector<8x64xf32>
    %cst_102 = arith.constant 0.254829586 : f32
    %237 = vector.broadcast %cst_102 : f32 to vector<8x64xf32>
    %238 = arith.addf %236, %237 : vector<8x64xf32>
    %239 = arith.mulf %238, %225 : vector<8x64xf32>
    %cst_103 = arith.constant 0.000000e+00 : f32
    %240 = vector.broadcast %cst_103 : f32 to vector<8x64xf32>
    %241 = arith.subf %240, %219 : vector<8x64xf32>
    %242 = arith.mulf %241, %219 : vector<8x64xf32>
    %243 = math.exp %242 : vector<8x64xf32>
    %244 = arith.mulf %239, %243 : vector<8x64xf32>
    %cst_104 = arith.constant 1.000000e+00 : f32
    %245 = vector.broadcast %cst_104 : f32 to vector<8x64xf32>
    %246 = arith.subf %245, %244 : vector<8x64xf32>
    %cst_105 = arith.constant 0.000000e+00 : f32
    %247 = vector.broadcast %cst_105 : f32 to vector<8x64xf32>
    %248 = arith.cmpf olt, %218, %247 : vector<8x64xf32>
    %cst_106 = arith.constant 0.000000e+00 : f32
    %249 = vector.broadcast %cst_106 : f32 to vector<8x64xf32>
    %250 = arith.subf %249, %246 : vector<8x64xf32>
    %251 = arith.select %248, %250, %246 : vector<8x64xi1>, vector<8x64xf32>
    %cst_107 = arith.constant 1.000000e+00 : f32
    %252 = vector.broadcast %cst_107 : f32 to vector<8x64xf32>
    %253 = arith.addf %252, %251 : vector<8x64xf32>
    %254 = arith.mulf %216, %253 : vector<8x64xf32>
    %255 = arith.truncf %254 : vector<8x64xf32> to vector<8x64xbf16>
    %c0_108 = arith.constant 0 : index
    %c0_109 = arith.constant 0 : index
    %256 = vector.load %arg17[%c0_108, %c0_109] : memref<64x32xbf16, #tpu.memory_space<vmem>>, vector<64x32xbf16>
    %cst_110 = arith.constant dense<0.000000e+00> : vector<8x32xf32>
    %257 = tpu.matmul %255, %256, %cst_110 {dimension_numbers = #tpu.dot_dimension_numbers<[1], [0], [0], [1], [0, 0, 1, 1], [], []>} : vector<8x64xbf16>, vector<64x32xbf16>, vector<8x32xf32> -> vector<8x32xf32>
    %c0_111 = arith.constant 0 : index
    %c0_112 = arith.constant 0 : index
    %258 = vector.load %arg18[%c0_111, %c0_112] : memref<1x32xf32, #tpu.memory_space<vmem>>, vector<1x32xf32>
    %259 = vector.broadcast %258 : vector<1x32xf32> to vector<8x32xf32>
    %260 = arith.addf %257, %259 : vector<8x32xf32>
    %261 = arith.addf %208, %260 : vector<8x32xf32>
    %c0_113 = arith.constant 0 : index
    %c0_114 = arith.constant 0 : index
    %262 = vector.load %arg21[%c0_113, %c0_114] : memref<1x32xf32, #tpu.memory_space<vmem>>, vector<1x32xf32>
    %c0_115 = arith.constant 0 : index
    %c0_116 = arith.constant 0 : index
    %263 = vector.load %arg22[%c0_115, %c0_116] : memref<1x32xf32, #tpu.memory_space<vmem>>, vector<1x32xf32>
    %cst_117 = arith.constant dense<0.000000e+00> : vector<8xf32>
    %264 = vector.multi_reduction <add>, %261, %cst_117 [1] : vector<8x32xf32> to vector<8xf32>
    %265 = vector.shape_cast %264 : vector<8xf32> to vector<8x1xf32>
    %cst_118 = arith.constant 3.200000e+01 : f32
    %266 = vector.broadcast %cst_118 : f32 to vector<8x1xf32>
    %267 = arith.divf %265, %266 : vector<8x1xf32>
    %268 = vector.broadcast %267 : vector<8x1xf32> to vector<8x32xf32>
    %269 = arith.subf %261, %268 : vector<8x32xf32>
    %270 = arith.mulf %269, %269 : vector<8x32xf32>
    %cst_119 = arith.constant dense<0.000000e+00> : vector<8xf32>
    %271 = vector.multi_reduction <add>, %270, %cst_119 [1] : vector<8x32xf32> to vector<8xf32>
    %272 = vector.shape_cast %271 : vector<8xf32> to vector<8x1xf32>
    %cst_120 = arith.constant 3.200000e+01 : f32
    %273 = vector.broadcast %cst_120 : f32 to vector<8x1xf32>
    %274 = arith.divf %272, %273 : vector<8x1xf32>
    %275 = vector.broadcast %267 : vector<8x1xf32> to vector<8x32xf32>
    %276 = arith.subf %261, %275 : vector<8x32xf32>
    %cst_121 = arith.constant 9.99999971E-10 : f32
    %277 = vector.broadcast %cst_121 : f32 to vector<8x1xf32>
    %278 = arith.addf %274, %277 : vector<8x1xf32>
    %279 = math.sqrt %278 : vector<8x1xf32>
    %280 = vector.broadcast %279 : vector<8x1xf32> to vector<8x32xf32>
    %281 = arith.divf %276, %280 : vector<8x32xf32>
    %282 = vector.broadcast %262 : vector<1x32xf32> to vector<8x32xf32>
    %283 = arith.mulf %281, %282 : vector<8x32xf32>
    %284 = vector.broadcast %263 : vector<1x32xf32> to vector<8x32xf32>
    %285 = arith.addf %283, %284 : vector<8x32xf32>
    %286 = arith.addf %172, %174 : vector<8x8xf32>
    %cst_122 = arith.constant dense<0.000000e+00> : vector<8xf32>
    %287 = vector.multi_reduction <add>, %286, %cst_122 [1] : vector<8x8xf32> to vector<8xf32>
    %288 = vector.shape_cast %287 : vector<8xf32> to vector<8x1xf32>
    %289 = tpu.reciprocal %288 {approx = true} : vector<8x1xf32> -> vector<8x1xf32>
    %290 = vector.broadcast %289 : vector<8x1xf32> to vector<8x8xf32>
    %291 = arith.mulf %286, %290 : vector<8x8xf32>
    %c0_123 = arith.constant 0 : index
    %c0_124 = arith.constant 0 : index
    %c0_125 = arith.constant 0 : index
    %292 = vector.load %arg23[%c0_123, %c0_124, %c0_125] : memref<1x8x32xf32, #tpu.memory_space<vmem>>, vector<1x8x32xf32>
    %293 = vector.shape_cast %292 : vector<1x8x32xf32> to vector<8x32xf32>
    %294 = vector.shape_cast %285 : vector<8x32xf32> to vector<1x8x32xf32>
    tpu.vector_store %arg23[%c0_123, %c0_124, %c0_125], %294 {strides = array<i32>} : memref<1x8x32xf32, #tpu.memory_space<vmem>>, vector<1x8x32xf32>,
    %c0_126 = arith.constant 0 : index
    %c0_127 = arith.constant 0 : index
    %c0_128 = arith.constant 0 : index
    %295 = vector.load %arg24[%c0_126, %c0_127, %c0_128] : memref<1x8x32xf32, #tpu.memory_space<vmem>>, vector<1x8x32xf32>
    %296 = vector.shape_cast %295 : vector<1x8x32xf32> to vector<8x32xf32>
    %297 = vector.shape_cast %183 : vector<8x32xf32> to vector<1x8x32xf32>
    tpu.vector_store %arg24[%c0_126, %c0_127, %c0_128], %297 {strides = array<i32>} : memref<1x8x32xf32, #tpu.memory_space<vmem>>, vector<1x8x32xf32>,
    %298 = arith.truncf %291 : vector<8x8xf32> to vector<8x8xbf16>
    %c0_129 = arith.constant 0 : index
    %c0_130 = arith.constant 0 : index
    %c0_131 = arith.constant 0 : index
    %299 = vector.load %arg25[%c0_129, %c0_130, %c0_131] : memref<1x8x8xbf16, #tpu.memory_space<vmem>>, vector<1x8x8xbf16>
    %300 = vector.shape_cast %299 : vector<1x8x8xbf16> to vector<8x8xbf16>
    %301 = vector.shape_cast %298 : vector<8x8xbf16> to vector<1x8x8xbf16>
    tpu.vector_store %arg25[%c0_129, %c0_130, %c0_131], %301 {strides = array<i32>} : memref<1x8x8xbf16, #tpu.memory_space<vmem>>, vector<1x8x8xbf16>,
    %302 = arith.truncf %172 : vector<8x8xf32> to vector<8x8xbf16>
    %c0_132 = arith.constant 0 : index
    %c0_133 = arith.constant 0 : index
    %c0_134 = arith.constant 0 : index
    %303 = vector.load %arg26[%c0_132, %c0_133, %c0_134] : memref<1x8x8xbf16, #tpu.memory_space<vmem>>, vector<1x8x8xbf16>
    %304 = vector.shape_cast %303 : vector<1x8x8xbf16> to vector<8x8xbf16>
    %305 = vector.shape_cast %302 : vector<8x8xbf16> to vector<1x8x8xbf16>
    tpu.vector_store %arg26[%c0_132, %c0_133, %c0_134], %305 {strides = array<i32>} : memref<1x8x8xbf16, #tpu.memory_space<vmem>>, vector<1x8x8xbf16>,
    %306 = arith.truncf %174 : vector<8x8xf32> to vector<8x8xbf16>
    %c0_135 = arith.constant 0 : index
    %c0_136 = arith.constant 0 : index
    %c0_137 = arith.constant 0 : index
    %307 = vector.load %arg27[%c0_135, %c0_136, %c0_137] : memref<1x8x8xbf16, #tpu.memory_space<vmem>>, vector<1x8x8xbf16>
    %308 = vector.shape_cast %307 : vector<1x8x8xbf16> to vector<8x8xbf16>
    %309 = vector.shape_cast %306 : vector<8x8xbf16> to vector<1x8x8xbf16>
    tpu.vector_store %arg27[%c0_135, %c0_136, %c0_137], %309 {strides = array<i32>} : memref<1x8x8xbf16, #tpu.memory_space<vmem>>, vector<1x8x8xbf16>,
    return
  }
  func.func @transform_0(%arg0: i32, %arg1: i32) -> (i32, i32, i32) {
    %c0_i32 = arith.constant 0 : i32
    %c0_i32_0 = arith.constant 0 : i32
    %c0_i32_1 = arith.constant 0 : i32
    return %arg0, %c0_i32, %c0_i32_0 : i32, i32, i32
  }
  func.func @transform_1(%arg0: i32, %arg1: i32) -> (i32, i32, i32) {
    %c0_i32 = arith.constant 0 : i32
    %c0_i32_0 = arith.constant 0 : i32
    %c0_i32_1 = arith.constant 0 : i32
    return %arg0, %c0_i32, %c0_i32_0 : i32, i32, i32
  }
  func.func @transform_2(%arg0: i32, %arg1: i32) -> (i32, i32) {
    %c0_i32 = arith.constant 0 : i32
    %c0_i32_0 = arith.constant 0 : i32
    return %arg1, %c0_i32 : i32, i32
  }
  func.func @transform_3(%arg0: i32, %arg1: i32) -> (i32, i32) {
    %c0_i32 = arith.constant 0 : i32
    %c0_i32_0 = arith.constant 0 : i32
    %c0_i32_1 = arith.constant 0 : i32
    return %c0_i32, %c0_i32_0 : i32, i32
  }
  func.func @transform_4(%arg0: i32, %arg1: i32) -> (i32, i32) {
    %c0_i32 = arith.constant 0 : i32
    %c0_i32_0 = arith.constant 0 : i32
    %c0_i32_1 = arith.constant 0 : i32
    return %c0_i32, %c0_i32_0 : i32, i32
  }
  func.func @transform_5(%arg0: i32, %arg1: i32) -> (i32, i32) {
    %c0_i32 = arith.constant 0 : i32
    %c0_i32_0 = arith.constant 0 : i32
    %c0_i32_1 = arith.constant 0 : i32
    return %c0_i32, %c0_i32_0 : i32, i32
  }
  func.func @transform_6(%arg0: i32, %arg1: i32) -> (i32, i32) {
    %c0_i32 = arith.constant 0 : i32
    %c0_i32_0 = arith.constant 0 : i32
    %c0_i32_1 = arith.constant 0 : i32
    return %c0_i32, %c0_i32_0 : i32, i32
  }
  func.func @transform_7(%arg0: i32, %arg1: i32) -> (i32, i32) {
    %c0_i32 = arith.constant 0 : i32
    %c0_i32_0 = arith.constant 0 : i32
    %c0_i32_1 = arith.constant 0 : i32
    return %c0_i32, %c0_i32_0 : i32, i32
  }
  func.func @transform_8(%arg0: i32, %arg1: i32) -> (i32, i32) {
    %c0_i32 = arith.constant 0 : i32
    %c0_i32_0 = arith.constant 0 : i32
    %c0_i32_1 = arith.constant 0 : i32
    return %c0_i32, %c0_i32_0 : i32, i32
  }
  func.func @transform_9(%arg0: i32, %arg1: i32) -> (i32, i32) {
    %c0_i32 = arith.constant 0 : i32
    %c0_i32_0 = arith.constant 0 : i32
    %c0_i32_1 = arith.constant 0 : i32
    return %c0_i32, %c0_i32_0 : i32, i32
  }
  func.func @transform_10(%arg0: i32, %arg1: i32) -> (i32, i32) {
    %c0_i32 = arith.constant 0 : i32
    %c0_i32_0 = arith.constant 0 : i32
    %c0_i32_1 = arith.constant 0 : i32
    return %c0_i32, %c0_i32_0 : i32, i32
  }
  func.func @transform_11(%arg0: i32, %arg1: i32) -> (i32, i32) {
    %c0_i32 = arith.constant 0 : i32
    %c0_i32_0 = arith.constant 0 : i32
    %c0_i32_1 = arith.constant 0 : i32
    return %c0_i32, %c0_i32_0 : i32, i32
  }
  func.func @transform_12(%arg0: i32, %arg1: i32) -> (i32, i32) {
    %c0_i32 = arith.constant 0 : i32
    %c0_i32_0 = arith.constant 0 : i32
    %c0_i32_1 = arith.constant 0 : i32
    return %c0_i32, %c0_i32_0 : i32, i32
  }
  func.func @transform_13(%arg0: i32, %arg1: i32) -> (i32, i32) {
    %c0_i32 = arith.constant 0 : i32
    %c0_i32_0 = arith.constant 0 : i32
    %c0_i32_1 = arith.constant 0 : i32
    return %c0_i32, %c0_i32_0 : i32, i32
  }
  func.func @transform_14(%arg0: i32, %arg1: i32) -> (i32, i32) {
    %c0_i32 = arith.constant 0 : i32
    %c0_i32_0 = arith.constant 0 : i32
    %c0_i32_1 = arith.constant 0 : i32
    return %c0_i32, %c0_i32_0 : i32, i32
  }
  func.func @transform_15(%arg0: i32, %arg1: i32) -> (i32, i32) {
    %c0_i32 = arith.constant 0 : i32
    %c0_i32_0 = arith.constant 0 : i32
    %c0_i32_1 = arith.constant 0 : i32
    return %c0_i32, %c0_i32_0 : i32, i32
  }
  func.func @transform_16(%arg0: i32, %arg1: i32) -> (i32, i32) {
    %c0_i32 = arith.constant 0 : i32
    %c0_i32_0 = arith.constant 0 : i32
    %c0_i32_1 = arith.constant 0 : i32
    return %c0_i32, %c0_i32_0 : i32, i32
  }
  func.func @transform_17(%arg0: i32, %arg1: i32) -> (i32, i32) {
    %c0_i32 = arith.constant 0 : i32
    %c0_i32_0 = arith.constant 0 : i32
    %c0_i32_1 = arith.constant 0 : i32
    return %c0_i32, %c0_i32_0 : i32, i32
  }
  func.func @transform_18(%arg0: i32, %arg1: i32) -> (i32, i32) {
    %c0_i32 = arith.constant 0 : i32
    %c0_i32_0 = arith.constant 0 : i32
    %c0_i32_1 = arith.constant 0 : i32
    return %c0_i32, %c0_i32_0 : i32, i32
  }
  func.func @transform_19(%arg0: i32, %arg1: i32) -> (i32, i32) {
    %c0_i32 = arith.constant 0 : i32
    %c0_i32_0 = arith.constant 0 : i32
    %c0_i32_1 = arith.constant 0 : i32
    return %c0_i32, %c0_i32_0 : i32, i32
  }
  func.func @transform_20(%arg0: i32, %arg1: i32) -> (i32, i32) {
    %c0_i32 = arith.constant 0 : i32
    %c0_i32_0 = arith.constant 0 : i32
    %c0_i32_1 = arith.constant 0 : i32
    return %c0_i32, %c0_i32_0 : i32, i32
  }
  func.func @transform_21(%arg0: i32, %arg1: i32) -> (i32, i32, i32) {
    %c0_i32 = arith.constant 0 : i32
    %c0_i32_0 = arith.constant 0 : i32
    return %arg0, %arg1, %c0_i32 : i32, i32, i32
  }
  func.func @transform_22(%arg0: i32, %arg1: i32) -> (i32, i32, i32) {
    %c0_i32 = arith.constant 0 : i32
    %c0_i32_0 = arith.constant 0 : i32
    return %arg0, %arg1, %c0_i32 : i32, i32, i32
  }
  func.func @transform_23(%arg0: i32, %arg1: i32) -> (i32, i32, i32) {
    %c0_i32 = arith.constant 0 : i32
    %c0_i32_0 = arith.constant 0 : i32
    return %arg0, %arg1, %c0_i32 : i32, i32, i32
  }
  func.func @transform_24(%arg0: i32, %arg1: i32) -> (i32, i32, i32) {
    %c0_i32 = arith.constant 0 : i32
    %c0_i32_0 = arith.constant 0 : i32
    return %arg0, %arg1, %c0_i32 : i32, i32, i32
  }
  func.func @transform_25(%arg0: i32, %arg1: i32) -> (i32, i32, i32) {
    %c0_i32 = arith.constant 0 : i32
    %c0_i32_0 = arith.constant 0 : i32
    return %arg0, %arg1, %c0_i32 : i32, i32, i32
  }
}

module attributes {stable_mosaic.version = 11 : i64} {
  func.func @cross_block_kernel(%arg0: i32, %arg1: i32, %arg2: memref<1x8x32xf32, #tpu.memory_space<vmem>>, %arg3: memref<1x8x32xf32, #tpu.memory_space<vmem>>, %arg4: memref<8x8xbf16, #tpu.memory_space<vmem>>, %arg5: memref<32x64xbf16, #tpu.memory_space<vmem>>, %arg6: memref<1x64xf32, #tpu.memory_space<vmem>>, %arg7: memref<32x64xbf16, #tpu.memory_space<vmem>>, %arg8: memref<1x64xf32, #tpu.memory_space<vmem>>, %arg9: memref<32x32xbf16, #tpu.memory_space<vmem>>, %arg10: memref<1x32xf32, #tpu.memory_space<vmem>>, %arg11: memref<32x32xbf16, #tpu.memory_space<vmem>>, %arg12: memref<1x32xf32, #tpu.memory_space<vmem>>, %arg13: memref<32x32xbf16, #tpu.memory_space<vmem>>, %arg14: memref<1x32xf32, #tpu.memory_space<vmem>>, %arg15: memref<32x64xbf16, #tpu.memory_space<vmem>>, %arg16: memref<1x64xf32, #tpu.memory_space<vmem>>, %arg17: memref<64x32xbf16, #tpu.memory_space<vmem>>, %arg18: memref<1x32xf32, #tpu.memory_space<vmem>>, %arg19: memref<1x32xf32, #tpu.memory_space<vmem>>, %arg20: memref<1x32xf32, #tpu.memory_space<vmem>>, %arg21: memref<1x32xf32, #tpu.memory_space<vmem>>, %arg22: memref<1x32xf32, #tpu.memory_space<vmem>>, %arg23: memref<1x8x32xf32, #tpu.memory_space<vmem>>, %arg24: memref<1x8x32xf32, #tpu.memory_space<vmem>>, %arg25: memref<1x8x8xbf16, #tpu.memory_space<vmem>>, %arg26: memref<1x8x8xbf16, #tpu.memory_space<vmem>>, %arg27: memref<1x8x8xbf16, #tpu.memory_space<vmem>>, %arg28: memref<8x64xbf16, #tpu.memory_space<vmem>>, %arg29: memref<8x32xbf16, #tpu.memory_space<vmem>>) attributes {dimension_semantics = [#tpu.dimension_semantics<parallel>, #tpu.dimension_semantics<arbitrary>], iteration_bounds = array<i64: 2, 1>, scalar_prefetch = 0 : i64, scratch_operands = 2 : i64, tpu.core_type = #tpu.core_type<tc>, window_params = [{transform_indices = @transform_0, window_bounds = array<i64: 1, 8, 32>}, {transform_indices = @transform_1, window_bounds = array<i64: 1, 8, 32>}, {transform_indices = @transform_2, window_bounds = array<i64: 8, 8>}, {pipeline_mode = #tpu.pipeline_mode<synchronous>, transform_indices = @transform_3, window_bounds = array<i64: 32, 64>}, {pipeline_mode = #tpu.pipeline_mode<synchronous>, transform_indices = @transform_4, window_bounds = array<i64: 1, 64>}, {pipeline_mode = #tpu.pipeline_mode<synchronous>, transform_indices = @transform_5, window_bounds = array<i64: 32, 64>}, {pipeline_mode = #tpu.pipeline_mode<synchronous>, transform_indices = @transform_6, window_bounds = array<i64: 1, 64>}, {pipeline_mode = #tpu.pipeline_mode<synchronous>, transform_indices = @transform_7, window_bounds = array<i64: 32, 32>}, {pipeline_mode = #tpu.pipeline_mode<synchronous>, transform_indices = @transform_8, window_bounds = array<i64: 1, 32>}, {pipeline_mode = #tpu.pipeline_mode<synchronous>, transform_indices = @transform_9, window_bounds = array<i64: 32, 32>}, {pipeline_mode = #tpu.pipeline_mode<synchronous>, transform_indices = @transform_10, window_bounds = array<i64: 1, 32>}, {pipeline_mode = #tpu.pipeline_mode<synchronous>, transform_indices = @transform_11, window_bounds = array<i64: 32, 32>}, {pipeline_mode = #tpu.pipeline_mode<synchronous>, transform_indices = @transform_12, window_bounds = array<i64: 1, 32>}, {pipeline_mode = #tpu.pipeline_mode<synchronous>, transform_indices = @transform_13, window_bounds = array<i64: 32, 64>}, {pipeline_mode = #tpu.pipeline_mode<synchronous>, transform_indices = @transform_14, window_bounds = array<i64: 1, 64>}, {pipeline_mode = #tpu.pipeline_mode<synchronous>, transform_indices = @transform_15, window_bounds = array<i64: 64, 32>}, {pipeline_mode = #tpu.pipeline_mode<synchronous>, transform_indices = @transform_16, window_bounds = array<i64: 1, 32>}, {pipeline_mode = #tpu.pipeline_mode<synchronous>, transform_indices = @transform_17, window_bounds = array<i64: 1, 32>}, {pipeline_mode = #tpu.pipeline_mode<synchronous>, transform_indices = @transform_18, window_bounds = array<i64: 1, 32>}, {pipeline_mode = #tpu.pipeline_mode<synchronous>, transform_indices = @transform_19, window_bounds = array<i64: 1, 32>}, {pipeline_mode = #tpu.pipeline_mode<synchronous>, transform_indices = @transform_20, window_bounds = array<i64: 1, 32>}, {transform_indices = @transform_21, window_bounds = array<i64: 1, 8, 32>}, {transform_indices = @transform_22, window_bounds = array<i64: 1, 8, 32>}, {transform_indices = @transform_23, window_bounds = array<i64: 1, 8, 8>}, {transform_indices = @transform_24, window_bounds = array<i64: 1, 8, 8>}, {transform_indices = @transform_25, window_bounds = array<i64: 1, 8, 8>}]} {
    %c0_i32 = arith.constant 0 : i32
    %0 = arith.cmpi eq, %arg1, %c0_i32 : i32
    %1 = arith.extui %0 : i1 to i32
    %c0_i32_0 = arith.constant 0 : i32
    %2 = arith.cmpi ne, %1, %c0_i32_0 : i32
    scf.if %2 {
      %c0_138 = arith.constant 0 : index
      %c0_139 = arith.constant 0 : index
      %c0_140 = arith.constant 0 : index
      %310 = vector.load %arg2[%c0_138, %c0_139, %c0_140] : memref<1x8x32xf32, #tpu.memory_space<vmem>>, vector<1x8x32xf32>
      %311 = vector.shape_cast %310 : vector<1x8x32xf32> to vector<8x32xf32>
      %312 = arith.truncf %311 : vector<8x32xf32> to vector<8x32xbf16>
      %c0_141 = arith.constant 0 : index
      %c0_142 = arith.constant 0 : index
      %313 = vector.load %arg7[%c0_141, %c0_142] : memref<32x64xbf16, #tpu.memory_space<vmem>>, vector<32x64xbf16>
      %cst_143 = arith.constant dense<0.000000e+00> : vector<8x64xf32>
      %314 = tpu.matmul %312, %313, %cst_143 {dimension_numbers = #tpu.dot_dimension_numbers<[1], [0], [0], [1], [0, 0, 1, 1], [], []>} : vector<8x32xbf16>, vector<32x64xbf16>, vector<8x64xf32> -> vector<8x64xf32>
      %c0_144 = arith.constant 0 : index
      %c0_145 = arith.constant 0 : index
      %315 = vector.load %arg8[%c0_144, %c0_145] : memref<1x64xf32, #tpu.memory_space<vmem>>, vector<1x64xf32>
      %316 = vector.broadcast %315 : vector<1x64xf32> to vector<8x64xf32>
      %317 = arith.addf %314, %316 : vector<8x64xf32>
      %318 = arith.truncf %317 : vector<8x64xf32> to vector<8x64xbf16>
      %c0_146 = arith.constant 0 : index
      %c0_147 = arith.constant 0 : index
      %319 = vector.load %arg28[%c0_146, %c0_147] : memref<8x64xbf16, #tpu.memory_space<vmem>>, vector<8x64xbf16>
      tpu.vector_store %arg28[%c0_146, %c0_147], %318 {strides = array<i32>} : memref<8x64xbf16, #tpu.memory_space<vmem>>, vector<8x64xbf16>,
      %c0_148 = arith.constant 0 : index
      %c0_149 = arith.constant 0 : index
      %c0_150 = arith.constant 0 : index
      %320 = vector.load %arg3[%c0_148, %c0_149, %c0_150] : memref<1x8x32xf32, #tpu.memory_space<vmem>>, vector<1x8x32xf32>
      %321 = vector.shape_cast %320 : vector<1x8x32xf32> to vector<8x32xf32>
      %322 = arith.truncf %321 : vector<8x32xf32> to vector<8x32xbf16>
      %c0_151 = arith.constant 0 : index
      %c0_152 = arith.constant 0 : index
      %323 = vector.load %arg11[%c0_151, %c0_152] : memref<32x32xbf16, #tpu.memory_space<vmem>>, vector<32x32xbf16>
      %cst_153 = arith.constant dense<0.000000e+00> : vector<8x32xf32>
      %324 = tpu.matmul %322, %323, %cst_153 {dimension_numbers = #tpu.dot_dimension_numbers<[1], [0], [0], [1], [0, 0, 1, 1], [], []>} : vector<8x32xbf16>, vector<32x32xbf16>, vector<8x32xf32> -> vector<8x32xf32>
      %c0_154 = arith.constant 0 : index
      %c0_155 = arith.constant 0 : index
      %325 = vector.load %arg12[%c0_154, %c0_155] : memref<1x32xf32, #tpu.memory_space<vmem>>, vector<1x32xf32>
      %326 = vector.broadcast %325 : vector<1x32xf32> to vector<8x32xf32>
      %327 = arith.addf %324, %326 : vector<8x32xf32>
      %328 = arith.truncf %327 : vector<8x32xf32> to vector<8x32xbf16>
      %c0_156 = arith.constant 0 : index
      %c0_157 = arith.constant 0 : index
      %329 = vector.load %arg29[%c0_156, %c0_157] : memref<8x32xbf16, #tpu.memory_space<vmem>>, vector<8x32xbf16>
      tpu.vector_store %arg29[%c0_156, %c0_157], %328 {strides = array<i32>} : memref<8x32xbf16, #tpu.memory_space<vmem>>, vector<8x32xbf16>,
    } else {
    }
    %c8_i32 = arith.constant 8 : i32
    %3 = arith.muli %arg1, %c8_i32 : i32
    %4 = tpu.assume_multiple %3, 8 : i32
    %c0 = arith.constant 0 : index
    %5 = arith.index_cast %4 : i32 to index
    %c0_1 = arith.constant 0 : index
    %6 = vector.load %arg2[%c0, %5, %c0_1] : memref<1x8x32xf32, #tpu.memory_space<vmem>>, vector<1x8x32xf32>
    %7 = vector.shape_cast %6 : vector<1x8x32xf32> to vector<8x32xf32>
    %c0_2 = arith.constant 0 : index
    %8 = arith.index_cast %4 : i32 to index
    %c0_3 = arith.constant 0 : index
    %9 = vector.load %arg3[%c0_2, %8, %c0_3] : memref<1x8x32xf32, #tpu.memory_space<vmem>>, vector<1x8x32xf32>
    %10 = vector.shape_cast %9 : vector<1x8x32xf32> to vector<8x32xf32>
    %c0_4 = arith.constant 0 : index
    %c0_5 = arith.constant 0 : index
    %11 = vector.load %arg4[%c0_4, %c0_5] : memref<8x8xbf16, #tpu.memory_space<vmem>>, vector<8x8xbf16>
    %12 = arith.extf %11 : vector<8x8xbf16> to vector<8x8xf32>
    %13 = arith.truncf %7 : vector<8x32xf32> to vector<8x32xbf16>
    %c0_6 = arith.constant 0 : index
    %c0_7 = arith.constant 0 : index
    %14 = vector.load %arg5[%c0_6, %c0_7] : memref<32x64xbf16, #tpu.memory_space<vmem>>, vector<32x64xbf16>
    %cst = arith.constant dense<0.000000e+00> : vector<8x64xf32>
    %15 = tpu.matmul %13, %14, %cst {dimension_numbers = #tpu.dot_dimension_numbers<[1], [0], [0], [1], [0, 0, 1, 1], [], []>} : vector<8x32xbf16>, vector<32x64xbf16>, vector<8x64xf32> -> vector<8x64xf32>
    %c0_8 = arith.constant 0 : index
    %c0_9 = arith.constant 0 : index
    %16 = vector.load %arg6[%c0_8, %c0_9] : memref<1x64xf32, #tpu.memory_space<vmem>>, vector<1x64xf32>
    %17 = vector.broadcast %16 : vector<1x64xf32> to vector<8x64xf32>
    %18 = arith.addf %15, %17 : vector<8x64xf32>
    %19 = arith.truncf %18 : vector<8x64xf32> to vector<8x64xbf16>
    %cst_10 = arith.constant 0.000000e+00 : f32
    %20 = vector.broadcast %cst_10 : f32 to vector<8x8xf32>
    %cst_11 = arith.constant 0.000000e+00 : f32
    %21 = vector.broadcast %cst_11 : f32 to vector<8x8xf32>
    %cst_12 = arith.constant 0.000000e+00 : f32
    %22 = vector.broadcast %cst_12 : f32 to vector<8x32xf32>
    %23 = vector.extract_strided_slice %19 {offsets = [0, 0], sizes = [8, 8], strides = [1, 1]} : vector<8x64xbf16> to vector<8x8xbf16>
    %24 = vector.extract_strided_slice %19 {offsets = [0, 32], sizes = [8, 8], strides = [1, 1]} : vector<8x64xbf16> to vector<8x8xbf16>
    %c0_13 = arith.constant 0 : index
    %c0_14 = arith.constant 0 : index
    %25 = vector.load %arg28[%c0_13, %c0_14] : memref<8x64xbf16, #tpu.memory_space<vmem>>, vector<8x8xbf16>
    %c0_15 = arith.constant 0 : index
    %c32 = arith.constant 32 : index
    %26 = vector.load %arg28[%c0_15, %c32] : memref<8x64xbf16, #tpu.memory_space<vmem>>, vector<8x8xbf16>
    %c0_16 = arith.constant 0 : index
    %c0_17 = arith.constant 0 : index
    %27 = vector.load %arg29[%c0_16, %c0_17] : memref<8x32xbf16, #tpu.memory_space<vmem>>, vector<8x8xbf16>
    %cst_18 = arith.constant dense<0.000000e+00> : vector<8x8xf32>
    %28 = tpu.matmul %23, %25, %cst_18 {dimension_numbers = #tpu.dot_dimension_numbers<[1], [1], [0], [0], [0, 0, 1, 0], [], []>} : vector<8x8xbf16>, vector<8x8xbf16>, vector<8x8xf32> -> vector<8x8xf32>
    %29 = arith.addf %28, %12 : vector<8x8xf32>
    %cst_19 = arith.constant dense<0xFF800000> : vector<8xf32>
    %30 = vector.multi_reduction <maximumf>, %29, %cst_19 [1] : vector<8x8xf32> to vector<8xf32>
    %31 = vector.shape_cast %30 : vector<8xf32> to vector<8x1xf32>
    %32 = vector.broadcast %31 : vector<8x1xf32> to vector<8x8xf32>
    %33 = arith.subf %29, %32 : vector<8x8xf32>
    %34 = math.exp %33 : vector<8x8xf32>
    %cst_20 = arith.constant dense<0.000000e+00> : vector<8xf32>
    %35 = vector.multi_reduction <add>, %34, %cst_20 [1] : vector<8x8xf32> to vector<8xf32>
    %36 = vector.shape_cast %35 : vector<8xf32> to vector<8x1xf32>
    %37 = tpu.reciprocal %36 {approx = true} : vector<8x1xf32> -> vector<8x1xf32>
    %38 = vector.broadcast %37 : vector<8x1xf32> to vector<8x8xf32>
    %39 = arith.mulf %34, %38 : vector<8x8xf32>
    %40 = arith.addf %20, %39 : vector<8x8xf32>
    %41 = arith.truncf %39 : vector<8x8xf32> to vector<8x8xbf16>
    %cst_21 = arith.constant dense<0.000000e+00> : vector<8x8xf32>
    %42 = tpu.matmul %41, %26, %cst_21 {dimension_numbers = #tpu.dot_dimension_numbers<[1], [0], [0], [1], [0, 0, 1, 1], [], []>} : vector<8x8xbf16>, vector<8x8xbf16>, vector<8x8xf32> -> vector<8x8xf32>
    %43 = arith.truncf %42 : vector<8x8xf32> to vector<8x8xbf16>
    %c0_22 = arith.constant 0 : index
    %c0_23 = arith.constant 0 : index
    %44 = vector.load %arg9[%c0_22, %c0_23] : memref<32x32xbf16, #tpu.memory_space<vmem>>, vector<8x32xbf16>
    %cst_24 = arith.constant dense<0.000000e+00> : vector<8x32xf32>
    %45 = tpu.matmul %43, %44, %cst_24 {dimension_numbers = #tpu.dot_dimension_numbers<[1], [0], [0], [1], [0, 0, 1, 1], [], []>} : vector<8x8xbf16>, vector<8x32xbf16>, vector<8x32xf32> -> vector<8x32xf32>
    %46 = arith.addf %22, %45 : vector<8x32xf32>
    %cst_25 = arith.constant dense<0.000000e+00> : vector<8x8xf32>
    %47 = tpu.matmul %24, %27, %cst_25 {dimension_numbers = #tpu.dot_dimension_numbers<[1], [1], [0], [0], [0, 0, 1, 0], [], []>} : vector<8x8xbf16>, vector<8x8xbf16>, vector<8x8xf32> -> vector<8x8xf32>
    %48 = arith.addf %47, %12 : vector<8x8xf32>
    %cst_26 = arith.constant dense<0xFF800000> : vector<8xf32>
    %49 = vector.multi_reduction <maximumf>, %48, %cst_26 [1] : vector<8x8xf32> to vector<8xf32>
    %50 = vector.shape_cast %49 : vector<8xf32> to vector<8x1xf32>
    %51 = vector.broadcast %50 : vector<8x1xf32> to vector<8x8xf32>
    %52 = arith.subf %48, %51 : vector<8x8xf32>
    %53 = math.exp %52 : vector<8x8xf32>
    %cst_27 = arith.constant dense<0.000000e+00> : vector<8xf32>
    %54 = vector.multi_reduction <add>, %53, %cst_27 [1] : vector<8x8xf32> to vector<8xf32>
    %55 = vector.shape_cast %54 : vector<8xf32> to vector<8x1xf32>
    %56 = tpu.reciprocal %55 {approx = true} : vector<8x1xf32> -> vector<8x1xf32>
    %57 = vector.broadcast %56 : vector<8x1xf32> to vector<8x8xf32>
    %58 = arith.mulf %53, %57 : vector<8x8xf32>
    %59 = arith.addf %21, %58 : vector<8x8xf32>
    %60 = vector.extract_strided_slice %19 {offsets = [0, 8], sizes = [8, 8], strides = [1, 1]} : vector<8x64xbf16> to vector<8x8xbf16>
    %61 = vector.extract_strided_slice %19 {offsets = [0, 40], sizes = [8, 8], strides = [1, 1]} : vector<8x64xbf16> to vector<8x8xbf16>
    %c0_28 = arith.constant 0 : index
    %c8 = arith.constant 8 : index
    %62 = vector.load %arg28[%c0_28, %c8] : memref<8x64xbf16, #tpu.memory_space<vmem>>, vector<8x8xbf16>
    %c0_29 = arith.constant 0 : index
    %c40 = arith.constant 40 : index
    %63 = vector.load %arg28[%c0_29, %c40] : memref<8x64xbf16, #tpu.memory_space<vmem>>, vector<8x8xbf16>
    %c0_30 = arith.constant 0 : index
    %c8_31 = arith.constant 8 : index
    %64 = vector.load %arg29[%c0_30, %c8_31] : memref<8x32xbf16, #tpu.memory_space<vmem>>, vector<8x8xbf16>
    %cst_32 = arith.constant dense<0.000000e+00> : vector<8x8xf32>
    %65 = tpu.matmul %60, %62, %cst_32 {dimension_numbers = #tpu.dot_dimension_numbers<[1], [1], [0], [0], [0, 0, 1, 0], [], []>} : vector<8x8xbf16>, vector<8x8xbf16>, vector<8x8xf32> -> vector<8x8xf32>
    %66 = arith.addf %65, %12 : vector<8x8xf32>
    %cst_33 = arith.constant dense<0xFF800000> : vector<8xf32>
    %67 = vector.multi_reduction <maximumf>, %66, %cst_33 [1] : vector<8x8xf32> to vector<8xf32>
    %68 = vector.shape_cast %67 : vector<8xf32> to vector<8x1xf32>
    %69 = vector.broadcast %68 : vector<8x1xf32> to vector<8x8xf32>
    %70 = arith.subf %66, %69 : vector<8x8xf32>
    %71 = math.exp %70 : vector<8x8xf32>
    %cst_34 = arith.constant dense<0.000000e+00> : vector<8xf32>
    %72 = vector.multi_reduction <add>, %71, %cst_34 [1] : vector<8x8xf32> to vector<8xf32>
    %73 = vector.shape_cast %72 : vector<8xf32> to vector<8x1xf32>
    %74 = tpu.reciprocal %73 {approx = true} : vector<8x1xf32> -> vector<8x1xf32>
    %75 = vector.broadcast %74 : vector<8x1xf32> to vector<8x8xf32>
    %76 = arith.mulf %71, %75 : vector<8x8xf32>
    %77 = arith.addf %40, %76 : vector<8x8xf32>
    %78 = arith.truncf %76 : vector<8x8xf32> to vector<8x8xbf16>
    %cst_35 = arith.constant dense<0.000000e+00> : vector<8x8xf32>
    %79 = tpu.matmul %78, %63, %cst_35 {dimension_numbers = #tpu.dot_dimension_numbers<[1], [0], [0], [1], [0, 0, 1, 1], [], []>} : vector<8x8xbf16>, vector<8x8xbf16>, vector<8x8xf32> -> vector<8x8xf32>
    %80 = arith.truncf %79 : vector<8x8xf32> to vector<8x8xbf16>
    %c8_36 = arith.constant 8 : index
    %c0_37 = arith.constant 0 : index
    %81 = vector.load %arg9[%c8_36, %c0_37] : memref<32x32xbf16, #tpu.memory_space<vmem>>, vector<8x32xbf16>
    %cst_38 = arith.constant dense<0.000000e+00> : vector<8x32xf32>
    %82 = tpu.matmul %80, %81, %cst_38 {dimension_numbers = #tpu.dot_dimension_numbers<[1], [0], [0], [1], [0, 0, 1, 1], [], []>} : vector<8x8xbf16>, vector<8x32xbf16>, vector<8x32xf32> -> vector<8x32xf32>
    %83 = arith.addf %46, %82 : vector<8x32xf32>
    %cst_39 = arith.constant dense<0.000000e+00> : vector<8x8xf32>
    %84 = tpu.matmul %61, %64, %cst_39 {dimension_numbers = #tpu.dot_dimension_numbers<[1], [1], [0], [0], [0, 0, 1, 0], [], []>} : vector<8x8xbf16>, vector<8x8xbf16>, vector<8x8xf32> -> vector<8x8xf32>
    %85 = arith.addf %84, %12 : vector<8x8xf32>
    %cst_40 = arith.constant dense<0xFF800000> : vector<8xf32>
    %86 = vector.multi_reduction <maximumf>, %85, %cst_40 [1] : vector<8x8xf32> to vector<8xf32>
    %87 = vector.shape_cast %86 : vector<8xf32> to vector<8x1xf32>
    %88 = vector.broadcast %87 : vector<8x1xf32> to vector<8x8xf32>
    %89 = arith.subf %85, %88 : vector<8x8xf32>
    %90 = math.exp %89 : vector<8x8xf32>
    %cst_41 = arith.constant dense<0.000000e+00> : vector<8xf32>
    %91 = vector.multi_reduction <add>, %90, %cst_41 [1] : vector<8x8xf32> to vector<8xf32>
    %92 = vector.shape_cast %91 : vector<8xf32> to vector<8x1xf32>
    %93 = tpu.reciprocal %92 {approx = true} : vector<8x1xf32> -> vector<8x1xf32>
    %94 = vector.broadcast %93 : vector<8x1xf32> to vector<8x8xf32>
    %95 = arith.mulf %90, %94 : vector<8x8xf32>
    %96 = arith.addf %59, %95 : vector<8x8xf32>
    %97 = vector.extract_strided_slice %19 {offsets = [0, 16], sizes = [8, 8], strides = [1, 1]} : vector<8x64xbf16> to vector<8x8xbf16>
    %98 = vector.extract_strided_slice %19 {offsets = [0, 48], sizes = [8, 8], strides = [1, 1]} : vector<8x64xbf16> to vector<8x8xbf16>
    %c0_42 = arith.constant 0 : index
    %c16 = arith.constant 16 : index
    %99 = vector.load %arg28[%c0_42, %c16] : memref<8x64xbf16, #tpu.memory_space<vmem>>, vector<8x8xbf16>
    %c0_43 = arith.constant 0 : index
    %c48 = arith.constant 48 : index
    %100 = vector.load %arg28[%c0_43, %c48] : memref<8x64xbf16, #tpu.memory_space<vmem>>, vector<8x8xbf16>
    %c0_44 = arith.constant 0 : index
    %c16_45 = arith.constant 16 : index
    %101 = vector.load %arg29[%c0_44, %c16_45] : memref<8x32xbf16, #tpu.memory_space<vmem>>, vector<8x8xbf16>
    %cst_46 = arith.constant dense<0.000000e+00> : vector<8x8xf32>
    %102 = tpu.matmul %97, %99, %cst_46 {dimension_numbers = #tpu.dot_dimension_numbers<[1], [1], [0], [0], [0, 0, 1, 0], [], []>} : vector<8x8xbf16>, vector<8x8xbf16>, vector<8x8xf32> -> vector<8x8xf32>
    %103 = arith.addf %102, %12 : vector<8x8xf32>
    %cst_47 = arith.constant dense<0xFF800000> : vector<8xf32>
    %104 = vector.multi_reduction <maximumf>, %103, %cst_47 [1] : vector<8x8xf32> to vector<8xf32>
    %105 = vector.shape_cast %104 : vector<8xf32> to vector<8x1xf32>
    %106 = vector.broadcast %105 : vector<8x1xf32> to vector<8x8xf32>
    %107 = arith.subf %103, %106 : vector<8x8xf32>
    %108 = math.exp %107 : vector<8x8xf32>
    %cst_48 = arith.constant dense<0.000000e+00> : vector<8xf32>
    %109 = vector.multi_reduction <add>, %108, %cst_48 [1] : vector<8x8xf32> to vector<8xf32>
    %110 = vector.shape_cast %109 : vector<8xf32> to vector<8x1xf32>
    %111 = tpu.reciprocal %110 {approx = true} : vector<8x1xf32> -> vector<8x1xf32>
    %112 = vector.broadcast %111 : vector<8x1xf32> to vector<8x8xf32>
    %113 = arith.mulf %108, %112 : vector<8x8xf32>
    %114 = arith.addf %77, %113 : vector<8x8xf32>
    %115 = arith.truncf %113 : vector<8x8xf32> to vector<8x8xbf16>
    %cst_49 = arith.constant dense<0.000000e+00> : vector<8x8xf32>
    %116 = tpu.matmul %115, %100, %cst_49 {dimension_numbers = #tpu.dot_dimension_numbers<[1], [0], [0], [1], [0, 0, 1, 1], [], []>} : vector<8x8xbf16>, vector<8x8xbf16>, vector<8x8xf32> -> vector<8x8xf32>
    %117 = arith.truncf %116 : vector<8x8xf32> to vector<8x8xbf16>
    %c16_50 = arith.constant 16 : index
    %c0_51 = arith.constant 0 : index
    %118 = vector.load %arg9[%c16_50, %c0_51] : memref<32x32xbf16, #tpu.memory_space<vmem>>, vector<8x32xbf16>
    %cst_52 = arith.constant dense<0.000000e+00> : vector<8x32xf32>
    %119 = tpu.matmul %117, %118, %cst_52 {dimension_numbers = #tpu.dot_dimension_numbers<[1], [0], [0], [1], [0, 0, 1, 1], [], []>} : vector<8x8xbf16>, vector<8x32xbf16>, vector<8x32xf32> -> vector<8x32xf32>
    %120 = arith.addf %83, %119 : vector<8x32xf32>
    %cst_53 = arith.constant dense<0.000000e+00> : vector<8x8xf32>
    %121 = tpu.matmul %98, %101, %cst_53 {dimension_numbers = #tpu.dot_dimension_numbers<[1], [1], [0], [0], [0, 0, 1, 0], [], []>} : vector<8x8xbf16>, vector<8x8xbf16>, vector<8x8xf32> -> vector<8x8xf32>
    %122 = arith.addf %121, %12 : vector<8x8xf32>
    %cst_54 = arith.constant dense<0xFF800000> : vector<8xf32>
    %123 = vector.multi_reduction <maximumf>, %122, %cst_54 [1] : vector<8x8xf32> to vector<8xf32>
    %124 = vector.shape_cast %123 : vector<8xf32> to vector<8x1xf32>
    %125 = vector.broadcast %124 : vector<8x1xf32> to vector<8x8xf32>
    %126 = arith.subf %122, %125 : vector<8x8xf32>
    %127 = math.exp %126 : vector<8x8xf32>
    %cst_55 = arith.constant dense<0.000000e+00> : vector<8xf32>
    %128 = vector.multi_reduction <add>, %127, %cst_55 [1] : vector<8x8xf32> to vector<8xf32>
    %129 = vector.shape_cast %128 : vector<8xf32> to vector<8x1xf32>
    %130 = tpu.reciprocal %129 {approx = true} : vector<8x1xf32> -> vector<8x1xf32>
    %131 = vector.broadcast %130 : vector<8x1xf32> to vector<8x8xf32>
    %132 = arith.mulf %127, %131 : vector<8x8xf32>
    %133 = arith.addf %96, %132 : vector<8x8xf32>
    %134 = vector.extract_strided_slice %19 {offsets = [0, 24], sizes = [8, 8], strides = [1, 1]} : vector<8x64xbf16> to vector<8x8xbf16>
    %135 = vector.extract_strided_slice %19 {offsets = [0, 56], sizes = [8, 8], strides = [1, 1]} : vector<8x64xbf16> to vector<8x8xbf16>
    %c0_56 = arith.constant 0 : index
    %c24 = arith.constant 24 : index
    %136 = vector.load %arg28[%c0_56, %c24] : memref<8x64xbf16, #tpu.memory_space<vmem>>, vector<8x8xbf16>
    %c0_57 = arith.constant 0 : index
    %c56 = arith.constant 56 : index
    %137 = vector.load %arg28[%c0_57, %c56] : memref<8x64xbf16, #tpu.memory_space<vmem>>, vector<8x8xbf16>
    %c0_58 = arith.constant 0 : index
    %c24_59 = arith.constant 24 : index
    %138 = vector.load %arg29[%c0_58, %c24_59] : memref<8x32xbf16, #tpu.memory_space<vmem>>, vector<8x8xbf16>
    %cst_60 = arith.constant dense<0.000000e+00> : vector<8x8xf32>
    %139 = tpu.matmul %134, %136, %cst_60 {dimension_numbers = #tpu.dot_dimension_numbers<[1], [1], [0], [0], [0, 0, 1, 0], [], []>} : vector<8x8xbf16>, vector<8x8xbf16>, vector<8x8xf32> -> vector<8x8xf32>
    %140 = arith.addf %139, %12 : vector<8x8xf32>
    %cst_61 = arith.constant dense<0xFF800000> : vector<8xf32>
    %141 = vector.multi_reduction <maximumf>, %140, %cst_61 [1] : vector<8x8xf32> to vector<8xf32>
    %142 = vector.shape_cast %141 : vector<8xf32> to vector<8x1xf32>
    %143 = vector.broadcast %142 : vector<8x1xf32> to vector<8x8xf32>
    %144 = arith.subf %140, %143 : vector<8x8xf32>
    %145 = math.exp %144 : vector<8x8xf32>
    %cst_62 = arith.constant dense<0.000000e+00> : vector<8xf32>
    %146 = vector.multi_reduction <add>, %145, %cst_62 [1] : vector<8x8xf32> to vector<8xf32>
    %147 = vector.shape_cast %146 : vector<8xf32> to vector<8x1xf32>
    %148 = tpu.reciprocal %147 {approx = true} : vector<8x1xf32> -> vector<8x1xf32>
    %149 = vector.broadcast %148 : vector<8x1xf32> to vector<8x8xf32>
    %150 = arith.mulf %145, %149 : vector<8x8xf32>
    %151 = arith.addf %114, %150 : vector<8x8xf32>
    %152 = arith.truncf %150 : vector<8x8xf32> to vector<8x8xbf16>
    %cst_63 = arith.constant dense<0.000000e+00> : vector<8x8xf32>
    %153 = tpu.matmul %152, %137, %cst_63 {dimension_numbers = #tpu.dot_dimension_numbers<[1], [0], [0], [1], [0, 0, 1, 1], [], []>} : vector<8x8xbf16>, vector<8x8xbf16>, vector<8x8xf32> -> vector<8x8xf32>
    %154 = arith.truncf %153 : vector<8x8xf32> to vector<8x8xbf16>
    %c24_64 = arith.constant 24 : index
    %c0_65 = arith.constant 0 : index
    %155 = vector.load %arg9[%c24_64, %c0_65] : memref<32x32xbf16, #tpu.memory_space<vmem>>, vector<8x32xbf16>
    %cst_66 = arith.constant dense<0.000000e+00> : vector<8x32xf32>
    %156 = tpu.matmul %154, %155, %cst_66 {dimension_numbers = #tpu.dot_dimension_numbers<[1], [0], [0], [1], [0, 0, 1, 1], [], []>} : vector<8x8xbf16>, vector<8x32xbf16>, vector<8x32xf32> -> vector<8x32xf32>
    %157 = arith.addf %120, %156 : vector<8x32xf32>
    %cst_67 = arith.constant dense<0.000000e+00> : vector<8x8xf32>
    %158 = tpu.matmul %135, %138, %cst_67 {dimension_numbers = #tpu.dot_dimension_numbers<[1], [1], [0], [0], [0, 0, 1, 0], [], []>} : vector<8x8xbf16>, vector<8x8xbf16>, vector<8x8xf32> -> vector<8x8xf32>
    %159 = arith.addf %158, %12 : vector<8x8xf32>
    %cst_68 = arith.constant dense<0xFF800000> : vector<8xf32>
    %160 = vector.multi_reduction <maximumf>, %159, %cst_68 [1] : vector<8x8xf32> to vector<8xf32>
    %161 = vector.shape_cast %160 : vector<8xf32> to vector<8x1xf32>
    %162 = vector.broadcast %161 : vector<8x1xf32> to vector<8x8xf32>
    %163 = arith.subf %159, %162 : vector<8x8xf32>
    %164 = math.exp %163 : vector<8x8xf32>
    %cst_69 = arith.constant dense<0.000000e+00> : vector<8xf32>
    %165 = vector.multi_reduction <add>, %164, %cst_69 [1] : vector<8x8xf32> to vector<8xf32>
    %166 = vector.shape_cast %165 : vector<8xf32> to vector<8x1xf32>
    %167 = tpu.reciprocal %166 {approx = true} : vector<8x1xf32> -> vector<8x1xf32>
    %168 = vector.broadcast %167 : vector<8x1xf32> to vector<8x8xf32>
    %169 = arith.mulf %164, %168 : vector<8x8xf32>
    %170 = arith.addf %133, %169 : vector<8x8xf32>
    %cst_70 = arith.constant 2.500000e-01 : f32
    %171 = vector.broadcast %cst_70 : f32 to vector<8x8xf32>
    %172 = arith.mulf %151, %171 : vector<8x8xf32>
    %cst_71 = arith.constant 2.500000e-01 : f32
    %173 = vector.broadcast %cst_71 : f32 to vector<8x8xf32>
    %174 = arith.mulf %170, %173 : vector<8x8xf32>
    %c0_72 = arith.constant 0 : index
    %c0_73 = arith.constant 0 : index
    %175 = vector.load %arg10[%c0_72, %c0_73] : memref<1x32xf32, #tpu.memory_space<vmem>>, vector<1x32xf32>
    %176 = vector.broadcast %175 : vector<1x32xf32> to vector<8x32xf32>
    %177 = arith.addf %157, %176 : vector<8x32xf32>
    %178 = arith.truncf %10 : vector<8x32xf32> to vector<8x32xbf16>
    %c0_74 = arith.constant 0 : index
    %c0_75 = arith.constant 0 : index
    %179 = vector.load %arg13[%c0_74, %c0_75] : memref<32x32xbf16, #tpu.memory_space<vmem>>, vector<32x32xbf16>
    %cst_76 = arith.constant dense<0.000000e+00> : vector<8x32xf32>
    %180 = tpu.matmul %178, %179, %cst_76 {dimension_numbers = #tpu.dot_dimension_numbers<[1], [0], [0], [1], [0, 0, 1, 1], [], []>} : vector<8x32xbf16>, vector<32x32xbf16>, vector<8x32xf32> -> vector<8x32xf32>
    %c0_77 = arith.constant 0 : index
    %c0_78 = arith.constant 0 : index
    %181 = vector.load %arg14[%c0_77, %c0_78] : memref<1x32xf32, #tpu.memory_space<vmem>>, vector<1x32xf32>
    %182 = vector.broadcast %181 : vector<1x32xf32> to vector<8x32xf32>
    %183 = arith.addf %180, %182 : vector<8x32xf32>
    %184 = arith.addf %7, %177 : vector<8x32xf32>
    %c0_79 = arith.constant 0 : index
    %c0_80 = arith.constant 0 : index
    %185 = vector.load %arg19[%c0_79, %c0_80] : memref<1x32xf32, #tpu.memory_space<vmem>>, vector<1x32xf32>
    %c0_81 = arith.constant 0 : index
    %c0_82 = arith.constant 0 : index
    %186 = vector.load %arg20[%c0_81, %c0_82] : memref<1x32xf32, #tpu.memory_space<vmem>>, vector<1x32xf32>
    %cst_83 = arith.constant dense<0.000000e+00> : vector<8xf32>
    %187 = vector.multi_reduction <add>, %184, %cst_83 [1] : vector<8x32xf32> to vector<8xf32>
    %188 = vector.shape_cast %187 : vector<8xf32> to vector<8x1xf32>
    %cst_84 = arith.constant 3.200000e+01 : f32
    %189 = vector.broadcast %cst_84 : f32 to vector<8x1xf32>
    %190 = arith.divf %188, %189 : vector<8x1xf32>
    %191 = vector.broadcast %190 : vector<8x1xf32> to vector<8x32xf32>
    %192 = arith.subf %184, %191 : vector<8x32xf32>
    %193 = arith.mulf %192, %192 : vector<8x32xf32>
    %cst_85 = arith.constant dense<0.000000e+00> : vector<8xf32>
    %194 = vector.multi_reduction <add>, %193, %cst_85 [1] : vector<8x32xf32> to vector<8xf32>
    %195 = vector.shape_cast %194 : vector<8xf32> to vector<8x1xf32>
    %cst_86 = arith.constant 3.200000e+01 : f32
    %196 = vector.broadcast %cst_86 : f32 to vector<8x1xf32>
    %197 = arith.divf %195, %196 : vector<8x1xf32>
    %198 = vector.broadcast %190 : vector<8x1xf32> to vector<8x32xf32>
    %199 = arith.subf %184, %198 : vector<8x32xf32>
    %cst_87 = arith.constant 9.99999971E-10 : f32
    %200 = vector.broadcast %cst_87 : f32 to vector<8x1xf32>
    %201 = arith.addf %197, %200 : vector<8x1xf32>
    %202 = math.sqrt %201 : vector<8x1xf32>
    %203 = vector.broadcast %202 : vector<8x1xf32> to vector<8x32xf32>
    %204 = arith.divf %199, %203 : vector<8x32xf32>
    %205 = vector.broadcast %185 : vector<1x32xf32> to vector<8x32xf32>
    %206 = arith.mulf %204, %205 : vector<8x32xf32>
    %207 = vector.broadcast %186 : vector<1x32xf32> to vector<8x32xf32>
    %208 = arith.addf %206, %207 : vector<8x32xf32>
    %209 = arith.truncf %208 : vector<8x32xf32> to vector<8x32xbf16>
    %c0_88 = arith.constant 0 : index
    %c0_89 = arith.constant 0 : index
    %210 = vector.load %arg15[%c0_88, %c0_89] : memref<32x64xbf16, #tpu.memory_space<vmem>>, vector<32x64xbf16>
    %cst_90 = arith.constant dense<0.000000e+00> : vector<8x64xf32>
    %211 = tpu.matmul %209, %210, %cst_90 {dimension_numbers = #tpu.dot_dimension_numbers<[1], [0], [0], [1], [0, 0, 1, 1], [], []>} : vector<8x32xbf16>, vector<32x64xbf16>, vector<8x64xf32> -> vector<8x64xf32>
    %c0_91 = arith.constant 0 : index
    %c0_92 = arith.constant 0 : index
    %212 = vector.load %arg16[%c0_91, %c0_92] : memref<1x64xf32, #tpu.memory_space<vmem>>, vector<1x64xf32>
    %213 = vector.broadcast %212 : vector<1x64xf32> to vector<8x64xf32>
    %214 = arith.addf %211, %213 : vector<8x64xf32>
    %cst_93 = arith.constant 5.000000e-01 : f32
    %215 = vector.broadcast %cst_93 : f32 to vector<8x64xf32>
    %216 = arith.mulf %215, %214 : vector<8x64xf32>
    %cst_94 = arith.constant 0.707106769 : f32
    %217 = vector.broadcast %cst_94 : f32 to vector<8x64xf32>
    %218 = arith.mulf %214, %217 : vector<8x64xf32>
    %219 = math.absf %218 : vector<8x64xf32>
    %cst_95 = arith.constant 0.327591091 : f32
    %220 = vector.broadcast %cst_95 : f32 to vector<8x64xf32>
    %221 = arith.mulf %220, %219 : vector<8x64xf32>
    %cst_96 = arith.constant 1.000000e+00 : f32
    %222 = vector.broadcast %cst_96 : f32 to vector<8x64xf32>
    %223 = arith.addf %222, %221 : vector<8x64xf32>
    %cst_97 = arith.constant 1.000000e+00 : f32
    %224 = vector.broadcast %cst_97 : f32 to vector<8x64xf32>
    %225 = arith.divf %224, %223 : vector<8x64xf32>
    %cst_98 = arith.constant 1.06140542 : f32
    %226 = vector.broadcast %cst_98 : f32 to vector<8x64xf32>
    %227 = arith.mulf %226, %225 : vector<8x64xf32>
    %cst_99 = arith.constant -1.45315206 : f32
    %228 = vector.broadcast %cst_99 : f32 to vector<8x64xf32>
    %229 = arith.addf %227, %228 : vector<8x64xf32>
    %230 = arith.mulf %229, %225 : vector<8x64xf32>
    %cst_100 = arith.constant 1.42141378 : f32
    %231 = vector.broadcast %cst_100 : f32 to vector<8x64xf32>
    %232 = arith.addf %230, %231 : vector<8x64xf32>
    %233 = arith.mulf %232, %225 : vector<8x64xf32>
    %cst_101 = arith.constant -0.284496725 : f32
    %234 = vector.broadcast %cst_101 : f32 to vector<8x64xf32>
    %235 = arith.addf %233, %234 : vector<8x64xf32>
    %236 = arith.mulf %235, %225 : vector<8x64xf32>
    %cst_102 = arith.constant 0.254829586 : f32
    %237 = vector.broadcast %cst_102 : f32 to vector<8x64xf32>
    %238 = arith.addf %236, %237 : vector<8x64xf32>
    %239 = arith.mulf %238, %225 : vector<8x64xf32>
    %cst_103 = arith.constant 0.000000e+00 : f32
    %240 = vector.broadcast %cst_103 : f32 to vector<8x64xf32>
    %241 = arith.subf %240, %219 : vector<8x64xf32>
    %242 = arith.mulf %241, %219 : vector<8x64xf32>
    %243 = math.exp %242 : vector<8x64xf32>
    %244 = arith.mulf %239, %243 : vector<8x64xf32>
    %cst_104 = arith.constant 1.000000e+00 : f32
    %245 = vector.broadcast %cst_104 : f32 to vector<8x64xf32>
    %246 = arith.subf %245, %244 : vector<8x64xf32>
    %cst_105 = arith.constant 0.000000e+00 : f32
    %247 = vector.broadcast %cst_105 : f32 to vector<8x64xf32>
    %248 = arith.cmpf olt, %218, %247 : vector<8x64xf32>
    %cst_106 = arith.constant 0.000000e+00 : f32
    %249 = vector.broadcast %cst_106 : f32 to vector<8x64xf32>
    %250 = arith.subf %249, %246 : vector<8x64xf32>
    %251 = arith.select %248, %250, %246 : vector<8x64xi1>, vector<8x64xf32>
    %cst_107 = arith.constant 1.000000e+00 : f32
    %252 = vector.broadcast %cst_107 : f32 to vector<8x64xf32>
    %253 = arith.addf %252, %251 : vector<8x64xf32>
    %254 = arith.mulf %216, %253 : vector<8x64xf32>
    %255 = arith.truncf %254 : vector<8x64xf32> to vector<8x64xbf16>
    %c0_108 = arith.constant 0 : index
    %c0_109 = arith.constant 0 : index
    %256 = vector.load %arg17[%c0_108, %c0_109] : memref<64x32xbf16, #tpu.memory_space<vmem>>, vector<64x32xbf16>
    %cst_110 = arith.constant dense<0.000000e+00> : vector<8x32xf32>
    %257 = tpu.matmul %255, %256, %cst_110 {dimension_numbers = #tpu.dot_dimension_numbers<[1], [0], [0], [1], [0, 0, 1, 1], [], []>} : vector<8x64xbf16>, vector<64x32xbf16>, vector<8x32xf32> -> vector<8x32xf32>
    %c0_111 = arith.constant 0 : index
    %c0_112 = arith.constant 0 : index
    %258 = vector.load %arg18[%c0_111, %c0_112] : memref<1x32xf32, #tpu.memory_space<vmem>>, vector<1x32xf32>
    %259 = vector.broadcast %258 : vector<1x32xf32> to vector<8x32xf32>
    %260 = arith.addf %257, %259 : vector<8x32xf32>
    %261 = arith.addf %208, %260 : vector<8x32xf32>
    %c0_113 = arith.constant 0 : index
    %c0_114 = arith.constant 0 : index
    %262 = vector.load %arg21[%c0_113, %c0_114] : memref<1x32xf32, #tpu.memory_space<vmem>>, vector<1x32xf32>
    %c0_115 = arith.constant 0 : index
    %c0_116 = arith.constant 0 : index
    %263 = vector.load %arg22[%c0_115, %c0_116] : memref<1x32xf32, #tpu.memory_space<vmem>>, vector<1x32xf32>
    %cst_117 = arith.constant dense<0.000000e+00> : vector<8xf32>
    %264 = vector.multi_reduction <add>, %261, %cst_117 [1] : vector<8x32xf32> to vector<8xf32>
    %265 = vector.shape_cast %264 : vector<8xf32> to vector<8x1xf32>
    %cst_118 = arith.constant 3.200000e+01 : f32
    %266 = vector.broadcast %cst_118 : f32 to vector<8x1xf32>
    %267 = arith.divf %265, %266 : vector<8x1xf32>
    %268 = vector.broadcast %267 : vector<8x1xf32> to vector<8x32xf32>
    %269 = arith.subf %261, %268 : vector<8x32xf32>
    %270 = arith.mulf %269, %269 : vector<8x32xf32>
    %cst_119 = arith.constant dense<0.000000e+00> : vector<8xf32>
    %271 = vector.multi_reduction <add>, %270, %cst_119 [1] : vector<8x32xf32> to vector<8xf32>
    %272 = vector.shape_cast %271 : vector<8xf32> to vector<8x1xf32>
    %cst_120 = arith.constant 3.200000e+01 : f32
    %273 = vector.broadcast %cst_120 : f32 to vector<8x1xf32>
    %274 = arith.divf %272, %273 : vector<8x1xf32>
    %275 = vector.broadcast %267 : vector<8x1xf32> to vector<8x32xf32>
    %276 = arith.subf %261, %275 : vector<8x32xf32>
    %cst_121 = arith.constant 9.99999971E-10 : f32
    %277 = vector.broadcast %cst_121 : f32 to vector<8x1xf32>
    %278 = arith.addf %274, %277 : vector<8x1xf32>
    %279 = math.sqrt %278 : vector<8x1xf32>
    %280 = vector.broadcast %279 : vector<8x1xf32> to vector<8x32xf32>
    %281 = arith.divf %276, %280 : vector<8x32xf32>
    %282 = vector.broadcast %262 : vector<1x32xf32> to vector<8x32xf32>
    %283 = arith.mulf %281, %282 : vector<8x32xf32>
    %284 = vector.broadcast %263 : vector<1x32xf32> to vector<8x32xf32>
    %285 = arith.addf %283, %284 : vector<8x32xf32>
    %286 = arith.addf %172, %174 : vector<8x8xf32>
    %cst_122 = arith.constant dense<0.000000e+00> : vector<8xf32>
    %287 = vector.multi_reduction <add>, %286, %cst_122 [1] : vector<8x8xf32> to vector<8xf32>
    %288 = vector.shape_cast %287 : vector<8xf32> to vector<8x1xf32>
    %289 = tpu.reciprocal %288 {approx = true} : vector<8x1xf32> -> vector<8x1xf32>
    %290 = vector.broadcast %289 : vector<8x1xf32> to vector<8x8xf32>
    %291 = arith.mulf %286, %290 : vector<8x8xf32>
    %c0_123 = arith.constant 0 : index
    %c0_124 = arith.constant 0 : index
    %c0_125 = arith.constant 0 : index
    %292 = vector.load %arg23[%c0_123, %c0_124, %c0_125] : memref<1x8x32xf32, #tpu.memory_space<vmem>>, vector<1x8x32xf32>
    %293 = vector.shape_cast %292 : vector<1x8x32xf32> to vector<8x32xf32>
    %294 = vector.shape_cast %285 : vector<8x32xf32> to vector<1x8x32xf32>
    tpu.vector_store %arg23[%c0_123, %c0_124, %c0_125], %294 {strides = array<i32>} : memref<1x8x32xf32, #tpu.memory_space<vmem>>, vector<1x8x32xf32>,
    %c0_126 = arith.constant 0 : index
    %c0_127 = arith.constant 0 : index
    %c0_128 = arith.constant 0 : index
    %295 = vector.load %arg24[%c0_126, %c0_127, %c0_128] : memref<1x8x32xf32, #tpu.memory_space<vmem>>, vector<1x8x32xf32>
    %296 = vector.shape_cast %295 : vector<1x8x32xf32> to vector<8x32xf32>
    %297 = vector.shape_cast %183 : vector<8x32xf32> to vector<1x8x32xf32>
    tpu.vector_store %arg24[%c0_126, %c0_127, %c0_128], %297 {strides = array<i32>} : memref<1x8x32xf32, #tpu.memory_space<vmem>>, vector<1x8x32xf32>,
    %298 = arith.truncf %291 : vector<8x8xf32> to vector<8x8xbf16>
    %c0_129 = arith.constant 0 : index
    %c0_130 = arith.constant 0 : index
    %c0_131 = arith.constant 0 : index
    %299 = vector.load %arg25[%c0_129, %c0_130, %c0_131] : memref<1x8x8xbf16, #tpu.memory_space<vmem>>, vector<1x8x8xbf16>
    %300 = vector.shape_cast %299 : vector<1x8x8xbf16> to vector<8x8xbf16>
    %301 = vector.shape_cast %298 : vector<8x8xbf16> to vector<1x8x8xbf16>
    tpu.vector_store %arg25[%c0_129, %c0_130, %c0_131], %301 {strides = array<i32>} : memref<1x8x8xbf16, #tpu.memory_space<vmem>>, vector<1x8x8xbf16>,
    %302 = arith.truncf %172 : vector<8x8xf32> to vector<8x8xbf16>
    %c0_132 = arith.constant 0 : index
    %c0_133 = arith.constant 0 : index
    %c0_134 = arith.constant 0 : index
    %303 = vector.load %arg26[%c0_132, %c0_133, %c0_134] : memref<1x8x8xbf16, #tpu.memory_space<vmem>>, vector<1x8x8xbf16>
    %304 = vector.shape_cast %303 : vector<1x8x8xbf16> to vector<8x8xbf16>
    %305 = vector.shape_cast %302 : vector<8x8xbf16> to vector<1x8x8xbf16>
    tpu.vector_store %arg26[%c0_132, %c0_133, %c0_134], %305 {strides = array<i32>} : memref<1x8x8xbf16, #tpu.memory_space<vmem>>, vector<1x8x8xbf16>,
    %306 = arith.truncf %174 : vector<8x8xf32> to vector<8x8xbf16>
    %c0_135 = arith.constant 0 : index
    %c0_136 = arith.constant 0 : index
    %c0_137 = arith.constant 0 : index
    %307 = vector.load %arg27[%c0_135, %c0_136, %c0_137] : memref<1x8x8xbf16, #tpu.memory_space<vmem>>, vector<1x8x8xbf16>
    %308 = vector.shape_cast %307 : vector<1x8x8xbf16> to vector<8x8xbf16>
    %309 = vector.shape_cast %306 : vector<8x8xbf16> to vector<1x8x8xbf16>
    tpu.vector_store %arg27[%c0_135, %c0_136, %c0_137], %309 {strides = array<i32>} : memref<1x8x8xbf16, #tpu.memory_space<vmem>>, vector<1x8x8xbf16>,
    return
  }
  func.func @transform_0(%arg0: i32, %arg1: i32) -> (i32, i32, i32) {
    %c0_i32 = arith.constant 0 : i32
    %c0_i32_0 = arith.constant 0 : i32
    %c0_i32_1 = arith.constant 0 : i32
    return %arg0, %c0_i32, %c0_i32_0 : i32, i32, i32
  }
  func.func @transform_1(%arg0: i32, %arg1: i32) -> (i32, i32, i32) {
    %c0_i32 = arith.constant 0 : i32
    %c0_i32_0 = arith.constant 0 : i32
    %c0_i32_1 = arith.constant 0 : i32
    return %arg0, %c0_i32, %c0_i32_0 : i32, i32, i32
  }
  func.func @transform_2(%arg0: i32, %arg1: i32) -> (i32, i32) {
    %c0_i32 = arith.constant 0 : i32
    %c0_i32_0 = arith.constant 0 : i32
    return %arg1, %c0_i32 : i32, i32
  }
  func.func @transform_3(%arg0: i32, %arg1: i32) -> (i32, i32) {
    %c0_i32 = arith.constant 0 : i32
    %c0_i32_0 = arith.constant 0 : i32
    %c0_i32_1 = arith.constant 0 : i32
    return %c0_i32, %c0_i32_0 : i32, i32
  }
  func.func @transform_4(%arg0: i32, %arg1: i32) -> (i32, i32) {
    %c0_i32 = arith.constant 0 : i32
    %c0_i32_0 = arith.constant 0 : i32
    %c0_i32_1 = arith.constant 0 : i32
    return %c0_i32, %c0_i32_0 : i32, i32
  }
  func.func @transform_5(%arg0: i32, %arg1: i32) -> (i32, i32) {
    %c0_i32 = arith.constant 0 : i32
    %c0_i32_0 = arith.constant 0 : i32
    %c0_i32_1 = arith.constant 0 : i32
    return %c0_i32, %c0_i32_0 : i32, i32
  }
  func.func @transform_6(%arg0: i32, %arg1: i32) -> (i32, i32) {
    %c0_i32 = arith.constant 0 : i32
    %c0_i32_0 = arith.constant 0 : i32
    %c0_i32_1 = arith.constant 0 : i32
    return %c0_i32, %c0_i32_0 : i32, i32
  }
  func.func @transform_7(%arg0: i32, %arg1: i32) -> (i32, i32) {
    %c0_i32 = arith.constant 0 : i32
    %c0_i32_0 = arith.constant 0 : i32
    %c0_i32_1 = arith.constant 0 : i32
    return %c0_i32, %c0_i32_0 : i32, i32
  }
  func.func @transform_8(%arg0: i32, %arg1: i32) -> (i32, i32) {
    %c0_i32 = arith.constant 0 : i32
    %c0_i32_0 = arith.constant 0 : i32
    %c0_i32_1 = arith.constant 0 : i32
    return %c0_i32, %c0_i32_0 : i32, i32
  }
  func.func @transform_9(%arg0: i32, %arg1: i32) -> (i32, i32) {
    %c0_i32 = arith.constant 0 : i32
    %c0_i32_0 = arith.constant 0 : i32
    %c0_i32_1 = arith.constant 0 : i32
    return %c0_i32, %c0_i32_0 : i32, i32
  }
  func.func @transform_10(%arg0: i32, %arg1: i32) -> (i32, i32) {
    %c0_i32 = arith.constant 0 : i32
    %c0_i32_0 = arith.constant 0 : i32
    %c0_i32_1 = arith.constant 0 : i32
    return %c0_i32, %c0_i32_0 : i32, i32
  }
  func.func @transform_11(%arg0: i32, %arg1: i32) -> (i32, i32) {
    %c0_i32 = arith.constant 0 : i32
    %c0_i32_0 = arith.constant 0 : i32
    %c0_i32_1 = arith.constant 0 : i32
    return %c0_i32, %c0_i32_0 : i32, i32
  }
  func.func @transform_12(%arg0: i32, %arg1: i32) -> (i32, i32) {
    %c0_i32 = arith.constant 0 : i32
    %c0_i32_0 = arith.constant 0 : i32
    %c0_i32_1 = arith.constant 0 : i32
    return %c0_i32, %c0_i32_0 : i32, i32
  }
  func.func @transform_13(%arg0: i32, %arg1: i32) -> (i32, i32) {
    %c0_i32 = arith.constant 0 : i32
    %c0_i32_0 = arith.constant 0 : i32
    %c0_i32_1 = arith.constant 0 : i32
    return %c0_i32, %c0_i32_0 : i32, i32
  }
  func.func @transform_14(%arg0: i32, %arg1: i32) -> (i32, i32) {
    %c0_i32 = arith.constant 0 : i32
    %c0_i32_0 = arith.constant 0 : i32
    %c0_i32_1 = arith.constant 0 : i32
    return %c0_i32, %c0_i32_0 : i32, i32
  }
  func.func @transform_15(%arg0: i32, %arg1: i32) -> (i32, i32) {
    %c0_i32 = arith.constant 0 : i32
    %c0_i32_0 = arith.constant 0 : i32
    %c0_i32_1 = arith.constant 0 : i32
    return %c0_i32, %c0_i32_0 : i32, i32
  }
  func.func @transform_16(%arg0: i32, %arg1: i32) -> (i32, i32) {
    %c0_i32 = arith.constant 0 : i32
    %c0_i32_0 = arith.constant 0 : i32
    %c0_i32_1 = arith.constant 0 : i32
    return %c0_i32, %c0_i32_0 : i32, i32
  }
  func.func @transform_17(%arg0: i32, %arg1: i32) -> (i32, i32) {
    %c0_i32 = arith.constant 0 : i32
    %c0_i32_0 = arith.constant 0 : i32
    %c0_i32_1 = arith.constant 0 : i32
    return %c0_i32, %c0_i32_0 : i32, i32
  }
  func.func @transform_18(%arg0: i32, %arg1: i32) -> (i32, i32) {
    %c0_i32 = arith.constant 0 : i32
    %c0_i32_0 = arith.constant 0 : i32
    %c0_i32_1 = arith.constant 0 : i32
    return %c0_i32, %c0_i32_0 : i32, i32
  }
  func.func @transform_19(%arg0: i32, %arg1: i32) -> (i32, i32) {
    %c0_i32 = arith.constant 0 : i32
    %c0_i32_0 = arith.constant 0 : i32
    %c0_i32_1 = arith.constant 0 : i32
    return %c0_i32, %c0_i32_0 : i32, i32
  }
  func.func @transform_20(%arg0: i32, %arg1: i32) -> (i32, i32) {
    %c0_i32 = arith.constant 0 : i32
    %c0_i32_0 = arith.constant 0 : i32
    %c0_i32_1 = arith.constant 0 : i32
    return %c0_i32, %c0_i32_0 : i32, i32
  }
  func.func @transform_21(%arg0: i32, %arg1: i32) -> (i32, i32, i32) {
    %c0_i32 = arith.constant 0 : i32
    %c0_i32_0 = arith.constant 0 : i32
    return %arg0, %arg1, %c0_i32 : i32, i32, i32
  }
  func.func @transform_22(%arg0: i32, %arg1: i32) -> (i32, i32, i32) {
    %c0_i32 = arith.constant 0 : i32
    %c0_i32_0 = arith.constant 0 : i32
    return %arg0, %arg1, %c0_i32 : i32, i32, i32
  }
  func.func @transform_23(%arg0: i32, %arg1: i32) -> (i32, i32, i32) {
    %c0_i32 = arith.constant 0 : i32
    %c0_i32_0 = arith.constant 0 : i32
    return %arg0, %arg1, %c0_i32 : i32, i32, i32
  }
  func.func @transform_24(%arg0: i32, %arg1: i32) -> (i32, i32, i32) {
    %c0_i32 = arith.constant 0 : i32
    %c0_i32_0 = arith.constant 0 : i32
    return %arg0, %arg1, %c0_i32 : i32, i32, i32
  }
  func.func @transform_25(%arg0: i32, %arg1: i32) -> (i32, i32, i32) {
    %c0_i32 = arith.constant 0 : i32
    %c0_i32_0 = arith.constant 0 : i32
    return %arg0, %arg1, %c0_i32 : i32, i32, i32
  }
}

</mosaic_0001>

<llo_original>
// kernel: tpu_custom_call.1
$region0: #{tpu_custom_call.1}
  #allocation0 [shape = 'u32[]', space=smem, size = 0x4, offset = 0x4, fixed_abs, tag = 'smem constant byte address 0x4 - core index']
  #allocation1 [shape = 'u32[144,128]{1,0:T(1,128)}', space=vmem, size = 0x12000, scoped, tag = 'internal scratch']
  #allocation2 [shape = 'bf16[8,64]{1,0:T(8,128)(2,1)}', space=vmem, size = 0x800, scoped, tag = 'scratch operand']
  #allocation3 [shape = 'bf16[8,32]{1,0:T(8,128)(2,1)}', space=vmem, size = 0x800, scoped, tag = 'scratch operand']
  %s0 = inlined_call_operand.hbm [shape: f32[2,8,32], index: 0, kind: input, shape index: {}]
  %s1 = inlined_call_operand.hbm [shape: f32[2,8,32], index: 1, kind: input, shape index: {}]
  %s2 = inlined_call_operand.hbm [shape: bf16[8,8], index: 2, kind: input, shape index: {}]
  %s3 = inlined_call_operand.hbm [shape: bf16[32,64], index: 3, kind: input, shape index: {}]
  %s4 = inlined_call_operand.hbm [shape: f32[1,64], index: 4, kind: input, shape index: {}]
  %s5 = inlined_call_operand.hbm [shape: bf16[32,64], index: 5, kind: input, shape index: {}]
  %s6 = inlined_call_operand.hbm [shape: f32[1,64], index: 6, kind: input, shape index: {}]
  %s7 = inlined_call_operand.hbm [shape: bf16[32,32], index: 7, kind: input, shape index: {}]
  %s8 = inlined_call_operand.hbm [shape: f32[1,32], index: 8, kind: input, shape index: {}]
  %s9 = inlined_call_operand.hbm [shape: bf16[32,32], index: 9, kind: input, shape index: {}]
  %s10 = inlined_call_operand.hbm [shape: f32[1,32], index: 10, kind: input, shape index: {}]
  %s11 = inlined_call_operand.hbm [shape: bf16[32,32], index: 11, kind: input, shape index: {}]
  %s12 = inlined_call_operand.hbm [shape: f32[1,32], index: 12, kind: input, shape index: {}]
  %s13 = inlined_call_operand.hbm [shape: bf16[32,64], index: 13, kind: input, shape index: {}]
  %s14 = inlined_call_operand.hbm [shape: f32[1,64], index: 14, kind: input, shape index: {}]
  %s15 = inlined_call_operand.hbm [shape: bf16[64,32], index: 15, kind: input, shape index: {}]
  %s16 = inlined_call_operand.hbm [shape: f32[1,32], index: 16, kind: input, shape index: {}]
  %s17 = inlined_call_operand.hbm [shape: f32[1,32], index: 17, kind: input, shape index: {}]
  %s18 = inlined_call_operand.hbm [shape: f32[1,32], index: 18, kind: input, shape index: {}]
  %s19 = inlined_call_operand.hbm [shape: f32[1,32], index: 19, kind: input, shape index: {}]
  %s20 = inlined_call_operand.hbm [shape: f32[1,32], index: 20, kind: input, shape index: {}]
  %s21 = inlined_call_operand.hbm [shape: f32[2,8,32], index: 21, kind: output, shape index: {0}]
  %s22 = inlined_call_operand.hbm [shape: f32[2,8,32], index: 22, kind: output, shape index: {1}]
  %s23 = inlined_call_operand.hbm [shape: bf16[2,8,8], index: 23, kind: output, shape index: {2}]
  %s24 = inlined_call_operand.hbm [shape: bf16[2,8,8], index: 24, kind: output, shape index: {3}]
  %s25 = inlined_call_operand.hbm [shape: bf16[2,8,8], index: 25, kind: output, shape index: {4}]
  %26 = xla_tuple %s21, %s22, %s23, %s24, %s25
  %s27 = sld [smem:[#allocation0]]
  $region237: #{tpu_custom_call.1} parent=0
    _
  %s29 = ssub.s32 1, %s27
  %s30 = scalar_select 0, %s29, %s27
  $region1: #{tpu_custom_call.1} parent=0
    #allocation4 [shape = 'u8[8192]{0}', space=vmem, size = 0x2000, scoped, tag = 'input window, operand 0']
    #allocation5 [shape = 's32[2]{0}', space=sflag, size = 0x8, scoped, tag = 'scoped memory for tpu_custom_call.1']
    #allocation6 [shape = 's32[2]{0}', space=sflag, size = 0x8, scoped, tag = 'scoped memory for tpu_custom_call.1']
    #allocation7 [shape = 'u8[8192]{0}', space=vmem, size = 0x2000, scoped, tag = 'input window, operand 1']
    #allocation8 [shape = 's32[2]{0}', space=sflag, size = 0x8, scoped, tag = 'scoped memory for tpu_custom_call.1']
    #allocation9 [shape = 'u8[2048]{0}', space=vmem, size = 0x800, scoped, tag = 'input window, operand 2, single buffered']
    #allocation10 [shape = 'u8[8192]{0}', space=vmem, size = 0x2000, scoped, tag = 'input window, operand 3, single buffered']
    #allocation11 [shape = 's32[1]{0}', space=sflag, size = 0x4, scoped, tag = 'scoped memory for tpu_custom_call.1']
    #allocation12 [shape = 'u8[512]{0}', space=vmem, size = 0x400, scoped, tag = 'input window, operand 4, single buffered']
    #allocation13 [shape = 'u8[8192]{0}', space=vmem, size = 0x2000, scoped, tag = 'input window, operand 5, single buffered']
    #allocation14 [shape = 's32[1]{0}', space=sflag, size = 0x4, scoped, tag = 'scoped memory for tpu_custom_call.1']
    #allocation15 [shape = 'u8[512]{0}', space=vmem, size = 0x400, scoped, tag = 'input window, operand 6, single buffered']
    #allocation16 [shape = 'u8[8192]{0}', space=vmem, size = 0x2000, scoped, tag = 'input window, operand 7, single buffered']
    #allocation17 [shape = 's32[1]{0}', space=sflag, size = 0x4, scoped, tag = 'scoped memory for tpu_custom_call.1']
    #allocation18 [shape = 'u8[512]{0}', space=vmem, size = 0x400, scoped, tag = 'input window, operand 8, single buffered']
    #allocation19 [shape = 'u8[8192]{0}', space=vmem, size = 0x2000, scoped, tag = 'input window, operand 9, single buffered']
    #allocation20 [shape = 's32[1]{0}', space=sflag, size = 0x4, scoped, tag = 'scoped memory for tpu_custom_call.1']
    #allocation21 [shape = 'u8[512]{0}', space=vmem, size = 0x400, scoped, tag = 'input window, operand 10, single buffered']
    #allocation22 [shape = 'u8[8192]{0}', space=vmem, size = 0x2000, scoped, tag = 'input window, operand 11, single buffered']
    #allocation23 [shape = 's32[1]{0}', space=sflag, size = 0x4, scoped, tag = 'scoped memory for tpu_custom_call.1']
    #allocation24 [shape = 'u8[512]{0}', space=vmem, size = 0x400, scoped, tag = 'input window, operand 12, single buffered']
    #allocation25 [shape = 'u8[8192]{0}', space=vmem, size = 0x2000, scoped, tag = 'input window, operand 13, single buffered']
    #allocation26 [shape = 's32[1]{0}', space=sflag, size = 0x4, scoped, tag = 'scoped memory for tpu_custom_call.1']
    #allocation27 [shape = 'u8[512]{0}', space=vmem, size = 0x400, scoped, tag = 'input window, operand 14, single buffered']
    #allocation28 [shape = 'u8[16384]{0}', space=vmem, size = 0x4000, scoped, tag = 'input window, operand 15, single buffered']
    #allocation29 [shape = 's32[1]{0}', space=sflag, size = 0x4, scoped, tag = 'scoped memory for tpu_custom_call.1']
    #allocation30 [shape = 'u8[512]{0}', space=vmem, size = 0x400, scoped, tag = 'input window, operand 16, single buffered']
    #allocation31 [shape = 'u8[512]{0}', space=vmem, size = 0x400, scoped, tag = 'input window, operand 17, single buffered']
    #allocation32 [shape = 's32[1]{0}', space=sflag, size = 0x4, scoped, tag = 'scoped memory for tpu_custom_call.1']
    #allocation33 [shape = 'u8[512]{0}', space=vmem, size = 0x400, scoped, tag = 'input window, operand 18, single buffered']
    #allocation34 [shape = 'u8[512]{0}', space=vmem, size = 0x400, scoped, tag = 'input window, operand 19, single buffered']
    #allocation35 [shape = 's32[1]{0}', space=sflag, size = 0x4, scoped, tag = 'scoped memory for tpu_custom_call.1']
    #allocation36 [shape = 'u8[512]{0}', space=vmem, size = 0x400, scoped, tag = 'input window, operand 20, single buffered']
    #allocation37 [shape = 'u8[8192]{0}', space=vmem, size = 0x2000, scoped, tag = 'output window, operand 0']
    #allocation38 [shape = 'u8[8192]{0}', space=vmem, size = 0x2000, scoped, tag = 'output window, operand 1']
    #allocation39 [shape = 's32[2]{0}', space=sflag, size = 0x8, scoped, tag = 'scoped memory for tpu_custom_call.1']
    #allocation40 [shape = 'u8[4096]{0}', space=vmem, size = 0x1000, scoped, tag = 'output window, operand 2']
    #allocation41 [shape = 'u8[4096]{0}', space=vmem, size = 0x1000, scoped, tag = 'output window, operand 3']
    #allocation42 [shape = 's32[2]{0}', space=sflag, size = 0x8, scoped, tag = 'scoped memory for tpu_custom_call.1']
    #allocation43 [shape = 'u8[4096]{0}', space=vmem, size = 0x1000, scoped, tag = 'output window, operand 4']
    %31 = vsyncpa [#allocation5], 0
    %s32 = scalar_lea.sflag [#allocation5], 1
    %33 = vsyncpa %s32, 0
    %34 = vsyncpa [#allocation8], 0
    %s35 = scalar_lea.sflag [#allocation8], 1
    %36 = vsyncpa %s35, 0
    %37 = vsyncpa [#allocation11], 0
    %38 = vsyncpa [#allocation14], 0
    %39 = vsyncpa [#allocation17], 0
    %40 = vsyncpa [#allocation20], 0
    %41 = vsyncpa [#allocation23], 0
    %42 = vsyncpa [#allocation26], 0
    %43 = vsyncpa [#allocation29], 0
    %44 = vsyncpa [#allocation32], 0
    %45 = vsyncpa [#allocation35], 0
    %46 = vsyncpa [#allocation6], 0
    %s47 = scalar_lea.sflag [#allocation6], 1
    %48 = vsyncpa %s47, 0
    %49 = vsyncpa [#allocation39], 0
    %s50 = scalar_lea.sflag [#allocation39], 1
    %51 = vsyncpa %s50, 0
    %52 = vsyncpa [#allocation42], 0
    %s53 = scalar_lea.sflag [#allocation42], 1
    %54 = vsyncpa %s53, 0
    loop: start=0, step=1, limit=4
    $region2: #{tpu_custom_call.1} parent=1 // loop_pre_header
      _
    $region3: #{tpu_custom_call.1} parent=1 // loop_header
      %s56 = sphi 0, %s60
      %p57 = scmp.ge.s32.totalorder %s56, 4
      %s63 = sphi 0, %s75
      %s64 = sphi 0, %s71
      %s65 = sphi 0, %s63
      %s66 = sphi 0, %s64
      %s67 = sphi 0, %s65
      %s68 = sphi 0, %s66
      %s78 = sphi 0, %s80
      %s81 = sphi 0, %s78
      %s82 = sphi 0, %s81
      %s98 = sphi 0, %s82
      %s104 = sphi 0, %s106
      %s107 = sphi 0, %s104
      %s108 = sphi 0, %s107
      %s124 = sphi 0, %s108
      %s130 = sphi 0, %s132
      %s133 = sphi 0, %s130
      %s134 = sphi 0, %s133
      %s150 = sphi 0, %s134
      %s154 = sphi 0, %s154
      %s156 = sphi 0, %s154
      %s157 = sphi 0, %s156
      %s171 = sphi 0, %s157
      %s175 = sphi 0, %s175
      %s177 = sphi 0, %s175
      %s178 = sphi 0, %s177
      %s192 = sphi 0, %s178
      %s196 = sphi 0, %s196
      %s198 = sphi 0, %s196
      %s199 = sphi 0, %s198
      %s213 = sphi 0, %s199
      %s217 = sphi 0, %s217
      %s219 = sphi 0, %s217
      %s220 = sphi 0, %s219
      %s234 = sphi 0, %s220
      %s238 = sphi 0, %s238
      %s240 = sphi 0, %s238
      %s241 = sphi 0, %s240
      %s255 = sphi 0, %s241
      %s259 = sphi 0, %s259
      %s261 = sphi 0, %s259
      %s262 = sphi 0, %s261
      %s276 = sphi 0, %s262
      %s280 = sphi 0, %s280
      %s282 = sphi 0, %s280
      %s283 = sphi 0, %s282
      %s297 = sphi 0, %s283
      %s301 = sphi 0, %s301
      %s303 = sphi 0, %s301
      %s304 = sphi 0, %s303
      %s318 = sphi 0, %s304
      %s322 = sphi 0, %s322
      %s324 = sphi 0, %s322
      %s325 = sphi 0, %s324
      %s339 = sphi 0, %s325
      %s343 = sphi 0, %s343
      %s345 = sphi 0, %s343
      %s346 = sphi 0, %s345
      %s360 = sphi 0, %s346
      %s364 = sphi 0, %s364
      %s366 = sphi 0, %s364
      %s367 = sphi 0, %s366
      %s381 = sphi 0, %s367
      %s385 = sphi 0, %s385
      %s387 = sphi 0, %s385
      %s388 = sphi 0, %s387
      %s402 = sphi 0, %s388
      %s406 = sphi 0, %s406
      %s408 = sphi 0, %s406
      %s409 = sphi 0, %s408
      %s423 = sphi 0, %s409
      %s427 = sphi 0, %s427
      %s429 = sphi 0, %s427
      %s430 = sphi 0, %s429
      %s444 = sphi 0, %s430
      %s448 = sphi 0, %s448
      %s450 = sphi 0, %s448
      %s451 = sphi 0, %s450
      %s465 = sphi 0, %s451
      %s469 = sphi 0, %s469
      %s471 = sphi 0, %s469
      %s472 = sphi 0, %s471
      %s486 = sphi 0, %s472
      %s490 = sphi 0, %s490
      %s492 = sphi 0, %s490
      %s493 = sphi 0, %s492
      %s507 = sphi 0, %s493
      %s511 = sphi 0, %s511
      %s513 = sphi 0, %s511
      %s514 = sphi 0, %s513
      %s528 = sphi 0, %s514
      %s536 = sphi 0, %s538
      %s539 = sphi 0, %s536
      %s540 = sphi 0, %s539
      %s556 = sphi 0, %s540
      %s564 = sphi 0, %s566
      %s567 = sphi 0, %s564
      %s568 = sphi 0, %s567
      %s584 = sphi 0, %s568
      %s592 = sphi 0, %s594
      %s595 = sphi 0, %s592
      %s596 = sphi 0, %s595
      %s612 = sphi 0, %s596
      %s620 = sphi 0, %s622
      %s623 = sphi 0, %s620
      %s624 = sphi 0, %s623
      %s640 = sphi 0, %s624
      %s648 = sphi 0, %s650
      %s651 = sphi 0, %s648
      %s652 = sphi 0, %s651
      %s668 = sphi 0, %s652
    $region4: #{tpu_custom_call.1} parent=1 // loop_header_branch
      %59 = sbr.rel (%p57) target = $region8
    $region5: #{tpu_custom_call.1} parent=1 // loop_body
      %s61 = ssub.s32 %s56, 1
      %s62 = ssub.s32 %s56, 2
      %s69 = sadd.s32 1, %s64
      %p70 = scmp.ge.s32.totalorder %s69, 1
      %s71 = scalar_select %p70, 0, %s69
      %s72 = sadd.s32 1, %s63
      %s73 = scalar_select %p70, %s72, %s63
      %p74 = scmp.ge.s32.totalorder %s73, 2
      %s75 = scalar_select %p74, 0, %s73
      %s76 = ssub.s32 %s63, %s75
      %p77 = scmp.eq.s32.totalorder %s76, 0
      %s79 = sadd.s32 %s78, 1
      %s80 = scalar_select %p77, %s78, %s79
      %p83 = pneg %p77
      %p84 = scmp.eq.s32.totalorder %s56, 1
      %p85 = por %p83, %p84
      %p86 = scmp.ne.s32.totalorder %s78, %s81
      %p87 = scmp.eq.s32.totalorder %s56, 0
      %p88 = por %p86, %p87
      %p89 = scmp.ne.s32.totalorder %s78, %s81
      %p90 = scmp.eq.s32.totalorder %s61, 1
      %p91 = por %p89, %p90
      %p92 = scmp.ne.s32.totalorder %s81, %s82
      %p93 = scmp.eq.s32.totalorder %s61, 0
      %p94 = por %p92, %p93
      %p95 = scmp.ne.s32.totalorder %s81, %s82
      %p96 = scmp.eq.s32.totalorder %s62, 1
      %p97 = por %p95, %p96
      %p99 = scmp.ne.s32.totalorder %s82, %s98
      %p100 = scmp.eq.s32.totalorder %s62, 0
      %p101 = por %p99, %p100
      %s102 = ssub.s32 %s63, %s75
      %p103 = scmp.eq.s32.totalorder %s102, 0
      %s105 = sadd.s32 %s104, 1
      %s106 = scalar_select %p103, %s104, %s105
      %p109 = pneg %p103
      %p110 = scmp.eq.s32.totalorder %s56, 1
      %p111 = por %p109, %p110
      %p112 = scmp.ne.s32.totalorder %s104, %s107
      %p113 = scmp.eq.s32.totalorder %s56, 0
      %p114 = por %p112, %p113
      %p115 = scmp.ne.s32.totalorder %s104, %s107
      %p116 = scmp.eq.s32.totalorder %s61, 1
      %p117 = por %p115, %p116
      %p118 = scmp.ne.s32.totalorder %s107, %s108
      %p119 = scmp.eq.s32.totalorder %s61, 0
      %p120 = por %p118, %p119
      %p121 = scmp.ne.s32.totalorder %s107, %s108
      %p122 = scmp.eq.s32.totalorder %s62, 1
      %p123 = por %p121, %p122
      %p125 = scmp.ne.s32.totalorder %s108, %s124
      %p126 = scmp.eq.s32.totalorder %s62, 0
      %p127 = por %p125, %p126
      %s128 = ssub.s32 %s64, %s71
      %p129 = scmp.eq.s32.totalorder %s128, 0
      %s131 = sadd.s32 %s130, 1
      %s132 = scalar_select %p129, %s130, %s131
      %p135 = pneg %p129
      %p136 = scmp.eq.s32.totalorder %s56, 1
      %p137 = por %p135, %p136
      %p138 = scmp.ne.s32.totalorder %s130, %s133
      %p139 = scmp.eq.s32.totalorder %s56, 0
      %p140 = por %p138, %p139
      %p141 = scmp.ne.s32.totalorder %s130, %s133
      %p142 = scmp.eq.s32.totalorder %s61, 1
      %p143 = por %p141, %p142
      %p144 = scmp.ne.s32.totalorder %s133, %s134
      %p145 = scmp.eq.s32.totalorder %s61, 0
      %p146 = por %p144, %p145
      %p147 = scmp.ne.s32.totalorder %s133, %s134
      %p148 = scmp.eq.s32.totalorder %s62, 1
      %p149 = por %p147, %p148
      %p151 = scmp.ne.s32.totalorder %s134, %s150
      %p152 = scmp.eq.s32.totalorder %s62, 0
      %p153 = por %p151, %p152
      %s155 = sadd.s32 %s154, 1
      %p158 = scmp.eq.s32.totalorder %s56, 1
      %p159 = scmp.ne.s32.totalorder %s154, %s156
      %p160 = scmp.eq.s32.totalorder %s56, 0
      %p161 = por %p159, %p160
      %p162 = scmp.ne.s32.totalorder %s154, %s156
      %p163 = scmp.eq.s32.totalorder %s61, 1
      %p164 = por %p162, %p163
      %p165 = scmp.ne.s32.totalorder %s156, %s157
      %p166 = scmp.eq.s32.totalorder %s61, 0
      %p167 = por %p165, %p166
      %p168 = scmp.ne.s32.totalorder %s156, %s157
      %p169 = scmp.eq.s32.totalorder %s62, 1
      %p170 = por %p168, %p169
      %p172 = scmp.ne.s32.totalorder %s157, %s171
      %p173 = scmp.eq.s32.totalorder %s62, 0
      %p174 = por %p172, %p173
      %s176 = sadd.s32 %s175, 1
      %p179 = scmp.eq.s32.totalorder %s56, 1
      %p180 = scmp.ne.s32.totalorder %s175, %s177
      %p181 = scmp.eq.s32.totalorder %s56, 0
      %p182 = por %p180, %p181
      %p183 = scmp.ne.s32.totalorder %s175, %s177
      %p184 = scmp.eq.s32.totalorder %s61, 1
      %p185 = por %p183, %p184
      %p186 = scmp.ne.s32.totalorder %s177, %s178
      %p187 = scmp.eq.s32.totalorder %s61, 0
      %p188 = por %p186, %p187
      %p189 = scmp.ne.s32.totalorder %s177, %s178
      %p190 = scmp.eq.s32.totalorder %s62, 1
      %p191 = por %p189, %p190
      %p193 = scmp.ne.s32.totalorder %s178, %s192
      %p194 = scmp.eq.s32.totalorder %s62, 0
      %p195 = por %p193, %p194
      %s197 = sadd.s32 %s196, 1
      %p200 = scmp.eq.s32.totalorder %s56, 1
      %p201 = scmp.ne.s32.totalorder %s196, %s198
      %p202 = scmp.eq.s32.totalorder %s56, 0
      %p203 = por %p201, %p202
      %p204 = scmp.ne.s32.totalorder %s196, %s198
      %p205 = scmp.eq.s32.totalorder %s61, 1
      %p206 = por %p204, %p205
      %p207 = scmp.ne.s32.totalorder %s198, %s199
      %p208 = scmp.eq.s32.totalorder %s61, 0
      %p209 = por %p207, %p208
      %p210 = scmp.ne.s32.totalorder %s198, %s199
      %p211 = scmp.eq.s32.totalorder %s62, 1
      %p212 = por %p210, %p211
      %p214 = scmp.ne.s32.totalorder %s199, %s213
      %p215 = scmp.eq.s32.totalorder %s62, 0
      %p216 = por %p214, %p215
      %s218 = sadd.s32 %s217, 1
      %p221 = scmp.eq.s32.totalorder %s56, 1
      %p222 = scmp.ne.s32.totalorder %s217, %s219
      %p223 = scmp.eq.s32.totalorder %s56, 0
      %p224 = por %p222, %p223
      %p225 = scmp.ne.s32.totalorder %s217, %s219
      %p226 = scmp.eq.s32.totalorder %s61, 1
      %p227 = por %p225, %p226
      %p228 = scmp.ne.s32.totalorder %s219, %s220
      %p229 = scmp.eq.s32.totalorder %s61, 0
      %p230 = por %p228, %p229
      %p231 = scmp.ne.s32.totalorder %s219, %s220
      %p232 = scmp.eq.s32.totalorder %s62, 1
      %p233 = por %p231, %p232
      %p235 = scmp.ne.s32.totalorder %s220, %s234
      %p236 = scmp.eq.s32.totalorder %s62, 0
      %p237 = por %p235, %p236
      %s239 = sadd.s32 %s238, 1
      %p242 = scmp.eq.s32.totalorder %s56, 1
      %p243 = scmp.ne.s32.totalorder %s238, %s240
      %p244 = scmp.eq.s32.totalorder %s56, 0
      %p245 = por %p243, %p244
      %p246 = scmp.ne.s32.totalorder %s238, %s240
      %p247 = scmp.eq.s32.totalorder %s61, 1
      %p248 = por %p246, %p247
      %p249 = scmp.ne.s32.totalorder %s240, %s241
      %p250 = scmp.eq.s32.totalorder %s61, 0
      %p251 = por %p249, %p250
      %p252 = scmp.ne.s32.totalorder %s240, %s241
      %p253 = scmp.eq.s32.totalorder %s62, 1
      %p254 = por %p252, %p253
      %p256 = scmp.ne.s32.totalorder %s241, %s255
      %p257 = scmp.eq.s32.totalorder %s62, 0
      %p258 = por %p256, %p257
      %s260 = sadd.s32 %s259, 1
      %p263 = scmp.eq.s32.totalorder %s56, 1
      %p264 = scmp.ne.s32.totalorder %s259, %s261
      %p265 = scmp.eq.s32.totalorder %s56, 0
      %p266 = por %p264, %p265
      %p267 = scmp.ne.s32.totalorder %s259, %s261
      %p268 = scmp.eq.s32.totalorder %s61, 1
      %p269 = por %p267, %p268
      %p270 = scmp.ne.s32.totalorder %s261, %s262
      %p271 = scmp.eq.s32.totalorder %s61, 0
      %p272 = por %p270, %p271
      %p273 = scmp.ne.s32.totalorder %s261, %s262
      %p274 = scmp.eq.s32.totalorder %s62, 1
      %p275 = por %p273, %p274
      %p277 = scmp.ne.s32.totalorder %s262, %s276
      %p278 = scmp.eq.s32.totalorder %s62, 0
      %p279 = por %p277, %p278
      %s281 = sadd.s32 %s280, 1
      %p284 = scmp.eq.s32.totalorder %s56, 1
      %p285 = scmp.ne.s32.totalorder %s280, %s282
      %p286 = scmp.eq.s32.totalorder %s56, 0
      %p287 = por %p285, %p286
      %p288 = scmp.ne.s32.totalorder %s280, %s282
      %p289 = scmp.eq.s32.totalorder %s61, 1
      %p290 = por %p288, %p289
      %p291 = scmp.ne.s32.totalorder %s282, %s283
      %p292 = scmp.eq.s32.totalorder %s61, 0
      %p293 = por %p291, %p292
      %p294 = scmp.ne.s32.totalorder %s282, %s283
      %p295 = scmp.eq.s32.totalorder %s62, 1
      %p296 = por %p294, %p295
      %p298 = scmp.ne.s32.totalorder %s283, %s297
      %p299 = scmp.eq.s32.totalorder %s62, 0
      %p300 = por %p298, %p299
      %s302 = sadd.s32 %s301, 1
      %p305 = scmp.eq.s32.totalorder %s56, 1
      %p306 = scmp.ne.s32.totalorder %s301, %s303
      %p307 = scmp.eq.s32.totalorder %s56, 0
      %p308 = por %p306, %p307
      %p309 = scmp.ne.s32.totalorder %s301, %s303
      %p310 = scmp.eq.s32.totalorder %s61, 1
      %p311 = por %p309, %p310
      %p312 = scmp.ne.s32.totalorder %s303, %s304
      %p313 = scmp.eq.s32.totalorder %s61, 0
      %p314 = por %p312, %p313
      %p315 = scmp.ne.s32.totalorder %s303, %s304
      %p316 = scmp.eq.s32.totalorder %s62, 1
      %p317 = por %p315, %p316
      %p319 = scmp.ne.s32.totalorder %s304, %s318
      %p320 = scmp.eq.s32.totalorder %s62, 0
      %p321 = por %p319, %p320
      %s323 = sadd.s32 %s322, 1
      %p326 = scmp.eq.s32.totalorder %s56, 1
      %p327 = scmp.ne.s32.totalorder %s322, %s324
      %p328 = scmp.eq.s32.totalorder %s56, 0
      %p329 = por %p327, %p328
      %p330 = scmp.ne.s32.totalorder %s322, %s324
      %p331 = scmp.eq.s32.totalorder %s61, 1
      %p332 = por %p330, %p331
      %p333 = scmp.ne.s32.totalorder %s324, %s325
      %p334 = scmp.eq.s32.totalorder %s61, 0
      %p335 = por %p333, %p334
      %p336 = scmp.ne.s32.totalorder %s324, %s325
      %p337 = scmp.eq.s32.totalorder %s62, 1
      %p338 = por %p336, %p337
      %p340 = scmp.ne.s32.totalorder %s325, %s339
      %p341 = scmp.eq.s32.totalorder %s62, 0
      %p342 = por %p340, %p341
      %s344 = sadd.s32 %s343, 1
      %p347 = scmp.eq.s32.totalorder %s56, 1
      %p348 = scmp.ne.s32.totalorder %s343, %s345
      %p349 = scmp.eq.s32.totalorder %s56, 0
      %p350 = por %p348, %p349
      %p351 = scmp.ne.s32.totalorder %s343, %s345
      %p352 = scmp.eq.s32.totalorder %s61, 1
      %p353 = por %p351, %p352
      %p354 = scmp.ne.s32.totalorder %s345, %s346
      %p355 = scmp.eq.s32.totalorder %s61, 0
      %p356 = por %p354, %p355
      %p357 = scmp.ne.s32.totalorder %s345, %s346
      %p358 = scmp.eq.s32.totalorder %s62, 1
      %p359 = por %p357, %p358
      %p361 = scmp.ne.s32.totalorder %s346, %s360
      %p362 = scmp.eq.s32.totalorder %s62, 0
      %p363 = por %p361, %p362
      %s365 = sadd.s32 %s364, 1
      %p368 = scmp.eq.s32.totalorder %s56, 1
      %p369 = scmp.ne.s32.totalorder %s364, %s366
      %p370 = scmp.eq.s32.totalorder %s56, 0
      %p371 = por %p369, %p370
      %p372 = scmp.ne.s32.totalorder %s364, %s366
      %p373 = scmp.eq.s32.totalorder %s61, 1
      %p374 = por %p372, %p373
      %p375 = scmp.ne.s32.totalorder %s366, %s367
      %p376 = scmp.eq.s32.totalorder %s61, 0
      %p377 = por %p375, %p376
      %p378 = scmp.ne.s32.totalorder %s366, %s367
      %p379 = scmp.eq.s32.totalorder %s62, 1
      %p380 = por %p378, %p379
      %p382 = scmp.ne.s32.totalorder %s367, %s381
      %p383 = scmp.eq.s32.totalorder %s62, 0
      %p384 = por %p382, %p383
      %s386 = sadd.s32 %s385, 1
      %p389 = scmp.eq.s32.totalorder %s56, 1
      %p390 = scmp.ne.s32.totalorder %s385, %s387
      %p391 = scmp.eq.s32.totalorder %s56, 0
      %p392 = por %p390, %p391
      %p393 = scmp.ne.s32.totalorder %s385, %s387
      %p394 = scmp.eq.s32.totalorder %s61, 1
      %p395 = por %p393, %p394
      %p396 = scmp.ne.s32.totalorder %s387, %s388
      %p397 = scmp.eq.s32.totalorder %s61, 0
      %p398 = por %p396, %p397
      %p399 = scmp.ne.s32.totalorder %s387, %s388
      %p400 = scmp.eq.s32.totalorder %s62, 1
      %p401 = por %p399, %p400
      %p403 = scmp.ne.s32.totalorder %s388, %s402
      %p404 = scmp.eq.s32.totalorder %s62, 0
      %p405 = por %p403, %p404
      %s407 = sadd.s32 %s406, 1
      %p410 = scmp.eq.s32.totalorder %s56, 1
      %p411 = scmp.ne.s32.totalorder %s406, %s408
      %p412 = scmp.eq.s32.totalorder %s56, 0
      %p413 = por %p411, %p412
      %p414 = scmp.ne.s32.totalorder %s406, %s408
      %p415 = scmp.eq.s32.totalorder %s61, 1
      %p416 = por %p414, %p415
      %p417 = scmp.ne.s32.totalorder %s408, %s409
      %p418 = scmp.eq.s32.totalorder %s61, 0
      %p419 = por %p417, %p418
      %p420 = scmp.ne.s32.totalorder %s408, %s409
      %p421 = scmp.eq.s32.totalorder %s62, 1
      %p422 = por %p420, %p421
      %p424 = scmp.ne.s32.totalorder %s409, %s423
      %p425 = scmp.eq.s32.totalorder %s62, 0
      %p426 = por %p424, %p425
      %s428 = sadd.s32 %s427, 1
      %p431 = scmp.eq.s32.totalorder %s56, 1
      %p432 = scmp.ne.s32.totalorder %s427, %s429
      %p433 = scmp.eq.s32.totalorder %s56, 0
      %p434 = por %p432, %p433
      %p435 = scmp.ne.s32.totalorder %s427, %s429
      %p436 = scmp.eq.s32.totalorder %s61, 1
      %p437 = por %p435, %p436
      %p438 = scmp.ne.s32.totalorder %s429, %s430
      %p439 = scmp.eq.s32.totalorder %s61, 0
      %p440 = por %p438, %p439
      %p441 = scmp.ne.s32.totalorder %s429, %s430
      %p442 = scmp.eq.s32.totalorder %s62, 1
      %p443 = por %p441, %p442
      %p445 = scmp.ne.s32.totalorder %s430, %s444
      %p446 = scmp.eq.s32.totalorder %s62, 0
      %p447 = por %p445, %p446
      %s449 = sadd.s32 %s448, 1
      %p452 = scmp.eq.s32.totalorder %s56, 1
      %p453 = scmp.ne.s32.totalorder %s448, %s450
      %p454 = scmp.eq.s32.totalorder %s56, 0
      %p455 = por %p453, %p454
      %p456 = scmp.ne.s32.totalorder %s448, %s450
      %p457 = scmp.eq.s32.totalorder %s61, 1
      %p458 = por %p456, %p457
      %p459 = scmp.ne.s32.totalorder %s450, %s451
      %p460 = scmp.eq.s32.totalorder %s61, 0
      %p461 = por %p459, %p460
      %p462 = scmp.ne.s32.totalorder %s450, %s451
      %p463 = scmp.eq.s32.totalorder %s62, 1
      %p464 = por %p462, %p463
      %p466 = scmp.ne.s32.totalorder %s451, %s465
      %p467 = scmp.eq.s32.totalorder %s62, 0
      %p468 = por %p466, %p467
      %s470 = sadd.s32 %s469, 1
      %p473 = scmp.eq.s32.totalorder %s56, 1
      %p474 = scmp.ne.s32.totalorder %s469, %s471
      %p475 = scmp.eq.s32.totalorder %s56, 0
      %p476 = por %p474, %p475
      %p477 = scmp.ne.s32.totalorder %s469, %s471
      %p478 = scmp.eq.s32.totalorder %s61, 1
      %p479 = por %p477, %p478
      %p480 = scmp.ne.s32.totalorder %s471, %s472
      %p481 = scmp.eq.s32.totalorder %s61, 0
      %p482 = por %p480, %p481
      %p483 = scmp.ne.s32.totalorder %s471, %s472
      %p484 = scmp.eq.s32.totalorder %s62, 1
      %p485 = por %p483, %p484
      %p487 = scmp.ne.s32.totalorder %s472, %s486
      %p488 = scmp.eq.s32.totalorder %s62, 0
      %p489 = por %p487, %p488
      %s491 = sadd.s32 %s490, 1
      %p494 = scmp.eq.s32.totalorder %s56, 1
      %p495 = scmp.ne.s32.totalorder %s490, %s492
      %p496 = scmp.eq.s32.totalorder %s56, 0
      %p497 = por %p495, %p496
      %p498 = scmp.ne.s32.totalorder %s490, %s492
      %p499 = scmp.eq.s32.totalorder %s61, 1
      %p500 = por %p498, %p499
      %p501 = scmp.ne.s32.totalorder %s492, %s493
      %p502 = scmp.eq.s32.totalorder %s61, 0
      %p503 = por %p501, %p502
      %p504 = scmp.ne.s32.totalorder %s492, %s493
      %p505 = scmp.eq.s32.totalorder %s62, 1
      %p506 = por %p504, %p505
      %p508 = scmp.ne.s32.totalorder %s493, %s507
      %p509 = scmp.eq.s32.totalorder %s62, 0
      %p510 = por %p508, %p509
      %s512 = sadd.s32 %s511, 1
      %p515 = scmp.eq.s32.totalorder %s56, 1
      %p516 = scmp.ne.s32.totalorder %s511, %s513
      %p517 = scmp.eq.s32.totalorder %s56, 0
      %p518 = por %p516, %p517
      %p519 = scmp.ne.s32.totalorder %s511, %s513
      %p520 = scmp.eq.s32.totalorder %s61, 1
      %p521 = por %p519, %p520
      %p522 = scmp.ne.s32.totalorder %s513, %s514
      %p523 = scmp.eq.s32.totalorder %s61, 0
      %p524 = por %p522, %p523
      %p525 = scmp.ne.s32.totalorder %s513, %s514
      %p526 = scmp.eq.s32.totalorder %s62, 1
      %p527 = por %p525, %p526
      %p529 = scmp.ne.s32.totalorder %s514, %s528
      %p530 = scmp.eq.s32.totalorder %s62, 0
      %p531 = por %p529, %p530
      %s532 = ssub.s32 %s63, %s75
      %s533 = ssub.s32 %s64, %s71
      %s534 = sor.u32 %s532, %s533
      %p535 = scmp.eq.s32.totalorder %s534, 0
      %s537 = sadd.s32 %s536, 1
      %s538 = scalar_select %p535, %s536, %s537
      %p541 = pneg %p535
      %p542 = scmp.eq.s32.totalorder %s56, 1
      %p543 = por %p541, %p542
      %p544 = scmp.ne.s32.totalorder %s536, %s539
      %p545 = scmp.eq.s32.totalorder %s56, 0
      %p546 = por %p544, %p545
      %p547 = scmp.ne.s32.totalorder %s536, %s539
      %p548 = scmp.eq.s32.totalorder %s61, 1
      %p549 = por %p547, %p548
      %p550 = scmp.ne.s32.totalorder %s539, %s540
      %p551 = scmp.eq.s32.totalorder %s61, 0
      %p552 = por %p550, %p551
      %p553 = scmp.ne.s32.totalorder %s539, %s540
      %p554 = scmp.eq.s32.totalorder %s62, 1
      %p555 = por %p553, %p554
      %p557 = scmp.ne.s32.totalorder %s540, %s556
      %p558 = scmp.eq.s32.totalorder %s62, 0
      %p559 = por %p557, %p558
      %s560 = ssub.s32 %s63, %s75
      %s561 = ssub.s32 %s64, %s71
      %s562 = sor.u32 %s560, %s561
      %p563 = scmp.eq.s32.totalorder %s562, 0
      %s565 = sadd.s32 %s564, 1
      %s566 = scalar_select %p563, %s564, %s565
      %p569 = pneg %p563
      %p570 = scmp.eq.s32.totalorder %s56, 1
      %p571 = por %p569, %p570
      %p572 = scmp.ne.s32.totalorder %s564, %s567
      %p573 = scmp.eq.s32.totalorder %s56, 0
      %p574 = por %p572, %p573
      %p575 = scmp.ne.s32.totalorder %s564, %s567
      %p576 = scmp.eq.s32.totalorder %s61, 1
      %p577 = por %p575, %p576
      %p578 = scmp.ne.s32.totalorder %s567, %s568
      %p579 = scmp.eq.s32.totalorder %s61, 0
      %p580 = por %p578, %p579
      %p581 = scmp.ne.s32.totalorder %s567, %s568
      %p582 = scmp.eq.s32.totalorder %s62, 1
      %p583 = por %p581, %p582
      %p585 = scmp.ne.s32.totalorder %s568, %s584
      %p586 = scmp.eq.s32.totalorder %s62, 0
      %p587 = por %p585, %p586
      %s588 = ssub.s32 %s63, %s75
      %s589 = ssub.s32 %s64, %s71
      %s590 = sor.u32 %s588, %s589
      %p591 = scmp.eq.s32.totalorder %s590, 0
      %s593 = sadd.s32 %s592, 1
      %s594 = scalar_select %p591, %s592, %s593
      %p597 = pneg %p591
      %p598 = scmp.eq.s32.totalorder %s56, 1
      %p599 = por %p597, %p598
      %p600 = scmp.ne.s32.totalorder %s592, %s595
      %p601 = scmp.eq.s32.totalorder %s56, 0
      %p602 = por %p600, %p601
      %p603 = scmp.ne.s32.totalorder %s592, %s595
      %p604 = scmp.eq.s32.totalorder %s61, 1
      %p605 = por %p603, %p604
      %p606 = scmp.ne.s32.totalorder %s595, %s596
      %p607 = scmp.eq.s32.totalorder %s61, 0
      %p608 = por %p606, %p607
      %p609 = scmp.ne.s32.totalorder %s595, %s596
      %p610 = scmp.eq.s32.totalorder %s62, 1
      %p611 = por %p609, %p610
      %p613 = scmp.ne.s32.totalorder %s596, %s612
      %p614 = scmp.eq.s32.totalorder %s62, 0
      %p615 = por %p613, %p614
      %s616 = ssub.s32 %s63, %s75
      %s617 = ssub.s32 %s64, %s71
      %s618 = sor.u32 %s616, %s617
      %p619 = scmp.eq.s32.totalorder %s618, 0
      %s621 = sadd.s32 %s620, 1
      %s622 = scalar_select %p619, %s620, %s621
      %p625 = pneg %p619
      %p626 = scmp.eq.s32.totalorder %s56, 1
      %p627 = por %p625, %p626
      %p628 = scmp.ne.s32.totalorder %s620, %s623
      %p629 = scmp.eq.s32.totalorder %s56, 0
      %p630 = por %p628, %p629
      %p631 = scmp.ne.s32.totalorder %s620, %s623
      %p632 = scmp.eq.s32.totalorder %s61, 1
      %p633 = por %p631, %p632
      %p634 = scmp.ne.s32.totalorder %s623, %s624
      %p635 = scmp.eq.s32.totalorder %s61, 0
      %p636 = por %p634, %p635
      %p637 = scmp.ne.s32.totalorder %s623, %s624
      %p638 = scmp.eq.s32.totalorder %s62, 1
      %p639 = por %p637, %p638
      %p641 = scmp.ne.s32.totalorder %s624, %s640
      %p642 = scmp.eq.s32.totalorder %s62, 0
      %p643 = por %p641, %p642
      %s644 = ssub.s32 %s63, %s75
      %s645 = ssub.s32 %s64, %s71
      %s646 = sor.u32 %s644, %s645
      %p647 = scmp.eq.s32.totalorder %s646, 0
      %s649 = sadd.s32 %s648, 1
      %s650 = scalar_select %p647, %s648, %s649
      %p653 = pneg %p647
      %p654 = scmp.eq.s32.totalorder %s56, 1
      %p655 = por %p653, %p654
      %p656 = scmp.ne.s32.totalorder %s648, %s651
      %p657 = scmp.eq.s32.totalorder %s56, 0
      %p658 = por %p656, %p657
      %p659 = scmp.ne.s32.totalorder %s648, %s651
      %p660 = scmp.eq.s32.totalorder %s61, 1
      %p661 = por %p659, %p660
      %p662 = scmp.ne.s32.totalorder %s651, %s652
      %p663 = scmp.eq.s32.totalorder %s61, 0
      %p664 = por %p662, %p663
      %p665 = scmp.ne.s32.totalorder %s651, %s652
      %p666 = scmp.eq.s32.totalorder %s62, 1
      %p667 = por %p665, %p666
      %p669 = scmp.ne.s32.totalorder %s652, %s668
      %p670 = scmp.eq.s32.totalorder %s62, 0
      %p671 = por %p669, %p670
      %p672 = scmp.le.s32.totalorder 1, %s56
      %p673 = scmp.lt.s32.totalorder %s56, 3
      %p674 = pnand %p672, %p673
      %p675 = pneg %p674
      // Predicated region
      $region9: #{tpu_custom_call.1} parent=5 // pred_check
        _
      $region10: #{tpu_custom_call.1} parent=5 // pred_check_branch
        %677 = sbr.rel (%p674) target = $region12
      $region11: #{tpu_custom_call.1} parent=5 // pred_region
        %s678 = ssub.s32 %s56, 1
        // Predicated region
        $region13: #{tpu_custom_call.1} parent=11 // pred_check
          %p679 = pneg %p146
        $region14: #{tpu_custom_call.1} parent=11 // pred_check_branch
          %681 = sbr.rel (%p679) target = $region16
        $region15: #{tpu_custom_call.1} parent=11 // pred_region
          %s683 = ssub.s32 64, 64
          %684 = vsyncadd [#allocation8], %s683
          %s685 = smul.addr %s66, 64
          %s686 = scalar_lea.hbm %s2, %s685
          %s688 = sshll.u32 [#allocation9], 4
          %s689 = int_to_ptr.vmem [resolvable:$true] %s688
          %691 = dma.hbm_to_vmem [thread:$0]  %s686, 64, %s689, [#allocation8]
        $region16: #{tpu_custom_call.1} parent=11 // pred_fallthru
          _
        // Predicated region
        $region17: #{tpu_custom_call.1} parent=11 // pred_check
          %p692 = pneg %p167
        $region18: #{tpu_custom_call.1} parent=11 // pred_check_branch
          %694 = sbr.rel (%p692) target = $region20
        $region19: #{tpu_custom_call.1} parent=11 // pred_region
          %s696 = ssub.s32 256, 256
          %697 = vsyncadd [#allocation11], %s696
          %s698 = sshll.u32 [#allocation10], 4
          %s699 = int_to_ptr.vmem [resolvable:$true] %s698
          %704 = dma.hbm_to_vmem [thread:$0]  %s3, 256, %s699, [#allocation11], 64, 64, 4
        $region20: #{tpu_custom_call.1} parent=11 // pred_fallthru
          _
        // Predicated region
        $region21: #{tpu_custom_call.1} parent=11 // pred_check
          %p705 = pneg %p188
        $region22: #{tpu_custom_call.1} parent=11 // pred_check_branch
          %707 = sbr.rel (%p705) target = $region24
        $region23: #{tpu_custom_call.1} parent=11 // pred_region
          %s709 = ssub.s32 16, 16
          %710 = vsyncadd [#allocation11], %s709
          %s712 = sshll.u32 [#allocation12], 4
          %s713 = int_to_ptr.vmem [resolvable:$true] %s712
          %715 = dma.hbm_to_vmem [thread:$0]  %s4, 16, %s713, [#allocation11]
        $region24: #{tpu_custom_call.1} parent=11 // pred_fallthru
          _
        // Predicated region
        $region25: #{tpu_custom_call.1} parent=11 // pred_check
          %p716 = pneg %p209
        $region26: #{tpu_custom_call.1} parent=11 // pred_check_branch
          %718 = sbr.rel (%p716) target = $region28
        $region27: #{tpu_custom_call.1} parent=11 // pred_region
          %s720 = ssub.s32 256, 256
          %721 = vsyncadd [#allocation14], %s720
          %s722 = sshll.u32 [#allocation13], 4
          %s723 = int_to_ptr.vmem [resolvable:$true] %s722
          %728 = dma.hbm_to_vmem [thread:$0]  %s5, 256, %s723, [#allocation14], 64, 64, 4
        $region28: #{tpu_custom_call.1} parent=11 // pred_fallthru
          _
        // Predicated region
        $region29: #{tpu_custom_call.1} parent=11 // pred_check
          %p729 = pneg %p230
        $region30: #{tpu_custom_call.1} parent=11 // pred_check_branch
          %731 = sbr.rel (%p729) target = $region32
        $region31: #{tpu_custom_call.1} parent=11 // pred_region
          %s733 = ssub.s32 16, 16
          %734 = vsyncadd [#allocation14], %s733
          %s736 = sshll.u32 [#allocation15], 4
          %s737 = int_to_ptr.vmem [resolvable:$true] %s736
          %739 = dma.hbm_to_vmem [thread:$0]  %s6, 16, %s737, [#allocation14]
        $region32: #{tpu_custom_call.1} parent=11 // pred_fallthru
          _
        // Predicated region
        $region33: #{tpu_custom_call.1} parent=11 // pred_check
          %p740 = pneg %p251
        $region34: #{tpu_custom_call.1} parent=11 // pred_check_branch
          %742 = sbr.rel (%p740) target = $region36
        $region35: #{tpu_custom_call.1} parent=11 // pred_region
          %s744 = ssub.s32 256, 256
          %745 = vsyncadd [#allocation17], %s744
          %s746 = sshll.u32 [#allocation16], 4
          %s747 = int_to_ptr.vmem [resolvable:$true] %s746
          %752 = dma.hbm_to_vmem [thread:$0]  %s7, 256, %s747, [#allocation17], 64, 64, 4
        $region36: #{tpu_custom_call.1} parent=11 // pred_fallthru
          _
        // Predicated region
        $region37: #{tpu_custom_call.1} parent=11 // pred_check
          %p753 = pneg %p272
        $region38: #{tpu_custom_call.1} parent=11 // pred_check_branch
          %755 = sbr.rel (%p753) target = $region40
        $region39: #{tpu_custom_call.1} parent=11 // pred_region
          %s757 = ssub.s32 16, 16
          %758 = vsyncadd [#allocation17], %s757
          %s760 = sshll.u32 [#allocation18], 4
          %s761 = int_to_ptr.vmem [resolvable:$true] %s760
          %763 = dma.hbm_to_vmem [thread:$0]  %s8, 16, %s761, [#allocation17]
        $region40: #{tpu_custom_call.1} parent=11 // pred_fallthru
          _
        // Predicated region
        $region41: #{tpu_custom_call.1} parent=11 // pred_check
          %p764 = pneg %p293
        $region42: #{tpu_custom_call.1} parent=11 // pred_check_branch
          %766 = sbr.rel (%p764) target = $region44
        $region43: #{tpu_custom_call.1} parent=11 // pred_region
          %s768 = ssub.s32 256, 256
          %769 = vsyncadd [#allocation20], %s768
          %s770 = sshll.u32 [#allocation19], 4
          %s771 = int_to_ptr.vmem [resolvable:$true] %s770
          %776 = dma.hbm_to_vmem [thread:$0]  %s9, 256, %s771, [#allocation20], 64, 64, 4
        $region44: #{tpu_custom_call.1} parent=11 // pred_fallthru
          _
        // Predicated region
        $region45: #{tpu_custom_call.1} parent=11 // pred_check
          %p777 = pneg %p314
        $region46: #{tpu_custom_call.1} parent=11 // pred_check_branch
          %779 = sbr.rel (%p777) target = $region48
        $region47: #{tpu_custom_call.1} parent=11 // pred_region
          %s781 = ssub.s32 16, 16
          %782 = vsyncadd [#allocation20], %s781
          %s784 = sshll.u32 [#allocation21], 4
          %s785 = int_to_ptr.vmem [resolvable:$true] %s784
          %787 = dma.hbm_to_vmem [thread:$0]  %s10, 16, %s785, [#allocation20]
        $region48: #{tpu_custom_call.1} parent=11 // pred_fallthru
          _
        // Predicated region
        $region49: #{tpu_custom_call.1} parent=11 // pred_check
          %p788 = pneg %p335
        $region50: #{tpu_custom_call.1} parent=11 // pred_check_branch
          %790 = sbr.rel (%p788) target = $region52
        $region51: #{tpu_custom_call.1} parent=11 // pred_region
          %s792 = ssub.s32 256, 256
          %793 = vsyncadd [#allocation23], %s792
          %s794 = sshll.u32 [#allocation22], 4
          %s795 = int_to_ptr.vmem [resolvable:$true] %s794
          %800 = dma.hbm_to_vmem [thread:$0]  %s11, 256, %s795, [#allocation23], 64, 64, 4
        $region52: #{tpu_custom_call.1} parent=11 // pred_fallthru
          _
        // Predicated region
        $region53: #{tpu_custom_call.1} parent=11 // pred_check
          %p801 = pneg %p356
        $region54: #{tpu_custom_call.1} parent=11 // pred_check_branch
          %803 = sbr.rel (%p801) target = $region56
        $region55: #{tpu_custom_call.1} parent=11 // pred_region
          %s805 = ssub.s32 16, 16
          %806 = vsyncadd [#allocation23], %s805
          %s808 = sshll.u32 [#allocation24], 4
          %s809 = int_to_ptr.vmem [resolvable:$true] %s808
          %811 = dma.hbm_to_vmem [thread:$0]  %s12, 16, %s809, [#allocation23]
        $region56: #{tpu_custom_call.1} parent=11 // pred_fallthru
          _
        // Predicated region
        $region57: #{tpu_custom_call.1} parent=11 // pred_check
          %p812 = pneg %p377
        $region58: #{tpu_custom_call.1} parent=11 // pred_check_branch
          %814 = sbr.rel (%p812) target = $region60
        $region59: #{tpu_custom_call.1} parent=11 // pred_region
          %s816 = ssub.s32 256, 256
          %817 = vsyncadd [#allocation26], %s816
          %s818 = sshll.u32 [#allocation25], 4
          %s819 = int_to_ptr.vmem [resolvable:$true] %s818
          %824 = dma.hbm_to_vmem [thread:$0]  %s13, 256, %s819, [#allocation26], 64, 64, 4
        $region60: #{tpu_custom_call.1} parent=11 // pred_fallthru
          _
        // Predicated region
        $region61: #{tpu_custom_call.1} parent=11 // pred_check
          %p825 = pneg %p398
        $region62: #{tpu_custom_call.1} parent=11 // pred_check_branch
          %827 = sbr.rel (%p825) target = $region64
        $region63: #{tpu_custom_call.1} parent=11 // pred_region
          %s829 = ssub.s32 16, 16
          %830 = vsyncadd [#allocation26], %s829
          %s832 = sshll.u32 [#allocation27], 4
          %s833 = int_to_ptr.vmem [resolvable:$true] %s832
          %835 = dma.hbm_to_vmem [thread:$0]  %s14, 16, %s833, [#allocation26]
        $region64: #{tpu_custom_call.1} parent=11 // pred_fallthru
          _
        // Predicated region
        $region65: #{tpu_custom_call.1} parent=11 // pred_check
          %p836 = pneg %p419
        $region66: #{tpu_custom_call.1} parent=11 // pred_check_branch
          %838 = sbr.rel (%p836) target = $region68
        $region67: #{tpu_custom_call.1} parent=11 // pred_region
          %s840 = ssub.s32 512, 512
          %841 = vsyncadd [#allocation29], %s840
          %s842 = sshll.u32 [#allocation28], 4
          %s843 = int_to_ptr.vmem [resolvable:$true] %s842
          %848 = dma.hbm_to_vmem [thread:$0]  %s15, 512, %s843, [#allocation29], 64, 64, 4
        $region68: #{tpu_custom_call.1} parent=11 // pred_fallthru
          _
        // Predicated region
        $region69: #{tpu_custom_call.1} parent=11 // pred_check
          %p849 = pneg %p440
        $region70: #{tpu_custom_call.1} parent=11 // pred_check_branch
          %851 = sbr.rel (%p849) target = $region72
        $region71: #{tpu_custom_call.1} parent=11 // pred_region
          %s853 = ssub.s32 16, 16
          %854 = vsyncadd [#allocation29], %s853
          %s856 = sshll.u32 [#allocation30], 4
          %s857 = int_to_ptr.vmem [resolvable:$true] %s856
          %859 = dma.hbm_to_vmem [thread:$0]  %s16, 16, %s857, [#allocation29]
        $region72: #{tpu_custom_call.1} parent=11 // pred_fallthru
          _
        // Predicated region
        $region73: #{tpu_custom_call.1} parent=11 // pred_check
          %p860 = pneg %p461
        $region74: #{tpu_custom_call.1} parent=11 // pred_check_branch
          %862 = sbr.rel (%p860) target = $region76
        $region75: #{tpu_custom_call.1} parent=11 // pred_region
          %s864 = ssub.s32 16, 16
          %865 = vsyncadd [#allocation32], %s864
          %s867 = sshll.u32 [#allocation31], 4
          %s868 = int_to_ptr.vmem [resolvable:$true] %s867
          %870 = dma.hbm_to_vmem [thread:$0]  %s17, 16, %s868, [#allocation32]
        $region76: #{tpu_custom_call.1} parent=11 // pred_fallthru
          _
        // Predicated region
        $region77: #{tpu_custom_call.1} parent=11 // pred_check
          %p871 = pneg %p482
        $region78: #{tpu_custom_call.1} parent=11 // pred_check_branch
          %873 = sbr.rel (%p871) target = $region80
        $region79: #{tpu_custom_call.1} parent=11 // pred_region
          %s875 = ssub.s32 16, 16
          %876 = vsyncadd [#allocation32], %s875
          %s878 = sshll.u32 [#allocation33], 4
          %s879 = int_to_ptr.vmem [resolvable:$true] %s878
          %881 = dma.hbm_to_vmem [thread:$0]  %s18, 16, %s879, [#allocation32]
        $region80: #{tpu_custom_call.1} parent=11 // pred_fallthru
          _
        // Predicated region
        $region81: #{tpu_custom_call.1} parent=11 // pred_check
          %p882 = pneg %p503
        $region82: #{tpu_custom_call.1} parent=11 // pred_check_branch
          %884 = sbr.rel (%p882) target = $region84
        $region83: #{tpu_custom_call.1} parent=11 // pred_region
          %s886 = ssub.s32 16, 16
          %887 = vsyncadd [#allocation35], %s886
          %s889 = sshll.u32 [#allocation34], 4
          %s890 = int_to_ptr.vmem [resolvable:$true] %s889
          %892 = dma.hbm_to_vmem [thread:$0]  %s19, 16, %s890, [#allocation35]
        $region84: #{tpu_custom_call.1} parent=11 // pred_fallthru
          _
        // Predicated region
        $region85: #{tpu_custom_call.1} parent=11 // pred_check
          %p893 = pneg %p524
        $region86: #{tpu_custom_call.1} parent=11 // pred_check_branch
          %895 = sbr.rel (%p893) target = $region88
        $region87: #{tpu_custom_call.1} parent=11 // pred_region
          %s897 = ssub.s32 16, 16
          %898 = vsyncadd [#allocation35], %s897
          %s900 = sshll.u32 [#allocation36], 4
          %s901 = int_to_ptr.vmem [resolvable:$true] %s900
          %903 = dma.hbm_to_vmem [thread:$0]  %s20, 16, %s901, [#allocation35]
        $region88: #{tpu_custom_call.1} parent=11 // pred_fallthru
          _
      $region12: #{tpu_custom_call.1} parent=5 // pred_fallthru
        _
      %p904 = scmp.lt.s32.totalorder %s56, 2
      // Predicated region
      $region89: #{tpu_custom_call.1} parent=5 // pred_check
        %p905 = pneg %p904
      $region90: #{tpu_custom_call.1} parent=5 // pred_check_branch
        %907 = sbr.rel (%p905) target = $region92
      $region91: #{tpu_custom_call.1} parent=5 // pred_region
        // Predicated region
        $region93: #{tpu_custom_call.1} parent=91 // pred_check
          %p908 = pneg %p88
        $region94: #{tpu_custom_call.1} parent=91 // pred_check_branch
          %910 = sbr.rel (%p908) target = $region96
        $region95: #{tpu_custom_call.1} parent=91 // pred_region
          %s911 = sand.u32 %s78, 1
          %s912 = scalar_lea.sflag [#allocation5], %s911
          %s913 = sand.u32 %s78, 1
          %s914 = smul.addr %s913, 8
          %s915 = scalar_lea.vmem [#allocation4], %s914
          %s917 = ssub.s32 128, 128
          %918 = vsyncadd %s912, %s917
          %s919 = smul.addr %s63, 128
          %s920 = scalar_lea.hbm %s0, %s919
          %s922 = sshll.u32 %s915, 4
          %s923 = int_to_ptr.vmem [resolvable:$true] %s922
          %925 = dma.hbm_to_vmem [thread:$0]  %s920, 128, %s923, %s912
        $region96: #{tpu_custom_call.1} parent=91 // pred_fallthru
          _
        // Predicated region
        $region97: #{tpu_custom_call.1} parent=91 // pred_check
          %p926 = pneg %p114
        $region98: #{tpu_custom_call.1} parent=91 // pred_check_branch
          %928 = sbr.rel (%p926) target = $region100
        $region99: #{tpu_custom_call.1} parent=91 // pred_region
          %s929 = sand.u32 %s56, 1
          %s930 = scalar_lea.sflag [#allocation8], %s929
          %s931 = sand.u32 %s104, 1
          %s932 = smul.addr %s931, 8
          %s933 = scalar_lea.vmem [#allocation7], %s932
          %s935 = ssub.s32 128, 128
          %936 = vsyncadd %s930, %s935
          %s937 = smul.addr %s63, 128
          %s938 = scalar_lea.hbm %s1, %s937
          %s940 = sshll.u32 %s933, 4
          %s941 = int_to_ptr.vmem [resolvable:$true] %s940
          %943 = dma.hbm_to_vmem [thread:$0]  %s938, 128, %s941, %s930
        $region100: #{tpu_custom_call.1} parent=91 // pred_fallthru
          _
      $region92: #{tpu_custom_call.1} parent=5 // pred_fallthru
        _
      %p944 = scmp.le.s32.totalorder 1, %s56
      %p945 = scmp.lt.s32.totalorder %s56, 3
      %p946 = pnand %p944, %p945
      %p947 = pneg %p946
      // Predicated region
      $region101: #{tpu_custom_call.1} parent=5 // pred_check
        _
      $region102: #{tpu_custom_call.1} parent=5 // pred_check_branch
        %949 = sbr.rel (%p946) target = $region104
      $region103: #{tpu_custom_call.1} parent=5 // pred_region
        %s950 = ssub.s32 %s56, 1
        %s951 = sand.u32 %s81, 1
        %s952 = scalar_lea.sflag [#allocation5], %s951
        %s953 = sand.u32 %s81, 1
        %s954 = smul.addr %s953, 8
        %s955 = scalar_lea.vmem [#allocation4], %s954
        // Predicated region
        $region105: #{tpu_custom_call.1} parent=103 // pred_check
          %p956 = pneg %p94
        $region106: #{tpu_custom_call.1} parent=103 // pred_check_branch
          %958 = sbr.rel (%p956) target = $region108
        $region107: #{tpu_custom_call.1} parent=103 // pred_region
          %959 = dma.done %s952, 128
        $region108: #{tpu_custom_call.1} parent=103 // pred_fallthru
          _
        %s960 = sand.u32 %s61, 1
        %s961 = scalar_lea.sflag [#allocation8], %s960
        %s962 = sand.u32 %s107, 1
        %s963 = smul.addr %s962, 8
        %s964 = scalar_lea.vmem [#allocation7], %s963
        // Predicated region
        $region109: #{tpu_custom_call.1} parent=103 // pred_check
          %p965 = pneg %p120
        $region110: #{tpu_custom_call.1} parent=103 // pred_check_branch
          %967 = sbr.rel (%p965) target = $region112
        $region111: #{tpu_custom_call.1} parent=103 // pred_region
          %968 = dma.done %s961, 128
        $region112: #{tpu_custom_call.1} parent=103 // pred_fallthru
          _
        // Predicated region
        $region113: #{tpu_custom_call.1} parent=103 // pred_check
          %p969 = pneg %p146
        $region114: #{tpu_custom_call.1} parent=103 // pred_check_branch
          %971 = sbr.rel (%p969) target = $region116
        $region115: #{tpu_custom_call.1} parent=103 // pred_region
          %972 = dma.done [#allocation8], 64
        $region116: #{tpu_custom_call.1} parent=103 // pred_fallthru
          _
        // Predicated region
        $region117: #{tpu_custom_call.1} parent=103 // pred_check
          %p973 = pneg %p167
        $region118: #{tpu_custom_call.1} parent=103 // pred_check_branch
          %975 = sbr.rel (%p973) target = $region120
        $region119: #{tpu_custom_call.1} parent=103 // pred_region
          %976 = dma.done [#allocation11], 256
        $region120: #{tpu_custom_call.1} parent=103 // pred_fallthru
          _
        // Predicated region
        $region121: #{tpu_custom_call.1} parent=103 // pred_check
          %p977 = pneg %p188
        $region122: #{tpu_custom_call.1} parent=103 // pred_check_branch
          %979 = sbr.rel (%p977) target = $region124
        $region123: #{tpu_custom_call.1} parent=103 // pred_region
          %980 = dma.done [#allocation11], 16
        $region124: #{tpu_custom_call.1} parent=103 // pred_fallthru
          _
        // Predicated region
        $region125: #{tpu_custom_call.1} parent=103 // pred_check
          %p981 = pneg %p209
        $region126: #{tpu_custom_call.1} parent=103 // pred_check_branch
          %983 = sbr.rel (%p981) target = $region128
        $region127: #{tpu_custom_call.1} parent=103 // pred_region
          %984 = dma.done [#allocation14], 256
        $region128: #{tpu_custom_call.1} parent=103 // pred_fallthru
          _
        // Predicated region
        $region129: #{tpu_custom_call.1} parent=103 // pred_check
          %p985 = pneg %p230
        $region130: #{tpu_custom_call.1} parent=103 // pred_check_branch
          %987 = sbr.rel (%p985) target = $region132
        $region131: #{tpu_custom_call.1} parent=103 // pred_region
          %988 = dma.done [#allocation14], 16
        $region132: #{tpu_custom_call.1} parent=103 // pred_fallthru
          _
        // Predicated region
        $region133: #{tpu_custom_call.1} parent=103 // pred_check
          %p989 = pneg %p251
        $region134: #{tpu_custom_call.1} parent=103 // pred_check_branch
          %991 = sbr.rel (%p989) target = $region136
        $region135: #{tpu_custom_call.1} parent=103 // pred_region
          %992 = dma.done [#allocation17], 256
        $region136: #{tpu_custom_call.1} parent=103 // pred_fallthru
          _
        // Predicated region
        $region137: #{tpu_custom_call.1} parent=103 // pred_check
          %p993 = pneg %p272
        $region138: #{tpu_custom_call.1} parent=103 // pred_check_branch
          %995 = sbr.rel (%p993) target = $region140
        $region139: #{tpu_custom_call.1} parent=103 // pred_region
          %996 = dma.done [#allocation17], 16
        $region140: #{tpu_custom_call.1} parent=103 // pred_fallthru
          _
        // Predicated region
        $region141: #{tpu_custom_call.1} parent=103 // pred_check
          %p997 = pneg %p293
        $region142: #{tpu_custom_call.1} parent=103 // pred_check_branch
          %999 = sbr.rel (%p997) target = $region144
        $region143: #{tpu_custom_call.1} parent=103 // pred_region
          %1000 = dma.done [#allocation20], 256
        $region144: #{tpu_custom_call.1} parent=103 // pred_fallthru
          _
        // Predicated region
        $region145: #{tpu_custom_call.1} parent=103 // pred_check
          %p1001 = pneg %p314
        $region146: #{tpu_custom_call.1} parent=103 // pred_check_branch
          %1003 = sbr.rel (%p1001) target = $region148
        $region147: #{tpu_custom_call.1} parent=103 // pred_region
          %1004 = dma.done [#allocation20], 16
        $region148: #{tpu_custom_call.1} parent=103 // pred_fallthru
          _
        // Predicated region
        $region149: #{tpu_custom_call.1} parent=103 // pred_check
          %p1005 = pneg %p335
        $region150: #{tpu_custom_call.1} parent=103 // pred_check_branch
          %1007 = sbr.rel (%p1005) target = $region152
        $region151: #{tpu_custom_call.1} parent=103 // pred_region
          %1008 = dma.done [#allocation23], 256
        $region152: #{tpu_custom_call.1} parent=103 // pred_fallthru
          _
        // Predicated region
        $region153: #{tpu_custom_call.1} parent=103 // pred_check
          %p1009 = pneg %p356
        $region154: #{tpu_custom_call.1} parent=103 // pred_check_branch
          %1011 = sbr.rel (%p1009) target = $region156
        $region155: #{tpu_custom_call.1} parent=103 // pred_region
          %1012 = dma.done [#allocation23], 16
        $region156: #{tpu_custom_call.1} parent=103 // pred_fallthru
          _
        // Predicated region
        $region157: #{tpu_custom_call.1} parent=103 // pred_check
          %p1013 = pneg %p377
        $region158: #{tpu_custom_call.1} parent=103 // pred_check_branch
          %1015 = sbr.rel (%p1013) target = $region160
        $region159: #{tpu_custom_call.1} parent=103 // pred_region
          %1016 = dma.done [#allocation26], 256
        $region160: #{tpu_custom_call.1} parent=103 // pred_fallthru
          _
        // Predicated region
        $region161: #{tpu_custom_call.1} parent=103 // pred_check
          %p1017 = pneg %p398
        $region162: #{tpu_custom_call.1} parent=103 // pred_check_branch
          %1019 = sbr.rel (%p1017) target = $region164
        $region163: #{tpu_custom_call.1} parent=103 // pred_region
          %1020 = dma.done [#allocation26], 16
        $region164: #{tpu_custom_call.1} parent=103 // pred_fallthru
          _
        // Predicated region
        $region165: #{tpu_custom_call.1} parent=103 // pred_check
          %p1021 = pneg %p419
        $region166: #{tpu_custom_call.1} parent=103 // pred_check_branch
          %1023 = sbr.rel (%p1021) target = $region168
        $region167: #{tpu_custom_call.1} parent=103 // pred_region
          %1024 = dma.done [#allocation29], 512
        $region168: #{tpu_custom_call.1} parent=103 // pred_fallthru
          _
        // Predicated region
        $region169: #{tpu_custom_call.1} parent=103 // pred_check
          %p1025 = pneg %p440
        $region170: #{tpu_custom_call.1} parent=103 // pred_check_branch
          %1027 = sbr.rel (%p1025) target = $region172
        $region171: #{tpu_custom_call.1} parent=103 // pred_region
          %1028 = dma.done [#allocation29], 16
        $region172: #{tpu_custom_call.1} parent=103 // pred_fallthru
          _
        // Predicated region
        $region173: #{tpu_custom_call.1} parent=103 // pred_check
          %p1029 = pneg %p461
        $region174: #{tpu_custom_call.1} parent=103 // pred_check_branch
          %1031 = sbr.rel (%p1029) target = $region176
        $region175: #{tpu_custom_call.1} parent=103 // pred_region
          %1032 = dma.done [#allocation32], 16
        $region176: #{tpu_custom_call.1} parent=103 // pred_fallthru
          _
        // Predicated region
        $region177: #{tpu_custom_call.1} parent=103 // pred_check
          %p1033 = pneg %p482
        $region178: #{tpu_custom_call.1} parent=103 // pred_check_branch
          %1035 = sbr.rel (%p1033) target = $region180
        $region179: #{tpu_custom_call.1} parent=103 // pred_region
          %1036 = dma.done [#allocation32], 16
        $region180: #{tpu_custom_call.1} parent=103 // pred_fallthru
          _
        // Predicated region
        $region181: #{tpu_custom_call.1} parent=103 // pred_check
          %p1037 = pneg %p503
        $region182: #{tpu_custom_call.1} parent=103 // pred_check_branch
          %1039 = sbr.rel (%p1037) target = $region184
        $region183: #{tpu_custom_call.1} parent=103 // pred_region
          %1040 = dma.done [#allocation35], 16
        $region184: #{tpu_custom_call.1} parent=103 // pred_fallthru
          _
        // Predicated region
        $region185: #{tpu_custom_call.1} parent=103 // pred_check
          %p1041 = pneg %p524
        $region186: #{tpu_custom_call.1} parent=103 // pred_check_branch
          %1043 = sbr.rel (%p1041) target = $region188
        $region187: #{tpu_custom_call.1} parent=103 // pred_region
          %1044 = dma.done [#allocation35], 16
        $region188: #{tpu_custom_call.1} parent=103 // pred_fallthru
          _
        %s1045 = sand.u32 %s81, 1
        %s1046 = scalar_lea.sflag [#allocation5], %s1045
        %s1047 = sand.u32 %s81, 1
        %s1048 = smul.addr %s1047, 8
        %s1049 = scalar_lea.vmem [#allocation4], %s1048
        %p1050 = pneg %p94
        %p1051 = pneg %p91
        %s1052 = sand.u32 %s61, 1
        %s1053 = scalar_lea.sflag [#allocation8], %s1052
        %s1054 = sand.u32 %s107, 1
        %s1055 = smul.addr %s1054, 8
        %s1056 = scalar_lea.vmem [#allocation7], %s1055
        %p1057 = pneg %p120
        %p1058 = pneg %p117
        %p1059 = pneg %p146
        %p1060 = pneg %p143
        %p1061 = pneg %p167
        %p1062 = pneg %p164
        %p1063 = pneg %p188
        %p1064 = pneg %p185
        %p1065 = pneg %p209
        %p1066 = pneg %p206
        %p1067 = pneg %p230
        %p1068 = pneg %p227
        %p1069 = pneg %p251
        %p1070 = pneg %p248
        %p1071 = pneg %p272
        %p1072 = pneg %p269
        %p1073 = pneg %p293
        %p1074 = pneg %p290
        %p1075 = pneg %p314
        %p1076 = pneg %p311
        %p1077 = pneg %p335
        %p1078 = pneg %p332
        %p1079 = pneg %p356
        %p1080 = pneg %p353
        %p1081 = pneg %p377
        %p1082 = pneg %p374
        %p1083 = pneg %p398
        %p1084 = pneg %p395
        %p1085 = pneg %p419
        %p1086 = pneg %p416
        %p1087 = pneg %p440
        %p1088 = pneg %p437
        %p1089 = pneg %p461
        %p1090 = pneg %p458
        %p1091 = pneg %p482
        %p1092 = pneg %p479
        %p1093 = pneg %p503
        %p1094 = pneg %p500
        %p1095 = pneg %p524
        %p1096 = pneg %p521
        %p1097 = pneg %p552
        %p1098 = pneg %p549
        %s1099 = sand.u32 %s539, 1
        %s1100 = scalar_lea.sflag [#allocation6], %s1099
        %s1101 = sand.u32 %s539, 1
        %s1102 = smul.addr %s1101, 8
        %s1103 = scalar_lea.vmem [#allocation37], %s1102
        %p1104 = pneg %p580
        %p1105 = pneg %p577
        %s1106 = sand.u32 %s61, 1
        %s1107 = scalar_lea.sflag [#allocation39], %s1106
        %s1108 = sand.u32 %s567, 1
        %s1109 = smul.addr %s1108, 8
        %s1110 = scalar_lea.vmem [#allocation38], %s1109
        %p1111 = pneg %p608
        %p1112 = pneg %p605
        %s1113 = sand.u32 %s61, 1
        %s1114 = scalar_lea.sflag [#allocation39], %s1113
        %s1115 = sand.u32 %s595, 1
        %s1116 = smul.addr %s1115, 4
        %s1117 = scalar_lea.vmem [#allocation40], %s1116
        %p1118 = pneg %p636
        %p1119 = pneg %p633
        %s1120 = sand.u32 %s61, 1
        %s1121 = scalar_lea.sflag [#allocation42], %s1120
        %s1122 = sand.u32 %s623, 1
        %s1123 = smul.addr %s1122, 4
        %s1124 = scalar_lea.vmem [#allocation41], %s1123
        %p1125 = pneg %p664
        %p1126 = pneg %p661
        %s1127 = sand.u32 %s61, 1
        %s1128 = scalar_lea.sflag [#allocation42], %s1127
        %s1129 = sand.u32 %s651, 1
        %s1130 = smul.addr %s1129, 4
        %s1131 = scalar_lea.vmem [#allocation43], %s1130
        %p1133 = scmp.eq.s32.totalorder %s66, 0
        // Predicated region
        $region189: #{tpu_custom_call.1} parent=103 // pred_check
          %p1134 = pneg %p1133
        $region190: #{tpu_custom_call.1} parent=103 // pred_check_branch
          %1136 = sbr.rel (%p1134) target = $region192
        $region191: #{tpu_custom_call.1} parent=103 // pred_region
          %v1137 = vld [vmem:[%s955] sm:$0xff]
          %v1138 = vpack.c.bf16 %v1137, %v1137
          %v1139 = vld [vmem:[#allocation13] sm:$0xf]
          %v1140 = vld [vmem:[#allocation13 + $0x4] sm:$0xf]
          %v1141 = vld [vmem:[#allocation13 + $0x8] sm:$0xf]
          %v1142 = vld [vmem:[#allocation13 + $0xc] sm:$0xf]
          %v1143 = vld [vmem:[#allocation15] sm:$0x1]
          %v1145 = vlaneseq
          %v1146 = vshrl.u32 %v1145, 7
          %v1147 = vsub.s32 0, %v1146
          %v1148 = vrot.slane %v1143, %v1147
          %v1154 = vunpack.c.l.b16 %v1139
          %v1155 = vunpack.c.l.b16 %v1140
          %v1156 = vunpack.c.l.b16 %v1141
          %v1157 = vunpack.c.l.b16 %v1142
          %v1158 = vpack.c.b16 %v1155, %v1154
          %v1159 = vpack.c.b16 %v1157, %v1156
          %vm1162 = vcmask 261120
          %v1164 = vsel %vm1162, %v1138, 0
          %1166 = vmatprep.subr.bf16.mxu0 0
          %1167 = vmatpush1.bf16.msra.mxu0 %v1158
          %1168 = vmatprep.subr.bf16.mxu0 0
          %1169 = vmatpush1.bf16.msra.mxu0 %v1159
          %1170 = vmatprep.subr.bf16.mxu0 0
          %1171 = vmatpush1.bf16.msra.mxu0 0
          %1172 = vmatprep.subr.bf16.mxu0 0
          %1173 = vmatpush1.bf16.msra.mxu0 0
          %1174 = vmatprep.subr.bf16.mxu0 0
          %1175 = vmatpush1.bf16.msra.mxu0 0
          %1176 = vmatprep.subr.bf16.mxu0 0
          %1177 = vmatpush1.bf16.msra.mxu0 0
          %1178 = vmatprep.subr.bf16.mxu0 0
          %1179 = vmatpush1.bf16.msra.mxu0 0
          %1180 = vmatprep.subr.bf16.mxu0 0
          %1181 = vmatpush1.bf16.msra.mxu0 0
          %1182 = vmatprep.subr.bf16.mxu0 0
          %1183 = vmatpush1.bf16.msra.mxu0 0
          %1184 = vmatprep.subr.bf16.mxu0 0
          %1185 = vmatpush1.bf16.msra.mxu0 0
          %1186 = vmatprep.subr.bf16.mxu0 0
          %1187 = vmatpush1.bf16.msra.mxu0 0
          %1188 = vmatprep.subr.bf16.mxu0 0
          %1189 = vmatpush1.bf16.msra.mxu0 0
          %1190 = vmatprep.subr.bf16.mxu0 0
          %1191 = vmatpush1.bf16.msra.mxu0 0
          %1192 = vmatprep.subr.bf16.mxu0 0
          %1193 = vmatpush1.bf16.msra.mxu0 0
          %1194 = vmatprep.subr.bf16.mxu0 0
          %1195 = vmatpush1.bf16.msra.mxu0 0
          %1196 = vmatprep.subr.bf16.mxu0 0
          %1197 = vmatpush1.bf16.msra.mxu0 0
          %1198 = vmatprep.mubr.bf16.mxu0 0
          %1199 = vmatmul.mubr.bf16.gmra.mrb[0].mxu0 %v1164
          %v1200 = vpop.f32.mrb[0].mxu0
          %v1201 = vadd.f32 %v1148, %v1200
          %v1202 = vpop.f32.mrb[0].mxu0
          %v1203 = vpop.f32.mrb[0].mxu0
          %v1204 = vpop.f32.mrb[0].mxu0
          %1205 = vdwg.mxu0
          %v1206 = vpack.c.bf16 %v1201, %v1201
          %vm1207 = vcmask 519168
          %1208 = vst.msk [vmem:[#allocation2] sm:$0xf] %vm1207, %v1206
          %v1209 = vld [vmem:[%s964] sm:$0xff]
          %v1210 = vpack.c.bf16 %v1209, %v1209
          %v1211 = vld [vmem:[#allocation19] sm:$0xf]
          %v1212 = vld [vmem:[#allocation19 + $0x4] sm:$0xf]
          %v1213 = vld [vmem:[#allocation19 + $0x8] sm:$0xf]
          %v1214 = vld [vmem:[#allocation19 + $0xc] sm:$0xf]
          %v1215 = vld [vmem:[#allocation21] sm:$0x1]
          %v1217 = vlaneseq
          %v1218 = vshrl.u32 %v1217, 7
          %v1219 = vsub.s32 0, %v1218
          %v1220 = vrot.slane %v1215, %v1219
          %v1226 = vunpack.c.l.b16 %v1211
          %v1227 = vunpack.c.l.b16 %v1212
          %v1228 = vunpack.c.l.b16 %v1213
          %v1229 = vunpack.c.l.b16 %v1214
          %v1230 = vpack.c.b16 %v1227, %v1226
          %v1231 = vpack.c.b16 %v1229, %v1228
          %v1235 = vsel %vm1162, %v1210, 0
          %1237 = vmatprep.subr.bf16.mxu0 0
          %1238 = vmatpush1.bf16.msra.mxu0 %v1230
          %1239 = vmatprep.subr.bf16.mxu0 0
          %1240 = vmatpush1.bf16.msra.mxu0 %v1231
          %1241 = vmatprep.subr.bf16.mxu0 0
          %1242 = vmatpush1.bf16.msra.mxu0 0
          %1243 = vmatprep.subr.bf16.mxu0 0
          %1244 = vmatpush1.bf16.msra.mxu0 0
          %1245 = vmatprep.subr.bf16.mxu0 0
          %1246 = vmatpush1.bf16.msra.mxu0 0
          %1247 = vmatprep.subr.bf16.mxu0 0
          %1248 = vmatpush1.bf16.msra.mxu0 0
          %1249 = vmatprep.subr.bf16.mxu0 0
          %1250 = vmatpush1.bf16.msra.mxu0 0
          %1251 = vmatprep.subr.bf16.mxu0 0
          %1252 = vmatpush1.bf16.msra.mxu0 0
          %1253 = vmatprep.subr.bf16.mxu0 0
          %1254 = vmatpush1.bf16.msra.mxu0 0
          %1255 = vmatprep.subr.bf16.mxu0 0
          %1256 = vmatpush1.bf16.msra.mxu0 0
          %1257 = vmatprep.subr.bf16.mxu0 0
          %1258 = vmatpush1.bf16.msra.mxu0 0
          %1259 = vmatprep.subr.bf16.mxu0 0
          %1260 = vmatpush1.bf16.msra.mxu0 0
          %1261 = vmatprep.subr.bf16.mxu0 0
          %1262 = vmatpush1.bf16.msra.mxu0 0
          %1263 = vmatprep.subr.bf16.mxu0 0
          %1264 = vmatpush1.bf16.msra.mxu0 0
          %1265 = vmatprep.subr.bf16.mxu0 0
          %1266 = vmatpush1.bf16.msra.mxu0 0
          %1267 = vmatprep.subr.bf16.mxu0 0
          %1268 = vmatpush1.bf16.msra.mxu0 0
          %1269 = vmatprep.mubr.bf16.mxu0 0
          %1270 = vmatmul.mubr.bf16.gmra.mrb[0].mxu0 %v1235
          %v1271 = vpop.f32.mrb[0].mxu0
          %v1272 = vadd.f32 %v1220, %v1271
          %v1273 = vpop.f32.mrb[0].mxu0
          %v1274 = vpop.f32.mrb[0].mxu0
          %v1275 = vpop.f32.mrb[0].mxu0
          %1276 = vdwg.mxu0
          %v1277 = vpack.c.bf16 %v1272, %v1272
          %vm1278 = vcmask 257024
          %1279 = vst.msk [vmem:[#allocation3] sm:$0xf] %vm1278, %v1277
        $region192: #{tpu_custom_call.1} parent=103 // pred_fallthru
          _
        %s1280 = smul.u32 %s66, 8
        %s1281 = scalar_lea.vmem %s955, %s1280 [#allocation4]
        %v1282 = vld [vmem:[%s1281] sm:$0xff]
        %s1283 = scalar_lea.vmem %s964, %s1280 [#allocation7]
        %v1284 = vld [vmem:[%s1283] sm:$0xff]
        %v1285 = vld [vmem:[#allocation9] sm:$0xf]
        %v1286 = vunpack.c.l.bf16 %v1285
        %v1287 = vpack.c.bf16 %v1282, %v1282
        %v1288 = vld [vmem:[#allocation10] sm:$0xf]
        %v1289 = vld [vmem:[#allocation10 + $0x4] sm:$0xf]
        %v1290 = vld [vmem:[#allocation10 + $0x8] sm:$0xf]
        %v1291 = vld [vmem:[#allocation10 + $0xc] sm:$0xf]
        %v1292 = vld [vmem:[#allocation12] sm:$0x1]
        %v1294 = vlaneseq
        %v1295 = vshrl.u32 %v1294, 7
        %v1296 = vsub.s32 0, %v1295
        %v1297 = vrot.slane %v1292, %v1296
        %v1303 = vunpack.c.l.b16 %v1288
        %v1304 = vunpack.c.l.b16 %v1289
        %v1305 = vunpack.c.l.b16 %v1290
        %v1306 = vunpack.c.l.b16 %v1291
        %v1307 = vpack.c.b16 %v1304, %v1303
        %v1308 = vpack.c.b16 %v1306, %v1305
        %vm1311 = vcmask 261120
        %v1313 = vsel %vm1311, %v1287, 0
        %1315 = vmatprep.subr.bf16.mxu0 0
        %1316 = vmatpush1.bf16.msra.mxu0 %v1307
        %1317 = vmatprep.subr.bf16.mxu0 0
        %1318 = vmatpush1.bf16.msra.mxu0 %v1308
        %1319 = vmatprep.subr.bf16.mxu0 0
        %1320 = vmatpush1.bf16.msra.mxu0 0
        %1321 = vmatprep.subr.bf16.mxu0 0
        %1322 = vmatpush1.bf16.msra.mxu0 0
        %1323 = vmatprep.subr.bf16.mxu0 0
        %1324 = vmatpush1.bf16.msra.mxu0 0
        %1325 = vmatprep.subr.bf16.mxu0 0
        %1326 = vmatpush1.bf16.msra.mxu0 0
        %1327 = vmatprep.subr.bf16.mxu0 0
        %1328 = vmatpush1.bf16.msra.mxu0 0
        %1329 = vmatprep.subr.bf16.mxu0 0
        %1330 = vmatpush1.bf16.msra.mxu0 0
        %1331 = vmatprep.subr.bf16.mxu0 0
        %1332 = vmatpush1.bf16.msra.mxu0 0
        %1333 = vmatprep.subr.bf16.mxu0 0
        %1334 = vmatpush1.bf16.msra.mxu0 0
        %1335 = vmatprep.subr.bf16.mxu0 0
        %1336 = vmatpush1.bf16.msra.mxu0 0
        %1337 = vmatprep.subr.bf16.mxu0 0
        %1338 = vmatpush1.bf16.msra.mxu0 0
        %1339 = vmatprep.subr.bf16.mxu0 0
        %1340 = vmatpush1.bf16.msra.mxu0 0
        %1341 = vmatprep.subr.bf16.mxu0 0
        %1342 = vmatpush1.bf16.msra.mxu0 0
        %1343 = vmatprep.subr.bf16.mxu0 0
        %1344 = vmatpush1.bf16.msra.mxu0 0
        %1345 = vmatprep.subr.bf16.mxu0 0
        %1346 = vmatpush1.bf16.msra.mxu0 0
        %1347 = vmatprep.mubr.bf16.mxu0 0
        %1348 = vmatmul.mubr.bf16.gmra.mrb[0].mxu0 %v1313
        %v1349 = vpop.f32.mrb[0].mxu0
        %v1350 = vadd.f32 %v1297, %v1349
        %v1351 = vpop.f32.mrb[0].mxu0
        %v1352 = vpop.f32.mrb[0].mxu0
        %v1353 = vpop.f32.mrb[0].mxu0
        %1354 = vdwg.mxu0
        %v1355 = vpack.c.bf16 %v1350, %v1350
        %v1356 = vld [vmem:[#allocation2] sm:$0xf]
        %v1357 = vld [vmem:[#allocation3] sm:$0xf]
        %vm1358 = vcmask 64512
        %v1360 = vsel %vm1358, %v1355, 0
        %v1363 = vsel %vm1358, %v1356, 0
        %1365 = vmatprep.subr.bf16.mxu0 0
        %1366 = vmatpush1.bf16.xpose.msra.mxu0 %v1363
        %1367 = vmatprep.subr.bf16.mxu0 0
        %1368 = vmatpush1.bf16.xpose.msra.mxu0 0
        %1369 = vmatprep.subr.bf16.mxu0 0
        %1370 = vmatpush1.bf16.xpose.msra.mxu0 0
        %1371 = vmatprep.subr.bf16.mxu0 0
        %1372 = vmatpush1.bf16.xpose.msra.mxu0 0
        %1373 = vmatprep.subr.bf16.mxu0 0
        %1374 = vmatpush1.bf16.xpose.msra.mxu0 0
        %1375 = vmatprep.subr.bf16.mxu0 0
        %1376 = vmatpush1.bf16.xpose.msra.mxu0 0
        %1377 = vmatprep.subr.bf16.mxu0 0
        %1378 = vmatpush1.bf16.xpose.msra.mxu0 0
        %1379 = vmatprep.subr.bf16.mxu0 0
        %1380 = vmatpush1.bf16.xpose.msra.mxu0 0
        %1381 = vmatprep.subr.bf16.mxu0 0
        %1382 = vmatpush1.bf16.xpose.msra.mxu0 0
        %1383 = vmatprep.subr.bf16.mxu0 0
        %1384 = vmatpush1.bf16.xpose.msra.mxu0 0
        %1385 = vmatprep.subr.bf16.mxu0 0
        %1386 = vmatpush1.bf16.xpose.msra.mxu0 0
        %1387 = vmatprep.subr.bf16.mxu0 0
        %1388 = vmatpush1.bf16.xpose.msra.mxu0 0
        %1389 = vmatprep.subr.bf16.mxu0 0
        %1390 = vmatpush1.bf16.xpose.msra.mxu0 0
        %1391 = vmatprep.subr.bf16.mxu0 0
        %1392 = vmatpush1.bf16.xpose.msra.mxu0 0
        %1393 = vmatprep.subr.bf16.mxu0 0
        %1394 = vmatpush1.bf16.xpose.msra.mxu0 0
        %1395 = vmatprep.subr.bf16.mxu0 0
        %1396 = vmatpush1.bf16.xpose.msra.mxu0 0
        %1397 = vmatprep.mubr.bf16.mxu0 0
        %1398 = vmatmul.mubr.bf16.gmra.mrb[0].mxu0 %v1360
        %v1399 = vpop.f32.mrb[0].mxu0
        %v1400 = vadd.f32 %v1286, %v1399
        %v1401 = vpop.f32.mrb[0].mxu0
        %v1402 = vpop.f32.mrb[0].mxu0
        %v1403 = vpop.f32.mrb[0].mxu0
        %1404 = vdwg.mxu0
        %v1405 = vsel %vm1358, %v1400, -inf
        %1406 = vmax.xlane.f32.xlu0 %v1405
        %v1407 = vpop.xlane.xlu0 %1406
        %v1408 = vsub.f32 %v1400, %v1407
        %v1409 = vmul.f32 %v1408, 1.442695
        %v1410 = vpow.pop %v1409
        %v1411 = vsel %vm1358, %v1410, 0.0
        %1412 = vadd.xlane.f32.xlu0 %v1411
        %v1413 = vpop.xlane.xlu0 %1412
        %v1414 = vrcp.pop %v1413
        %v1415 = vmul.f32 %v1410, %v1414
        %v1416 = vadd.f32 %v1415, 0.0
        %v1417 = vpack.c.bf16 %v1415, %v1415
        %v1419 = vunpack.c.l.b16 %v1356
        %v1420 = vpack.c.b16 %v1419, %v1419
        %1421 = vrot.lane.b32.xlu0 %v1420, 96
        %v1422 = vpop.permute.xlu0 %1421
        %v1424 = vsel %vm1358, %v1417, 0
        %vm1426 = vcmask 1043456
        %v1428 = vsel %vm1426, %v1422, 0
        %1430 = vmatprep.subr.bf16.mxu0 0
        %1431 = vmatpush1.bf16.msra.mxu0 %v1428
        %1432 = vmatprep.subr.bf16.mxu0 0
        %1433 = vmatpush1.bf16.msra.mxu0 0
        %1434 = vmatprep.subr.bf16.mxu0 0
        %1435 = vmatpush1.bf16.msra.mxu0 0
        %1436 = vmatprep.subr.bf16.mxu0 0
        %1437 = vmatpush1.bf16.msra.mxu0 0
        %1438 = vmatprep.subr.bf16.mxu0 0
        %1439 = vmatpush1.bf16.msra.mxu0 0
        %1440 = vmatprep.subr.bf16.mxu0 0
        %1441 = vmatpush1.bf16.msra.mxu0 0
        %1442 = vmatprep.subr.bf16.mxu0 0
        %1443 = vmatpush1.bf16.msra.mxu0 0
        %1444 = vmatprep.subr.bf16.mxu0 0
        %1445 = vmatpush1.bf16.msra.mxu0 0
        %1446 = vmatprep.subr.bf16.mxu0 0
        %1447 = vmatpush1.bf16.msra.mxu0 0
        %1448 = vmatprep.subr.bf16.mxu0 0
        %1449 = vmatpush1.bf16.msra.mxu0 0
        %1450 = vmatprep.subr.bf16.mxu0 0
        %1451 = vmatpush1.bf16.msra.mxu0 0
        %1452 = vmatprep.subr.bf16.mxu0 0
        %1453 = vmatpush1.bf16.msra.mxu0 0
        %1454 = vmatprep.subr.bf16.mxu0 0
        %1455 = vmatpush1.bf16.msra.mxu0 0
        %1456 = vmatprep.subr.bf16.mxu0 0
        %1457 = vmatpush1.bf16.msra.mxu0 0
        %1458 = vmatprep.subr.bf16.mxu0 0
        %1459 = vmatpush1.bf16.msra.mxu0 0
        %1460 = vmatprep.subr.bf16.mxu0 0
        %1461 = vmatpush1.bf16.msra.mxu0 0
        %1462 = vmatprep.mubr.bf16.mxu0 0
        %1463 = vmatmul.mubr.bf16.gmra.mrb[0].mxu0 %v1424
        %v1464 = vpop.f32.mrb[0].mxu0
        %v1465 = vadd.f32 0.0, %v1464
        %v1466 = vpop.f32.mrb[0].mxu0
        %v1467 = vpop.f32.mrb[0].mxu0
        %v1468 = vpop.f32.mrb[0].mxu0
        %1469 = vdwg.mxu0
        %v1470 = vpack.c.bf16 %v1465, %v1465
        %v1471 = vld [vmem:[#allocation16] sm:$0xf]
        %1473 = vrot.lane.b32.xlu0 %v1355, 96
        %v1474 = vpop.permute.xlu0 %1473
        %v1476 = vsel %vm1358, %v1474, 0
        %v1479 = vsel %vm1358, %v1357, 0
        %1481 = vmatprep.subr.bf16.mxu0 0
        %1482 = vmatpush1.bf16.xpose.msra.mxu0 %v1479
        %1483 = vmatprep.subr.bf16.mxu0 0
        %1484 = vmatpush1.bf16.xpose.msra.mxu0 0
        %1485 = vmatprep.subr.bf16.mxu0 0
        %1486 = vmatpush1.bf16.xpose.msra.mxu0 0
        %1487 = vmatprep.subr.bf16.mxu0 0
        %1488 = vmatpush1.bf16.xpose.msra.mxu0 0
        %1489 = vmatprep.subr.bf16.mxu0 0
        %1490 = vmatpush1.bf16.xpose.msra.mxu0 0
        %1491 = vmatprep.subr.bf16.mxu0 0
        %1492 = vmatpush1.bf16.xpose.msra.mxu0 0
        %1493 = vmatprep.subr.bf16.mxu0 0
        %1494 = vmatpush1.bf16.xpose.msra.mxu0 0
        %1495 = vmatprep.subr.bf16.mxu0 0
        %1496 = vmatpush1.bf16.xpose.msra.mxu0 0
        %1497 = vmatprep.subr.bf16.mxu0 0
        %1498 = vmatpush1.bf16.xpose.msra.mxu0 0
        %1499 = vmatprep.subr.bf16.mxu0 0
        %1500 = vmatpush1.bf16.xpose.msra.mxu0 0
        %1501 = vmatprep.subr.bf16.mxu0 0
        %1502 = vmatpush1.bf16.xpose.msra.mxu0 0
        %1503 = vmatprep.subr.bf16.mxu0 0
        %1504 = vmatpush1.bf16.xpose.msra.mxu0 0
        %1505 = vmatprep.subr.bf16.mxu0 0
        %1506 = vmatpush1.bf16.xpose.msra.mxu0 0
        %1507 = vmatprep.subr.bf16.mxu0 0
        %1508 = vmatpush1.bf16.xpose.msra.mxu0 0
        %1509 = vmatprep.subr.bf16.mxu0 0
        %1510 = vmatpush1.bf16.xpose.msra.mxu0 0
        %1511 = vmatprep.subr.bf16.mxu0 0
        %1512 = vmatpush1.bf16.xpose.msra.mxu0 0
        %1513 = vmatprep.mubr.bf16.mxu0 0
        %1514 = vmatmul.mubr.bf16.gmra.mrb[0].mxu0 %v1476
        %v1515 = vpop.f32.mrb[0].mxu0
        %v1516 = vadd.f32 %v1286, %v1515
        %v1517 = vpop.f32.mrb[0].mxu0
        %v1518 = vpop.f32.mrb[0].mxu0
        %v1519 = vpop.f32.mrb[0].mxu0
        %1520 = vdwg.mxu0
        %v1521 = vsel %vm1358, %v1516, -inf
        %1522 = vmax.xlane.f32.xlu0 %v1521
        %v1523 = vpop.xlane.xlu0 %1522
        %v1524 = vsub.f32 %v1516, %v1523
        %v1525 = vmul.f32 %v1524, 1.442695
        %v1526 = vpow.pop %v1525
        %v1527 = vsel %vm1358, %v1526, 0.0
        %1528 = vadd.xlane.f32.xlu0 %v1527
        %v1529 = vpop.xlane.xlu0 %1528
        %v1530 = vrcp.pop %v1529
        %v1531 = vmul.f32 %v1526, %v1530
        %v1532 = vadd.f32 %v1531, 0.0
        %1533 = vrot.lane.b32.xlu0 %v1355, 120
        %v1534 = vpop.permute.xlu0 %1533
        %1535 = vrot.lane.b32.xlu0 %v1420, 120
        %v1536 = vpop.permute.xlu0 %1535
        %v1538 = vsel %vm1358, %v1534, 0
        %v1541 = vsel %vm1358, %v1536, 0
        %1543 = vmatprep.subr.bf16.mxu0 0
        %1544 = vmatpush1.bf16.xpose.msra.mxu0 %v1541
        %1545 = vmatprep.subr.bf16.mxu0 0
        %1546 = vmatpush1.bf16.xpose.msra.mxu0 0
        %1547 = vmatprep.subr.bf16.mxu0 0
        %1548 = vmatpush1.bf16.xpose.msra.mxu0 0
        %1549 = vmatprep.subr.bf16.mxu0 0
        %1550 = vmatpush1.bf16.xpose.msra.mxu0 0
        %1551 = vmatprep.subr.bf16.mxu0 0
        %1552 = vmatpush1.bf16.xpose.msra.mxu0 0
        %1553 = vmatprep.subr.bf16.mxu0 0
        %1554 = vmatpush1.bf16.xpose.msra.mxu0 0
        %1555 = vmatprep.subr.bf16.mxu0 0
        %1556 = vmatpush1.bf16.xpose.msra.mxu0 0
        %1557 = vmatprep.subr.bf16.mxu0 0
        %1558 = vmatpush1.bf16.xpose.msra.mxu0 0
        %1559 = vmatprep.subr.bf16.mxu0 0
        %1560 = vmatpush1.bf16.xpose.msra.mxu0 0
        %1561 = vmatprep.subr.bf16.mxu0 0
        %1562 = vmatpush1.bf16.xpose.msra.mxu0 0
        %1563 = vmatprep.subr.bf16.mxu0 0
        %1564 = vmatpush1.bf16.xpose.msra.mxu0 0
        %1565 = vmatprep.subr.bf16.mxu0 0
        %1566 = vmatpush1.bf16.xpose.msra.mxu0 0
        %1567 = vmatprep.subr.bf16.mxu0 0
        %1568 = vmatpush1.bf16.xpose.msra.mxu0 0
        %1569 = vmatprep.subr.bf16.mxu0 0
        %1570 = vmatpush1.bf16.xpose.msra.mxu0 0
        %1571 = vmatprep.subr.bf16.mxu0 0
        %1572 = vmatpush1.bf16.xpose.msra.mxu0 0
        %1573 = vmatprep.subr.bf16.mxu0 0
        %1574 = vmatpush1.bf16.xpose.msra.mxu0 0
        %1575 = vmatprep.mubr.bf16.mxu0 0
        %1576 = vmatmul.mubr.bf16.gmra.mrb[0].mxu0 %v1538
        %v1577 = vpop.f32.mrb[0].mxu0
        %v1578 = vadd.f32 %v1286, %v1577
        %v1579 = vpop.f32.mrb[0].mxu0
        %v1580 = vpop.f32.mrb[0].mxu0
        %v1581 = vpop.f32.mrb[0].mxu0
        %1582 = vdwg.mxu0
        %v1583 = vsel %vm1358, %v1578, -inf
        %1584 = vmax.xlane.f32.xlu0 %v1583
        %v1585 = vpop.xlane.xlu0 %1584
        %v1586 = vsub.f32 %v1578, %v1585
        %v1587 = vmul.f32 %v1586, 1.442695
        %v1588 = vpow.pop %v1587
        %v1589 = vsel %vm1358, %v1588, 0.0
        %1590 = vadd.xlane.f32.xlu0 %v1589
        %v1591 = vpop.xlane.xlu0 %1590
        %v1592 = vrcp.pop %v1591
        %v1593 = vmul.f32 %v1588, %v1592
        %v1594 = vadd.f32 %v1416, %v1593
        %v1595 = vpack.c.bf16 %v1593, %v1593
        %1596 = vrot.lane.b32.xlu0 %v1420, 88
        %v1597 = vpop.permute.xlu0 %1596
        %v1599 = vsel %vm1358, %v1595, 0
        %v1602 = vsel %vm1426, %v1597, 0
        %1604 = vmatprep.subr.bf16.mxu0 0
        %1605 = vmatpush1.bf16.msra.mxu0 %v1602
        %1606 = vmatprep.subr.bf16.mxu0 0
        %1607 = vmatpush1.bf16.msra.mxu0 0
        %1608 = vmatprep.subr.bf16.mxu0 0
        %1609 = vmatpush1.bf16.msra.mxu0 0
        %1610 = vmatprep.subr.bf16.mxu0 0
        %1611 = vmatpush1.bf16.msra.mxu0 0
        %1612 = vmatprep.subr.bf16.mxu0 0
        %1613 = vmatpush1.bf16.msra.mxu0 0
        %1614 = vmatprep.subr.bf16.mxu0 0
        %1615 = vmatpush1.bf16.msra.mxu0 0
        %1616 = vmatprep.subr.bf16.mxu0 0
        %1617 = vmatpush1.bf16.msra.mxu0 0
        %1618 = vmatprep.subr.bf16.mxu0 0
        %1619 = vmatpush1.bf16.msra.mxu0 0
        %1620 = vmatprep.subr.bf16.mxu0 0
        %1621 = vmatpush1.bf16.msra.mxu0 0
        %1622 = vmatprep.subr.bf16.mxu0 0
        %1623 = vmatpush1.bf16.msra.mxu0 0
        %1624 = vmatprep.subr.bf16.mxu0 0
        %1625 = vmatpush1.bf16.msra.mxu0 0
        %1626 = vmatprep.subr.bf16.mxu0 0
        %1627 = vmatpush1.bf16.msra.mxu0 0
        %1628 = vmatprep.subr.bf16.mxu0 0
        %1629 = vmatpush1.bf16.msra.mxu0 0
        %1630 = vmatprep.subr.bf16.mxu0 0
        %1631 = vmatpush1.bf16.msra.mxu0 0
        %1632 = vmatprep.subr.bf16.mxu0 0
        %1633 = vmatpush1.bf16.msra.mxu0 0
        %1634 = vmatprep.subr.bf16.mxu0 0
        %1635 = vmatpush1.bf16.msra.mxu0 0
        %1636 = vmatprep.mubr.bf16.mxu0 0
        %1637 = vmatmul.mubr.bf16.gmra.mrb[0].mxu0 %v1599
        %v1638 = vpop.f32.mrb[0].mxu0
        %v1639 = vadd.f32 0.0, %v1638
        %v1640 = vpop.f32.mrb[0].mxu0
        %v1641 = vpop.f32.mrb[0].mxu0
        %v1642 = vpop.f32.mrb[0].mxu0
        %1643 = vdwg.mxu0
        %v1644 = vpack.c.bf16 %v1639, %v1639
        %v1645 = vld [vmem:[#allocation16 + $0x4] sm:$0xf]
        %v1647 = vsel %vm1358, %v1644, 0
        %v1650 = vsel %vm1426, %v1645, 0
        %1652 = vmatprep.subr.bf16.mxu0 0
        %1653 = vmatpush1.bf16.msra.mxu0 %v1650
        %1654 = vmatprep.subr.bf16.mxu0 0
        %1655 = vmatpush1.bf16.msra.mxu0 0
        %1656 = vmatprep.subr.bf16.mxu0 0
        %1657 = vmatpush1.bf16.msra.mxu0 0
        %1658 = vmatprep.subr.bf16.mxu0 0
        %1659 = vmatpush1.bf16.msra.mxu0 0
        %1660 = vmatprep.subr.bf16.mxu0 0
        %1661 = vmatpush1.bf16.msra.mxu0 0
        %1662 = vmatprep.subr.bf16.mxu0 0
        %1663 = vmatpush1.bf16.msra.mxu0 0
        %1664 = vmatprep.subr.bf16.mxu0 0
        %1665 = vmatpush1.bf16.msra.mxu0 0
        %1666 = vmatprep.subr.bf16.mxu0 0
        %1667 = vmatpush1.bf16.msra.mxu0 0
        %1668 = vmatprep.subr.bf16.mxu0 0
        %1669 = vmatpush1.bf16.msra.mxu0 0
        %1670 = vmatprep.subr.bf16.mxu0 0
        %1671 = vmatpush1.bf16.msra.mxu0 0
        %1672 = vmatprep.subr.bf16.mxu0 0
        %1673 = vmatpush1.bf16.msra.mxu0 0
        %1674 = vmatprep.subr.bf16.mxu0 0
        %1675 = vmatpush1.bf16.msra.mxu0 0
        %1676 = vmatprep.subr.bf16.mxu0 0
        %1677 = vmatpush1.bf16.msra.mxu0 0
        %1678 = vmatprep.subr.bf16.mxu0 0
        %1679 = vmatpush1.bf16.msra.mxu0 0
        %1680 = vmatprep.subr.bf16.mxu0 0
        %1681 = vmatpush1.bf16.msra.mxu0 0
        %1682 = vmatprep.subr.bf16.mxu0 0
        %1683 = vmatpush1.bf16.msra.mxu0 0
        %1684 = vmatprep.mubr.bf16.mxu0 0
        %1685 = vmatmul.mubr.bf16.gmra.mrb[0].mxu0 %v1647
        %v1686 = vpop.f32.mrb[0].mxu0
        %v1687 = vadd.f32 0.0, %v1686
        %v1688 = vpop.f32.mrb[0].mxu0
        %v1689 = vpop.f32.mrb[0].mxu0
        %v1690 = vpop.f32.mrb[0].mxu0
        %1691 = vdwg.mxu0
        %v1693 = vsel %vm1358, %v1470, 0
        %v1696 = vsel %vm1426, %v1471, 0
        %1698 = vmatprep.subr.bf16.mxu0 0
        %1699 = vmatpush1.bf16.msra.mxu0 %v1696
        %1700 = vmatprep.subr.bf16.mxu0 0
        %1701 = vmatpush1.bf16.msra.mxu0 0
        %1702 = vmatprep.subr.bf16.mxu0 0
        %1703 = vmatpush1.bf16.msra.mxu0 0
        %1704 = vmatprep.subr.bf16.mxu0 0
        %1705 = vmatpush1.bf16.msra.mxu0 0
        %1706 = vmatprep.subr.bf16.mxu0 0
        %1707 = vmatpush1.bf16.msra.mxu0 0
        %1708 = vmatprep.subr.bf16.mxu0 0
        %1709 = vmatpush1.bf16.msra.mxu0 0
        %1710 = vmatprep.subr.bf16.mxu0 0
        %1711 = vmatpush1.bf16.msra.mxu0 0
        %1712 = vmatprep.subr.bf16.mxu0 0
        %1713 = vmatpush1.bf16.msra.mxu0 0
        %1714 = vmatprep.subr.bf16.mxu0 0
        %1715 = vmatpush1.bf16.msra.mxu0 0
        %1716 = vmatprep.subr.bf16.mxu0 0
        %1717 = vmatpush1.bf16.msra.mxu0 0
        %1718 = vmatprep.subr.bf16.mxu0 0
        %1719 = vmatpush1.bf16.msra.mxu0 0
        %1720 = vmatprep.subr.bf16.mxu0 0
        %1721 = vmatpush1.bf16.msra.mxu0 0
        %1722 = vmatprep.subr.bf16.mxu0 0
        %1723 = vmatpush1.bf16.msra.mxu0 0
        %1724 = vmatprep.subr.bf16.mxu0 0
        %1725 = vmatpush1.bf16.msra.mxu0 0
        %1726 = vmatprep.subr.bf16.mxu0 0
        %1727 = vmatpush1.bf16.msra.mxu0 0
        %1728 = vmatprep.subr.bf16.mxu0 0
        %1729 = vmatpush1.bf16.msra.mxu0 0
        %1730 = vmatprep.mubr.bf16.mxu0 0
        %1731 = vmatmul.mubr.bf16.gmra.mrb[0].mxu0 %v1693
        %v1732 = vpop.f32.mrb[0].mxu0
        %v1733 = vadd.f32 %v1687, %v1732
        %v1734 = vpop.f32.mrb[0].mxu0
        %v1735 = vpop.f32.mrb[0].mxu0
        %v1736 = vpop.f32.mrb[0].mxu0
        %1737 = vdwg.mxu0
        %1738 = vrot.lane.b32.xlu0 %v1355, 88
        %v1739 = vpop.permute.xlu0 %1738
        %v1741 = vunpack.c.l.b16 %v1357
        %v1742 = vpack.c.b16 %v1741, %v1741
        %1743 = vrot.lane.b32.xlu0 %v1742, 120
        %v1744 = vpop.permute.xlu0 %1743
        %v1746 = vsel %vm1358, %v1739, 0
        %v1749 = vsel %vm1358, %v1744, 0
        %1751 = vmatprep.subr.bf16.mxu0 0
        %1752 = vmatpush1.bf16.xpose.msra.mxu0 %v1749
        %1753 = vmatprep.subr.bf16.mxu0 0
        %1754 = vmatpush1.bf16.xpose.msra.mxu0 0
        %1755 = vmatprep.subr.bf16.mxu0 0
        %1756 = vmatpush1.bf16.xpose.msra.mxu0 0
        %1757 = vmatprep.subr.bf16.mxu0 0
        %1758 = vmatpush1.bf16.xpose.msra.mxu0 0
        %1759 = vmatprep.subr.bf16.mxu0 0
        %1760 = vmatpush1.bf16.xpose.msra.mxu0 0
        %1761 = vmatprep.subr.bf16.mxu0 0
        %1762 = vmatpush1.bf16.xpose.msra.mxu0 0
        %1763 = vmatprep.subr.bf16.mxu0 0
        %1764 = vmatpush1.bf16.xpose.msra.mxu0 0
        %1765 = vmatprep.subr.bf16.mxu0 0
        %1766 = vmatpush1.bf16.xpose.msra.mxu0 0
        %1767 = vmatprep.subr.bf16.mxu0 0
        %1768 = vmatpush1.bf16.xpose.msra.mxu0 0
        %1769 = vmatprep.subr.bf16.mxu0 0
        %1770 = vmatpush1.bf16.xpose.msra.mxu0 0
        %1771 = vmatprep.subr.bf16.mxu0 0
        %1772 = vmatpush1.bf16.xpose.msra.mxu0 0
        %1773 = vmatprep.subr.bf16.mxu0 0
        %1774 = vmatpush1.bf16.xpose.msra.mxu0 0
        %1775 = vmatprep.subr.bf16.mxu0 0
        %1776 = vmatpush1.bf16.xpose.msra.mxu0 0
        %1777 = vmatprep.subr.bf16.mxu0 0
        %1778 = vmatpush1.bf16.xpose.msra.mxu0 0
        %1779 = vmatprep.subr.bf16.mxu0 0
        %1780 = vmatpush1.bf16.xpose.msra.mxu0 0
        %1781 = vmatprep.subr.bf16.mxu0 0
        %1782 = vmatpush1.bf16.xpose.msra.mxu0 0
        %1783 = vmatprep.mubr.bf16.mxu0 0
        %1784 = vmatmul.mubr.bf16.gmra.mrb[0].mxu0 %v1746
        %v1785 = vpop.f32.mrb[0].mxu0
        %v1786 = vadd.f32 %v1286, %v1785
        %v1787 = vpop.f32.mrb[0].mxu0
        %v1788 = vpop.f32.mrb[0].mxu0
        %v1789 = vpop.f32.mrb[0].mxu0
        %1790 = vdwg.mxu0
        %v1791 = vsel %vm1358, %v1786, -inf
        %1792 = vmax.xlane.f32.xlu0 %v1791
        %v1793 = vpop.xlane.xlu0 %1792
        %v1794 = vsub.f32 %v1786, %v1793
        %v1795 = vmul.f32 %v1794, 1.442695
        %v1796 = vpow.pop %v1795
        %v1797 = vsel %vm1358, %v1796, 0.0
        %1798 = vadd.xlane.f32.xlu0 %v1797
        %v1799 = vpop.xlane.xlu0 %1798
        %v1800 = vrcp.pop %v1799
        %v1801 = vmul.f32 %v1796, %v1800
        %v1802 = vadd.f32 %v1532, %v1801
        %1803 = vrot.lane.b32.xlu0 %v1355, 112
        %v1804 = vpop.permute.xlu0 %1803
        %1805 = vrot.lane.b32.xlu0 %v1420, 112
        %v1806 = vpop.permute.xlu0 %1805
        %v1808 = vsel %vm1358, %v1804, 0
        %v1811 = vsel %vm1358, %v1806, 0
        %1813 = vmatprep.subr.bf16.mxu0 0
        %1814 = vmatpush1.bf16.xpose.msra.mxu0 %v1811
        %1815 = vmatprep.subr.bf16.mxu0 0
        %1816 = vmatpush1.bf16.xpose.msra.mxu0 0
        %1817 = vmatprep.subr.bf16.mxu0 0
        %1818 = vmatpush1.bf16.xpose.msra.mxu0 0
        %1819 = vmatprep.subr.bf16.mxu0 0
        %1820 = vmatpush1.bf16.xpose.msra.mxu0 0
        %1821 = vmatprep.subr.bf16.mxu0 0
        %1822 = vmatpush1.bf16.xpose.msra.mxu0 0
        %1823 = vmatprep.subr.bf16.mxu0 0
        %1824 = vmatpush1.bf16.xpose.msra.mxu0 0
        %1825 = vmatprep.subr.bf16.mxu0 0
        %1826 = vmatpush1.bf16.xpose.msra.mxu0 0
        %1827 = vmatprep.subr.bf16.mxu0 0
        %1828 = vmatpush1.bf16.xpose.msra.mxu0 0
        %1829 = vmatprep.subr.bf16.mxu0 0
        %1830 = vmatpush1.bf16.xpose.msra.mxu0 0
        %1831 = vmatprep.subr.bf16.mxu0 0
        %1832 = vmatpush1.bf16.xpose.msra.mxu0 0
        %1833 = vmatprep.subr.bf16.mxu0 0
        %1834 = vmatpush1.bf16.xpose.msra.mxu0 0
        %1835 = vmatprep.subr.bf16.mxu0 0
        %1836 = vmatpush1.bf16.xpose.msra.mxu0 0
        %1837 = vmatprep.subr.bf16.mxu0 0
        %1838 = vmatpush1.bf16.xpose.msra.mxu0 0
        %1839 = vmatprep.subr.bf16.mxu0 0
        %1840 = vmatpush1.bf16.xpose.msra.mxu0 0
        %1841 = vmatprep.subr.bf16.mxu0 0
        %1842 = vmatpush1.bf16.xpose.msra.mxu0 0
        %1843 = vmatprep.subr.bf16.mxu0 0
        %1844 = vmatpush1.bf16.xpose.msra.mxu0 0
        %1845 = vmatprep.mubr.bf16.mxu0 0
        %1846 = vmatmul.mubr.bf16.gmra.mrb[0].mxu0 %v1808
        %v1847 = vpop.f32.mrb[0].mxu0
        %v1848 = vadd.f32 %v1286, %v1847
        %v1849 = vpop.f32.mrb[0].mxu0
        %v1850 = vpop.f32.mrb[0].mxu0
        %v1851 = vpop.f32.mrb[0].mxu0
        %1852 = vdwg.mxu0
        %v1853 = vsel %vm1358, %v1848, -inf
        %1854 = vmax.xlane.f32.xlu0 %v1853
        %v1855 = vpop.xlane.xlu0 %1854
        %v1856 = vsub.f32 %v1848, %v1855
        %v1857 = vmul.f32 %v1856, 1.442695
        %v1858 = vpow.pop %v1857
        %v1859 = vsel %vm1358, %v1858, 0.0
        %1860 = vadd.xlane.f32.xlu0 %v1859
        %v1861 = vpop.xlane.xlu0 %1860
        %v1862 = vrcp.pop %v1861
        %v1863 = vmul.f32 %v1858, %v1862
        %v1864 = vadd.f32 %v1594, %v1863
        %v1865 = vpack.c.bf16 %v1863, %v1863
        %1866 = vrot.lane.b32.xlu0 %v1420, 80
        %v1867 = vpop.permute.xlu0 %1866
        %v1869 = vsel %vm1358, %v1865, 0
        %v1872 = vsel %vm1426, %v1867, 0
        %1874 = vmatprep.subr.bf16.mxu0 0
        %1875 = vmatpush1.bf16.msra.mxu0 %v1872
        %1876 = vmatprep.subr.bf16.mxu0 0
        %1877 = vmatpush1.bf16.msra.mxu0 0
        %1878 = vmatprep.subr.bf16.mxu0 0
        %1879 = vmatpush1.bf16.msra.mxu0 0
        %1880 = vmatprep.subr.bf16.mxu0 0
        %1881 = vmatpush1.bf16.msra.mxu0 0
        %1882 = vmatprep.subr.bf16.mxu0 0
        %1883 = vmatpush1.bf16.msra.mxu0 0
        %1884 = vmatprep.subr.bf16.mxu0 0
        %1885 = vmatpush1.bf16.msra.mxu0 0
        %1886 = vmatprep.subr.bf16.mxu0 0
        %1887 = vmatpush1.bf16.msra.mxu0 0
        %1888 = vmatprep.subr.bf16.mxu0 0
        %1889 = vmatpush1.bf16.msra.mxu0 0
        %1890 = vmatprep.subr.bf16.mxu0 0
        %1891 = vmatpush1.bf16.msra.mxu0 0
        %1892 = vmatprep.subr.bf16.mxu0 0
        %1893 = vmatpush1.bf16.msra.mxu0 0
        %1894 = vmatprep.subr.bf16.mxu0 0
        %1895 = vmatpush1.bf16.msra.mxu0 0
        %1896 = vmatprep.subr.bf16.mxu0 0
        %1897 = vmatpush1.bf16.msra.mxu0 0
        %1898 = vmatprep.subr.bf16.mxu0 0
        %1899 = vmatpush1.bf16.msra.mxu0 0
        %1900 = vmatprep.subr.bf16.mxu0 0
        %1901 = vmatpush1.bf16.msra.mxu0 0
        %1902 = vmatprep.subr.bf16.mxu0 0
        %1903 = vmatpush1.bf16.msra.mxu0 0
        %1904 = vmatprep.subr.bf16.mxu0 0
        %1905 = vmatpush1.bf16.msra.mxu0 0
        %1906 = vmatprep.mubr.bf16.mxu0 0
        %1907 = vmatmul.mubr.bf16.gmra.mrb[0].mxu0 %v1869
        %v1908 = vpop.f32.mrb[0].mxu0
        %v1909 = vadd.f32 0.0, %v1908
        %v1910 = vpop.f32.mrb[0].mxu0
        %v1911 = vpop.f32.mrb[0].mxu0
        %v1912 = vpop.f32.mrb[0].mxu0
        %1913 = vdwg.mxu0
        %v1914 = vpack.c.bf16 %v1909, %v1909
        %v1915 = vld [vmem:[#allocation16 + $0x8] sm:$0xf]
        %v1917 = vsel %vm1358, %v1914, 0
        %v1920 = vsel %vm1426, %v1915, 0
        %1922 = vmatprep.subr.bf16.mxu0 0
        %1923 = vmatpush1.bf16.msra.mxu0 %v1920
        %1924 = vmatprep.subr.bf16.mxu0 0
        %1925 = vmatpush1.bf16.msra.mxu0 0
        %1926 = vmatprep.subr.bf16.mxu0 0
        %1927 = vmatpush1.bf16.msra.mxu0 0
        %1928 = vmatprep.subr.bf16.mxu0 0
        %1929 = vmatpush1.bf16.msra.mxu0 0
        %1930 = vmatprep.subr.bf16.mxu0 0
        %1931 = vmatpush1.bf16.msra.mxu0 0
        %1932 = vmatprep.subr.bf16.mxu0 0
        %1933 = vmatpush1.bf16.msra.mxu0 0
        %1934 = vmatprep.subr.bf16.mxu0 0
        %1935 = vmatpush1.bf16.msra.mxu0 0
        %1936 = vmatprep.subr.bf16.mxu0 0
        %1937 = vmatpush1.bf16.msra.mxu0 0
        %1938 = vmatprep.subr.bf16.mxu0 0
        %1939 = vmatpush1.bf16.msra.mxu0 0
        %1940 = vmatprep.subr.bf16.mxu0 0
        %1941 = vmatpush1.bf16.msra.mxu0 0
        %1942 = vmatprep.subr.bf16.mxu0 0
        %1943 = vmatpush1.bf16.msra.mxu0 0
        %1944 = vmatprep.subr.bf16.mxu0 0
        %1945 = vmatpush1.bf16.msra.mxu0 0
        %1946 = vmatprep.subr.bf16.mxu0 0
        %1947 = vmatpush1.bf16.msra.mxu0 0
        %1948 = vmatprep.subr.bf16.mxu0 0
        %1949 = vmatpush1.bf16.msra.mxu0 0
        %1950 = vmatprep.subr.bf16.mxu0 0
        %1951 = vmatpush1.bf16.msra.mxu0 0
        %1952 = vmatprep.subr.bf16.mxu0 0
        %1953 = vmatpush1.bf16.msra.mxu0 0
        %1954 = vmatprep.mubr.bf16.mxu0 0
        %1955 = vmatmul.mubr.bf16.gmra.mrb[0].mxu0 %v1917
        %v1956 = vpop.f32.mrb[0].mxu0
        %v1957 = vadd.f32 0.0, %v1956
        %v1958 = vpop.f32.mrb[0].mxu0
        %v1959 = vpop.f32.mrb[0].mxu0
        %v1960 = vpop.f32.mrb[0].mxu0
        %1961 = vdwg.mxu0
        %v1962 = vadd.f32 %v1733, %v1957
        %1963 = vrot.lane.b32.xlu0 %v1355, 80
        %v1964 = vpop.permute.xlu0 %1963
        %1965 = vrot.lane.b32.xlu0 %v1742, 112
        %v1966 = vpop.permute.xlu0 %1965
        %v1968 = vsel %vm1358, %v1964, 0
        %v1971 = vsel %vm1358, %v1966, 0
        %1973 = vmatprep.subr.bf16.mxu0 0
        %1974 = vmatpush1.bf16.xpose.msra.mxu0 %v1971
        %1975 = vmatprep.subr.bf16.mxu0 0
        %1976 = vmatpush1.bf16.xpose.msra.mxu0 0
        %1977 = vmatprep.subr.bf16.mxu0 0
        %1978 = vmatpush1.bf16.xpose.msra.mxu0 0
        %1979 = vmatprep.subr.bf16.mxu0 0
        %1980 = vmatpush1.bf16.xpose.msra.mxu0 0
        %1981 = vmatprep.subr.bf16.mxu0 0
        %1982 = vmatpush1.bf16.xpose.msra.mxu0 0
        %1983 = vmatprep.subr.bf16.mxu0 0
        %1984 = vmatpush1.bf16.xpose.msra.mxu0 0
        %1985 = vmatprep.subr.bf16.mxu0 0
        %1986 = vmatpush1.bf16.xpose.msra.mxu0 0
        %1987 = vmatprep.subr.bf16.mxu0 0
        %1988 = vmatpush1.bf16.xpose.msra.mxu0 0
        %1989 = vmatprep.subr.bf16.mxu0 0
        %1990 = vmatpush1.bf16.xpose.msra.mxu0 0
        %1991 = vmatprep.subr.bf16.mxu0 0
        %1992 = vmatpush1.bf16.xpose.msra.mxu0 0
        %1993 = vmatprep.subr.bf16.mxu0 0
        %1994 = vmatpush1.bf16.xpose.msra.mxu0 0
        %1995 = vmatprep.subr.bf16.mxu0 0
        %1996 = vmatpush1.bf16.xpose.msra.mxu0 0
        %1997 = vmatprep.subr.bf16.mxu0 0
        %1998 = vmatpush1.bf16.xpose.msra.mxu0 0
        %1999 = vmatprep.subr.bf16.mxu0 0
        %2000 = vmatpush1.bf16.xpose.msra.mxu0 0
        %2001 = vmatprep.subr.bf16.mxu0 0
        %2002 = vmatpush1.bf16.xpose.msra.mxu0 0
        %2003 = vmatprep.subr.bf16.mxu0 0
        %2004 = vmatpush1.bf16.xpose.msra.mxu0 0
        %2005 = vmatprep.mubr.bf16.mxu0 0
        %2006 = vmatmul.mubr.bf16.gmra.mrb[0].mxu0 %v1968
        %v2007 = vpop.f32.mrb[0].mxu0
        %v2008 = vadd.f32 %v1286, %v2007
        %v2009 = vpop.f32.mrb[0].mxu0
        %v2010 = vpop.f32.mrb[0].mxu0
        %v2011 = vpop.f32.mrb[0].mxu0
        %2012 = vdwg.mxu0
        %v2013 = vsel %vm1358, %v2008, -inf
        %2014 = vmax.xlane.f32.xlu0 %v2013
        %v2015 = vpop.xlane.xlu0 %2014
        %v2016 = vsub.f32 %v2008, %v2015
        %v2017 = vmul.f32 %v2016, 1.442695
        %v2018 = vpow.pop %v2017
        %v2019 = vsel %vm1358, %v2018, 0.0
        %2020 = vadd.xlane.f32.xlu0 %v2019
        %v2021 = vpop.xlane.xlu0 %2020
        %v2022 = vrcp.pop %v2021
        %v2023 = vmul.f32 %v2018, %v2022
        %v2024 = vadd.f32 %v1802, %v2023
        %2025 = vrot.lane.b32.xlu0 %v1355, 104
        %v2026 = vpop.permute.xlu0 %2025
        %2027 = vrot.lane.b32.xlu0 %v1420, 104
        %v2028 = vpop.permute.xlu0 %2027
        %v2030 = vsel %vm1358, %v2026, 0
        %v2033 = vsel %vm1358, %v2028, 0
        %2035 = vmatprep.subr.bf16.mxu0 0
        %2036 = vmatpush1.bf16.xpose.msra.mxu0 %v2033
        %2037 = vmatprep.subr.bf16.mxu0 0
        %2038 = vmatpush1.bf16.xpose.msra.mxu0 0
        %2039 = vmatprep.subr.bf16.mxu0 0
        %2040 = vmatpush1.bf16.xpose.msra.mxu0 0
        %2041 = vmatprep.subr.bf16.mxu0 0
        %2042 = vmatpush1.bf16.xpose.msra.mxu0 0
        %2043 = vmatprep.subr.bf16.mxu0 0
        %2044 = vmatpush1.bf16.xpose.msra.mxu0 0
        %2045 = vmatprep.subr.bf16.mxu0 0
        %2046 = vmatpush1.bf16.xpose.msra.mxu0 0
        %2047 = vmatprep.subr.bf16.mxu0 0
        %2048 = vmatpush1.bf16.xpose.msra.mxu0 0
        %2049 = vmatprep.subr.bf16.mxu0 0
        %2050 = vmatpush1.bf16.xpose.msra.mxu0 0
        %2051 = vmatprep.subr.bf16.mxu0 0
        %2052 = vmatpush1.bf16.xpose.msra.mxu0 0
        %2053 = vmatprep.subr.bf16.mxu0 0
        %2054 = vmatpush1.bf16.xpose.msra.mxu0 0
        %2055 = vmatprep.subr.bf16.mxu0 0
        %2056 = vmatpush1.bf16.xpose.msra.mxu0 0
        %2057 = vmatprep.subr.bf16.mxu0 0
        %2058 = vmatpush1.bf16.xpose.msra.mxu0 0
        %2059 = vmatprep.subr.bf16.mxu0 0
        %2060 = vmatpush1.bf16.xpose.msra.mxu0 0
        %2061 = vmatprep.subr.bf16.mxu0 0
        %2062 = vmatpush1.bf16.xpose.msra.mxu0 0
        %2063 = vmatprep.subr.bf16.mxu0 0
        %2064 = vmatpush1.bf16.xpose.msra.mxu0 0
        %2065 = vmatprep.subr.bf16.mxu0 0
        %2066 = vmatpush1.bf16.xpose.msra.mxu0 0
        %2067 = vmatprep.mubr.bf16.mxu0 0
        %2068 = vmatmul.mubr.bf16.gmra.mrb[0].mxu0 %v2030
        %v2069 = vpop.f32.mrb[0].mxu0
        %v2070 = vadd.f32 %v1286, %v2069
        %v2071 = vpop.f32.mrb[0].mxu0
        %v2072 = vpop.f32.mrb[0].mxu0
        %v2073 = vpop.f32.mrb[0].mxu0
        %2074 = vdwg.mxu0
        %v2075 = vsel %vm1358, %v2070, -inf
        %2076 = vmax.xlane.f32.xlu0 %v2075
        %v2077 = vpop.xlane.xlu0 %2076
        %v2078 = vsub.f32 %v2070, %v2077
        %v2079 = vmul.f32 %v2078, 1.442695
        %v2080 = vpow.pop %v2079
        %v2081 = vsel %vm1358, %v2080, 0.0
        %2082 = vadd.xlane.f32.xlu0 %v2081
        %v2083 = vpop.xlane.xlu0 %2082
        %v2084 = vrcp.pop %v2083
        %v2085 = vmul.f32 %v2080, %v2084
        %v2086 = vadd.f32 %v1864, %v2085
        %v2087 = vpack.c.bf16 %v2085, %v2085
        %2088 = vrot.lane.b32.xlu0 %v1420, 72
        %v2089 = vpop.permute.xlu0 %2088
        %v2091 = vsel %vm1358, %v2087, 0
        %v2094 = vsel %vm1426, %v2089, 0
        %2096 = vmatprep.subr.bf16.mxu0 0
        %2097 = vmatpush1.bf16.msra.mxu0 %v2094
        %2098 = vmatprep.subr.bf16.mxu0 0
        %2099 = vmatpush1.bf16.msra.mxu0 0
        %2100 = vmatprep.subr.bf16.mxu0 0
        %2101 = vmatpush1.bf16.msra.mxu0 0
        %2102 = vmatprep.subr.bf16.mxu0 0
        %2103 = vmatpush1.bf16.msra.mxu0 0
        %2104 = vmatprep.subr.bf16.mxu0 0
        %2105 = vmatpush1.bf16.msra.mxu0 0
        %2106 = vmatprep.subr.bf16.mxu0 0
        %2107 = vmatpush1.bf16.msra.mxu0 0
        %2108 = vmatprep.subr.bf16.mxu0 0
        %2109 = vmatpush1.bf16.msra.mxu0 0
        %2110 = vmatprep.subr.bf16.mxu0 0
        %2111 = vmatpush1.bf16.msra.mxu0 0
        %2112 = vmatprep.subr.bf16.mxu0 0
        %2113 = vmatpush1.bf16.msra.mxu0 0
        %2114 = vmatprep.subr.bf16.mxu0 0
        %2115 = vmatpush1.bf16.msra.mxu0 0
        %2116 = vmatprep.subr.bf16.mxu0 0
        %2117 = vmatpush1.bf16.msra.mxu0 0
        %2118 = vmatprep.subr.bf16.mxu0 0
        %2119 = vmatpush1.bf16.msra.mxu0 0
        %2120 = vmatprep.subr.bf16.mxu0 0
        %2121 = vmatpush1.bf16.msra.mxu0 0
        %2122 = vmatprep.subr.bf16.mxu0 0
        %2123 = vmatpush1.bf16.msra.mxu0 0
        %2124 = vmatprep.subr.bf16.mxu0 0
        %2125 = vmatpush1.bf16.msra.mxu0 0
        %2126 = vmatprep.subr.bf16.mxu0 0
        %2127 = vmatpush1.bf16.msra.mxu0 0
        %2128 = vmatprep.mubr.bf16.mxu0 0
        %2129 = vmatmul.mubr.bf16.gmra.mrb[0].mxu0 %v2091
        %v2130 = vpop.f32.mrb[0].mxu0
        %v2131 = vadd.f32 0.0, %v2130
        %v2132 = vpop.f32.mrb[0].mxu0
        %v2133 = vpop.f32.mrb[0].mxu0
        %v2134 = vpop.f32.mrb[0].mxu0
        %2135 = vdwg.mxu0
        %v2136 = vpack.c.bf16 %v2131, %v2131
        %v2137 = vld [vmem:[#allocation16 + $0xc] sm:$0xf]
        %v2139 = vsel %vm1358, %v2136, 0
        %v2142 = vsel %vm1426, %v2137, 0
        %2144 = vmatprep.subr.bf16.mxu0 0
        %2145 = vmatpush1.bf16.msra.mxu0 %v2142
        %2146 = vmatprep.subr.bf16.mxu0 0
        %2147 = vmatpush1.bf16.msra.mxu0 0
        %2148 = vmatprep.subr.bf16.mxu0 0
        %2149 = vmatpush1.bf16.msra.mxu0 0
        %2150 = vmatprep.subr.bf16.mxu0 0
        %2151 = vmatpush1.bf16.msra.mxu0 0
        %2152 = vmatprep.subr.bf16.mxu0 0
        %2153 = vmatpush1.bf16.msra.mxu0 0
        %2154 = vmatprep.subr.bf16.mxu0 0
        %2155 = vmatpush1.bf16.msra.mxu0 0
        %2156 = vmatprep.subr.bf16.mxu0 0
        %2157 = vmatpush1.bf16.msra.mxu0 0
        %2158 = vmatprep.subr.bf16.mxu0 0
        %2159 = vmatpush1.bf16.msra.mxu0 0
        %2160 = vmatprep.subr.bf16.mxu0 0
        %2161 = vmatpush1.bf16.msra.mxu0 0
        %2162 = vmatprep.subr.bf16.mxu0 0
        %2163 = vmatpush1.bf16.msra.mxu0 0
        %2164 = vmatprep.subr.bf16.mxu0 0
        %2165 = vmatpush1.bf16.msra.mxu0 0
        %2166 = vmatprep.subr.bf16.mxu0 0
        %2167 = vmatpush1.bf16.msra.mxu0 0
        %2168 = vmatprep.subr.bf16.mxu0 0
        %2169 = vmatpush1.bf16.msra.mxu0 0
        %2170 = vmatprep.subr.bf16.mxu0 0
        %2171 = vmatpush1.bf16.msra.mxu0 0
        %2172 = vmatprep.subr.bf16.mxu0 0
        %2173 = vmatpush1.bf16.msra.mxu0 0
        %2174 = vmatprep.subr.bf16.mxu0 0
        %2175 = vmatpush1.bf16.msra.mxu0 0
        %2176 = vmatprep.mubr.bf16.mxu0 0
        %2177 = vmatmul.mubr.bf16.gmra.mrb[0].mxu0 %v2139
        %v2178 = vpop.f32.mrb[0].mxu0
        %v2179 = vadd.f32 0.0, %v2178
        %v2180 = vpop.f32.mrb[0].mxu0
        %v2181 = vpop.f32.mrb[0].mxu0
        %v2182 = vpop.f32.mrb[0].mxu0
        %2183 = vdwg.mxu0
        %v2184 = vadd.f32 %v1962, %v2179
        %2185 = vrot.lane.b32.xlu0 %v1355, 72
        %v2186 = vpop.permute.xlu0 %2185
        %2187 = vrot.lane.b32.xlu0 %v1742, 104
        %v2188 = vpop.permute.xlu0 %2187
        %v2190 = vsel %vm1358, %v2186, 0
        %v2193 = vsel %vm1358, %v2188, 0
        %2195 = vmatprep.subr.bf16.mxu0 0
        %2196 = vmatpush1.bf16.xpose.msra.mxu0 %v2193
        %2197 = vmatprep.subr.bf16.mxu0 0
        %2198 = vmatpush1.bf16.xpose.msra.mxu0 0
        %2199 = vmatprep.subr.bf16.mxu0 0
        %2200 = vmatpush1.bf16.xpose.msra.mxu0 0
        %2201 = vmatprep.subr.bf16.mxu0 0
        %2202 = vmatpush1.bf16.xpose.msra.mxu0 0
        %2203 = vmatprep.subr.bf16.mxu0 0
        %2204 = vmatpush1.bf16.xpose.msra.mxu0 0
        %2205 = vmatprep.subr.bf16.mxu0 0
        %2206 = vmatpush1.bf16.xpose.msra.mxu0 0
        %2207 = vmatprep.subr.bf16.mxu0 0
        %2208 = vmatpush1.bf16.xpose.msra.mxu0 0
        %2209 = vmatprep.subr.bf16.mxu0 0
        %2210 = vmatpush1.bf16.xpose.msra.mxu0 0
        %2211 = vmatprep.subr.bf16.mxu0 0
        %2212 = vmatpush1.bf16.xpose.msra.mxu0 0
        %2213 = vmatprep.subr.bf16.mxu0 0
        %2214 = vmatpush1.bf16.xpose.msra.mxu0 0
        %2215 = vmatprep.subr.bf16.mxu0 0
        %2216 = vmatpush1.bf16.xpose.msra.mxu0 0
        %2217 = vmatprep.subr.bf16.mxu0 0
        %2218 = vmatpush1.bf16.xpose.msra.mxu0 0
        %2219 = vmatprep.subr.bf16.mxu0 0
        %2220 = vmatpush1.bf16.xpose.msra.mxu0 0
        %2221 = vmatprep.subr.bf16.mxu0 0
        %2222 = vmatpush1.bf16.xpose.msra.mxu0 0
        %2223 = vmatprep.subr.bf16.mxu0 0
        %2224 = vmatpush1.bf16.xpose.msra.mxu0 0
        %2225 = vmatprep.subr.bf16.mxu0 0
        %2226 = vmatpush1.bf16.xpose.msra.mxu0 0
        %2227 = vmatprep.mubr.bf16.mxu0 0
        %2228 = vmatmul.mubr.bf16.gmra.mrb[0].mxu0 %v2190
        %v2229 = vpop.f32.mrb[0].mxu0
        %v2230 = vadd.f32 %v1286, %v2229
        %v2231 = vpop.f32.mrb[0].mxu0
        %v2232 = vpop.f32.mrb[0].mxu0
        %v2233 = vpop.f32.mrb[0].mxu0
        %2234 = vdwg.mxu0
        %v2235 = vsel %vm1358, %v2230, -inf
        %2236 = vmax.xlane.f32.xlu0 %v2235
        %v2237 = vpop.xlane.xlu0 %2236
        %v2238 = vsub.f32 %v2230, %v2237
        %v2239 = vmul.f32 %v2238, 1.442695
        %v2240 = vpow.pop %v2239
        %v2241 = vsel %vm1358, %v2240, 0.0
        %2242 = vadd.xlane.f32.xlu0 %v2241
        %v2243 = vpop.xlane.xlu0 %2242
        %v2244 = vrcp.pop %v2243
        %v2245 = vmul.f32 %v2240, %v2244
        %v2246 = vadd.f32 %v2024, %v2245
        %v2247 = vmul.f32 %v2086, 0.25
        %v2248 = vmul.f32 %v2246, 0.25
        %v2249 = vld [vmem:[#allocation18] sm:$0x1]
        %v2251 = vlaneseq
        %v2252 = vshrl.u32 %v2251, 7
        %v2253 = vsub.s32 0, %v2252
        %v2254 = vrot.slane %v2249, %v2253
        %v2256 = vadd.f32 %v2184, %v2254
        %v2257 = vpack.c.bf16 %v1284, %v1284
        %v2258 = vld [vmem:[#allocation22] sm:$0xf]
        %v2259 = vld [vmem:[#allocation22 + $0x4] sm:$0xf]
        %v2260 = vld [vmem:[#allocation22 + $0x8] sm:$0xf]
        %v2261 = vld [vmem:[#allocation22 + $0xc] sm:$0xf]
        %v2262 = vld [vmem:[#allocation24] sm:$0x1]
        %v2264 = vlaneseq
        %v2265 = vshrl.u32 %v2264, 7
        %v2266 = vsub.s32 0, %v2265
        %v2267 = vrot.slane %v2262, %v2266
        %v2273 = vunpack.c.l.b16 %v2258
        %v2274 = vunpack.c.l.b16 %v2259
        %v2275 = vunpack.c.l.b16 %v2260
        %v2276 = vunpack.c.l.b16 %v2261
        %v2277 = vpack.c.b16 %v2274, %v2273
        %v2278 = vpack.c.b16 %v2276, %v2275
        %v2282 = vsel %vm1311, %v2257, 0
        %2284 = vmatprep.subr.bf16.mxu0 0
        %2285 = vmatpush1.bf16.msra.mxu0 %v2277
        %2286 = vmatprep.subr.bf16.mxu0 0
        %2287 = vmatpush1.bf16.msra.mxu0 %v2278
        %2288 = vmatprep.subr.bf16.mxu0 0
        %2289 = vmatpush1.bf16.msra.mxu0 0
        %2290 = vmatprep.subr.bf16.mxu0 0
        %2291 = vmatpush1.bf16.msra.mxu0 0
        %2292 = vmatprep.subr.bf16.mxu0 0
        %2293 = vmatpush1.bf16.msra.mxu0 0
        %2294 = vmatprep.subr.bf16.mxu0 0
        %2295 = vmatpush1.bf16.msra.mxu0 0
        %2296 = vmatprep.subr.bf16.mxu0 0
        %2297 = vmatpush1.bf16.msra.mxu0 0
        %2298 = vmatprep.subr.bf16.mxu0 0
        %2299 = vmatpush1.bf16.msra.mxu0 0
        %2300 = vmatprep.subr.bf16.mxu0 0
        %2301 = vmatpush1.bf16.msra.mxu0 0
        %2302 = vmatprep.subr.bf16.mxu0 0
        %2303 = vmatpush1.bf16.msra.mxu0 0
        %2304 = vmatprep.subr.bf16.mxu0 0
        %2305 = vmatpush1.bf16.msra.mxu0 0
        %2306 = vmatprep.subr.bf16.mxu0 0
        %2307 = vmatpush1.bf16.msra.mxu0 0
        %2308 = vmatprep.subr.bf16.mxu0 0
        %2309 = vmatpush1.bf16.msra.mxu0 0
        %2310 = vmatprep.subr.bf16.mxu0 0
        %2311 = vmatpush1.bf16.msra.mxu0 0
        %2312 = vmatprep.subr.bf16.mxu0 0
        %2313 = vmatpush1.bf16.msra.mxu0 0
        %2314 = vmatprep.subr.bf16.mxu0 0
        %2315 = vmatpush1.bf16.msra.mxu0 0
        %2316 = vmatprep.mubr.bf16.mxu0 0
        %2317 = vmatmul.mubr.bf16.gmra.mrb[0].mxu0 %v2282
        %v2318 = vpop.f32.mrb[0].mxu0
        %v2319 = vadd.f32 %v2267, %v2318
        %v2320 = vpop.f32.mrb[0].mxu0
        %v2321 = vpop.f32.mrb[0].mxu0
        %v2322 = vpop.f32.mrb[0].mxu0
        %2323 = vdwg.mxu0
        %v2324 = vadd.f32 %v1282, %v2256
        %v2325 = vld [vmem:[#allocation31] sm:$0x1]
        %v2326 = vld [vmem:[#allocation33] sm:$0x1]
        %v2327 = vsel %vm1311, %v2324, 0.0
        %2328 = vadd.xlane.f32.xlu0 %v2327
        %v2329 = vpop.xlane.xlu0 %2328
        %v2330 = vrcp.pop 32.0
        %v2331 = vmul.f32 %v2329, %v2330
        %v2332 = vsub.f32 %v2324, %v2331
        %v2333 = vmul.f32 %v2332, %v2332
        %v2334 = vsel %vm1311, %v2333, 0.0
        %2335 = vadd.xlane.f32.xlu0 %v2334
        %v2336 = vpop.xlane.xlu0 %2335
        %v2337 = vmul.f32 %v2336, %v2330
        %v2338 = vadd.f32 %v2337, 1e-09
        %v2339 = vrsqrt.pop %v2338
        %v2340 = vmul.f32 %v2338, %v2339
        %vm2341 = vcmp.eq.f32.partialorder %v2338, inf
        %v2342 = vsel %vm2341, %v2338, %v2340
        %vm2343 = vcmp.eq.f32.partialorder %v2338, 0.0
        %v2344 = vand.u32 %v2338, 2147483648
        %v2345 = vsel %vm2343, %v2344, %v2342
        %v2346 = vrcp.pop %v2345
        %v2347 = vmul.f32 %v2332, %v2346
        %v2349 = vlaneseq
        %v2350 = vshrl.u32 %v2349, 7
        %v2351 = vsub.s32 0, %v2350
        %v2352 = vrot.slane %v2325, %v2351
        %v2354 = vmul.f32 %v2347, %v2352
        %v2356 = vlaneseq
        %v2357 = vshrl.u32 %v2356, 7
        %v2358 = vsub.s32 0, %v2357
        %v2359 = vrot.slane %v2326, %v2358
        %v2361 = vadd.f32 %v2354, %v2359
        %v2362 = vpack.c.bf16 %v2361, %v2361
        %v2363 = vld [vmem:[#allocation25] sm:$0xf]
        %v2364 = vld [vmem:[#allocation25 + $0x4] sm:$0xf]
        %v2365 = vld [vmem:[#allocation25 + $0x8] sm:$0xf]
        %v2366 = vld [vmem:[#allocation25 + $0xc] sm:$0xf]
        %v2367 = vld [vmem:[#allocation27] sm:$0x1]
        %v2369 = vlaneseq
        %v2370 = vshrl.u32 %v2369, 7
        %v2371 = vsub.s32 0, %v2370
        %v2372 = vrot.slane %v2367, %v2371
        %v2378 = vunpack.c.l.b16 %v2363
        %v2379 = vunpack.c.l.b16 %v2364
        %v2380 = vunpack.c.l.b16 %v2365
        %v2381 = vunpack.c.l.b16 %v2366
        %v2382 = vpack.c.b16 %v2379, %v2378
        %v2383 = vpack.c.b16 %v2381, %v2380
        %v2387 = vsel %vm1311, %v2362, 0
        %2389 = vmatprep.subr.bf16.mxu0 0
        %2390 = vmatpush1.bf16.msra.mxu0 %v2382
        %2391 = vmatprep.subr.bf16.mxu0 0
        %2392 = vmatpush1.bf16.msra.mxu0 %v2383
        %2393 = vmatprep.subr.bf16.mxu0 0
        %2394 = vmatpush1.bf16.msra.mxu0 0
        %2395 = vmatprep.subr.bf16.mxu0 0
        %2396 = vmatpush1.bf16.msra.mxu0 0
        %2397 = vmatprep.subr.bf16.mxu0 0
        %2398 = vmatpush1.bf16.msra.mxu0 0
        %2399 = vmatprep.subr.bf16.mxu0 0
        %2400 = vmatpush1.bf16.msra.mxu0 0
        %2401 = vmatprep.subr.bf16.mxu0 0
        %2402 = vmatpush1.bf16.msra.mxu0 0
        %2403 = vmatprep.subr.bf16.mxu0 0
        %2404 = vmatpush1.bf16.msra.mxu0 0
        %2405 = vmatprep.subr.bf16.mxu0 0
        %2406 = vmatpush1.bf16.msra.mxu0 0
        %2407 = vmatprep.subr.bf16.mxu0 0
        %2408 = vmatpush1.bf16.msra.mxu0 0
        %2409 = vmatprep.subr.bf16.mxu0 0
        %2410 = vmatpush1.bf16.msra.mxu0 0
        %2411 = vmatprep.subr.bf16.mxu0 0
        %2412 = vmatpush1.bf16.msra.mxu0 0
        %2413 = vmatprep.subr.bf16.mxu0 0
        %2414 = vmatpush1.bf16.msra.mxu0 0
        %2415 = vmatprep.subr.bf16.mxu0 0
        %2416 = vmatpush1.bf16.msra.mxu0 0
        %2417 = vmatprep.subr.bf16.mxu0 0
        %2418 = vmatpush1.bf16.msra.mxu0 0
        %2419 = vmatprep.subr.bf16.mxu0 0
        %2420 = vmatpush1.bf16.msra.mxu0 0
        %2421 = vmatprep.mubr.bf16.mxu0 0
        %2422 = vmatmul.mubr.bf16.gmra.mrb[0].mxu0 %v2387
        %v2423 = vpop.f32.mrb[0].mxu0
        %v2424 = vadd.f32 %v2372, %v2423
        %v2425 = vpop.f32.mrb[0].mxu0
        %v2426 = vpop.f32.mrb[0].mxu0
        %v2427 = vpop.f32.mrb[0].mxu0
        %2428 = vdwg.mxu0
        %v2429 = vmul.f32 %v2424, 0.5
        %v2430 = vmul.f32 %v2424, 0.70710677
        %v2431 = vand.u32 2147483647, %v2430
        %v2432 = vmul.f32 %v2431, 0.3275911
        %v2433 = vadd.f32 %v2432, 1.0
        %v2434 = vrcp.pop %v2433
        %v2435 = vmul.f32 1.0, %v2434
        %v2436 = vmul.f32 %v2435, 1.0614054
        %v2437 = vadd.f32 %v2436, -1.4531521
        %v2438 = vmul.f32 %v2437, %v2435
        %v2439 = vadd.f32 %v2438, 1.4214138
        %v2440 = vmul.f32 %v2439, %v2435
        %v2441 = vadd.f32 %v2440, -0.28449672
        %v2442 = vmul.f32 %v2441, %v2435
        %v2443 = vadd.f32 %v2442, 0.2548296
        %v2444 = vmul.f32 %v2443, %v2435
        %v2445 = vsub.f32 0.0, %v2431
        %v2446 = vmul.f32 %v2445, %v2431
        %v2447 = vmul.f32 %v2446, 1.442695
        %v2448 = vpow.pop %v2447
        %v2449 = vmul.f32 %v2444, %v2448
        %v2450 = vsub.f32 1.0, %v2449
        %vm2451 = vcmp.lt.f32.partialorder %v2430, 0.0
        %v2452 = vsub.f32 0.0, %v2450
        %v2453 = vsel %vm2451, %v2452, %v2450
        %v2454 = vadd.f32 %v2453, 1.0
        %v2455 = vmul.f32 %v2429, %v2454
        %v2456 = vpack.c.bf16 %v2455, %v2455
        %v2457 = vld [vmem:[#allocation28] sm:$0xf]
        %v2458 = vld [vmem:[#allocation28 + $0x4] sm:$0xf]
        %v2459 = vld [vmem:[#allocation28 + $0x8] sm:$0xf]
        %v2460 = vld [vmem:[#allocation28 + $0xc] sm:$0xf]
        %v2461 = vld [vmem:[#allocation28 + $0x10] sm:$0xf]
        %v2462 = vld [vmem:[#allocation28 + $0x14] sm:$0xf]
        %v2463 = vld [vmem:[#allocation28 + $0x18] sm:$0xf]
        %v2464 = vld [vmem:[#allocation28 + $0x1c] sm:$0xf]
        %v2465 = vld [vmem:[#allocation30] sm:$0x1]
        %v2467 = vlaneseq
        %v2468 = vshrl.u32 %v2467, 7
        %v2469 = vsub.s32 0, %v2468
        %v2470 = vrot.slane %v2465, %v2469
        %v2480 = vunpack.c.l.b16 %v2457
        %v2481 = vunpack.c.l.b16 %v2458
        %v2482 = vunpack.c.l.b16 %v2459
        %v2483 = vunpack.c.l.b16 %v2460
        %v2484 = vunpack.c.l.b16 %v2461
        %v2485 = vunpack.c.l.b16 %v2462
        %v2486 = vunpack.c.l.b16 %v2463
        %v2487 = vunpack.c.l.b16 %v2464
        %v2488 = vpack.c.b16 %v2481, %v2480
        %v2489 = vpack.c.b16 %v2483, %v2482
        %v2490 = vpack.c.b16 %v2485, %v2484
        %v2491 = vpack.c.b16 %v2487, %v2486
        %vm2496 = vcmask 523264
        %v2498 = vsel %vm2496, %v2456, 0
        %2500 = vmatprep.subr.bf16.mxu0 0
        %2501 = vmatpush1.bf16.msra.mxu0 %v2488
        %2502 = vmatprep.subr.bf16.mxu0 0
        %2503 = vmatpush1.bf16.msra.mxu0 %v2489
        %2504 = vmatprep.subr.bf16.mxu0 0
        %2505 = vmatpush1.bf16.msra.mxu0 %v2490
        %2506 = vmatprep.subr.bf16.mxu0 0
        %2507 = vmatpush1.bf16.msra.mxu0 %v2491
        %2508 = vmatprep.subr.bf16.mxu0 0
        %2509 = vmatpush1.bf16.msra.mxu0 0
        %2510 = vmatprep.subr.bf16.mxu0 0
        %2511 = vmatpush1.bf16.msra.mxu0 0
        %2512 = vmatprep.subr.bf16.mxu0 0
        %2513 = vmatpush1.bf16.msra.mxu0 0
        %2514 = vmatprep.subr.bf16.mxu0 0
        %2515 = vmatpush1.bf16.msra.mxu0 0
        %2516 = vmatprep.subr.bf16.mxu0 0
        %2517 = vmatpush1.bf16.msra.mxu0 0
        %2518 = vmatprep.subr.bf16.mxu0 0
        %2519 = vmatpush1.bf16.msra.mxu0 0
        %2520 = vmatprep.subr.bf16.mxu0 0
        %2521 = vmatpush1.bf16.msra.mxu0 0
        %2522 = vmatprep.subr.bf16.mxu0 0
        %2523 = vmatpush1.bf16.msra.mxu0 0
        %2524 = vmatprep.subr.bf16.mxu0 0
        %2525 = vmatpush1.bf16.msra.mxu0 0
        %2526 = vmatprep.subr.bf16.mxu0 0
        %2527 = vmatpush1.bf16.msra.mxu0 0
        %2528 = vmatprep.subr.bf16.mxu0 0
        %2529 = vmatpush1.bf16.msra.mxu0 0
        %2530 = vmatprep.subr.bf16.mxu0 0
        %2531 = vmatpush1.bf16.msra.mxu0 0
        %2532 = vmatprep.mubr.bf16.mxu0 0
        %2533 = vmatmul.mubr.bf16.gmra.mrb[0].mxu0 %v2498
        %v2534 = vpop.f32.mrb[0].mxu0
        %v2535 = vadd.f32 %v2470, %v2534
        %v2536 = vpop.f32.mrb[0].mxu0
        %v2537 = vpop.f32.mrb[0].mxu0
        %v2538 = vpop.f32.mrb[0].mxu0
        %2539 = vdwg.mxu0
        %v2540 = vadd.f32 %v2361, %v2535
        %v2541 = vld [vmem:[#allocation34] sm:$0x1]
        %v2542 = vld [vmem:[#allocation36] sm:$0x1]
        %v2543 = vsel %vm1311, %v2540, 0.0
        %2544 = vadd.xlane.f32.xlu0 %v2543
        %v2545 = vpop.xlane.xlu0 %2544
        %v2546 = vmul.f32 %v2545, %v2330
        %v2547 = vsub.f32 %v2540, %v2546
        %v2548 = vmul.f32 %v2547, %v2547
        %v2549 = vsel %vm1311, %v2548, 0.0
        %2550 = vadd.xlane.f32.xlu0 %v2549
        %v2551 = vpop.xlane.xlu0 %2550
        %v2552 = vmul.f32 %v2551, %v2330
        %v2553 = vadd.f32 %v2552, 1e-09
        %v2554 = vrsqrt.pop %v2553
        %v2555 = vmul.f32 %v2553, %v2554
        %vm2556 = vcmp.eq.f32.partialorder %v2553, inf
        %v2557 = vsel %vm2556, %v2553, %v2555
        %vm2558 = vcmp.eq.f32.partialorder %v2553, 0.0
        %v2559 = vand.u32 %v2553, 2147483648
        %v2560 = vsel %vm2558, %v2559, %v2557
        %v2561 = vrcp.pop %v2560
        %v2562 = vmul.f32 %v2547, %v2561
        %v2564 = vlaneseq
        %v2565 = vshrl.u32 %v2564, 7
        %v2566 = vsub.s32 0, %v2565
        %v2567 = vrot.slane %v2541, %v2566
        %v2569 = vmul.f32 %v2562, %v2567
        %v2571 = vlaneseq
        %v2572 = vshrl.u32 %v2571, 7
        %v2573 = vsub.s32 0, %v2572
        %v2574 = vrot.slane %v2542, %v2573
        %v2576 = vadd.f32 %v2569, %v2574
        %v2577 = vadd.f32 %v2247, %v2248
        %v2578 = vsel %vm1358, %v2577, 0.0
        %2579 = vadd.xlane.f32.xlu0 %v2578
        %v2580 = vpop.xlane.xlu0 %2579
        %v2581 = vrcp.pop %v2580
        %v2582 = vmul.f32 %v2577, %v2581
        %2583 = vst.msk [vmem:[%s1103] sm:$0xff] %vm1311, %v2576
        %2584 = vst.msk [vmem:[%s1110] sm:$0xff] %vm1311, %v2319
        %v2585 = vpack.c.bf16 %v2582, %v2582
        %vm2586 = vcmask 60416
        %2587 = vst.msk [vmem:[%s1117] sm:$0xf] %vm2586, %v2585
        %v2588 = vpack.c.bf16 %v2247, %v2247
        %2589 = vst.msk [vmem:[%s1124] sm:$0xf] %vm2586, %v2588
        %v2590 = vpack.c.bf16 %v2248, %v2248
        %2591 = vst.msk [vmem:[%s1131] sm:$0xf] %vm2586, %v2590
        %s2592 = sand.u32 %s539, 1
        %s2593 = scalar_lea.sflag [#allocation6], %s2592
        %s2594 = sand.u32 %s539, 1
        %s2595 = smul.addr %s2594, 8
        %s2596 = scalar_lea.vmem [#allocation37], %s2595
        %s2597 = sand.u32 %s61, 1
        %s2598 = scalar_lea.sflag [#allocation39], %s2597
        %s2599 = sand.u32 %s567, 1
        %s2600 = smul.addr %s2599, 8
        %s2601 = scalar_lea.vmem [#allocation38], %s2600
        %s2602 = sand.u32 %s61, 1
        %s2603 = scalar_lea.sflag [#allocation39], %s2602
        %s2604 = sand.u32 %s595, 1
        %s2605 = smul.addr %s2604, 4
        %s2606 = scalar_lea.vmem [#allocation40], %s2605
        %s2607 = sand.u32 %s61, 1
        %s2608 = scalar_lea.sflag [#allocation42], %s2607
        %s2609 = sand.u32 %s623, 1
        %s2610 = smul.addr %s2609, 4
        %s2611 = scalar_lea.vmem [#allocation41], %s2610
        %s2612 = sand.u32 %s61, 1
        %s2613 = scalar_lea.sflag [#allocation42], %s2612
        %s2614 = sand.u32 %s651, 1
        %s2615 = smul.addr %s2614, 4
        %s2616 = scalar_lea.vmem [#allocation43], %s2615
        // Predicated region
        $region193: #{tpu_custom_call.1} parent=103 // pred_check
          %p2617 = pneg %p549
        $region194: #{tpu_custom_call.1} parent=103 // pred_check_branch
          %2619 = sbr.rel (%p2617) target = $region196
        $region195: #{tpu_custom_call.1} parent=103 // pred_region
          %s2621 = ssub.s32 128, 128
          %2622 = vsyncadd %s2593, %s2621
          %s2623 = sadd.s32 %s66, %s65
          %s2624 = smul.addr %s2623, 128
          %s2625 = scalar_lea.hbm %s21, %s2624
          %s2627 = sshll.u32 %s2596, 4
          %s2628 = int_to_ptr.vmem [resolvable:$true] %s2627
          %2630 = dma.vmem_to_hbm [thread:$0]  %s2628, 128, %s2625, %s2593
        $region196: #{tpu_custom_call.1} parent=103 // pred_fallthru
          _
        // Predicated region
        $region197: #{tpu_custom_call.1} parent=103 // pred_check
          %p2631 = pneg %p577
        $region198: #{tpu_custom_call.1} parent=103 // pred_check_branch
          %2633 = sbr.rel (%p2631) target = $region200
        $region199: #{tpu_custom_call.1} parent=103 // pred_region
          %s2635 = ssub.s32 128, 128
          %2636 = vsyncadd %s2598, %s2635
          %s2637 = sadd.s32 %s66, %s65
          %s2638 = smul.addr %s2637, 128
          %s2639 = scalar_lea.hbm %s22, %s2638
          %s2641 = sshll.u32 %s2601, 4
          %s2642 = int_to_ptr.vmem [resolvable:$true] %s2641
          %2644 = dma.vmem_to_hbm [thread:$0]  %s2642, 128, %s2639, %s2598
        $region200: #{tpu_custom_call.1} parent=103 // pred_fallthru
          _
        // Predicated region
        $region201: #{tpu_custom_call.1} parent=103 // pred_check
          %p2645 = pneg %p605
        $region202: #{tpu_custom_call.1} parent=103 // pred_check_branch
          %2647 = sbr.rel (%p2645) target = $region204
        $region203: #{tpu_custom_call.1} parent=103 // pred_region
          %s2649 = ssub.s32 64, 64
          %2650 = vsyncadd %s2603, %s2649
          %s2651 = sadd.s32 %s66, %s65
          %s2652 = smul.addr %s2651, 64
          %s2653 = scalar_lea.hbm %s23, %s2652
          %s2655 = sshll.u32 %s2606, 4
          %s2656 = int_to_ptr.vmem [resolvable:$true] %s2655
          %2658 = dma.vmem_to_hbm [thread:$0]  %s2656, 64, %s2653, %s2603
        $region204: #{tpu_custom_call.1} parent=103 // pred_fallthru
          _
        // Predicated region
        $region205: #{tpu_custom_call.1} parent=103 // pred_check
          %p2659 = pneg %p633
        $region206: #{tpu_custom_call.1} parent=103 // pred_check_branch
          %2661 = sbr.rel (%p2659) target = $region208
        $region207: #{tpu_custom_call.1} parent=103 // pred_region
          %s2663 = ssub.s32 64, 64
          %2664 = vsyncadd %s2608, %s2663
          %s2665 = sadd.s32 %s66, %s65
          %s2666 = smul.addr %s2665, 64
          %s2667 = scalar_lea.hbm %s24, %s2666
          %s2669 = sshll.u32 %s2611, 4
          %s2670 = int_to_ptr.vmem [resolvable:$true] %s2669
          %2672 = dma.vmem_to_hbm [thread:$0]  %s2670, 64, %s2667, %s2608
        $region208: #{tpu_custom_call.1} parent=103 // pred_fallthru
          _
        // Predicated region
        $region209: #{tpu_custom_call.1} parent=103 // pred_check
          %p2673 = pneg %p661
        $region210: #{tpu_custom_call.1} parent=103 // pred_check_branch
          %2675 = sbr.rel (%p2673) target = $region212
        $region211: #{tpu_custom_call.1} parent=103 // pred_region
          %s2677 = ssub.s32 64, 64
          %2678 = vsyncadd %s2613, %s2677
          %s2679 = sadd.s32 %s66, %s65
          %s2680 = smul.addr %s2679, 64
          %s2681 = scalar_lea.hbm %s25, %s2680
          %s2683 = sshll.u32 %s2616, 4
          %s2684 = int_to_ptr.vmem [resolvable:$true] %s2683
          %2686 = dma.vmem_to_hbm [thread:$0]  %s2684, 64, %s2681, %s2613
        $region212: #{tpu_custom_call.1} parent=103 // pred_fallthru
          _
      $region104: #{tpu_custom_call.1} parent=5 // pred_fallthru
        _
      %p2687 = scmp.le.s32.totalorder 2, %s56
      // Predicated region
      $region213: #{tpu_custom_call.1} parent=5 // pred_check
        %p2688 = pneg %p2687
      $region214: #{tpu_custom_call.1} parent=5 // pred_check_branch
        %2690 = sbr.rel (%p2688) target = $region216
      $region215: #{tpu_custom_call.1} parent=5 // pred_region
        %s2691 = ssub.s32 %s56, 2
        // Predicated region
        $region217: #{tpu_custom_call.1} parent=215 // pred_check
          %p2692 = pneg %p555
        $region218: #{tpu_custom_call.1} parent=215 // pred_check_branch
          %2694 = sbr.rel (%p2692) target = $region220
        $region219: #{tpu_custom_call.1} parent=215 // pred_region
          %s2695 = sand.u32 %s540, 1
          %s2696 = scalar_lea.sflag [#allocation6], %s2695
          %s2697 = sand.u32 %s540, 1
          %s2698 = smul.addr %s2697, 8
          %s2699 = scalar_lea.vmem [#allocation37], %s2698
          %2700 = dma.done %s2696, 128
        $region220: #{tpu_custom_call.1} parent=215 // pred_fallthru
          _
        // Predicated region
        $region221: #{tpu_custom_call.1} parent=215 // pred_check
          %p2701 = pneg %p583
        $region222: #{tpu_custom_call.1} parent=215 // pred_check_branch
          %2703 = sbr.rel (%p2701) target = $region224
        $region223: #{tpu_custom_call.1} parent=215 // pred_region
          %s2704 = sand.u32 %s62, 1
          %s2705 = scalar_lea.sflag [#allocation39], %s2704
          %s2706 = sand.u32 %s568, 1
          %s2707 = smul.addr %s2706, 8
          %s2708 = scalar_lea.vmem [#allocation38], %s2707
          %2709 = dma.done %s2705, 128
        $region224: #{tpu_custom_call.1} parent=215 // pred_fallthru
          _
        // Predicated region
        $region225: #{tpu_custom_call.1} parent=215 // pred_check
          %p2710 = pneg %p611
        $region226: #{tpu_custom_call.1} parent=215 // pred_check_branch
          %2712 = sbr.rel (%p2710) target = $region228
        $region227: #{tpu_custom_call.1} parent=215 // pred_region
          %s2713 = sand.u32 %s62, 1
          %s2714 = scalar_lea.sflag [#allocation39], %s2713
          %s2715 = sand.u32 %s596, 1
          %s2716 = smul.addr %s2715, 4
          %s2717 = scalar_lea.vmem [#allocation40], %s2716
          %2718 = dma.done %s2714, 64
        $region228: #{tpu_custom_call.1} parent=215 // pred_fallthru
          _
        // Predicated region
        $region229: #{tpu_custom_call.1} parent=215 // pred_check
          %p2719 = pneg %p639
        $region230: #{tpu_custom_call.1} parent=215 // pred_check_branch
          %2721 = sbr.rel (%p2719) target = $region232
        $region231: #{tpu_custom_call.1} parent=215 // pred_region
          %s2722 = sand.u32 %s62, 1
          %s2723 = scalar_lea.sflag [#allocation42], %s2722
          %s2724 = sand.u32 %s624, 1
          %s2725 = smul.addr %s2724, 4
          %s2726 = scalar_lea.vmem [#allocation41], %s2725
          %2727 = dma.done %s2723, 64
        $region232: #{tpu_custom_call.1} parent=215 // pred_fallthru
          _
        // Predicated region
        $region233: #{tpu_custom_call.1} parent=215 // pred_check
          %p2728 = pneg %p667
        $region234: #{tpu_custom_call.1} parent=215 // pred_check_branch
          %2730 = sbr.rel (%p2728) target = $region236
        $region235: #{tpu_custom_call.1} parent=215 // pred_region
          %s2731 = sand.u32 %s62, 1
          %s2732 = scalar_lea.sflag [#allocation42], %s2731
          %s2733 = sand.u32 %s652, 1
          %s2734 = smul.addr %s2733, 4
          %s2735 = scalar_lea.vmem [#allocation43], %s2734
          %2736 = dma.done %s2732, 64
        $region236: #{tpu_custom_call.1} parent=215 // pred_fallthru
          _
      $region216: #{tpu_custom_call.1} parent=5 // pred_fallthru
        _
    $region6: #{tpu_custom_call.1} parent=1 // loop_footer
      %s60 = sadd.s32 1, %s56
    $region7: #{tpu_custom_call.1} parent=1 // loop_footer_branch
      %55 = sbr.rel target = $region3
    $region8: #{tpu_custom_call.1} parent=1 // loop_exit
      _
    %2737 = vsyncpa [#allocation5], 1
    %s2738 = scalar_lea.sflag [#allocation5], 1
    %2739 = vsyncpa %s2738, 1
    %2740 = vsyncpa [#allocation8], 1
    %s2741 = scalar_lea.sflag [#allocation8], 1
    %2742 = vsyncpa %s2741, 1
    %2743 = vsyncpa [#allocation11], 1
    %2744 = vsyncpa [#allocation14], 1
    %2745 = vsyncpa [#allocation17], 1
    %2746 = vsyncpa [#allocation20], 1
    %2747 = vsyncpa [#allocation23], 1
    %2748 = vsyncpa [#allocation26], 1
    %2749 = vsyncpa [#allocation29], 1
    %2750 = vsyncpa [#allocation32], 1
    %2751 = vsyncpa [#allocation35], 1
    %2752 = vsyncpa [#allocation6], 1
    %s2753 = scalar_lea.sflag [#allocation6], 1
    %2754 = vsyncpa %s2753, 1
    %2755 = vsyncpa [#allocation39], 1
    %s2756 = scalar_lea.sflag [#allocation39], 1
    %2757 = vsyncpa %s2756, 1
    %2758 = vsyncpa [#allocation42], 1
    %s2759 = scalar_lea.sflag [#allocation42], 1
    %2760 = vsyncpa %s2759, 1

// kernel: tpu_custom_call.1
$region0: #{tpu_custom_call.1}
  #allocation0 [shape = 'u32[]', space=smem, size = 0x4, offset = 0x4, fixed_abs, tag = 'smem constant byte address 0x4 - core index']
  #allocation1 [shape = 'u32[144,128]{1,0:T(1,128)}', space=vmem, size = 0x12000, scoped, tag = 'internal scratch']
  #allocation2 [shape = 'bf16[8,64]{1,0:T(8,128)(2,1)}', space=vmem, size = 0x800, scoped, tag = 'scratch operand']
  #allocation3 [shape = 'bf16[8,32]{1,0:T(8,128)(2,1)}', space=vmem, size = 0x800, scoped, tag = 'scratch operand']
  %s0 = inlined_call_operand.hbm [shape: f32[2,8,32], index: 0, kind: input, shape index: {}]
  %s1 = inlined_call_operand.hbm [shape: f32[2,8,32], index: 1, kind: input, shape index: {}]
  %s2 = inlined_call_operand.hbm [shape: bf16[8,8], index: 2, kind: input, shape index: {}]
  %s3 = inlined_call_operand.hbm [shape: bf16[32,64], index: 3, kind: input, shape index: {}]
  %s4 = inlined_call_operand.hbm [shape: f32[1,64], index: 4, kind: input, shape index: {}]
  %s5 = inlined_call_operand.hbm [shape: bf16[32,64], index: 5, kind: input, shape index: {}]
  %s6 = inlined_call_operand.hbm [shape: f32[1,64], index: 6, kind: input, shape index: {}]
  %s7 = inlined_call_operand.hbm [shape: bf16[32,32], index: 7, kind: input, shape index: {}]
  %s8 = inlined_call_operand.hbm [shape: f32[1,32], index: 8, kind: input, shape index: {}]
  %s9 = inlined_call_operand.hbm [shape: bf16[32,32], index: 9, kind: input, shape index: {}]
  %s10 = inlined_call_operand.hbm [shape: f32[1,32], index: 10, kind: input, shape index: {}]
  %s11 = inlined_call_operand.hbm [shape: bf16[32,32], index: 11, kind: input, shape index: {}]
  %s12 = inlined_call_operand.hbm [shape: f32[1,32], index: 12, kind: input, shape index: {}]
  %s13 = inlined_call_operand.hbm [shape: bf16[32,64], index: 13, kind: input, shape index: {}]
  %s14 = inlined_call_operand.hbm [shape: f32[1,64], index: 14, kind: input, shape index: {}]
  %s15 = inlined_call_operand.hbm [shape: bf16[64,32], index: 15, kind: input, shape index: {}]
  %s16 = inlined_call_operand.hbm [shape: f32[1,32], index: 16, kind: input, shape index: {}]
  %s17 = inlined_call_operand.hbm [shape: f32[1,32], index: 17, kind: input, shape index: {}]
  %s18 = inlined_call_operand.hbm [shape: f32[1,32], index: 18, kind: input, shape index: {}]
  %s19 = inlined_call_operand.hbm [shape: f32[1,32], index: 19, kind: input, shape index: {}]
  %s20 = inlined_call_operand.hbm [shape: f32[1,32], index: 20, kind: input, shape index: {}]
  %s21 = inlined_call_operand.hbm [shape: f32[2,8,32], index: 21, kind: output, shape index: {0}]
  %s22 = inlined_call_operand.hbm [shape: f32[2,8,32], index: 22, kind: output, shape index: {1}]
  %s23 = inlined_call_operand.hbm [shape: bf16[2,8,8], index: 23, kind: output, shape index: {2}]
  %s24 = inlined_call_operand.hbm [shape: bf16[2,8,8], index: 24, kind: output, shape index: {3}]
  %s25 = inlined_call_operand.hbm [shape: bf16[2,8,8], index: 25, kind: output, shape index: {4}]
  %26 = xla_tuple %s21, %s22, %s23, %s24, %s25
  %s27 = sld [smem:[#allocation0]]
  $region237: #{tpu_custom_call.1} parent=0
    _
  %s29 = ssub.s32 1, %s27
  %s30 = scalar_select 0, %s29, %s27
  $region1: #{tpu_custom_call.1} parent=0
    #allocation4 [shape = 'u8[8192]{0}', space=vmem, size = 0x2000, scoped, tag = 'input window, operand 0']
    #allocation5 [shape = 's32[2]{0}', space=sflag, size = 0x8, scoped, tag = 'scoped memory for tpu_custom_call.1']
    #allocation6 [shape = 's32[2]{0}', space=sflag, size = 0x8, scoped, tag = 'scoped memory for tpu_custom_call.1']
    #allocation7 [shape = 'u8[8192]{0}', space=vmem, size = 0x2000, scoped, tag = 'input window, operand 1']
    #allocation8 [shape = 's32[2]{0}', space=sflag, size = 0x8, scoped, tag = 'scoped memory for tpu_custom_call.1']
    #allocation9 [shape = 'u8[2048]{0}', space=vmem, size = 0x800, scoped, tag = 'input window, operand 2, single buffered']
    #allocation10 [shape = 'u8[8192]{0}', space=vmem, size = 0x2000, scoped, tag = 'input window, operand 3, single buffered']
    #allocation11 [shape = 's32[1]{0}', space=sflag, size = 0x4, scoped, tag = 'scoped memory for tpu_custom_call.1']
    #allocation12 [shape = 'u8[512]{0}', space=vmem, size = 0x400, scoped, tag = 'input window, operand 4, single buffered']
    #allocation13 [shape = 'u8[8192]{0}', space=vmem, size = 0x2000, scoped, tag = 'input window, operand 5, single buffered']
    #allocation14 [shape = 's32[1]{0}', space=sflag, size = 0x4, scoped, tag = 'scoped memory for tpu_custom_call.1']
    #allocation15 [shape = 'u8[512]{0}', space=vmem, size = 0x400, scoped, tag = 'input window, operand 6, single buffered']
    #allocation16 [shape = 'u8[8192]{0}', space=vmem, size = 0x2000, scoped, tag = 'input window, operand 7, single buffered']
    #allocation17 [shape = 's32[1]{0}', space=sflag, size = 0x4, scoped, tag = 'scoped memory for tpu_custom_call.1']
    #allocation18 [shape = 'u8[512]{0}', space=vmem, size = 0x400, scoped, tag = 'input window, operand 8, single buffered']
    #allocation19 [shape = 'u8[8192]{0}', space=vmem, size = 0x2000, scoped, tag = 'input window, operand 9, single buffered']
    #allocation20 [shape = 's32[1]{0}', space=sflag, size = 0x4, scoped, tag = 'scoped memory for tpu_custom_call.1']
    #allocation21 [shape = 'u8[512]{0}', space=vmem, size = 0x400, scoped, tag = 'input window, operand 10, single buffered']
    #allocation22 [shape = 'u8[8192]{0}', space=vmem, size = 0x2000, scoped, tag = 'input window, operand 11, single buffered']
    #allocation23 [shape = 's32[1]{0}', space=sflag, size = 0x4, scoped, tag = 'scoped memory for tpu_custom_call.1']
    #allocation24 [shape = 'u8[512]{0}', space=vmem, size = 0x400, scoped, tag = 'input window, operand 12, single buffered']
    #allocation25 [shape = 'u8[8192]{0}', space=vmem, size = 0x2000, scoped, tag = 'input window, operand 13, single buffered']
    #allocation26 [shape = 's32[1]{0}', space=sflag, size = 0x4, scoped, tag = 'scoped memory for tpu_custom_call.1']
    #allocation27 [shape = 'u8[512]{0}', space=vmem, size = 0x400, scoped, tag = 'input window, operand 14, single buffered']
    #allocation28 [shape = 'u8[16384]{0}', space=vmem, size = 0x4000, scoped, tag = 'input window, operand 15, single buffered']
    #allocation29 [shape = 's32[1]{0}', space=sflag, size = 0x4, scoped, tag = 'scoped memory for tpu_custom_call.1']
    #allocation30 [shape = 'u8[512]{0}', space=vmem, size = 0x400, scoped, tag = 'input window, operand 16, single buffered']
    #allocation31 [shape = 'u8[512]{0}', space=vmem, size = 0x400, scoped, tag = 'input window, operand 17, single buffered']
    #allocation32 [shape = 's32[1]{0}', space=sflag, size = 0x4, scoped, tag = 'scoped memory for tpu_custom_call.1']
    #allocation33 [shape = 'u8[512]{0}', space=vmem, size = 0x400, scoped, tag = 'input window, operand 18, single buffered']
    #allocation34 [shape = 'u8[512]{0}', space=vmem, size = 0x400, scoped, tag = 'input window, operand 19, single buffered']
    #allocation35 [shape = 's32[1]{0}', space=sflag, size = 0x4, scoped, tag = 'scoped memory for tpu_custom_call.1']
    #allocation36 [shape = 'u8[512]{0}', space=vmem, size = 0x400, scoped, tag = 'input window, operand 20, single buffered']
    #allocation37 [shape = 'u8[8192]{0}', space=vmem, size = 0x2000, scoped, tag = 'output window, operand 0']
    #allocation38 [shape = 'u8[8192]{0}', space=vmem, size = 0x2000, scoped, tag = 'output window, operand 1']
    #allocation39 [shape = 's32[2]{0}', space=sflag, size = 0x8, scoped, tag = 'scoped memory for tpu_custom_call.1']
    #allocation40 [shape = 'u8[4096]{0}', space=vmem, size = 0x1000, scoped, tag = 'output window, operand 2']
    #allocation41 [shape = 'u8[4096]{0}', space=vmem, size = 0x1000, scoped, tag = 'output window, operand 3']
    #allocation42 [shape = 's32[2]{0}', space=sflag, size = 0x8, scoped, tag = 'scoped memory for tpu_custom_call.1']
    #allocation43 [shape = 'u8[4096]{0}', space=vmem, size = 0x1000, scoped, tag = 'output window, operand 4']
    %31 = vsyncpa [#allocation5], 0
    %s32 = scalar_lea.sflag [#allocation5], 1
    %33 = vsyncpa %s32, 0
    %34 = vsyncpa [#allocation8], 0
    %s35 = scalar_lea.sflag [#allocation8], 1
    %36 = vsyncpa %s35, 0
    %37 = vsyncpa [#allocation11], 0
    %38 = vsyncpa [#allocation14], 0
    %39 = vsyncpa [#allocation17], 0
    %40 = vsyncpa [#allocation20], 0
    %41 = vsyncpa [#allocation23], 0
    %42 = vsyncpa [#allocation26], 0
    %43 = vsyncpa [#allocation29], 0
    %44 = vsyncpa [#allocation32], 0
    %45 = vsyncpa [#allocation35], 0
    %46 = vsyncpa [#allocation6], 0
    %s47 = scalar_lea.sflag [#allocation6], 1
    %48 = vsyncpa %s47, 0
    %49 = vsyncpa [#allocation39], 0
    %s50 = scalar_lea.sflag [#allocation39], 1
    %51 = vsyncpa %s50, 0
    %52 = vsyncpa [#allocation42], 0
    %s53 = scalar_lea.sflag [#allocation42], 1
    %54 = vsyncpa %s53, 0
    loop: start=0, step=1, limit=4
    $region2: #{tpu_custom_call.1} parent=1 // loop_pre_header
      _
    $region3: #{tpu_custom_call.1} parent=1 // loop_header
      %s56 = sphi 0, %s60
      %p57 = scmp.ge.s32.totalorder %s56, 4
      %s63 = sphi 0, %s75
      %s64 = sphi 0, %s71
      %s65 = sphi 0, %s63
      %s66 = sphi 0, %s64
      %s67 = sphi 0, %s65
      %s68 = sphi 0, %s66
      %s78 = sphi 0, %s80
      %s81 = sphi 0, %s78
      %s82 = sphi 0, %s81
      %s98 = sphi 0, %s82
      %s104 = sphi 0, %s106
      %s107 = sphi 0, %s104
      %s108 = sphi 0, %s107
      %s124 = sphi 0, %s108
      %s130 = sphi 0, %s132
      %s133 = sphi 0, %s130
      %s134 = sphi 0, %s133
      %s150 = sphi 0, %s134
      %s154 = sphi 0, %s154
      %s156 = sphi 0, %s154
      %s157 = sphi 0, %s156
      %s171 = sphi 0, %s157
      %s175 = sphi 0, %s175
      %s177 = sphi 0, %s175
      %s178 = sphi 0, %s177
      %s192 = sphi 0, %s178
      %s196 = sphi 0, %s196
      %s198 = sphi 0, %s196
      %s199 = sphi 0, %s198
      %s213 = sphi 0, %s199
      %s217 = sphi 0, %s217
      %s219 = sphi 0, %s217
      %s220 = sphi 0, %s219
      %s234 = sphi 0, %s220
      %s238 = sphi 0, %s238
      %s240 = sphi 0, %s238
      %s241 = sphi 0, %s240
      %s255 = sphi 0, %s241
      %s259 = sphi 0, %s259
      %s261 = sphi 0, %s259
      %s262 = sphi 0, %s261
      %s276 = sphi 0, %s262
      %s280 = sphi 0, %s280
      %s282 = sphi 0, %s280
      %s283 = sphi 0, %s282
      %s297 = sphi 0, %s283
      %s301 = sphi 0, %s301
      %s303 = sphi 0, %s301
      %s304 = sphi 0, %s303
      %s318 = sphi 0, %s304
      %s322 = sphi 0, %s322
      %s324 = sphi 0, %s322
      %s325 = sphi 0, %s324
      %s339 = sphi 0, %s325
      %s343 = sphi 0, %s343
      %s345 = sphi 0, %s343
      %s346 = sphi 0, %s345
      %s360 = sphi 0, %s346
      %s364 = sphi 0, %s364
      %s366 = sphi 0, %s364
      %s367 = sphi 0, %s366
      %s381 = sphi 0, %s367
      %s385 = sphi 0, %s385
      %s387 = sphi 0, %s385
      %s388 = sphi 0, %s387
      %s402 = sphi 0, %s388
      %s406 = sphi 0, %s406
      %s408 = sphi 0, %s406
      %s409 = sphi 0, %s408
      %s423 = sphi 0, %s409
      %s427 = sphi 0, %s427
      %s429 = sphi 0, %s427
      %s430 = sphi 0, %s429
      %s444 = sphi 0, %s430
      %s448 = sphi 0, %s448
      %s450 = sphi 0, %s448
      %s451 = sphi 0, %s450
      %s465 = sphi 0, %s451
      %s469 = sphi 0, %s469
      %s471 = sphi 0, %s469
      %s472 = sphi 0, %s471
      %s486 = sphi 0, %s472
      %s490 = sphi 0, %s490
      %s492 = sphi 0, %s490
      %s493 = sphi 0, %s492
      %s507 = sphi 0, %s493
      %s511 = sphi 0, %s511
      %s513 = sphi 0, %s511
      %s514 = sphi 0, %s513
      %s528 = sphi 0, %s514
      %s536 = sphi 0, %s538
      %s539 = sphi 0, %s536
      %s540 = sphi 0, %s539
      %s556 = sphi 0, %s540
      %s564 = sphi 0, %s566
      %s567 = sphi 0, %s564
      %s568 = sphi 0, %s567
      %s584 = sphi 0, %s568
      %s592 = sphi 0, %s594
      %s595 = sphi 0, %s592
      %s596 = sphi 0, %s595
      %s612 = sphi 0, %s596
      %s620 = sphi 0, %s622
      %s623 = sphi 0, %s620
      %s624 = sphi 0, %s623
      %s640 = sphi 0, %s624
      %s648 = sphi 0, %s650
      %s651 = sphi 0, %s648
      %s652 = sphi 0, %s651
      %s668 = sphi 0, %s652
    $region4: #{tpu_custom_call.1} parent=1 // loop_header_branch
      %59 = sbr.rel (%p57) target = $region8
    $region5: #{tpu_custom_call.1} parent=1 // loop_body
      %s61 = ssub.s32 %s56, 1
      %s62 = ssub.s32 %s56, 2
      %s69 = sadd.s32 1, %s64
      %p70 = scmp.ge.s32.totalorder %s69, 1
      %s71 = scalar_select %p70, 0, %s69
      %s72 = sadd.s32 1, %s63
      %s73 = scalar_select %p70, %s72, %s63
      %p74 = scmp.ge.s32.totalorder %s73, 2
      %s75 = scalar_select %p74, 0, %s73
      %s76 = ssub.s32 %s63, %s75
      %p77 = scmp.eq.s32.totalorder %s76, 0
      %s79 = sadd.s32 %s78, 1
      %s80 = scalar_select %p77, %s78, %s79
      %p83 = pneg %p77
      %p84 = scmp.eq.s32.totalorder %s56, 1
      %p85 = por %p83, %p84
      %p86 = scmp.ne.s32.totalorder %s78, %s81
      %p87 = scmp.eq.s32.totalorder %s56, 0
      %p88 = por %p86, %p87
      %p89 = scmp.ne.s32.totalorder %s78, %s81
      %p90 = scmp.eq.s32.totalorder %s61, 1
      %p91 = por %p89, %p90
      %p92 = scmp.ne.s32.totalorder %s81, %s82
      %p93 = scmp.eq.s32.totalorder %s61, 0
      %p94 = por %p92, %p93
      %p95 = scmp.ne.s32.totalorder %s81, %s82
      %p96 = scmp.eq.s32.totalorder %s62, 1
      %p97 = por %p95, %p96
      %p99 = scmp.ne.s32.totalorder %s82, %s98
      %p100 = scmp.eq.s32.totalorder %s62, 0
      %p101 = por %p99, %p100
      %s102 = ssub.s32 %s63, %s75
      %p103 = scmp.eq.s32.totalorder %s102, 0
      %s105 = sadd.s32 %s104, 1
      %s106 = scalar_select %p103, %s104, %s105
      %p109 = pneg %p103
      %p110 = scmp.eq.s32.totalorder %s56, 1
      %p111 = por %p109, %p110
      %p112 = scmp.ne.s32.totalorder %s104, %s107
      %p113 = scmp.eq.s32.totalorder %s56, 0
      %p114 = por %p112, %p113
      %p115 = scmp.ne.s32.totalorder %s104, %s107
      %p116 = scmp.eq.s32.totalorder %s61, 1
      %p117 = por %p115, %p116
      %p118 = scmp.ne.s32.totalorder %s107, %s108
      %p119 = scmp.eq.s32.totalorder %s61, 0
      %p120 = por %p118, %p119
      %p121 = scmp.ne.s32.totalorder %s107, %s108
      %p122 = scmp.eq.s32.totalorder %s62, 1
      %p123 = por %p121, %p122
      %p125 = scmp.ne.s32.totalorder %s108, %s124
      %p126 = scmp.eq.s32.totalorder %s62, 0
      %p127 = por %p125, %p126
      %s128 = ssub.s32 %s64, %s71
      %p129 = scmp.eq.s32.totalorder %s128, 0
      %s131 = sadd.s32 %s130, 1
      %s132 = scalar_select %p129, %s130, %s131
      %p135 = pneg %p129
      %p136 = scmp.eq.s32.totalorder %s56, 1
      %p137 = por %p135, %p136
      %p138 = scmp.ne.s32.totalorder %s130, %s133
      %p139 = scmp.eq.s32.totalorder %s56, 0
      %p140 = por %p138, %p139
      %p141 = scmp.ne.s32.totalorder %s130, %s133
      %p142 = scmp.eq.s32.totalorder %s61, 1
      %p143 = por %p141, %p142
      %p144 = scmp.ne.s32.totalorder %s133, %s134
      %p145 = scmp.eq.s32.totalorder %s61, 0
      %p146 = por %p144, %p145
      %p147 = scmp.ne.s32.totalorder %s133, %s134
      %p148 = scmp.eq.s32.totalorder %s62, 1
      %p149 = por %p147, %p148
      %p151 = scmp.ne.s32.totalorder %s134, %s150
      %p152 = scmp.eq.s32.totalorder %s62, 0
      %p153 = por %p151, %p152
      %s155 = sadd.s32 %s154, 1
      %p158 = scmp.eq.s32.totalorder %s56, 1
      %p159 = scmp.ne.s32.totalorder %s154, %s156
      %p160 = scmp.eq.s32.totalorder %s56, 0
      %p161 = por %p159, %p160
      %p162 = scmp.ne.s32.totalorder %s154, %s156
      %p163 = scmp.eq.s32.totalorder %s61, 1
      %p164 = por %p162, %p163
      %p165 = scmp.ne.s32.totalorder %s156, %s157
      %p166 = scmp.eq.s32.totalorder %s61, 0
      %p167 = por %p165, %p166
      %p168 = scmp.ne.s32.totalorder %s156, %s157
      %p169 = scmp.eq.s32.totalorder %s62, 1
      %p170 = por %p168, %p169
      %p172 = scmp.ne.s32.totalorder %s157, %s171
      %p173 = scmp.eq.s32.totalorder %s62, 0
      %p174 = por %p172, %p173
      %s176 = sadd.s32 %s175, 1
      %p179 = scmp.eq.s32.totalorder %s56, 1
      %p180 = scmp.ne.s32.totalorder %s175, %s177
      %p181 = scmp.eq.s32.totalorder %s56, 0
      %p182 = por %p180, %p181
      %p183 = scmp.ne.s32.totalorder %s175, %s177
      %p184 = scmp.eq.s32.totalorder %s61, 1
      %p185 = por %p183, %p184
      %p186 = scmp.ne.s32.totalorder %s177, %s178
      %p187 = scmp.eq.s32.totalorder %s61, 0
      %p188 = por %p186, %p187
      %p189 = scmp.ne.s32.totalorder %s177, %s178
      %p190 = scmp.eq.s32.totalorder %s62, 1
      %p191 = por %p189, %p190
      %p193 = scmp.ne.s32.totalorder %s178, %s192
      %p194 = scmp.eq.s32.totalorder %s62, 0
      %p195 = por %p193, %p194
      %s197 = sadd.s32 %s196, 1
      %p200 = scmp.eq.s32.totalorder %s56, 1
      %p201 = scmp.ne.s32.totalorder %s196, %s198
      %p202 = scmp.eq.s32.totalorder %s56, 0
      %p203 = por %p201, %p202
      %p204 = scmp.ne.s32.totalorder %s196, %s198
      %p205 = scmp.eq.s32.totalorder %s61, 1
      %p206 = por %p204, %p205
      %p207 = scmp.ne.s32.totalorder %s198, %s199
      %p208 = scmp.eq.s32.totalorder %s61, 0
      %p209 = por %p207, %p208
      %p210 = scmp.ne.s32.totalorder %s198, %s199
      %p211 = scmp.eq.s32.totalorder %s62, 1
      %p212 = por %p210, %p211
      %p214 = scmp.ne.s32.totalorder %s199, %s213
      %p215 = scmp.eq.s32.totalorder %s62, 0
      %p216 = por %p214, %p215
      %s218 = sadd.s32 %s217, 1
      %p221 = scmp.eq.s32.totalorder %s56, 1
      %p222 = scmp.ne.s32.totalorder %s217, %s219
      %p223 = scmp.eq.s32.totalorder %s56, 0
      %p224 = por %p222, %p223
      %p225 = scmp.ne.s32.totalorder %s217, %s219
      %p226 = scmp.eq.s32.totalorder %s61, 1
      %p227 = por %p225, %p226
      %p228 = scmp.ne.s32.totalorder %s219, %s220
      %p229 = scmp.eq.s32.totalorder %s61, 0
      %p230 = por %p228, %p229
      %p231 = scmp.ne.s32.totalorder %s219, %s220
      %p232 = scmp.eq.s32.totalorder %s62, 1
      %p233 = por %p231, %p232
      %p235 = scmp.ne.s32.totalorder %s220, %s234
      %p236 = scmp.eq.s32.totalorder %s62, 0
      %p237 = por %p235, %p236
      %s239 = sadd.s32 %s238, 1
      %p242 = scmp.eq.s32.totalorder %s56, 1
      %p243 = scmp.ne.s32.totalorder %s238, %s240
      %p244 = scmp.eq.s32.totalorder %s56, 0
      %p245 = por %p243, %p244
      %p246 = scmp.ne.s32.totalorder %s238, %s240
      %p247 = scmp.eq.s32.totalorder %s61, 1
      %p248 = por %p246, %p247
      %p249 = scmp.ne.s32.totalorder %s240, %s241
      %p250 = scmp.eq.s32.totalorder %s61, 0
      %p251 = por %p249, %p250
      %p252 = scmp.ne.s32.totalorder %s240, %s241
      %p253 = scmp.eq.s32.totalorder %s62, 1
      %p254 = por %p252, %p253
      %p256 = scmp.ne.s32.totalorder %s241, %s255
      %p257 = scmp.eq.s32.totalorder %s62, 0
      %p258 = por %p256, %p257
      %s260 = sadd.s32 %s259, 1
      %p263 = scmp.eq.s32.totalorder %s56, 1
      %p264 = scmp.ne.s32.totalorder %s259, %s261
      %p265 = scmp.eq.s32.totalorder %s56, 0
      %p266 = por %p264, %p265
      %p267 = scmp.ne.s32.totalorder %s259, %s261
      %p268 = scmp.eq.s32.totalorder %s61, 1
      %p269 = por %p267, %p268
      %p270 = scmp.ne.s32.totalorder %s261, %s262
      %p271 = scmp.eq.s32.totalorder %s61, 0
      %p272 = por %p270, %p271
      %p273 = scmp.ne.s32.totalorder %s261, %s262
      %p274 = scmp.eq.s32.totalorder %s62, 1
      %p275 = por %p273, %p274
      %p277 = scmp.ne.s32.totalorder %s262, %s276
      %p278 = scmp.eq.s32.totalorder %s62, 0
      %p279 = por %p277, %p278
      %s281 = sadd.s32 %s280, 1
      %p284 = scmp.eq.s32.totalorder %s56, 1
      %p285 = scmp.ne.s32.totalorder %s280, %s282
      %p286 = scmp.eq.s32.totalorder %s56, 0
      %p287 = por %p285, %p286
      %p288 = scmp.ne.s32.totalorder %s280, %s282
      %p289 = scmp.eq.s32.totalorder %s61, 1
      %p290 = por %p288, %p289
      %p291 = scmp.ne.s32.totalorder %s282, %s283
      %p292 = scmp.eq.s32.totalorder %s61, 0
      %p293 = por %p291, %p292
      %p294 = scmp.ne.s32.totalorder %s282, %s283
      %p295 = scmp.eq.s32.totalorder %s62, 1
      %p296 = por %p294, %p295
      %p298 = scmp.ne.s32.totalorder %s283, %s297
      %p299 = scmp.eq.s32.totalorder %s62, 0
      %p300 = por %p298, %p299
      %s302 = sadd.s32 %s301, 1
      %p305 = scmp.eq.s32.totalorder %s56, 1
      %p306 = scmp.ne.s32.totalorder %s301, %s303
      %p307 = scmp.eq.s32.totalorder %s56, 0
      %p308 = por %p306, %p307
      %p309 = scmp.ne.s32.totalorder %s301, %s303
      %p310 = scmp.eq.s32.totalorder %s61, 1
      %p311 = por %p309, %p310
      %p312 = scmp.ne.s32.totalorder %s303, %s304
      %p313 = scmp.eq.s32.totalorder %s61, 0
      %p314 = por %p312, %p313
      %p315 = scmp.ne.s32.totalorder %s303, %s304
      %p316 = scmp.eq.s32.totalorder %s62, 1
      %p317 = por %p315, %p316
      %p319 = scmp.ne.s32.totalorder %s304, %s318
      %p320 = scmp.eq.s32.totalorder %s62, 0
      %p321 = por %p319, %p320
      %s323 = sadd.s32 %s322, 1
      %p326 = scmp.eq.s32.totalorder %s56, 1
      %p327 = scmp.ne.s32.totalorder %s322, %s324
      %p328 = scmp.eq.s32.totalorder %s56, 0
      %p329 = por %p327, %p328
      %p330 = scmp.ne.s32.totalorder %s322, %s324
      %p331 = scmp.eq.s32.totalorder %s61, 1
      %p332 = por %p330, %p331
      %p333 = scmp.ne.s32.totalorder %s324, %s325
      %p334 = scmp.eq.s32.totalorder %s61, 0
      %p335 = por %p333, %p334
      %p336 = scmp.ne.s32.totalorder %s324, %s325
      %p337 = scmp.eq.s32.totalorder %s62, 1
      %p338 = por %p336, %p337
      %p340 = scmp.ne.s32.totalorder %s325, %s339
      %p341 = scmp.eq.s32.totalorder %s62, 0
      %p342 = por %p340, %p341
      %s344 = sadd.s32 %s343, 1
      %p347 = scmp.eq.s32.totalorder %s56, 1
      %p348 = scmp.ne.s32.totalorder %s343, %s345
      %p349 = scmp.eq.s32.totalorder %s56, 0
      %p350 = por %p348, %p349
      %p351 = scmp.ne.s32.totalorder %s343, %s345
      %p352 = scmp.eq.s32.totalorder %s61, 1
      %p353 = por %p351, %p352
      %p354 = scmp.ne.s32.totalorder %s345, %s346
      %p355 = scmp.eq.s32.totalorder %s61, 0
      %p356 = por %p354, %p355
      %p357 = scmp.ne.s32.totalorder %s345, %s346
      %p358 = scmp.eq.s32.totalorder %s62, 1
      %p359 = por %p357, %p358
      %p361 = scmp.ne.s32.totalorder %s346, %s360
      %p362 = scmp.eq.s32.totalorder %s62, 0
      %p363 = por %p361, %p362
      %s365 = sadd.s32 %s364, 1
      %p368 = scmp.eq.s32.totalorder %s56, 1
      %p369 = scmp.ne.s32.totalorder %s364, %s366
      %p370 = scmp.eq.s32.totalorder %s56, 0
      %p371 = por %p369, %p370
      %p372 = scmp.ne.s32.totalorder %s364, %s366
      %p373 = scmp.eq.s32.totalorder %s61, 1
      %p374 = por %p372, %p373
      %p375 = scmp.ne.s32.totalorder %s366, %s367
      %p376 = scmp.eq.s32.totalorder %s61, 0
      %p377 = por %p375, %p376
      %p378 = scmp.ne.s32.totalorder %s366, %s367
      %p379 = scmp.eq.s32.totalorder %s62, 1
      %p380 = por %p378, %p379
      %p382 = scmp.ne.s32.totalorder %s367, %s381
      %p383 = scmp.eq.s32.totalorder %s62, 0
      %p384 = por %p382, %p383
      %s386 = sadd.s32 %s385, 1
      %p389 = scmp.eq.s32.totalorder %s56, 1
      %p390 = scmp.ne.s32.totalorder %s385, %s387
      %p391 = scmp.eq.s32.totalorder %s56, 0
      %p392 = por %p390, %p391
      %p393 = scmp.ne.s32.totalorder %s385, %s387
      %p394 = scmp.eq.s32.totalorder %s61, 1
      %p395 = por %p393, %p394
      %p396 = scmp.ne.s32.totalorder %s387, %s388
      %p397 = scmp.eq.s32.totalorder %s61, 0
      %p398 = por %p396, %p397
      %p399 = scmp.ne.s32.totalorder %s387, %s388
      %p400 = scmp.eq.s32.totalorder %s62, 1
      %p401 = por %p399, %p400
      %p403 = scmp.ne.s32.totalorder %s388, %s402
      %p404 = scmp.eq.s32.totalorder %s62, 0
      %p405 = por %p403, %p404
      %s407 = sadd.s32 %s406, 1
      %p410 = scmp.eq.s32.totalorder %s56, 1
      %p411 = scmp.ne.s32.totalorder %s406, %s408
      %p412 = scmp.eq.s32.totalorder %s56, 0
      %p413 = por %p411, %p412
      %p414 = scmp.ne.s32.totalorder %s406, %s408
      %p415 = scmp.eq.s32.totalorder %s61, 1
      %p416 = por %p414, %p415
      %p417 = scmp.ne.s32.totalorder %s408, %s409
      %p418 = scmp.eq.s32.totalorder %s61, 0
      %p419 = por %p417, %p418
      %p420 = scmp.ne.s32.totalorder %s408, %s409
      %p421 = scmp.eq.s32.totalorder %s62, 1
      %p422 = por %p420, %p421
      %p424 = scmp.ne.s32.totalorder %s409, %s423
      %p425 = scmp.eq.s32.totalorder %s62, 0
      %p426 = por %p424, %p425
      %s428 = sadd.s32 %s427, 1
      %p431 = scmp.eq.s32.totalorder %s56, 1
      %p432 = scmp.ne.s32.totalorder %s427, %s429
      %p433 = scmp.eq.s32.totalorder %s56, 0
      %p434 = por %p432, %p433
      %p435 = scmp.ne.s32.totalorder %s427, %s429
      %p436 = scmp.eq.s32.totalorder %s61, 1
      %p437 = por %p435, %p436
      %p438 = scmp.ne.s32.totalorder %s429, %s430
      %p439 = scmp.eq.s32.totalorder %s61, 0
      %p440 = por %p438, %p439
      %p441 = scmp.ne.s32.totalorder %s429, %s430
      %p442 = scmp.eq.s32.totalorder %s62, 1
      %p443 = por %p441, %p442
      %p445 = scmp.ne.s32.totalorder %s430, %s444
      %p446 = scmp.eq.s32.totalorder %s62, 0
      %p447 = por %p445, %p446
      %s449 = sadd.s32 %s448, 1
      %p452 = scmp.eq.s32.totalorder %s56, 1
      %p453 = scmp.ne.s32.totalorder %s448, %s450
      %p454 = scmp.eq.s32.totalorder %s56, 0
      %p455 = por %p453, %p454
      %p456 = scmp.ne.s32.totalorder %s448, %s450
      %p457 = scmp.eq.s32.totalorder %s61, 1
      %p458 = por %p456, %p457
      %p459 = scmp.ne.s32.totalorder %s450, %s451
      %p460 = scmp.eq.s32.totalorder %s61, 0
      %p461 = por %p459, %p460
      %p462 = scmp.ne.s32.totalorder %s450, %s451
      %p463 = scmp.eq.s32.totalorder %s62, 1
      %p464 = por %p462, %p463
      %p466 = scmp.ne.s32.totalorder %s451, %s465
      %p467 = scmp.eq.s32.totalorder %s62, 0
      %p468 = por %p466, %p467
      %s470 = sadd.s32 %s469, 1
      %p473 = scmp.eq.s32.totalorder %s56, 1
      %p474 = scmp.ne.s32.totalorder %s469, %s471
      %p475 = scmp.eq.s32.totalorder %s56, 0
      %p476 = por %p474, %p475
      %p477 = scmp.ne.s32.totalorder %s469, %s471
      %p478 = scmp.eq.s32.totalorder %s61, 1
      %p479 = por %p477, %p478
      %p480 = scmp.ne.s32.totalorder %s471, %s472
      %p481 = scmp.eq.s32.totalorder %s61, 0
      %p482 = por %p480, %p481
      %p483 = scmp.ne.s32.totalorder %s471, %s472
      %p484 = scmp.eq.s32.totalorder %s62, 1
      %p485 = por %p483, %p484
      %p487 = scmp.ne.s32.totalorder %s472, %s486
      %p488 = scmp.eq.s32.totalorder %s62, 0
      %p489 = por %p487, %p488
      %s491 = sadd.s32 %s490, 1
      %p494 = scmp.eq.s32.totalorder %s56, 1
      %p495 = scmp.ne.s32.totalorder %s490, %s492
      %p496 = scmp.eq.s32.totalorder %s56, 0
      %p497 = por %p495, %p496
      %p498 = scmp.ne.s32.totalorder %s490, %s492
      %p499 = scmp.eq.s32.totalorder %s61, 1
      %p500 = por %p498, %p499
      %p501 = scmp.ne.s32.totalorder %s492, %s493
      %p502 = scmp.eq.s32.totalorder %s61, 0
      %p503 = por %p501, %p502
      %p504 = scmp.ne.s32.totalorder %s492, %s493
      %p505 = scmp.eq.s32.totalorder %s62, 1
      %p506 = por %p504, %p505
      %p508 = scmp.ne.s32.totalorder %s493, %s507
      %p509 = scmp.eq.s32.totalorder %s62, 0
      %p510 = por %p508, %p509
      %s512 = sadd.s32 %s511, 1
      %p515 = scmp.eq.s32.totalorder %s56, 1
      %p516 = scmp.ne.s32.totalorder %s511, %s513
      %p517 = scmp.eq.s32.totalorder %s56, 0
      %p518 = por %p516, %p517
      %p519 = scmp.ne.s32.totalorder %s511, %s513
      %p520 = scmp.eq.s32.totalorder %s61, 1
      %p521 = por %p519, %p520
      %p522 = scmp.ne.s32.totalorder %s513, %s514
      %p523 = scmp.eq.s32.totalorder %s61, 0
      %p524 = por %p522, %p523
      %p525 = scmp.ne.s32.totalorder %s513, %s514
      %p526 = scmp.eq.s32.totalorder %s62, 1
      %p527 = por %p525, %p526
      %p529 = scmp.ne.s32.totalorder %s514, %s528
      %p530 = scmp.eq.s32.totalorder %s62, 0
      %p531 = por %p529, %p530
      %s532 = ssub.s32 %s63, %s75
      %s533 = ssub.s32 %s64, %s71
      %s534 = sor.u32 %s532, %s533
      %p535 = scmp.eq.s32.totalorder %s534, 0
      %s537 = sadd.s32 %s536, 1
      %s538 = scalar_select %p535, %s536, %s537
      %p541 = pneg %p535
      %p542 = scmp.eq.s32.totalorder %s56, 1
      %p543 = por %p541, %p542
      %p544 = scmp.ne.s32.totalorder %s536, %s539
      %p545 = scmp.eq.s32.totalorder %s56, 0
      %p546 = por %p544, %p545
      %p547 = scmp.ne.s32.totalorder %s536, %s539
      %p548 = scmp.eq.s32.totalorder %s61, 1
      %p549 = por %p547, %p548
      %p550 = scmp.ne.s32.totalorder %s539, %s540
      %p551 = scmp.eq.s32.totalorder %s61, 0
      %p552 = por %p550, %p551
      %p553 = scmp.ne.s32.totalorder %s539, %s540
      %p554 = scmp.eq.s32.totalorder %s62, 1
      %p555 = por %p553, %p554
      %p557 = scmp.ne.s32.totalorder %s540, %s556
      %p558 = scmp.eq.s32.totalorder %s62, 0
      %p559 = por %p557, %p558
      %s560 = ssub.s32 %s63, %s75
      %s561 = ssub.s32 %s64, %s71
      %s562 = sor.u32 %s560, %s561
      %p563 = scmp.eq.s32.totalorder %s562, 0
      %s565 = sadd.s32 %s564, 1
      %s566 = scalar_select %p563, %s564, %s565
      %p569 = pneg %p563
      %p570 = scmp.eq.s32.totalorder %s56, 1
      %p571 = por %p569, %p570
      %p572 = scmp.ne.s32.totalorder %s564, %s567
      %p573 = scmp.eq.s32.totalorder %s56, 0
      %p574 = por %p572, %p573
      %p575 = scmp.ne.s32.totalorder %s564, %s567
      %p576 = scmp.eq.s32.totalorder %s61, 1
      %p577 = por %p575, %p576
      %p578 = scmp.ne.s32.totalorder %s567, %s568
      %p579 = scmp.eq.s32.totalorder %s61, 0
      %p580 = por %p578, %p579
      %p581 = scmp.ne.s32.totalorder %s567, %s568
      %p582 = scmp.eq.s32.totalorder %s62, 1
      %p583 = por %p581, %p582
      %p585 = scmp.ne.s32.totalorder %s568, %s584
      %p586 = scmp.eq.s32.totalorder %s62, 0
      %p587 = por %p585, %p586
      %s588 = ssub.s32 %s63, %s75
      %s589 = ssub.s32 %s64, %s71
      %s590 = sor.u32 %s588, %s589
      %p591 = scmp.eq.s32.totalorder %s590, 0
      %s593 = sadd.s32 %s592, 1
      %s594 = scalar_select %p591, %s592, %s593
      %p597 = pneg %p591
      %p598 = scmp.eq.s32.totalorder %s56, 1
      %p599 = por %p597, %p598
      %p600 = scmp.ne.s32.totalorder %s592, %s595
      %p601 = scmp.eq.s32.totalorder %s56, 0
      %p602 = por %p600, %p601
      %p603 = scmp.ne.s32.totalorder %s592, %s595
      %p604 = scmp.eq.s32.totalorder %s61, 1
      %p605 = por %p603, %p604
      %p606 = scmp.ne.s32.totalorder %s595, %s596
      %p607 = scmp.eq.s32.totalorder %s61, 0
      %p608 = por %p606, %p607
      %p609 = scmp.ne.s32.totalorder %s595, %s596
      %p610 = scmp.eq.s32.totalorder %s62, 1
      %p611 = por %p609, %p610
      %p613 = scmp.ne.s32.totalorder %s596, %s612
      %p614 = scmp.eq.s32.totalorder %s62, 0
      %p615 = por %p613, %p614
      %s616 = ssub.s32 %s63, %s75
      %s617 = ssub.s32 %s64, %s71
      %s618 = sor.u32 %s616, %s617
      %p619 = scmp.eq.s32.totalorder %s618, 0
      %s621 = sadd.s32 %s620, 1
      %s622 = scalar_select %p619, %s620, %s621
      %p625 = pneg %p619
      %p626 = scmp.eq.s32.totalorder %s56, 1
      %p627 = por %p625, %p626
      %p628 = scmp.ne.s32.totalorder %s620, %s623
      %p629 = scmp.eq.s32.totalorder %s56, 0
      %p630 = por %p628, %p629
      %p631 = scmp.ne.s32.totalorder %s620, %s623
      %p632 = scmp.eq.s32.totalorder %s61, 1
      %p633 = por %p631, %p632
      %p634 = scmp.ne.s32.totalorder %s623, %s624
      %p635 = scmp.eq.s32.totalorder %s61, 0
      %p636 = por %p634, %p635
      %p637 = scmp.ne.s32.totalorder %s623, %s624
      %p638 = scmp.eq.s32.totalorder %s62, 1
      %p639 = por %p637, %p638
      %p641 = scmp.ne.s32.totalorder %s624, %s640
      %p642 = scmp.eq.s32.totalorder %s62, 0
      %p643 = por %p641, %p642
      %s644 = ssub.s32 %s63, %s75
      %s645 = ssub.s32 %s64, %s71
      %s646 = sor.u32 %s644, %s645
      %p647 = scmp.eq.s32.totalorder %s646, 0
      %s649 = sadd.s32 %s648, 1
      %s650 = scalar_select %p647, %s648, %s649
      %p653 = pneg %p647
      %p654 = scmp.eq.s32.totalorder %s56, 1
      %p655 = por %p653, %p654
      %p656 = scmp.ne.s32.totalorder %s648, %s651
      %p657 = scmp.eq.s32.totalorder %s56, 0
      %p658 = por %p656, %p657
      %p659 = scmp.ne.s32.totalorder %s648, %s651
      %p660 = scmp.eq.s32.totalorder %s61, 1
      %p661 = por %p659, %p660
      %p662 = scmp.ne.s32.totalorder %s651, %s652
      %p663 = scmp.eq.s32.totalorder %s61, 0
      %p664 = por %p662, %p663
      %p665 = scmp.ne.s32.totalorder %s651, %s652
      %p666 = scmp.eq.s32.totalorder %s62, 1
      %p667 = por %p665, %p666
      %p669 = scmp.ne.s32.totalorder %s652, %s668
      %p670 = scmp.eq.s32.totalorder %s62, 0
      %p671 = por %p669, %p670
      %p672 = scmp.le.s32.totalorder 1, %s56
      %p673 = scmp.lt.s32.totalorder %s56, 3
      %p674 = pnand %p672, %p673
      %p675 = pneg %p674
      // Predicated region
      $region9: #{tpu_custom_call.1} parent=5 // pred_check
        _
      $region10: #{tpu_custom_call.1} parent=5 // pred_check_branch
        %677 = sbr.rel (%p674) target = $region12
      $region11: #{tpu_custom_call.1} parent=5 // pred_region
        %s678 = ssub.s32 %s56, 1
        // Predicated region
        $region13: #{tpu_custom_call.1} parent=11 // pred_check
          %p679 = pneg %p146
        $region14: #{tpu_custom_call.1} parent=11 // pred_check_branch
          %681 = sbr.rel (%p679) target = $region16
        $region15: #{tpu_custom_call.1} parent=11 // pred_region
          %s683 = ssub.s32 64, 64
          %684 = vsyncadd [#allocation8], %s683
          %s685 = smul.addr %s66, 64
          %s686 = scalar_lea.hbm %s2, %s685
          %s688 = sshll.u32 [#allocation9], 4
          %s689 = int_to_ptr.vmem [resolvable:$true] %s688
          %691 = dma.hbm_to_vmem [thread:$0]  %s686, 64, %s689, [#allocation8]
        $region16: #{tpu_custom_call.1} parent=11 // pred_fallthru
          _
        // Predicated region
        $region17: #{tpu_custom_call.1} parent=11 // pred_check
          %p692 = pneg %p167
        $region18: #{tpu_custom_call.1} parent=11 // pred_check_branch
          %694 = sbr.rel (%p692) target = $region20
        $region19: #{tpu_custom_call.1} parent=11 // pred_region
          %s696 = ssub.s32 256, 256
          %697 = vsyncadd [#allocation11], %s696
          %s698 = sshll.u32 [#allocation10], 4
          %s699 = int_to_ptr.vmem [resolvable:$true] %s698
          %704 = dma.hbm_to_vmem [thread:$0]  %s3, 256, %s699, [#allocation11], 64, 64, 4
        $region20: #{tpu_custom_call.1} parent=11 // pred_fallthru
          _
        // Predicated region
        $region21: #{tpu_custom_call.1} parent=11 // pred_check
          %p705 = pneg %p188
        $region22: #{tpu_custom_call.1} parent=11 // pred_check_branch
          %707 = sbr.rel (%p705) target = $region24
        $region23: #{tpu_custom_call.1} parent=11 // pred_region
          %s709 = ssub.s32 16, 16
          %710 = vsyncadd [#allocation11], %s709
          %s712 = sshll.u32 [#allocation12], 4
          %s713 = int_to_ptr.vmem [resolvable:$true] %s712
          %715 = dma.hbm_to_vmem [thread:$0]  %s4, 16, %s713, [#allocation11]
        $region24: #{tpu_custom_call.1} parent=11 // pred_fallthru
          _
        // Predicated region
        $region25: #{tpu_custom_call.1} parent=11 // pred_check
          %p716 = pneg %p209
        $region26: #{tpu_custom_call.1} parent=11 // pred_check_branch
          %718 = sbr.rel (%p716) target = $region28
        $region27: #{tpu_custom_call.1} parent=11 // pred_region
          %s720 = ssub.s32 256, 256
          %721 = vsyncadd [#allocation14], %s720
          %s722 = sshll.u32 [#allocation13], 4
          %s723 = int_to_ptr.vmem [resolvable:$true] %s722
          %728 = dma.hbm_to_vmem [thread:$0]  %s5, 256, %s723, [#allocation14], 64, 64, 4
        $region28: #{tpu_custom_call.1} parent=11 // pred_fallthru
          _
        // Predicated region
        $region29: #{tpu_custom_call.1} parent=11 // pred_check
          %p729 = pneg %p230
        $region30: #{tpu_custom_call.1} parent=11 // pred_check_branch
          %731 = sbr.rel (%p729) target = $region32
        $region31: #{tpu_custom_call.1} parent=11 // pred_region
          %s733 = ssub.s32 16, 16
          %734 = vsyncadd [#allocation14], %s733
          %s736 = sshll.u32 [#allocation15], 4
          %s737 = int_to_ptr.vmem [resolvable:$true] %s736
          %739 = dma.hbm_to_vmem [thread:$0]  %s6, 16, %s737, [#allocation14]
        $region32: #{tpu_custom_call.1} parent=11 // pred_fallthru
          _
        // Predicated region
        $region33: #{tpu_custom_call.1} parent=11 // pred_check
          %p740 = pneg %p251
        $region34: #{tpu_custom_call.1} parent=11 // pred_check_branch
          %742 = sbr.rel (%p740) target = $region36
        $region35: #{tpu_custom_call.1} parent=11 // pred_region
          %s744 = ssub.s32 256, 256
          %745 = vsyncadd [#allocation17], %s744
          %s746 = sshll.u32 [#allocation16], 4
          %s747 = int_to_ptr.vmem [resolvable:$true] %s746
          %752 = dma.hbm_to_vmem [thread:$0]  %s7, 256, %s747, [#allocation17], 64, 64, 4
        $region36: #{tpu_custom_call.1} parent=11 // pred_fallthru
          _
        // Predicated region
        $region37: #{tpu_custom_call.1} parent=11 // pred_check
          %p753 = pneg %p272
        $region38: #{tpu_custom_call.1} parent=11 // pred_check_branch
          %755 = sbr.rel (%p753) target = $region40
        $region39: #{tpu_custom_call.1} parent=11 // pred_region
          %s757 = ssub.s32 16, 16
          %758 = vsyncadd [#allocation17], %s757
          %s760 = sshll.u32 [#allocation18], 4
          %s761 = int_to_ptr.vmem [resolvable:$true] %s760
          %763 = dma.hbm_to_vmem [thread:$0]  %s8, 16, %s761, [#allocation17]
        $region40: #{tpu_custom_call.1} parent=11 // pred_fallthru
          _
        // Predicated region
        $region41: #{tpu_custom_call.1} parent=11 // pred_check
          %p764 = pneg %p293
        $region42: #{tpu_custom_call.1} parent=11 // pred_check_branch
          %766 = sbr.rel (%p764) target = $region44
        $region43: #{tpu_custom_call.1} parent=11 // pred_region
          %s768 = ssub.s32 256, 256
          %769 = vsyncadd [#allocation20], %s768
          %s770 = sshll.u32 [#allocation19], 4
          %s771 = int_to_ptr.vmem [resolvable:$true] %s770
          %776 = dma.hbm_to_vmem [thread:$0]  %s9, 256, %s771, [#allocation20], 64, 64, 4
        $region44: #{tpu_custom_call.1} parent=11 // pred_fallthru
          _
        // Predicated region
        $region45: #{tpu_custom_call.1} parent=11 // pred_check
          %p777 = pneg %p314
        $region46: #{tpu_custom_call.1} parent=11 // pred_check_branch
          %779 = sbr.rel (%p777) target = $region48
        $region47: #{tpu_custom_call.1} parent=11 // pred_region
          %s781 = ssub.s32 16, 16
          %782 = vsyncadd [#allocation20], %s781
          %s784 = sshll.u32 [#allocation21], 4
          %s785 = int_to_ptr.vmem [resolvable:$true] %s784
          %787 = dma.hbm_to_vmem [thread:$0]  %s10, 16, %s785, [#allocation20]
        $region48: #{tpu_custom_call.1} parent=11 // pred_fallthru
          _
        // Predicated region
        $region49: #{tpu_custom_call.1} parent=11 // pred_check
          %p788 = pneg %p335
        $region50: #{tpu_custom_call.1} parent=11 // pred_check_branch
          %790 = sbr.rel (%p788) target = $region52
        $region51: #{tpu_custom_call.1} parent=11 // pred_region
          %s792 = ssub.s32 256, 256
          %793 = vsyncadd [#allocation23], %s792
          %s794 = sshll.u32 [#allocation22], 4
          %s795 = int_to_ptr.vmem [resolvable:$true] %s794
          %800 = dma.hbm_to_vmem [thread:$0]  %s11, 256, %s795, [#allocation23], 64, 64, 4
        $region52: #{tpu_custom_call.1} parent=11 // pred_fallthru
          _
        // Predicated region
        $region53: #{tpu_custom_call.1} parent=11 // pred_check
          %p801 = pneg %p356
        $region54: #{tpu_custom_call.1} parent=11 // pred_check_branch
          %803 = sbr.rel (%p801) target = $region56
        $region55: #{tpu_custom_call.1} parent=11 // pred_region
          %s805 = ssub.s32 16, 16
          %806 = vsyncadd [#allocation23], %s805
          %s808 = sshll.u32 [#allocation24], 4
          %s809 = int_to_ptr.vmem [resolvable:$true] %s808
          %811 = dma.hbm_to_vmem [thread:$0]  %s12, 16, %s809, [#allocation23]
        $region56: #{tpu_custom_call.1} parent=11 // pred_fallthru
          _
        // Predicated region
        $region57: #{tpu_custom_call.1} parent=11 // pred_check
          %p812 = pneg %p377
        $region58: #{tpu_custom_call.1} parent=11 // pred_check_branch
          %814 = sbr.rel (%p812) target = $region60
        $region59: #{tpu_custom_call.1} parent=11 // pred_region
          %s816 = ssub.s32 256, 256
          %817 = vsyncadd [#allocation26], %s816
          %s818 = sshll.u32 [#allocation25], 4
          %s819 = int_to_ptr.vmem [resolvable:$true] %s818
          %824 = dma.hbm_to_vmem [thread:$0]  %s13, 256, %s819, [#allocation26], 64, 64, 4
        $region60: #{tpu_custom_call.1} parent=11 // pred_fallthru
          _
        // Predicated region
        $region61: #{tpu_custom_call.1} parent=11 // pred_check
          %p825 = pneg %p398
        $region62: #{tpu_custom_call.1} parent=11 // pred_check_branch
          %827 = sbr.rel (%p825) target = $region64
        $region63: #{tpu_custom_call.1} parent=11 // pred_region
          %s829 = ssub.s32 16, 16
          %830 = vsyncadd [#allocation26], %s829
          %s832 = sshll.u32 [#allocation27], 4
          %s833 = int_to_ptr.vmem [resolvable:$true] %s832
          %835 = dma.hbm_to_vmem [thread:$0]  %s14, 16, %s833, [#allocation26]
        $region64: #{tpu_custom_call.1} parent=11 // pred_fallthru
          _
        // Predicated region
        $region65: #{tpu_custom_call.1} parent=11 // pred_check
          %p836 = pneg %p419
        $region66: #{tpu_custom_call.1} parent=11 // pred_check_branch
          %838 = sbr.rel (%p836) target = $region68
        $region67: #{tpu_custom_call.1} parent=11 // pred_region
          %s840 = ssub.s32 512, 512
          %841 = vsyncadd [#allocation29], %s840
          %s842 = sshll.u32 [#allocation28], 4
          %s843 = int_to_ptr.vmem [resolvable:$true] %s842
          %848 = dma.hbm_to_vmem [thread:$0]  %s15, 512, %s843, [#allocation29], 64, 64, 4
        $region68: #{tpu_custom_call.1} parent=11 // pred_fallthru
          _
        // Predicated region
        $region69: #{tpu_custom_call.1} parent=11 // pred_check
          %p849 = pneg %p440
        $region70: #{tpu_custom_call.1} parent=11 // pred_check_branch
          %851 = sbr.rel (%p849) target = $region72
        $region71: #{tpu_custom_call.1} parent=11 // pred_region
          %s853 = ssub.s32 16, 16
          %854 = vsyncadd [#allocation29], %s853
          %s856 = sshll.u32 [#allocation30], 4
          %s857 = int_to_ptr.vmem [resolvable:$true] %s856
          %859 = dma.hbm_to_vmem [thread:$0]  %s16, 16, %s857, [#allocation29]
        $region72: #{tpu_custom_call.1} parent=11 // pred_fallthru
          _
        // Predicated region
        $region73: #{tpu_custom_call.1} parent=11 // pred_check
          %p860 = pneg %p461
        $region74: #{tpu_custom_call.1} parent=11 // pred_check_branch
          %862 = sbr.rel (%p860) target = $region76
        $region75: #{tpu_custom_call.1} parent=11 // pred_region
          %s864 = ssub.s32 16, 16
          %865 = vsyncadd [#allocation32], %s864
          %s867 = sshll.u32 [#allocation31], 4
          %s868 = int_to_ptr.vmem [resolvable:$true] %s867
          %870 = dma.hbm_to_vmem [thread:$0]  %s17, 16, %s868, [#allocation32]
        $region76: #{tpu_custom_call.1} parent=11 // pred_fallthru
          _
        // Predicated region
        $region77: #{tpu_custom_call.1} parent=11 // pred_check
          %p871 = pneg %p482
        $region78: #{tpu_custom_call.1} parent=11 // pred_check_branch
          %873 = sbr.rel (%p871) target = $region80
        $region79: #{tpu_custom_call.1} parent=11 // pred_region
          %s875 = ssub.s32 16, 16
          %876 = vsyncadd [#allocation32], %s875
          %s878 = sshll.u32 [#allocation33], 4
          %s879 = int_to_ptr.vmem [resolvable:$true] %s878
          %881 = dma.hbm_to_vmem [thread:$0]  %s18, 16, %s879, [#allocation32]
        $region80: #{tpu_custom_call.1} parent=11 // pred_fallthru
          _
        // Predicated region
        $region81: #{tpu_custom_call.1} parent=11 // pred_check
          %p882 = pneg %p503
        $region82: #{tpu_custom_call.1} parent=11 // pred_check_branch
          %884 = sbr.rel (%p882) target = $region84
        $region83: #{tpu_custom_call.1} parent=11 // pred_region
          %s886 = ssub.s32 16, 16
          %887 = vsyncadd [#allocation35], %s886
          %s889 = sshll.u32 [#allocation34], 4
          %s890 = int_to_ptr.vmem [resolvable:$true] %s889
          %892 = dma.hbm_to_vmem [thread:$0]  %s19, 16, %s890, [#allocation35]
        $region84: #{tpu_custom_call.1} parent=11 // pred_fallthru
          _
        // Predicated region
        $region85: #{tpu_custom_call.1} parent=11 // pred_check
          %p893 = pneg %p524
        $region86: #{tpu_custom_call.1} parent=11 // pred_check_branch
          %895 = sbr.rel (%p893) target = $region88
        $region87: #{tpu_custom_call.1} parent=11 // pred_region
          %s897 = ssub.s32 16, 16
          %898 = vsyncadd [#allocation35], %s897
          %s900 = sshll.u32 [#allocation36], 4
          %s901 = int_to_ptr.vmem [resolvable:$true] %s900
          %903 = dma.hbm_to_vmem [thread:$0]  %s20, 16, %s901, [#allocation35]
        $region88: #{tpu_custom_call.1} parent=11 // pred_fallthru
          _
      $region12: #{tpu_custom_call.1} parent=5 // pred_fallthru
        _
      %p904 = scmp.lt.s32.totalorder %s56, 2
      // Predicated region
      $region89: #{tpu_custom_call.1} parent=5 // pred_check
        %p905 = pneg %p904
      $region90: #{tpu_custom_call.1} parent=5 // pred_check_branch
        %907 = sbr.rel (%p905) target = $region92
      $region91: #{tpu_custom_call.1} parent=5 // pred_region
        // Predicated region
        $region93: #{tpu_custom_call.1} parent=91 // pred_check
          %p908 = pneg %p88
        $region94: #{tpu_custom_call.1} parent=91 // pred_check_branch
          %910 = sbr.rel (%p908) target = $region96
        $region95: #{tpu_custom_call.1} parent=91 // pred_region
          %s911 = sand.u32 %s78, 1
          %s912 = scalar_lea.sflag [#allocation5], %s911
          %s913 = sand.u32 %s78, 1
          %s914 = smul.addr %s913, 8
          %s915 = scalar_lea.vmem [#allocation4], %s914
          %s917 = ssub.s32 128, 128
          %918 = vsyncadd %s912, %s917
          %s919 = smul.addr %s63, 128
          %s920 = scalar_lea.hbm %s0, %s919
          %s922 = sshll.u32 %s915, 4
          %s923 = int_to_ptr.vmem [resolvable:$true] %s922
          %925 = dma.hbm_to_vmem [thread:$0]  %s920, 128, %s923, %s912
        $region96: #{tpu_custom_call.1} parent=91 // pred_fallthru
          _
        // Predicated region
        $region97: #{tpu_custom_call.1} parent=91 // pred_check
          %p926 = pneg %p114
        $region98: #{tpu_custom_call.1} parent=91 // pred_check_branch
          %928 = sbr.rel (%p926) target = $region100
        $region99: #{tpu_custom_call.1} parent=91 // pred_region
          %s929 = sand.u32 %s56, 1
          %s930 = scalar_lea.sflag [#allocation8], %s929
          %s931 = sand.u32 %s104, 1
          %s932 = smul.addr %s931, 8
          %s933 = scalar_lea.vmem [#allocation7], %s932
          %s935 = ssub.s32 128, 128
          %936 = vsyncadd %s930, %s935
          %s937 = smul.addr %s63, 128
          %s938 = scalar_lea.hbm %s1, %s937
          %s940 = sshll.u32 %s933, 4
          %s941 = int_to_ptr.vmem [resolvable:$true] %s940
          %943 = dma.hbm_to_vmem [thread:$0]  %s938, 128, %s941, %s930
        $region100: #{tpu_custom_call.1} parent=91 // pred_fallthru
          _
      $region92: #{tpu_custom_call.1} parent=5 // pred_fallthru
        _
      %p944 = scmp.le.s32.totalorder 1, %s56
      %p945 = scmp.lt.s32.totalorder %s56, 3
      %p946 = pnand %p944, %p945
      %p947 = pneg %p946
      // Predicated region
      $region101: #{tpu_custom_call.1} parent=5 // pred_check
        _
      $region102: #{tpu_custom_call.1} parent=5 // pred_check_branch
        %949 = sbr.rel (%p946) target = $region104
      $region103: #{tpu_custom_call.1} parent=5 // pred_region
        %s950 = ssub.s32 %s56, 1
        %s951 = sand.u32 %s81, 1
        %s952 = scalar_lea.sflag [#allocation5], %s951
        %s953 = sand.u32 %s81, 1
        %s954 = smul.addr %s953, 8
        %s955 = scalar_lea.vmem [#allocation4], %s954
        // Predicated region
        $region105: #{tpu_custom_call.1} parent=103 // pred_check
          %p956 = pneg %p94
        $region106: #{tpu_custom_call.1} parent=103 // pred_check_branch
          %958 = sbr.rel (%p956) target = $region108
        $region107: #{tpu_custom_call.1} parent=103 // pred_region
          %959 = dma.done %s952, 128
        $region108: #{tpu_custom_call.1} parent=103 // pred_fallthru
          _
        %s960 = sand.u32 %s61, 1
        %s961 = scalar_lea.sflag [#allocation8], %s960
        %s962 = sand.u32 %s107, 1
        %s963 = smul.addr %s962, 8
        %s964 = scalar_lea.vmem [#allocation7], %s963
        // Predicated region
        $region109: #{tpu_custom_call.1} parent=103 // pred_check
          %p965 = pneg %p120
        $region110: #{tpu_custom_call.1} parent=103 // pred_check_branch
          %967 = sbr.rel (%p965) target = $region112
        $region111: #{tpu_custom_call.1} parent=103 // pred_region
          %968 = dma.done %s961, 128
        $region112: #{tpu_custom_call.1} parent=103 // pred_fallthru
          _
        // Predicated region
        $region113: #{tpu_custom_call.1} parent=103 // pred_check
          %p969 = pneg %p146
        $region114: #{tpu_custom_call.1} parent=103 // pred_check_branch
          %971 = sbr.rel (%p969) target = $region116
        $region115: #{tpu_custom_call.1} parent=103 // pred_region
          %972 = dma.done [#allocation8], 64
        $region116: #{tpu_custom_call.1} parent=103 // pred_fallthru
          _
        // Predicated region
        $region117: #{tpu_custom_call.1} parent=103 // pred_check
          %p973 = pneg %p167
        $region118: #{tpu_custom_call.1} parent=103 // pred_check_branch
          %975 = sbr.rel (%p973) target = $region120
        $region119: #{tpu_custom_call.1} parent=103 // pred_region
          %976 = dma.done [#allocation11], 256
        $region120: #{tpu_custom_call.1} parent=103 // pred_fallthru
          _
        // Predicated region
        $region121: #{tpu_custom_call.1} parent=103 // pred_check
          %p977 = pneg %p188
        $region122: #{tpu_custom_call.1} parent=103 // pred_check_branch
          %979 = sbr.rel (%p977) target = $region124
        $region123: #{tpu_custom_call.1} parent=103 // pred_region
          %980 = dma.done [#allocation11], 16
        $region124: #{tpu_custom_call.1} parent=103 // pred_fallthru
          _
        // Predicated region
        $region125: #{tpu_custom_call.1} parent=103 // pred_check
          %p981 = pneg %p209
        $region126: #{tpu_custom_call.1} parent=103 // pred_check_branch
          %983 = sbr.rel (%p981) target = $region128
        $region127: #{tpu_custom_call.1} parent=103 // pred_region
          %984 = dma.done [#allocation14], 256
        $region128: #{tpu_custom_call.1} parent=103 // pred_fallthru
          _
        // Predicated region
        $region129: #{tpu_custom_call.1} parent=103 // pred_check
          %p985 = pneg %p230
        $region130: #{tpu_custom_call.1} parent=103 // pred_check_branch
          %987 = sbr.rel (%p985) target = $region132
        $region131: #{tpu_custom_call.1} parent=103 // pred_region
          %988 = dma.done [#allocation14], 16
        $region132: #{tpu_custom_call.1} parent=103 // pred_fallthru
          _
        // Predicated region
        $region133: #{tpu_custom_call.1} parent=103 // pred_check
          %p989 = pneg %p251
        $region134: #{tpu_custom_call.1} parent=103 // pred_check_branch
          %991 = sbr.rel (%p989) target = $region136
        $region135: #{tpu_custom_call.1} parent=103 // pred_region
          %992 = dma.done [#allocation17], 256
        $region136: #{tpu_custom_call.1} parent=103 // pred_fallthru
          _
        // Predicated region
        $region137: #{tpu_custom_call.1} parent=103 // pred_check
          %p993 = pneg %p272
        $region138: #{tpu_custom_call.1} parent=103 // pred_check_branch
          %995 = sbr.rel (%p993) target = $region140
        $region139: #{tpu_custom_call.1} parent=103 // pred_region
          %996 = dma.done [#allocation17], 16
        $region140: #{tpu_custom_call.1} parent=103 // pred_fallthru
          _
        // Predicated region
        $region141: #{tpu_custom_call.1} parent=103 // pred_check
          %p997 = pneg %p293
        $region142: #{tpu_custom_call.1} parent=103 // pred_check_branch
          %999 = sbr.rel (%p997) target = $region144
        $region143: #{tpu_custom_call.1} parent=103 // pred_region
          %1000 = dma.done [#allocation20], 256
        $region144: #{tpu_custom_call.1} parent=103 // pred_fallthru
          _
        // Predicated region
        $region145: #{tpu_custom_call.1} parent=103 // pred_check
          %p1001 = pneg %p314
        $region146: #{tpu_custom_call.1} parent=103 // pred_check_branch
          %1003 = sbr.rel (%p1001) target = $region148
        $region147: #{tpu_custom_call.1} parent=103 // pred_region
          %1004 = dma.done [#allocation20], 16
        $region148: #{tpu_custom_call.1} parent=103 // pred_fallthru
          _
        // Predicated region
        $region149: #{tpu_custom_call.1} parent=103 // pred_check
          %p1005 = pneg %p335
        $region150: #{tpu_custom_call.1} parent=103 // pred_check_branch
          %1007 = sbr.rel (%p1005) target = $region152
        $region151: #{tpu_custom_call.1} parent=103 // pred_region
          %1008 = dma.done [#allocation23], 256
        $region152: #{tpu_custom_call.1} parent=103 // pred_fallthru
          _
        // Predicated region
        $region153: #{tpu_custom_call.1} parent=103 // pred_check
          %p1009 = pneg %p356
        $region154: #{tpu_custom_call.1} parent=103 // pred_check_branch
          %1011 = sbr.rel (%p1009) target = $region156
        $region155: #{tpu_custom_call.1} parent=103 // pred_region
          %1012 = dma.done [#allocation23], 16
        $region156: #{tpu_custom_call.1} parent=103 // pred_fallthru
          _
        // Predicated region
        $region157: #{tpu_custom_call.1} parent=103 // pred_check
          %p1013 = pneg %p377
        $region158: #{tpu_custom_call.1} parent=103 // pred_check_branch
          %1015 = sbr.rel (%p1013) target = $region160
        $region159: #{tpu_custom_call.1} parent=103 // pred_region
          %1016 = dma.done [#allocation26], 256
        $region160: #{tpu_custom_call.1} parent=103 // pred_fallthru
          _
        // Predicated region
        $region161: #{tpu_custom_call.1} parent=103 // pred_check
          %p1017 = pneg %p398
        $region162: #{tpu_custom_call.1} parent=103 // pred_check_branch
          %1019 = sbr.rel (%p1017) target = $region164
        $region163: #{tpu_custom_call.1} parent=103 // pred_region
          %1020 = dma.done [#allocation26], 16
        $region164: #{tpu_custom_call.1} parent=103 // pred_fallthru
          _
        // Predicated region
        $region165: #{tpu_custom_call.1} parent=103 // pred_check
          %p1021 = pneg %p419
        $region166: #{tpu_custom_call.1} parent=103 // pred_check_branch
          %1023 = sbr.rel (%p1021) target = $region168
        $region167: #{tpu_custom_call.1} parent=103 // pred_region
          %1024 = dma.done [#allocation29], 512
        $region168: #{tpu_custom_call.1} parent=103 // pred_fallthru
          _
        // Predicated region
        $region169: #{tpu_custom_call.1} parent=103 // pred_check
          %p1025 = pneg %p440
        $region170: #{tpu_custom_call.1} parent=103 // pred_check_branch
          %1027 = sbr.rel (%p1025) target = $region172
        $region171: #{tpu_custom_call.1} parent=103 // pred_region
          %1028 = dma.done [#allocation29], 16
        $region172: #{tpu_custom_call.1} parent=103 // pred_fallthru
          _
        // Predicated region
        $region173: #{tpu_custom_call.1} parent=103 // pred_check
          %p1029 = pneg %p461
        $region174: #{tpu_custom_call.1} parent=103 // pred_check_branch
          %1031 = sbr.rel (%p1029) target = $region176
        $region175: #{tpu_custom_call.1} parent=103 // pred_region
          %1032 = dma.done [#allocation32], 16
        $region176: #{tpu_custom_call.1} parent=103 // pred_fallthru
          _
        // Predicated region
        $region177: #{tpu_custom_call.1} parent=103 // pred_check
          %p1033 = pneg %p482
        $region178: #{tpu_custom_call.1} parent=103 // pred_check_branch
          %1035 = sbr.rel (%p1033) target = $region180
        $region179: #{tpu_custom_call.1} parent=103 // pred_region
          %1036 = dma.done [#allocation32], 16
        $region180: #{tpu_custom_call.1} parent=103 // pred_fallthru
          _
        // Predicated region
        $region181: #{tpu_custom_call.1} parent=103 // pred_check
          %p1037 = pneg %p503
        $region182: #{tpu_custom_call.1} parent=103 // pred_check_branch
          %1039 = sbr.rel (%p1037) target = $region184
        $region183: #{tpu_custom_call.1} parent=103 // pred_region
          %1040 = dma.done [#allocation35], 16
        $region184: #{tpu_custom_call.1} parent=103 // pred_fallthru
          _
        // Predicated region
        $region185: #{tpu_custom_call.1} parent=103 // pred_check
          %p1041 = pneg %p524
        $region186: #{tpu_custom_call.1} parent=103 // pred_check_branch
          %1043 = sbr.rel (%p1041) target = $region188
        $region187: #{tpu_custom_call.1} parent=103 // pred_region
          %1044 = dma.done [#allocation35], 16
        $region188: #{tpu_custom_call.1} parent=103 // pred_fallthru
          _
        %s1045 = sand.u32 %s81, 1
        %s1046 = scalar_lea.sflag [#allocation5], %s1045
        %s1047 = sand.u32 %s81, 1
        %s1048 = smul.addr %s1047, 8
        %s1049 = scalar_lea.vmem [#allocation4], %s1048
        %p1050 = pneg %p94
        %p1051 = pneg %p91
        %s1052 = sand.u32 %s61, 1
        %s1053 = scalar_lea.sflag [#allocation8], %s1052
        %s1054 = sand.u32 %s107, 1
        %s1055 = smul.addr %s1054, 8
        %s1056 = scalar_lea.vmem [#allocation7], %s1055
        %p1057 = pneg %p120
        %p1058 = pneg %p117
        %p1059 = pneg %p146
        %p1060 = pneg %p143
        %p1061 = pneg %p167
        %p1062 = pneg %p164
        %p1063 = pneg %p188
        %p1064 = pneg %p185
        %p1065 = pneg %p209
        %p1066 = pneg %p206
        %p1067 = pneg %p230
        %p1068 = pneg %p227
        %p1069 = pneg %p251
        %p1070 = pneg %p248
        %p1071 = pneg %p272
        %p1072 = pneg %p269
        %p1073 = pneg %p293
        %p1074 = pneg %p290
        %p1075 = pneg %p314
        %p1076 = pneg %p311
        %p1077 = pneg %p335
        %p1078 = pneg %p332
        %p1079 = pneg %p356
        %p1080 = pneg %p353
        %p1081 = pneg %p377
        %p1082 = pneg %p374
        %p1083 = pneg %p398
        %p1084 = pneg %p395
        %p1085 = pneg %p419
        %p1086 = pneg %p416
        %p1087 = pneg %p440
        %p1088 = pneg %p437
        %p1089 = pneg %p461
        %p1090 = pneg %p458
        %p1091 = pneg %p482
        %p1092 = pneg %p479
        %p1093 = pneg %p503
        %p1094 = pneg %p500
        %p1095 = pneg %p524
        %p1096 = pneg %p521
        %p1097 = pneg %p552
        %p1098 = pneg %p549
        %s1099 = sand.u32 %s539, 1
        %s1100 = scalar_lea.sflag [#allocation6], %s1099
        %s1101 = sand.u32 %s539, 1
        %s1102 = smul.addr %s1101, 8
        %s1103 = scalar_lea.vmem [#allocation37], %s1102
        %p1104 = pneg %p580
        %p1105 = pneg %p577
        %s1106 = sand.u32 %s61, 1
        %s1107 = scalar_lea.sflag [#allocation39], %s1106
        %s1108 = sand.u32 %s567, 1
        %s1109 = smul.addr %s1108, 8
        %s1110 = scalar_lea.vmem [#allocation38], %s1109
        %p1111 = pneg %p608
        %p1112 = pneg %p605
        %s1113 = sand.u32 %s61, 1
        %s1114 = scalar_lea.sflag [#allocation39], %s1113
        %s1115 = sand.u32 %s595, 1
        %s1116 = smul.addr %s1115, 4
        %s1117 = scalar_lea.vmem [#allocation40], %s1116
        %p1118 = pneg %p636
        %p1119 = pneg %p633
        %s1120 = sand.u32 %s61, 1
        %s1121 = scalar_lea.sflag [#allocation42], %s1120
        %s1122 = sand.u32 %s623, 1
        %s1123 = smul.addr %s1122, 4
        %s1124 = scalar_lea.vmem [#allocation41], %s1123
        %p1125 = pneg %p664
        %p1126 = pneg %p661
        %s1127 = sand.u32 %s61, 1
        %s1128 = scalar_lea.sflag [#allocation42], %s1127
        %s1129 = sand.u32 %s651, 1
        %s1130 = smul.addr %s1129, 4
        %s1131 = scalar_lea.vmem [#allocation43], %s1130
        %p1133 = scmp.eq.s32.totalorder %s66, 0
        // Predicated region
        $region189: #{tpu_custom_call.1} parent=103 // pred_check
          %p1134 = pneg %p1133
        $region190: #{tpu_custom_call.1} parent=103 // pred_check_branch
          %1136 = sbr.rel (%p1134) target = $region192
        $region191: #{tpu_custom_call.1} parent=103 // pred_region
          %v1137 = vld [vmem:[%s955] sm:$0xff]
          %v1138 = vpack.c.bf16 %v1137, %v1137
          %v1139 = vld [vmem:[#allocation13] sm:$0xf]
          %v1140 = vld [vmem:[#allocation13 + $0x4] sm:$0xf]
          %v1141 = vld [vmem:[#allocation13 + $0x8] sm:$0xf]
          %v1142 = vld [vmem:[#allocation13 + $0xc] sm:$0xf]
          %v1143 = vld [vmem:[#allocation15] sm:$0x1]
          %v1145 = vlaneseq
          %v1146 = vshrl.u32 %v1145, 7
          %v1147 = vsub.s32 0, %v1146
          %v1148 = vrot.slane %v1143, %v1147
          %v1154 = vunpack.c.l.b16 %v1139
          %v1155 = vunpack.c.l.b16 %v1140
          %v1156 = vunpack.c.l.b16 %v1141
          %v1157 = vunpack.c.l.b16 %v1142
          %v1158 = vpack.c.b16 %v1155, %v1154
          %v1159 = vpack.c.b16 %v1157, %v1156
          %vm1162 = vcmask 261120
          %v1164 = vsel %vm1162, %v1138, 0
          %1166 = vmatprep.subr.bf16.mxu0 0
          %1167 = vmatpush1.bf16.msra.mxu0 %v1158
          %1168 = vmatprep.subr.bf16.mxu0 0
          %1169 = vmatpush1.bf16.msra.mxu0 %v1159
          %1170 = vmatprep.subr.bf16.mxu0 0
          %1171 = vmatpush1.bf16.msra.mxu0 0
          %1172 = vmatprep.subr.bf16.mxu0 0
          %1173 = vmatpush1.bf16.msra.mxu0 0
          %1174 = vmatprep.subr.bf16.mxu0 0
          %1175 = vmatpush1.bf16.msra.mxu0 0
          %1176 = vmatprep.subr.bf16.mxu0 0
          %1177 = vmatpush1.bf16.msra.mxu0 0
          %1178 = vmatprep.subr.bf16.mxu0 0
          %1179 = vmatpush1.bf16.msra.mxu0 0
          %1180 = vmatprep.subr.bf16.mxu0 0
          %1181 = vmatpush1.bf16.msra.mxu0 0
          %1182 = vmatprep.subr.bf16.mxu0 0
          %1183 = vmatpush1.bf16.msra.mxu0 0
          %1184 = vmatprep.subr.bf16.mxu0 0
          %1185 = vmatpush1.bf16.msra.mxu0 0
          %1186 = vmatprep.subr.bf16.mxu0 0
          %1187 = vmatpush1.bf16.msra.mxu0 0
          %1188 = vmatprep.subr.bf16.mxu0 0
          %1189 = vmatpush1.bf16.msra.mxu0 0
          %1190 = vmatprep.subr.bf16.mxu0 0
          %1191 = vmatpush1.bf16.msra.mxu0 0
          %1192 = vmatprep.subr.bf16.mxu0 0
          %1193 = vmatpush1.bf16.msra.mxu0 0
          %1194 = vmatprep.subr.bf16.mxu0 0
          %1195 = vmatpush1.bf16.msra.mxu0 0
          %1196 = vmatprep.subr.bf16.mxu0 0
          %1197 = vmatpush1.bf16.msra.mxu0 0
          %1198 = vmatprep.mubr.bf16.mxu0 0
          %1199 = vmatmul.mubr.bf16.gmra.mrb[0].mxu0 %v1164
          %v1200 = vpop.f32.mrb[0].mxu0
          %v1201 = vadd.f32 %v1148, %v1200
          %v1202 = vpop.f32.mrb[0].mxu0
          %v1203 = vpop.f32.mrb[0].mxu0
          %v1204 = vpop.f32.mrb[0].mxu0
          %1205 = vdwg.mxu0
          %v1206 = vpack.c.bf16 %v1201, %v1201
          %vm1207 = vcmask 519168
          %1208 = vst.msk [vmem:[#allocation2] sm:$0xf] %vm1207, %v1206
          %v1209 = vld [vmem:[%s964] sm:$0xff]
          %v1210 = vpack.c.bf16 %v1209, %v1209
          %v1211 = vld [vmem:[#allocation19] sm:$0xf]
          %v1212 = vld [vmem:[#allocation19 + $0x4] sm:$0xf]
          %v1213 = vld [vmem:[#allocation19 + $0x8] sm:$0xf]
          %v1214 = vld [vmem:[#allocation19 + $0xc] sm:$0xf]
          %v1215 = vld [vmem:[#allocation21] sm:$0x1]
          %v1217 = vlaneseq
          %v1218 = vshrl.u32 %v1217, 7
          %v1219 = vsub.s32 0, %v1218
          %v1220 = vrot.slane %v1215, %v1219
          %v1226 = vunpack.c.l.b16 %v1211
          %v1227 = vunpack.c.l.b16 %v1212
          %v1228 = vunpack.c.l.b16 %v1213
          %v1229 = vunpack.c.l.b16 %v1214
          %v1230 = vpack.c.b16 %v1227, %v1226
          %v1231 = vpack.c.b16 %v1229, %v1228
          %v1235 = vsel %vm1162, %v1210, 0
          %1237 = vmatprep.subr.bf16.mxu0 0
          %1238 = vmatpush1.bf16.msra.mxu0 %v1230
          %1239 = vmatprep.subr.bf16.mxu0 0
          %1240 = vmatpush1.bf16.msra.mxu0 %v1231
          %1241 = vmatprep.subr.bf16.mxu0 0
          %1242 = vmatpush1.bf16.msra.mxu0 0
          %1243 = vmatprep.subr.bf16.mxu0 0
          %1244 = vmatpush1.bf16.msra.mxu0 0
          %1245 = vmatprep.subr.bf16.mxu0 0
          %1246 = vmatpush1.bf16.msra.mxu0 0
          %1247 = vmatprep.subr.bf16.mxu0 0
          %1248 = vmatpush1.bf16.msra.mxu0 0
          %1249 = vmatprep.subr.bf16.mxu0 0
          %1250 = vmatpush1.bf16.msra.mxu0 0
          %1251 = vmatprep.subr.bf16.mxu0 0
          %1252 = vmatpush1.bf16.msra.mxu0 0
          %1253 = vmatprep.subr.bf16.mxu0 0
          %1254 = vmatpush1.bf16.msra.mxu0 0
          %1255 = vmatprep.subr.bf16.mxu0 0
          %1256 = vmatpush1.bf16.msra.mxu0 0
          %1257 = vmatprep.subr.bf16.mxu0 0
          %1258 = vmatpush1.bf16.msra.mxu0 0
          %1259 = vmatprep.subr.bf16.mxu0 0
          %1260 = vmatpush1.bf16.msra.mxu0 0
          %1261 = vmatprep.subr.bf16.mxu0 0
          %1262 = vmatpush1.bf16.msra.mxu0 0
          %1263 = vmatprep.subr.bf16.mxu0 0
          %1264 = vmatpush1.bf16.msra.mxu0 0
          %1265 = vmatprep.subr.bf16.mxu0 0
          %1266 = vmatpush1.bf16.msra.mxu0 0
          %1267 = vmatprep.subr.bf16.mxu0 0
          %1268 = vmatpush1.bf16.msra.mxu0 0
          %1269 = vmatprep.mubr.bf16.mxu0 0
          %1270 = vmatmul.mubr.bf16.gmra.mrb[0].mxu0 %v1235
          %v1271 = vpop.f32.mrb[0].mxu0
          %v1272 = vadd.f32 %v1220, %v1271
          %v1273 = vpop.f32.mrb[0].mxu0
          %v1274 = vpop.f32.mrb[0].mxu0
          %v1275 = vpop.f32.mrb[0].mxu0
          %1276 = vdwg.mxu0
          %v1277 = vpack.c.bf16 %v1272, %v1272
          %vm1278 = vcmask 257024
          %1279 = vst.msk [vmem:[#allocation3] sm:$0xf] %vm1278, %v1277
        $region192: #{tpu_custom_call.1} parent=103 // pred_fallthru
          _
        %s1280 = smul.u32 %s66, 8
        %s1281 = scalar_lea.vmem %s955, %s1280 [#allocation4]
        %v1282 = vld [vmem:[%s1281] sm:$0xff]
        %s1283 = scalar_lea.vmem %s964, %s1280 [#allocation7]
        %v1284 = vld [vmem:[%s1283] sm:$0xff]
        %v1285 = vld [vmem:[#allocation9] sm:$0xf]
        %v1286 = vunpack.c.l.bf16 %v1285
        %v1287 = vpack.c.bf16 %v1282, %v1282
        %v1288 = vld [vmem:[#allocation10] sm:$0xf]
        %v1289 = vld [vmem:[#allocation10 + $0x4] sm:$0xf]
        %v1290 = vld [vmem:[#allocation10 + $0x8] sm:$0xf]
        %v1291 = vld [vmem:[#allocation10 + $0xc] sm:$0xf]
        %v1292 = vld [vmem:[#allocation12] sm:$0x1]
        %v1294 = vlaneseq
        %v1295 = vshrl.u32 %v1294, 7
        %v1296 = vsub.s32 0, %v1295
        %v1297 = vrot.slane %v1292, %v1296
        %v1303 = vunpack.c.l.b16 %v1288
        %v1304 = vunpack.c.l.b16 %v1289
        %v1305 = vunpack.c.l.b16 %v1290
        %v1306 = vunpack.c.l.b16 %v1291
        %v1307 = vpack.c.b16 %v1304, %v1303
        %v1308 = vpack.c.b16 %v1306, %v1305
        %vm1311 = vcmask 261120
        %v1313 = vsel %vm1311, %v1287, 0
        %1315 = vmatprep.subr.bf16.mxu0 0
        %1316 = vmatpush1.bf16.msra.mxu0 %v1307
        %1317 = vmatprep.subr.bf16.mxu0 0
        %1318 = vmatpush1.bf16.msra.mxu0 %v1308
        %1319 = vmatprep.subr.bf16.mxu0 0
        %1320 = vmatpush1.bf16.msra.mxu0 0
        %1321 = vmatprep.subr.bf16.mxu0 0
        %1322 = vmatpush1.bf16.msra.mxu0 0
        %1323 = vmatprep.subr.bf16.mxu0 0
        %1324 = vmatpush1.bf16.msra.mxu0 0
        %1325 = vmatprep.subr.bf16.mxu0 0
        %1326 = vmatpush1.bf16.msra.mxu0 0
        %1327 = vmatprep.subr.bf16.mxu0 0
        %1328 = vmatpush1.bf16.msra.mxu0 0
        %1329 = vmatprep.subr.bf16.mxu0 0
        %1330 = vmatpush1.bf16.msra.mxu0 0
        %1331 = vmatprep.subr.bf16.mxu0 0
        %1332 = vmatpush1.bf16.msra.mxu0 0
        %1333 = vmatprep.subr.bf16.mxu0 0
        %1334 = vmatpush1.bf16.msra.mxu0 0
        %1335 = vmatprep.subr.bf16.mxu0 0
        %1336 = vmatpush1.bf16.msra.mxu0 0
        %1337 = vmatprep.subr.bf16.mxu0 0
        %1338 = vmatpush1.bf16.msra.mxu0 0
        %1339 = vmatprep.subr.bf16.mxu0 0
        %1340 = vmatpush1.bf16.msra.mxu0 0
        %1341 = vmatprep.subr.bf16.mxu0 0
        %1342 = vmatpush1.bf16.msra.mxu0 0
        %1343 = vmatprep.subr.bf16.mxu0 0
        %1344 = vmatpush1.bf16.msra.mxu0 0
        %1345 = vmatprep.subr.bf16.mxu0 0
        %1346 = vmatpush1.bf16.msra.mxu0 0
        %1347 = vmatprep.mubr.bf16.mxu0 0
        %1348 = vmatmul.mubr.bf16.gmra.mrb[0].mxu0 %v1313
        %v1349 = vpop.f32.mrb[0].mxu0
        %v1350 = vadd.f32 %v1297, %v1349
        %v1351 = vpop.f32.mrb[0].mxu0
        %v1352 = vpop.f32.mrb[0].mxu0
        %v1353 = vpop.f32.mrb[0].mxu0
        %1354 = vdwg.mxu0
        %v1355 = vpack.c.bf16 %v1350, %v1350
        %v1356 = vld [vmem:[#allocation2] sm:$0xf]
        %v1357 = vld [vmem:[#allocation3] sm:$0xf]
        %vm1358 = vcmask 64512
        %v1360 = vsel %vm1358, %v1355, 0
        %v1363 = vsel %vm1358, %v1356, 0
        %1365 = vmatprep.subr.bf16.mxu0 0
        %1366 = vmatpush1.bf16.xpose.msra.mxu0 %v1363
        %1367 = vmatprep.subr.bf16.mxu0 0
        %1368 = vmatpush1.bf16.xpose.msra.mxu0 0
        %1369 = vmatprep.subr.bf16.mxu0 0
        %1370 = vmatpush1.bf16.xpose.msra.mxu0 0
        %1371 = vmatprep.subr.bf16.mxu0 0
        %1372 = vmatpush1.bf16.xpose.msra.mxu0 0
        %1373 = vmatprep.subr.bf16.mxu0 0
        %1374 = vmatpush1.bf16.xpose.msra.mxu0 0
        %1375 = vmatprep.subr.bf16.mxu0 0
        %1376 = vmatpush1.bf16.xpose.msra.mxu0 0
        %1377 = vmatprep.subr.bf16.mxu0 0
        %1378 = vmatpush1.bf16.xpose.msra.mxu0 0
        %1379 = vmatprep.subr.bf16.mxu0 0
        %1380 = vmatpush1.bf16.xpose.msra.mxu0 0
        %1381 = vmatprep.subr.bf16.mxu0 0
        %1382 = vmatpush1.bf16.xpose.msra.mxu0 0
        %1383 = vmatprep.subr.bf16.mxu0 0
        %1384 = vmatpush1.bf16.xpose.msra.mxu0 0
        %1385 = vmatprep.subr.bf16.mxu0 0
        %1386 = vmatpush1.bf16.xpose.msra.mxu0 0
        %1387 = vmatprep.subr.bf16.mxu0 0
        %1388 = vmatpush1.bf16.xpose.msra.mxu0 0
        %1389 = vmatprep.subr.bf16.mxu0 0
        %1390 = vmatpush1.bf16.xpose.msra.mxu0 0
        %1391 = vmatprep.subr.bf16.mxu0 0
        %1392 = vmatpush1.bf16.xpose.msra.mxu0 0
        %1393 = vmatprep.subr.bf16.mxu0 0
        %1394 = vmatpush1.bf16.xpose.msra.mxu0 0
        %1395 = vmatprep.subr.bf16.mxu0 0
        %1396 = vmatpush1.bf16.xpose.msra.mxu0 0
        %1397 = vmatprep.mubr.bf16.mxu0 0
        %1398 = vmatmul.mubr.bf16.gmra.mrb[0].mxu0 %v1360
        %v1399 = vpop.f32.mrb[0].mxu0
        %v1400 = vadd.f32 %v1286, %v1399
        %v1401 = vpop.f32.mrb[0].mxu0
        %v1402 = vpop.f32.mrb[0].mxu0
        %v1403 = vpop.f32.mrb[0].mxu0
        %1404 = vdwg.mxu0
        %v1405 = vsel %vm1358, %v1400, -inf
        %1406 = vmax.xlane.f32.xlu0 %v1405
        %v1407 = vpop.xlane.xlu0 %1406
        %v1408 = vsub.f32 %v1400, %v1407
        %v1409 = vmul.f32 %v1408, 1.442695
        %v1410 = vpow.pop %v1409
        %v1411 = vsel %vm1358, %v1410, 0.0
        %1412 = vadd.xlane.f32.xlu0 %v1411
        %v1413 = vpop.xlane.xlu0 %1412
        %v1414 = vrcp.pop %v1413
        %v1415 = vmul.f32 %v1410, %v1414
        %v1416 = vadd.f32 %v1415, 0.0
        %v1417 = vpack.c.bf16 %v1415, %v1415
        %v1419 = vunpack.c.l.b16 %v1356
        %v1420 = vpack.c.b16 %v1419, %v1419
        %1421 = vrot.lane.b32.xlu0 %v1420, 96
        %v1422 = vpop.permute.xlu0 %1421
        %v1424 = vsel %vm1358, %v1417, 0
        %vm1426 = vcmask 1043456
        %v1428 = vsel %vm1426, %v1422, 0
        %1430 = vmatprep.subr.bf16.mxu0 0
        %1431 = vmatpush1.bf16.msra.mxu0 %v1428
        %1432 = vmatprep.subr.bf16.mxu0 0
        %1433 = vmatpush1.bf16.msra.mxu0 0
        %1434 = vmatprep.subr.bf16.mxu0 0
        %1435 = vmatpush1.bf16.msra.mxu0 0
        %1436 = vmatprep.subr.bf16.mxu0 0
        %1437 = vmatpush1.bf16.msra.mxu0 0
        %1438 = vmatprep.subr.bf16.mxu0 0
        %1439 = vmatpush1.bf16.msra.mxu0 0
        %1440 = vmatprep.subr.bf16.mxu0 0
        %1441 = vmatpush1.bf16.msra.mxu0 0
        %1442 = vmatprep.subr.bf16.mxu0 0
        %1443 = vmatpush1.bf16.msra.mxu0 0
        %1444 = vmatprep.subr.bf16.mxu0 0
        %1445 = vmatpush1.bf16.msra.mxu0 0
        %1446 = vmatprep.subr.bf16.mxu0 0
        %1447 = vmatpush1.bf16.msra.mxu0 0
        %1448 = vmatprep.subr.bf16.mxu0 0
        %1449 = vmatpush1.bf16.msra.mxu0 0
        %1450 = vmatprep.subr.bf16.mxu0 0
        %1451 = vmatpush1.bf16.msra.mxu0 0
        %1452 = vmatprep.subr.bf16.mxu0 0
        %1453 = vmatpush1.bf16.msra.mxu0 0
        %1454 = vmatprep.subr.bf16.mxu0 0
        %1455 = vmatpush1.bf16.msra.mxu0 0
        %1456 = vmatprep.subr.bf16.mxu0 0
        %1457 = vmatpush1.bf16.msra.mxu0 0
        %1458 = vmatprep.subr.bf16.mxu0 0
        %1459 = vmatpush1.bf16.msra.mxu0 0
        %1460 = vmatprep.subr.bf16.mxu0 0
        %1461 = vmatpush1.bf16.msra.mxu0 0
        %1462 = vmatprep.mubr.bf16.mxu0 0
        %1463 = vmatmul.mubr.bf16.gmra.mrb[0].mxu0 %v1424
        %v1464 = vpop.f32.mrb[0].mxu0
        %v1465 = vadd.f32 0.0, %v1464
        %v1466 = vpop.f32.mrb[0].mxu0
        %v1467 = vpop.f32.mrb[0].mxu0
        %v1468 = vpop.f32.mrb[0].mxu0
        %1469 = vdwg.mxu0
        %v1470 = vpack.c.bf16 %v1465, %v1465
        %v1471 = vld [vmem:[#allocation16] sm:$0xf]
        %1473 = vrot.lane.b32.xlu0 %v1355, 96
        %v1474 = vpop.permute.xlu0 %1473
        %v1476 = vsel %vm1358, %v1474, 0
        %v1479 = vsel %vm1358, %v1357, 0
        %1481 = vmatprep.subr.bf16.mxu0 0
        %1482 = vmatpush1.bf16.xpose.msra.mxu0 %v1479
        %1483 = vmatprep.subr.bf16.mxu0 0
        %1484 = vmatpush1.bf16.xpose.msra.mxu0 0
        %1485 = vmatprep.subr.bf16.mxu0 0
        %1486 = vmatpush1.bf16.xpose.msra.mxu0 0
        %1487 = vmatprep.subr.bf16.mxu0 0
        %1488 = vmatpush1.bf16.xpose.msra.mxu0 0
        %1489 = vmatprep.subr.bf16.mxu0 0
        %1490 = vmatpush1.bf16.xpose.msra.mxu0 0
        %1491 = vmatprep.subr.bf16.mxu0 0
        %1492 = vmatpush1.bf16.xpose.msra.mxu0 0
        %1493 = vmatprep.subr.bf16.mxu0 0
        %1494 = vmatpush1.bf16.xpose.msra.mxu0 0
        %1495 = vmatprep.subr.bf16.mxu0 0
        %1496 = vmatpush1.bf16.xpose.msra.mxu0 0
        %1497 = vmatprep.subr.bf16.mxu0 0
        %1498 = vmatpush1.bf16.xpose.msra.mxu0 0
        %1499 = vmatprep.subr.bf16.mxu0 0
        %1500 = vmatpush1.bf16.xpose.msra.mxu0 0
        %1501 = vmatprep.subr.bf16.mxu0 0
        %1502 = vmatpush1.bf16.xpose.msra.mxu0 0
        %1503 = vmatprep.subr.bf16.mxu0 0
        %1504 = vmatpush1.bf16.xpose.msra.mxu0 0
        %1505 = vmatprep.subr.bf16.mxu0 0
        %1506 = vmatpush1.bf16.xpose.msra.mxu0 0
        %1507 = vmatprep.subr.bf16.mxu0 0
        %1508 = vmatpush1.bf16.xpose.msra.mxu0 0
        %1509 = vmatprep.subr.bf16.mxu0 0
        %1510 = vmatpush1.bf16.xpose.msra.mxu0 0
        %1511 = vmatprep.subr.bf16.mxu0 0
        %1512 = vmatpush1.bf16.xpose.msra.mxu0 0
        %1513 = vmatprep.mubr.bf16.mxu0 0
        %1514 = vmatmul.mubr.bf16.gmra.mrb[0].mxu0 %v1476
        %v1515 = vpop.f32.mrb[0].mxu0
        %v1516 = vadd.f32 %v1286, %v1515
        %v1517 = vpop.f32.mrb[0].mxu0
        %v1518 = vpop.f32.mrb[0].mxu0
        %v1519 = vpop.f32.mrb[0].mxu0
        %1520 = vdwg.mxu0
        %v1521 = vsel %vm1358, %v1516, -inf
        %1522 = vmax.xlane.f32.xlu0 %v1521
        %v1523 = vpop.xlane.xlu0 %1522
        %v1524 = vsub.f32 %v1516, %v1523
        %v1525 = vmul.f32 %v1524, 1.442695
        %v1526 = vpow.pop %v1525
        %v1527 = vsel %vm1358, %v1526, 0.0
        %1528 = vadd.xlane.f32.xlu0 %v1527
        %v1529 = vpop.xlane.xlu0 %1528
        %v1530 = vrcp.pop %v1529
        %v1531 = vmul.f32 %v1526, %v1530
        %v1532 = vadd.f32 %v1531, 0.0
        %1533 = vrot.lane.b32.xlu0 %v1355, 120
        %v1534 = vpop.permute.xlu0 %1533
        %1535 = vrot.lane.b32.xlu0 %v1420, 120
        %v1536 = vpop.permute.xlu0 %1535
        %v1538 = vsel %vm1358, %v1534, 0
        %v1541 = vsel %vm1358, %v1536, 0
        %1543 = vmatprep.subr.bf16.mxu0 0
        %1544 = vmatpush1.bf16.xpose.msra.mxu0 %v1541
        %1545 = vmatprep.subr.bf16.mxu0 0
        %1546 = vmatpush1.bf16.xpose.msra.mxu0 0
        %1547 = vmatprep.subr.bf16.mxu0 0
        %1548 = vmatpush1.bf16.xpose.msra.mxu0 0
        %1549 = vmatprep.subr.bf16.mxu0 0
        %1550 = vmatpush1.bf16.xpose.msra.mxu0 0
        %1551 = vmatprep.subr.bf16.mxu0 0
        %1552 = vmatpush1.bf16.xpose.msra.mxu0 0
        %1553 = vmatprep.subr.bf16.mxu0 0
        %1554 = vmatpush1.bf16.xpose.msra.mxu0 0
        %1555 = vmatprep.subr.bf16.mxu0 0
        %1556 = vmatpush1.bf16.xpose.msra.mxu0 0
        %1557 = vmatprep.subr.bf16.mxu0 0
        %1558 = vmatpush1.bf16.xpose.msra.mxu0 0
        %1559 = vmatprep.subr.bf16.mxu0 0
        %1560 = vmatpush1.bf16.xpose.msra.mxu0 0
        %1561 = vmatprep.subr.bf16.mxu0 0
        %1562 = vmatpush1.bf16.xpose.msra.mxu0 0
        %1563 = vmatprep.subr.bf16.mxu0 0
        %1564 = vmatpush1.bf16.xpose.msra.mxu0 0
        %1565 = vmatprep.subr.bf16.mxu0 0
        %1566 = vmatpush1.bf16.xpose.msra.mxu0 0
        %1567 = vmatprep.subr.bf16.mxu0 0
        %1568 = vmatpush1.bf16.xpose.msra.mxu0 0
        %1569 = vmatprep.subr.bf16.mxu0 0
        %1570 = vmatpush1.bf16.xpose.msra.mxu0 0
        %1571 = vmatprep.subr.bf16.mxu0 0
        %1572 = vmatpush1.bf16.xpose.msra.mxu0 0
        %1573 = vmatprep.subr.bf16.mxu0 0
        %1574 = vmatpush1.bf16.xpose.msra.mxu0 0
        %1575 = vmatprep.mubr.bf16.mxu0 0
        %1576 = vmatmul.mubr.bf16.gmra.mrb[0].mxu0 %v1538
        %v1577 = vpop.f32.mrb[0].mxu0
        %v1578 = vadd.f32 %v1286, %v1577
        %v1579 = vpop.f32.mrb[0].mxu0
        %v1580 = vpop.f32.mrb[0].mxu0
        %v1581 = vpop.f32.mrb[0].mxu0
        %1582 = vdwg.mxu0
        %v1583 = vsel %vm1358, %v1578, -inf
        %1584 = vmax.xlane.f32.xlu0 %v1583
        %v1585 = vpop.xlane.xlu0 %1584
        %v1586 = vsub.f32 %v1578, %v1585
        %v1587 = vmul.f32 %v1586, 1.442695
        %v1588 = vpow.pop %v1587
        %v1589 = vsel %vm1358, %v1588, 0.0
        %1590 = vadd.xlane.f32.xlu0 %v1589
        %v1591 = vpop.xlane.xlu0 %1590
        %v1592 = vrcp.pop %v1591
        %v1593 = vmul.f32 %v1588, %v1592
        %v1594 = vadd.f32 %v1416, %v1593
        %v1595 = vpack.c.bf16 %v1593, %v1593
        %1596 = vrot.lane.b32.xlu0 %v1420, 88
        %v1597 = vpop.permute.xlu0 %1596
        %v1599 = vsel %vm1358, %v1595, 0
        %v1602 = vsel %vm1426, %v1597, 0
        %1604 = vmatprep.subr.bf16.mxu0 0
        %1605 = vmatpush1.bf16.msra.mxu0 %v1602
        %1606 = vmatprep.subr.bf16.mxu0 0
        %1607 = vmatpush1.bf16.msra.mxu0 0
        %1608 = vmatprep.subr.bf16.mxu0 0
        %1609 = vmatpush1.bf16.msra.mxu0 0
        %1610 = vmatprep.subr.bf16.mxu0 0
        %1611 = vmatpush1.bf16.msra.mxu0 0
        %1612 = vmatprep.subr.bf16.mxu0 0
        %1613 = vmatpush1.bf16.msra.mxu0 0
        %1614 = vmatprep.subr.bf16.mxu0 0
        %1615 = vmatpush1.bf16.msra.mxu0 0
        %1616 = vmatprep.subr.bf16.mxu0 0
        %1617 = vmatpush1.bf16.msra.mxu0 0
        %1618 = vmatprep.subr.bf16.mxu0 0
        %1619 = vmatpush1.bf16.msra.mxu0 0
        %1620 = vmatprep.subr.bf16.mxu0 0
        %1621 = vmatpush1.bf16.msra.mxu0 0
        %1622 = vmatprep.subr.bf16.mxu0 0
        %1623 = vmatpush1.bf16.msra.mxu0 0
        %1624 = vmatprep.subr.bf16.mxu0 0
        %1625 = vmatpush1.bf16.msra.mxu0 0
        %1626 = vmatprep.subr.bf16.mxu0 0
        %1627 = vmatpush1.bf16.msra.mxu0 0
        %1628 = vmatprep.subr.bf16.mxu0 0
        %1629 = vmatpush1.bf16.msra.mxu0 0
        %1630 = vmatprep.subr.bf16.mxu0 0
        %1631 = vmatpush1.bf16.msra.mxu0 0
        %1632 = vmatprep.subr.bf16.mxu0 0
        %1633 = vmatpush1.bf16.msra.mxu0 0
        %1634 = vmatprep.subr.bf16.mxu0 0
        %1635 = vmatpush1.bf16.msra.mxu0 0
        %1636 = vmatprep.mubr.bf16.mxu0 0
        %1637 = vmatmul.mubr.bf16.gmra.mrb[0].mxu0 %v1599
        %v1638 = vpop.f32.mrb[0].mxu0
        %v1639 = vadd.f32 0.0, %v1638
        %v1640 = vpop.f32.mrb[0].mxu0
        %v1641 = vpop.f32.mrb[0].mxu0
        %v1642 = vpop.f32.mrb[0].mxu0
        %1643 = vdwg.mxu0
        %v1644 = vpack.c.bf16 %v1639, %v1639
        %v1645 = vld [vmem:[#allocation16 + $0x4] sm:$0xf]
        %v1647 = vsel %vm1358, %v1644, 0
        %v1650 = vsel %vm1426, %v1645, 0
        %1652 = vmatprep.subr.bf16.mxu0 0
        %1653 = vmatpush1.bf16.msra.mxu0 %v1650
        %1654 = vmatprep.subr.bf16.mxu0 0
        %1655 = vmatpush1.bf16.msra.mxu0 0
        %1656 = vmatprep.subr.bf16.mxu0 0
        %1657 = vmatpush1.bf16.msra.mxu0 0
        %1658 = vmatprep.subr.bf16.mxu0 0
        %1659 = vmatpush1.bf16.msra.mxu0 0
        %1660 = vmatprep.subr.bf16.mxu0 0
        %1661 = vmatpush1.bf16.msra.mxu0 0
        %1662 = vmatprep.subr.bf16.mxu0 0
        %1663 = vmatpush1.bf16.msra.mxu0 0
        %1664 = vmatprep.subr.bf16.mxu0 0
        %1665 = vmatpush1.bf16.msra.mxu0 0
        %1666 = vmatprep.subr.bf16.mxu0 0
        %1667 = vmatpush1.bf16.msra.mxu0 0
        %1668 = vmatprep.subr.bf16.mxu0 0
        %1669 = vmatpush1.bf16.msra.mxu0 0
        %1670 = vmatprep.subr.bf16.mxu0 0
        %1671 = vmatpush1.bf16.msra.mxu0 0
        %1672 = vmatprep.subr.bf16.mxu0 0
        %1673 = vmatpush1.bf16.msra.mxu0 0
        %1674 = vmatprep.subr.bf16.mxu0 0
        %1675 = vmatpush1.bf16.msra.mxu0 0
        %1676 = vmatprep.subr.bf16.mxu0 0
        %1677 = vmatpush1.bf16.msra.mxu0 0
        %1678 = vmatprep.subr.bf16.mxu0 0
        %1679 = vmatpush1.bf16.msra.mxu0 0
        %1680 = vmatprep.subr.bf16.mxu0 0
        %1681 = vmatpush1.bf16.msra.mxu0 0
        %1682 = vmatprep.subr.bf16.mxu0 0
        %1683 = vmatpush1.bf16.msra.mxu0 0
        %1684 = vmatprep.mubr.bf16.mxu0 0
        %1685 = vmatmul.mubr.bf16.gmra.mrb[0].mxu0 %v1647
        %v1686 = vpop.f32.mrb[0].mxu0
        %v1687 = vadd.f32 0.0, %v1686
        %v1688 = vpop.f32.mrb[0].mxu0
        %v1689 = vpop.f32.mrb[0].mxu0
        %v1690 = vpop.f32.mrb[0].mxu0
        %1691 = vdwg.mxu0
        %v1693 = vsel %vm1358, %v1470, 0
        %v1696 = vsel %vm1426, %v1471, 0
        %1698 = vmatprep.subr.bf16.mxu0 0
        %1699 = vmatpush1.bf16.msra.mxu0 %v1696
        %1700 = vmatprep.subr.bf16.mxu0 0
        %1701 = vmatpush1.bf16.msra.mxu0 0
        %1702 = vmatprep.subr.bf16.mxu0 0
        %1703 = vmatpush1.bf16.msra.mxu0 0
        %1704 = vmatprep.subr.bf16.mxu0 0
        %1705 = vmatpush1.bf16.msra.mxu0 0
        %1706 = vmatprep.subr.bf16.mxu0 0
        %1707 = vmatpush1.bf16.msra.mxu0 0
        %1708 = vmatprep.subr.bf16.mxu0 0
        %1709 = vmatpush1.bf16.msra.mxu0 0
        %1710 = vmatprep.subr.bf16.mxu0 0
        %1711 = vmatpush1.bf16.msra.mxu0 0
        %1712 = vmatprep.subr.bf16.mxu0 0
        %1713 = vmatpush1.bf16.msra.mxu0 0
        %1714 = vmatprep.subr.bf16.mxu0 0
        %1715 = vmatpush1.bf16.msra.mxu0 0
        %1716 = vmatprep.subr.bf16.mxu0 0
        %1717 = vmatpush1.bf16.msra.mxu0 0
        %1718 = vmatprep.subr.bf16.mxu0 0
        %1719 = vmatpush1.bf16.msra.mxu0 0
        %1720 = vmatprep.subr.bf16.mxu0 0
        %1721 = vmatpush1.bf16.msra.mxu0 0
        %1722 = vmatprep.subr.bf16.mxu0 0
        %1723 = vmatpush1.bf16.msra.mxu0 0
        %1724 = vmatprep.subr.bf16.mxu0 0
        %1725 = vmatpush1.bf16.msra.mxu0 0
        %1726 = vmatprep.subr.bf16.mxu0 0
        %1727 = vmatpush1.bf16.msra.mxu0 0
        %1728 = vmatprep.subr.bf16.mxu0 0
        %1729 = vmatpush1.bf16.msra.mxu0 0
        %1730 = vmatprep.mubr.bf16.mxu0 0
        %1731 = vmatmul.mubr.bf16.gmra.mrb[0].mxu0 %v1693
        %v1732 = vpop.f32.mrb[0].mxu0
        %v1733 = vadd.f32 %v1687, %v1732
        %v1734 = vpop.f32.mrb[0].mxu0
        %v1735 = vpop.f32.mrb[0].mxu0
        %v1736 = vpop.f32.mrb[0].mxu0
        %1737 = vdwg.mxu0
        %1738 = vrot.lane.b32.xlu0 %v1355, 88
        %v1739 = vpop.permute.xlu0 %1738
        %v1741 = vunpack.c.l.b16 %v1357
        %v1742 = vpack.c.b16 %v1741, %v1741
        %1743 = vrot.lane.b32.xlu0 %v1742, 120
        %v1744 = vpop.permute.xlu0 %1743
        %v1746 = vsel %vm1358, %v1739, 0
        %v1749 = vsel %vm1358, %v1744, 0
        %1751 = vmatprep.subr.bf16.mxu0 0
        %1752 = vmatpush1.bf16.xpose.msra.mxu0 %v1749
        %1753 = vmatprep.subr.bf16.mxu0 0
        %1754 = vmatpush1.bf16.xpose.msra.mxu0 0
        %1755 = vmatprep.subr.bf16.mxu0 0
        %1756 = vmatpush1.bf16.xpose.msra.mxu0 0
        %1757 = vmatprep.subr.bf16.mxu0 0
        %1758 = vmatpush1.bf16.xpose.msra.mxu0 0
        %1759 = vmatprep.subr.bf16.mxu0 0
        %1760 = vmatpush1.bf16.xpose.msra.mxu0 0
        %1761 = vmatprep.subr.bf16.mxu0 0
        %1762 = vmatpush1.bf16.xpose.msra.mxu0 0
        %1763 = vmatprep.subr.bf16.mxu0 0
        %1764 = vmatpush1.bf16.xpose.msra.mxu0 0
        %1765 = vmatprep.subr.bf16.mxu0 0
        %1766 = vmatpush1.bf16.xpose.msra.mxu0 0
        %1767 = vmatprep.subr.bf16.mxu0 0
        %1768 = vmatpush1.bf16.xpose.msra.mxu0 0
        %1769 = vmatprep.subr.bf16.mxu0 0
        %1770 = vmatpush1.bf16.xpose.msra.mxu0 0
        %1771 = vmatprep.subr.bf16.mxu0 0
        %1772 = vmatpush1.bf16.xpose.msra.mxu0 0
        %1773 = vmatprep.subr.bf16.mxu0 0
        %1774 = vmatpush1.bf16.xpose.msra.mxu0 0
        %1775 = vmatprep.subr.bf16.mxu0 0
        %1776 = vmatpush1.bf16.xpose.msra.mxu0 0
        %1777 = vmatprep.subr.bf16.mxu0 0
        %1778 = vmatpush1.bf16.xpose.msra.mxu0 0
        %1779 = vmatprep.subr.bf16.mxu0 0
        %1780 = vmatpush1.bf16.xpose.msra.mxu0 0
        %1781 = vmatprep.subr.bf16.mxu0 0
        %1782 = vmatpush1.bf16.xpose.msra.mxu0 0
        %1783 = vmatprep.mubr.bf16.mxu0 0
        %1784 = vmatmul.mubr.bf16.gmra.mrb[0].mxu0 %v1746
        %v1785 = vpop.f32.mrb[0].mxu0
        %v1786 = vadd.f32 %v1286, %v1785
        %v1787 = vpop.f32.mrb[0].mxu0
        %v1788 = vpop.f32.mrb[0].mxu0
        %v1789 = vpop.f32.mrb[0].mxu0
        %1790 = vdwg.mxu0
        %v1791 = vsel %vm1358, %v1786, -inf
        %1792 = vmax.xlane.f32.xlu0 %v1791
        %v1793 = vpop.xlane.xlu0 %1792
        %v1794 = vsub.f32 %v1786, %v1793
        %v1795 = vmul.f32 %v1794, 1.442695
        %v1796 = vpow.pop %v1795
        %v1797 = vsel %vm1358, %v1796, 0.0
        %1798 = vadd.xlane.f32.xlu0 %v1797
        %v1799 = vpop.xlane.xlu0 %1798
        %v1800 = vrcp.pop %v1799
        %v1801 = vmul.f32 %v1796, %v1800
        %v1802 = vadd.f32 %v1532, %v1801
        %1803 = vrot.lane.b32.xlu0 %v1355, 112
        %v1804 = vpop.permute.xlu0 %1803
        %1805 = vrot.lane.b32.xlu0 %v1420, 112
        %v1806 = vpop.permute.xlu0 %1805
        %v1808 = vsel %vm1358, %v1804, 0
        %v1811 = vsel %vm1358, %v1806, 0
        %1813 = vmatprep.subr.bf16.mxu0 0
        %1814 = vmatpush1.bf16.xpose.msra.mxu0 %v1811
        %1815 = vmatprep.subr.bf16.mxu0 0
        %1816 = vmatpush1.bf16.xpose.msra.mxu0 0
        %1817 = vmatprep.subr.bf16.mxu0 0
        %1818 = vmatpush1.bf16.xpose.msra.mxu0 0
        %1819 = vmatprep.subr.bf16.mxu0 0
        %1820 = vmatpush1.bf16.xpose.msra.mxu0 0
        %1821 = vmatprep.subr.bf16.mxu0 0
        %1822 = vmatpush1.bf16.xpose.msra.mxu0 0
        %1823 = vmatprep.subr.bf16.mxu0 0
        %1824 = vmatpush1.bf16.xpose.msra.mxu0 0
        %1825 = vmatprep.subr.bf16.mxu0 0
        %1826 = vmatpush1.bf16.xpose.msra.mxu0 0
        %1827 = vmatprep.subr.bf16.mxu0 0
        %1828 = vmatpush1.bf16.xpose.msra.mxu0 0
        %1829 = vmatprep.subr.bf16.mxu0 0
        %1830 = vmatpush1.bf16.xpose.msra.mxu0 0
        %1831 = vmatprep.subr.bf16.mxu0 0
        %1832 = vmatpush1.bf16.xpose.msra.mxu0 0
        %1833 = vmatprep.subr.bf16.mxu0 0
        %1834 = vmatpush1.bf16.xpose.msra.mxu0 0
        %1835 = vmatprep.subr.bf16.mxu0 0
        %1836 = vmatpush1.bf16.xpose.msra.mxu0 0
        %1837 = vmatprep.subr.bf16.mxu0 0
        %1838 = vmatpush1.bf16.xpose.msra.mxu0 0
        %1839 = vmatprep.subr.bf16.mxu0 0
        %1840 = vmatpush1.bf16.xpose.msra.mxu0 0
        %1841 = vmatprep.subr.bf16.mxu0 0
        %1842 = vmatpush1.bf16.xpose.msra.mxu0 0
        %1843 = vmatprep.subr.bf16.mxu0 0
        %1844 = vmatpush1.bf16.xpose.msra.mxu0 0
        %1845 = vmatprep.mubr.bf16.mxu0 0
        %1846 = vmatmul.mubr.bf16.gmra.mrb[0].mxu0 %v1808
        %v1847 = vpop.f32.mrb[0].mxu0
        %v1848 = vadd.f32 %v1286, %v1847
        %v1849 = vpop.f32.mrb[0].mxu0
        %v1850 = vpop.f32.mrb[0].mxu0
        %v1851 = vpop.f32.mrb[0].mxu0
        %1852 = vdwg.mxu0
        %v1853 = vsel %vm1358, %v1848, -inf
        %1854 = vmax.xlane.f32.xlu0 %v1853
        %v1855 = vpop.xlane.xlu0 %1854
        %v1856 = vsub.f32 %v1848, %v1855
        %v1857 = vmul.f32 %v1856, 1.442695
        %v1858 = vpow.pop %v1857
        %v1859 = vsel %vm1358, %v1858, 0.0
        %1860 = vadd.xlane.f32.xlu0 %v1859
        %v1861 = vpop.xlane.xlu0 %1860
        %v1862 = vrcp.pop %v1861
        %v1863 = vmul.f32 %v1858, %v1862
        %v1864 = vadd.f32 %v1594, %v1863
        %v1865 = vpack.c.bf16 %v1863, %v1863
        %1866 = vrot.lane.b32.xlu0 %v1420, 80
        %v1867 = vpop.permute.xlu0 %1866
        %v1869 = vsel %vm1358, %v1865, 0
        %v1872 = vsel %vm1426, %v1867, 0
        %1874 = vmatprep.subr.bf16.mxu0 0
        %1875 = vmatpush1.bf16.msra.mxu0 %v1872
        %1876 = vmatprep.subr.bf16.mxu0 0
        %1877 = vmatpush1.bf16.msra.mxu0 0
        %1878 = vmatprep.subr.bf16.mxu0 0
        %1879 = vmatpush1.bf16.msra.mxu0 0
        %1880 = vmatprep.subr.bf16.mxu0 0
        %1881 = vmatpush1.bf16.msra.mxu0 0
        %1882 = vmatprep.subr.bf16.mxu0 0
        %1883 = vmatpush1.bf16.msra.mxu0 0
        %1884 = vmatprep.subr.bf16.mxu0 0
        %1885 = vmatpush1.bf16.msra.mxu0 0
        %1886 = vmatprep.subr.bf16.mxu0 0
        %1887 = vmatpush1.bf16.msra.mxu0 0
        %1888 = vmatprep.subr.bf16.mxu0 0
        %1889 = vmatpush1.bf16.msra.mxu0 0
        %1890 = vmatprep.subr.bf16.mxu0 0
        %1891 = vmatpush1.bf16.msra.mxu0 0
        %1892 = vmatprep.subr.bf16.mxu0 0
        %1893 = vmatpush1.bf16.msra.mxu0 0
        %1894 = vmatprep.subr.bf16.mxu0 0
        %1895 = vmatpush1.bf16.msra.mxu0 0
        %1896 = vmatprep.subr.bf16.mxu0 0
        %1897 = vmatpush1.bf16.msra.mxu0 0
        %1898 = vmatprep.subr.bf16.mxu0 0
        %1899 = vmatpush1.bf16.msra.mxu0 0
        %1900 = vmatprep.subr.bf16.mxu0 0
        %1901 = vmatpush1.bf16.msra.mxu0 0
        %1902 = vmatprep.subr.bf16.mxu0 0
        %1903 = vmatpush1.bf16.msra.mxu0 0
        %1904 = vmatprep.subr.bf16.mxu0 0
        %1905 = vmatpush1.bf16.msra.mxu0 0
        %1906 = vmatprep.mubr.bf16.mxu0 0
        %1907 = vmatmul.mubr.bf16.gmra.mrb[0].mxu0 %v1869
        %v1908 = vpop.f32.mrb[0].mxu0
        %v1909 = vadd.f32 0.0, %v1908
        %v1910 = vpop.f32.mrb[0].mxu0
        %v1911 = vpop.f32.mrb[0].mxu0
        %v1912 = vpop.f32.mrb[0].mxu0
        %1913 = vdwg.mxu0
        %v1914 = vpack.c.bf16 %v1909, %v1909
        %v1915 = vld [vmem:[#allocation16 + $0x8] sm:$0xf]
        %v1917 = vsel %vm1358, %v1914, 0
        %v1920 = vsel %vm1426, %v1915, 0
        %1922 = vmatprep.subr.bf16.mxu0 0
        %1923 = vmatpush1.bf16.msra.mxu0 %v1920
        %1924 = vmatprep.subr.bf16.mxu0 0
        %1925 = vmatpush1.bf16.msra.mxu0 0
        %1926 = vmatprep.subr.bf16.mxu0 0
        %1927 = vmatpush1.bf16.msra.mxu0 0
        %1928 = vmatprep.subr.bf16.mxu0 0
        %1929 = vmatpush1.bf16.msra.mxu0 0
        %1930 = vmatprep.subr.bf16.mxu0 0
        %1931 = vmatpush1.bf16.msra.mxu0 0
        %1932 = vmatprep.subr.bf16.mxu0 0
        %1933 = vmatpush1.bf16.msra.mxu0 0
        %1934 = vmatprep.subr.bf16.mxu0 0
        %1935 = vmatpush1.bf16.msra.mxu0 0
        %1936 = vmatprep.subr.bf16.mxu0 0
        %1937 = vmatpush1.bf16.msra.mxu0 0
        %1938 = vmatprep.subr.bf16.mxu0 0
        %1939 = vmatpush1.bf16.msra.mxu0 0
        %1940 = vmatprep.subr.bf16.mxu0 0
        %1941 = vmatpush1.bf16.msra.mxu0 0
        %1942 = vmatprep.subr.bf16.mxu0 0
        %1943 = vmatpush1.bf16.msra.mxu0 0
        %1944 = vmatprep.subr.bf16.mxu0 0
        %1945 = vmatpush1.bf16.msra.mxu0 0
        %1946 = vmatprep.subr.bf16.mxu0 0
        %1947 = vmatpush1.bf16.msra.mxu0 0
        %1948 = vmatprep.subr.bf16.mxu0 0
        %1949 = vmatpush1.bf16.msra.mxu0 0
        %1950 = vmatprep.subr.bf16.mxu0 0
        %1951 = vmatpush1.bf16.msra.mxu0 0
        %1952 = vmatprep.subr.bf16.mxu0 0
        %1953 = vmatpush1.bf16.msra.mxu0 0
        %1954 = vmatprep.mubr.bf16.mxu0 0
        %1955 = vmatmul.mubr.bf16.gmra.mrb[0].mxu0 %v1917
        %v1956 = vpop.f32.mrb[0].mxu0
        %v1957 = vadd.f32 0.0, %v1956
        %v1958 = vpop.f32.mrb[0].mxu0
        %v1959 = vpop.f32.mrb[0].mxu0
        %v1960 = vpop.f32.mrb[0].mxu0
        %1961 = vdwg.mxu0
        %v1962 = vadd.f32 %v1733, %v1957
        %1963 = vrot.lane.b32.xlu0 %v1355, 80
        %v1964 = vpop.permute.xlu0 %1963
        %1965 = vrot.lane.b32.xlu0 %v1742, 112
        %v1966 = vpop.permute.xlu0 %1965
        %v1968 = vsel %vm1358, %v1964, 0
        %v1971 = vsel %vm1358, %v1966, 0
        %1973 = vmatprep.subr.bf16.mxu0 0
        %1974 = vmatpush1.bf16.xpose.msra.mxu0 %v1971
        %1975 = vmatprep.subr.bf16.mxu0 0
        %1976 = vmatpush1.bf16.xpose.msra.mxu0 0
        %1977 = vmatprep.subr.bf16.mxu0 0
        %1978 = vmatpush1.bf16.xpose.msra.mxu0 0
        %1979 = vmatprep.subr.bf16.mxu0 0
        %1980 = vmatpush1.bf16.xpose.msra.mxu0 0
        %1981 = vmatprep.subr.bf16.mxu0 0
        %1982 = vmatpush1.bf16.xpose.msra.mxu0 0
        %1983 = vmatprep.subr.bf16.mxu0 0
        %1984 = vmatpush1.bf16.xpose.msra.mxu0 0
        %1985 = vmatprep.subr.bf16.mxu0 0
        %1986 = vmatpush1.bf16.xpose.msra.mxu0 0
        %1987 = vmatprep.subr.bf16.mxu0 0
        %1988 = vmatpush1.bf16.xpose.msra.mxu0 0
        %1989 = vmatprep.subr.bf16.mxu0 0
        %1990 = vmatpush1.bf16.xpose.msra.mxu0 0
        %1991 = vmatprep.subr.bf16.mxu0 0
        %1992 = vmatpush1.bf16.xpose.msra.mxu0 0
        %1993 = vmatprep.subr.bf16.mxu0 0
        %1994 = vmatpush1.bf16.xpose.msra.mxu0 0
        %1995 = vmatprep.subr.bf16.mxu0 0
        %1996 = vmatpush1.bf16.xpose.msra.mxu0 0
        %1997 = vmatprep.subr.bf16.mxu0 0
        %1998 = vmatpush1.bf16.xpose.msra.mxu0 0
        %1999 = vmatprep.subr.bf16.mxu0 0
        %2000 = vmatpush1.bf16.xpose.msra.mxu0 0
        %2001 = vmatprep.subr.bf16.mxu0 0
        %2002 = vmatpush1.bf16.xpose.msra.mxu0 0
        %2003 = vmatprep.subr.bf16.mxu0 0
        %2004 = vmatpush1.bf16.xpose.msra.mxu0 0
        %2005 = vmatprep.mubr.bf16.mxu0 0
        %2006 = vmatmul.mubr.bf16.gmra.mrb[0].mxu0 %v1968
        %v2007 = vpop.f32.mrb[0].mxu0
        %v2008 = vadd.f32 %v1286, %v2007
        %v2009 = vpop.f32.mrb[0].mxu0
        %v2010 = vpop.f32.mrb[0].mxu0
        %v2011 = vpop.f32.mrb[0].mxu0
        %2012 = vdwg.mxu0
        %v2013 = vsel %vm1358, %v2008, -inf
        %2014 = vmax.xlane.f32.xlu0 %v2013
        %v2015 = vpop.xlane.xlu0 %2014
        %v2016 = vsub.f32 %v2008, %v2015
        %v2017 = vmul.f32 %v2016, 1.442695
        %v2018 = vpow.pop %v2017
        %v2019 = vsel %vm1358, %v2018, 0.0
        %2020 = vadd.xlane.f32.xlu0 %v2019
        %v2021 = vpop.xlane.xlu0 %2020
        %v2022 = vrcp.pop %v2021
        %v2023 = vmul.f32 %v2018, %v2022
        %v2024 = vadd.f32 %v1802, %v2023
        %2025 = vrot.lane.b32.xlu0 %v1355, 104
        %v2026 = vpop.permute.xlu0 %2025
        %2027 = vrot.lane.b32.xlu0 %v1420, 104
        %v2028 = vpop.permute.xlu0 %2027
        %v2030 = vsel %vm1358, %v2026, 0
        %v2033 = vsel %vm1358, %v2028, 0
        %2035 = vmatprep.subr.bf16.mxu0 0
        %2036 = vmatpush1.bf16.xpose.msra.mxu0 %v2033
        %2037 = vmatprep.subr.bf16.mxu0 0
        %2038 = vmatpush1.bf16.xpose.msra.mxu0 0
        %2039 = vmatprep.subr.bf16.mxu0 0
        %2040 = vmatpush1.bf16.xpose.msra.mxu0 0
        %2041 = vmatprep.subr.bf16.mxu0 0
        %2042 = vmatpush1.bf16.xpose.msra.mxu0 0
        %2043 = vmatprep.subr.bf16.mxu0 0
        %2044 = vmatpush1.bf16.xpose.msra.mxu0 0
        %2045 = vmatprep.subr.bf16.mxu0 0
        %2046 = vmatpush1.bf16.xpose.msra.mxu0 0
        %2047 = vmatprep.subr.bf16.mxu0 0
        %2048 = vmatpush1.bf16.xpose.msra.mxu0 0
        %2049 = vmatprep.subr.bf16.mxu0 0
        %2050 = vmatpush1.bf16.xpose.msra.mxu0 0
        %2051 = vmatprep.subr.bf16.mxu0 0
        %2052 = vmatpush1.bf16.xpose.msra.mxu0 0
        %2053 = vmatprep.subr.bf16.mxu0 0
        %2054 = vmatpush1.bf16.xpose.msra.mxu0 0
        %2055 = vmatprep.subr.bf16.mxu0 0
        %2056 = vmatpush1.bf16.xpose.msra.mxu0 0
        %2057 = vmatprep.subr.bf16.mxu0 0
        %2058 = vmatpush1.bf16.xpose.msra.mxu0 0
        %2059 = vmatprep.subr.bf16.mxu0 0
        %2060 = vmatpush1.bf16.xpose.msra.mxu0 0
        %2061 = vmatprep.subr.bf16.mxu0 0
        %2062 = vmatpush1.bf16.xpose.msra.mxu0 0
        %2063 = vmatprep.subr.bf16.mxu0 0
        %2064 = vmatpush1.bf16.xpose.msra.mxu0 0
        %2065 = vmatprep.subr.bf16.mxu0 0
        %2066 = vmatpush1.bf16.xpose.msra.mxu0 0
        %2067 = vmatprep.mubr.bf16.mxu0 0
        %2068 = vmatmul.mubr.bf16.gmra.mrb[0].mxu0 %v2030
        %v2069 = vpop.f32.mrb[0].mxu0
        %v2070 = vadd.f32 %v1286, %v2069
        %v2071 = vpop.f32.mrb[0].mxu0
        %v2072 = vpop.f32.mrb[0].mxu0
        %v2073 = vpop.f32.mrb[0].mxu0
        %2074 = vdwg.mxu0
        %v2075 = vsel %vm1358, %v2070, -inf
        %2076 = vmax.xlane.f32.xlu0 %v2075
        %v2077 = vpop.xlane.xlu0 %2076
        %v2078 = vsub.f32 %v2070, %v2077
        %v2079 = vmul.f32 %v2078, 1.442695
        %v2080 = vpow.pop %v2079
        %v2081 = vsel %vm1358, %v2080, 0.0
        %2082 = vadd.xlane.f32.xlu0 %v2081
        %v2083 = vpop.xlane.xlu0 %2082
        %v2084 = vrcp.pop %v2083
        %v2085 = vmul.f32 %v2080, %v2084
        %v2086 = vadd.f32 %v1864, %v2085
        %v2087 = vpack.c.bf16 %v2085, %v2085
        %2088 = vrot.lane.b32.xlu0 %v1420, 72
        %v2089 = vpop.permute.xlu0 %2088
        %v2091 = vsel %vm1358, %v2087, 0
        %v2094 = vsel %vm1426, %v2089, 0
        %2096 = vmatprep.subr.bf16.mxu0 0
        %2097 = vmatpush1.bf16.msra.mxu0 %v2094
        %2098 = vmatprep.subr.bf16.mxu0 0
        %2099 = vmatpush1.bf16.msra.mxu0 0
        %2100 = vmatprep.subr.bf16.mxu0 0
        %2101 = vmatpush1.bf16.msra.mxu0 0
        %2102 = vmatprep.subr.bf16.mxu0 0
        %2103 = vmatpush1.bf16.msra.mxu0 0
        %2104 = vmatprep.subr.bf16.mxu0 0
        %2105 = vmatpush1.bf16.msra.mxu0 0
        %2106 = vmatprep.subr.bf16.mxu0 0
        %2107 = vmatpush1.bf16.msra.mxu0 0
        %2108 = vmatprep.subr.bf16.mxu0 0
        %2109 = vmatpush1.bf16.msra.mxu0 0
        %2110 = vmatprep.subr.bf16.mxu0 0
        %2111 = vmatpush1.bf16.msra.mxu0 0
        %2112 = vmatprep.subr.bf16.mxu0 0
        %2113 = vmatpush1.bf16.msra.mxu0 0
        %2114 = vmatprep.subr.bf16.mxu0 0
        %2115 = vmatpush1.bf16.msra.mxu0 0
        %2116 = vmatprep.subr.bf16.mxu0 0
        %2117 = vmatpush1.bf16.msra.mxu0 0
        %2118 = vmatprep.subr.bf16.mxu0 0
        %2119 = vmatpush1.bf16.msra.mxu0 0
        %2120 = vmatprep.subr.bf16.mxu0 0
        %2121 = vmatpush1.bf16.msra.mxu0 0
        %2122 = vmatprep.subr.bf16.mxu0 0
        %2123 = vmatpush1.bf16.msra.mxu0 0
        %2124 = vmatprep.subr.bf16.mxu0 0
        %2125 = vmatpush1.bf16.msra.mxu0 0
        %2126 = vmatprep.subr.bf16.mxu0 0
        %2127 = vmatpush1.bf16.msra.mxu0 0
        %2128 = vmatprep.mubr.bf16.mxu0 0
        %2129 = vmatmul.mubr.bf16.gmra.mrb[0].mxu0 %v2091
        %v2130 = vpop.f32.mrb[0].mxu0
        %v2131 = vadd.f32 0.0, %v2130
        %v2132 = vpop.f32.mrb[0].mxu0
        %v2133 = vpop.f32.mrb[0].mxu0
        %v2134 = vpop.f32.mrb[0].mxu0
        %2135 = vdwg.mxu0
        %v2136 = vpack.c.bf16 %v2131, %v2131
        %v2137 = vld [vmem:[#allocation16 + $0xc] sm:$0xf]
        %v2139 = vsel %vm1358, %v2136, 0
        %v2142 = vsel %vm1426, %v2137, 0
        %2144 = vmatprep.subr.bf16.mxu0 0
        %2145 = vmatpush1.bf16.msra.mxu0 %v2142
        %2146 = vmatprep.subr.bf16.mxu0 0
        %2147 = vmatpush1.bf16.msra.mxu0 0
        %2148 = vmatprep.subr.bf16.mxu0 0
        %2149 = vmatpush1.bf16.msra.mxu0 0
        %2150 = vmatprep.subr.bf16.mxu0 0
        %2151 = vmatpush1.bf16.msra.mxu0 0
        %2152 = vmatprep.subr.bf16.mxu0 0
        %2153 = vmatpush1.bf16.msra.mxu0 0
        %2154 = vmatprep.subr.bf16.mxu0 0
        %2155 = vmatpush1.bf16.msra.mxu0 0
        %2156 = vmatprep.subr.bf16.mxu0 0
        %2157 = vmatpush1.bf16.msra.mxu0 0
        %2158 = vmatprep.subr.bf16.mxu0 0
        %2159 = vmatpush1.bf16.msra.mxu0 0
        %2160 = vmatprep.subr.bf16.mxu0 0
        %2161 = vmatpush1.bf16.msra.mxu0 0
        %2162 = vmatprep.subr.bf16.mxu0 0
        %2163 = vmatpush1.bf16.msra.mxu0 0
        %2164 = vmatprep.subr.bf16.mxu0 0
        %2165 = vmatpush1.bf16.msra.mxu0 0
        %2166 = vmatprep.subr.bf16.mxu0 0
        %2167 = vmatpush1.bf16.msra.mxu0 0
        %2168 = vmatprep.subr.bf16.mxu0 0
        %2169 = vmatpush1.bf16.msra.mxu0 0
        %2170 = vmatprep.subr.bf16.mxu0 0
        %2171 = vmatpush1.bf16.msra.mxu0 0
        %2172 = vmatprep.subr.bf16.mxu0 0
        %2173 = vmatpush1.bf16.msra.mxu0 0
        %2174 = vmatprep.subr.bf16.mxu0 0
        %2175 = vmatpush1.bf16.msra.mxu0 0
        %2176 = vmatprep.mubr.bf16.mxu0 0
        %2177 = vmatmul.mubr.bf16.gmra.mrb[0].mxu0 %v2139
        %v2178 = vpop.f32.mrb[0].mxu0
        %v2179 = vadd.f32 0.0, %v2178
        %v2180 = vpop.f32.mrb[0].mxu0
        %v2181 = vpop.f32.mrb[0].mxu0
        %v2182 = vpop.f32.mrb[0].mxu0
        %2183 = vdwg.mxu0
        %v2184 = vadd.f32 %v1962, %v2179
        %2185 = vrot.lane.b32.xlu0 %v1355, 72
        %v2186 = vpop.permute.xlu0 %2185
        %2187 = vrot.lane.b32.xlu0 %v1742, 104
        %v2188 = vpop.permute.xlu0 %2187
        %v2190 = vsel %vm1358, %v2186, 0
        %v2193 = vsel %vm1358, %v2188, 0
        %2195 = vmatprep.subr.bf16.mxu0 0
        %2196 = vmatpush1.bf16.xpose.msra.mxu0 %v2193
        %2197 = vmatprep.subr.bf16.mxu0 0
        %2198 = vmatpush1.bf16.xpose.msra.mxu0 0
        %2199 = vmatprep.subr.bf16.mxu0 0
        %2200 = vmatpush1.bf16.xpose.msra.mxu0 0
        %2201 = vmatprep.subr.bf16.mxu0 0
        %2202 = vmatpush1.bf16.xpose.msra.mxu0 0
        %2203 = vmatprep.subr.bf16.mxu0 0
        %2204 = vmatpush1.bf16.xpose.msra.mxu0 0
        %2205 = vmatprep.subr.bf16.mxu0 0
        %2206 = vmatpush1.bf16.xpose.msra.mxu0 0
        %2207 = vmatprep.subr.bf16.mxu0 0
        %2208 = vmatpush1.bf16.xpose.msra.mxu0 0
        %2209 = vmatprep.subr.bf16.mxu0 0
        %2210 = vmatpush1.bf16.xpose.msra.mxu0 0
        %2211 = vmatprep.subr.bf16.mxu0 0
        %2212 = vmatpush1.bf16.xpose.msra.mxu0 0
        %2213 = vmatprep.subr.bf16.mxu0 0
        %2214 = vmatpush1.bf16.xpose.msra.mxu0 0
        %2215 = vmatprep.subr.bf16.mxu0 0
        %2216 = vmatpush1.bf16.xpose.msra.mxu0 0
        %2217 = vmatprep.subr.bf16.mxu0 0
        %2218 = vmatpush1.bf16.xpose.msra.mxu0 0
        %2219 = vmatprep.subr.bf16.mxu0 0
        %2220 = vmatpush1.bf16.xpose.msra.mxu0 0
        %2221 = vmatprep.subr.bf16.mxu0 0
        %2222 = vmatpush1.bf16.xpose.msra.mxu0 0
        %2223 = vmatprep.subr.bf16.mxu0 0
        %2224 = vmatpush1.bf16.xpose.msra.mxu0 0
        %2225 = vmatprep.subr.bf16.mxu0 0
        %2226 = vmatpush1.bf16.xpose.msra.mxu0 0
        %2227 = vmatprep.mubr.bf16.mxu0 0
        %2228 = vmatmul.mubr.bf16.gmra.mrb[0].mxu0 %v2190
        %v2229 = vpop.f32.mrb[0].mxu0
        %v2230 = vadd.f32 %v1286, %v2229
        %v2231 = vpop.f32.mrb[0].mxu0
        %v2232 = vpop.f32.mrb[0].mxu0
        %v2233 = vpop.f32.mrb[0].mxu0
        %2234 = vdwg.mxu0
        %v2235 = vsel %vm1358, %v2230, -inf
        %2236 = vmax.xlane.f32.xlu0 %v2235
        %v2237 = vpop.xlane.xlu0 %2236
        %v2238 = vsub.f32 %v2230, %v2237
        %v2239 = vmul.f32 %v2238, 1.442695
        %v2240 = vpow.pop %v2239
        %v2241 = vsel %vm1358, %v2240, 0.0
        %2242 = vadd.xlane.f32.xlu0 %v2241
        %v2243 = vpop.xlane.xlu0 %2242
        %v2244 = vrcp.pop %v2243
        %v2245 = vmul.f32 %v2240, %v2244
        %v2246 = vadd.f32 %v2024, %v2245
        %v2247 = vmul.f32 %v2086, 0.25
        %v2248 = vmul.f32 %v2246, 0.25
        %v2249 = vld [vmem:[#allocation18] sm:$0x1]
        %v2251 = vlaneseq
        %v2252 = vshrl.u32 %v2251, 7
        %v2253 = vsub.s32 0, %v2252
        %v2254 = vrot.slane %v2249, %v2253
        %v2256 = vadd.f32 %v2184, %v2254
        %v2257 = vpack.c.bf16 %v1284, %v1284
        %v2258 = vld [vmem:[#allocation22] sm:$0xf]
        %v2259 = vld [vmem:[#allocation22 + $0x4] sm:$0xf]
        %v2260 = vld [vmem:[#allocation22 + $0x8] sm:$0xf]
        %v2261 = vld [vmem:[#allocation22 + $0xc] sm:$0xf]
        %v2262 = vld [vmem:[#allocation24] sm:$0x1]
        %v2264 = vlaneseq
        %v2265 = vshrl.u32 %v2264, 7
        %v2266 = vsub.s32 0, %v2265
        %v2267 = vrot.slane %v2262, %v2266
        %v2273 = vunpack.c.l.b16 %v2258
        %v2274 = vunpack.c.l.b16 %v2259
        %v2275 = vunpack.c.l.b16 %v2260
        %v2276 = vunpack.c.l.b16 %v2261
        %v2277 = vpack.c.b16 %v2274, %v2273
        %v2278 = vpack.c.b16 %v2276, %v2275
        %v2282 = vsel %vm1311, %v2257, 0
        %2284 = vmatprep.subr.bf16.mxu0 0
        %2285 = vmatpush1.bf16.msra.mxu0 %v2277
        %2286 = vmatprep.subr.bf16.mxu0 0
        %2287 = vmatpush1.bf16.msra.mxu0 %v2278
        %2288 = vmatprep.subr.bf16.mxu0 0
        %2289 = vmatpush1.bf16.msra.mxu0 0
        %2290 = vmatprep.subr.bf16.mxu0 0
        %2291 = vmatpush1.bf16.msra.mxu0 0
        %2292 = vmatprep.subr.bf16.mxu0 0
        %2293 = vmatpush1.bf16.msra.mxu0 0
        %2294 = vmatprep.subr.bf16.mxu0 0
        %2295 = vmatpush1.bf16.msra.mxu0 0
        %2296 = vmatprep.subr.bf16.mxu0 0
        %2297 = vmatpush1.bf16.msra.mxu0 0
        %2298 = vmatprep.subr.bf16.mxu0 0
        %2299 = vmatpush1.bf16.msra.mxu0 0
        %2300 = vmatprep.subr.bf16.mxu0 0
        %2301 = vmatpush1.bf16.msra.mxu0 0
        %2302 = vmatprep.subr.bf16.mxu0 0
        %2303 = vmatpush1.bf16.msra.mxu0 0
        %2304 = vmatprep.subr.bf16.mxu0 0
        %2305 = vmatpush1.bf16.msra.mxu0 0
        %2306 = vmatprep.subr.bf16.mxu0 0
        %2307 = vmatpush1.bf16.msra.mxu0 0
        %2308 = vmatprep.subr.bf16.mxu0 0
        %2309 = vmatpush1.bf16.msra.mxu0 0
        %2310 = vmatprep.subr.bf16.mxu0 0
        %2311 = vmatpush1.bf16.msra.mxu0 0
        %2312 = vmatprep.subr.bf16.mxu0 0
        %2313 = vmatpush1.bf16.msra.mxu0 0
        %2314 = vmatprep.subr.bf16.mxu0 0
        %2315 = vmatpush1.bf16.msra.mxu0 0
        %2316 = vmatprep.mubr.bf16.mxu0 0
        %2317 = vmatmul.mubr.bf16.gmra.mrb[0].mxu0 %v2282
        %v2318 = vpop.f32.mrb[0].mxu0
        %v2319 = vadd.f32 %v2267, %v2318
        %v2320 = vpop.f32.mrb[0].mxu0
        %v2321 = vpop.f32.mrb[0].mxu0
        %v2322 = vpop.f32.mrb[0].mxu0
        %2323 = vdwg.mxu0
        %v2324 = vadd.f32 %v1282, %v2256
        %v2325 = vld [vmem:[#allocation31] sm:$0x1]
        %v2326 = vld [vmem:[#allocation33] sm:$0x1]
        %v2327 = vsel %vm1311, %v2324, 0.0
        %2328 = vadd.xlane.f32.xlu0 %v2327
        %v2329 = vpop.xlane.xlu0 %2328
        %v2330 = vrcp.pop 32.0
        %v2331 = vmul.f32 %v2329, %v2330
        %v2332 = vsub.f32 %v2324, %v2331
        %v2333 = vmul.f32 %v2332, %v2332
        %v2334 = vsel %vm1311, %v2333, 0.0
        %2335 = vadd.xlane.f32.xlu0 %v2334
        %v2336 = vpop.xlane.xlu0 %2335
        %v2337 = vmul.f32 %v2336, %v2330
        %v2338 = vadd.f32 %v2337, 1e-09
        %v2339 = vrsqrt.pop %v2338
        %v2340 = vmul.f32 %v2338, %v2339
        %vm2341 = vcmp.eq.f32.partialorder %v2338, inf
        %v2342 = vsel %vm2341, %v2338, %v2340
        %vm2343 = vcmp.eq.f32.partialorder %v2338, 0.0
        %v2344 = vand.u32 %v2338, 2147483648
        %v2345 = vsel %vm2343, %v2344, %v2342
        %v2346 = vrcp.pop %v2345
        %v2347 = vmul.f32 %v2332, %v2346
        %v2349 = vlaneseq
        %v2350 = vshrl.u32 %v2349, 7
        %v2351 = vsub.s32 0, %v2350
        %v2352 = vrot.slane %v2325, %v2351
        %v2354 = vmul.f32 %v2347, %v2352
        %v2356 = vlaneseq
        %v2357 = vshrl.u32 %v2356, 7
        %v2358 = vsub.s32 0, %v2357
        %v2359 = vrot.slane %v2326, %v2358
        %v2361 = vadd.f32 %v2354, %v2359
        %v2362 = vpack.c.bf16 %v2361, %v2361
        %v2363 = vld [vmem:[#allocation25] sm:$0xf]
        %v2364 = vld [vmem:[#allocation25 + $0x4] sm:$0xf]
        %v2365 = vld [vmem:[#allocation25 + $0x8] sm:$0xf]
        %v2366 = vld [vmem:[#allocation25 + $0xc] sm:$0xf]
        %v2367 = vld [vmem:[#allocation27] sm:$0x1]
        %v2369 = vlaneseq
        %v2370 = vshrl.u32 %v2369, 7
        %v2371 = vsub.s32 0, %v2370
        %v2372 = vrot.slane %v2367, %v2371
        %v2378 = vunpack.c.l.b16 %v2363
        %v2379 = vunpack.c.l.b16 %v2364
        %v2380 = vunpack.c.l.b16 %v2365
        %v2381 = vunpack.c.l.b16 %v2366
        %v2382 = vpack.c.b16 %v2379, %v2378
        %v2383 = vpack.c.b16 %v2381, %v2380
        %v2387 = vsel %vm1311, %v2362, 0
        %2389 = vmatprep.subr.bf16.mxu0 0
        %2390 = vmatpush1.bf16.msra.mxu0 %v2382
        %2391 = vmatprep.subr.bf16.mxu0 0
        %2392 = vmatpush1.bf16.msra.mxu0 %v2383
        %2393 = vmatprep.subr.bf16.mxu0 0
        %2394 = vmatpush1.bf16.msra.mxu0 0
        %2395 = vmatprep.subr.bf16.mxu0 0
        %2396 = vmatpush1.bf16.msra.mxu0 0
        %2397 = vmatprep.subr.bf16.mxu0 0
        %2398 = vmatpush1.bf16.msra.mxu0 0
        %2399 = vmatprep.subr.bf16.mxu0 0
        %2400 = vmatpush1.bf16.msra.mxu0 0
        %2401 = vmatprep.subr.bf16.mxu0 0
        %2402 = vmatpush1.bf16.msra.mxu0 0
        %2403 = vmatprep.subr.bf16.mxu0 0
        %2404 = vmatpush1.bf16.msra.mxu0 0
        %2405 = vmatprep.subr.bf16.mxu0 0
        %2406 = vmatpush1.bf16.msra.mxu0 0
        %2407 = vmatprep.subr.bf16.mxu0 0
        %2408 = vmatpush1.bf16.msra.mxu0 0
        %2409 = vmatprep.subr.bf16.mxu0 0
        %2410 = vmatpush1.bf16.msra.mxu0 0
        %2411 = vmatprep.subr.bf16.mxu0 0
        %2412 = vmatpush1.bf16.msra.mxu0 0
        %2413 = vmatprep.subr.bf16.mxu0 0
        %2414 = vmatpush1.bf16.msra.mxu0 0
        %2415 = vmatprep.subr.bf16.mxu0 0
        %2416 = vmatpush1.bf16.msra.mxu0 0
        %2417 = vmatprep.subr.bf16.mxu0 0
        %2418 = vmatpush1.bf16.msra.mxu0 0
        %2419 = vmatprep.subr.bf16.mxu0 0
        %2420 = vmatpush1.bf16.msra.mxu0 0
        %2421 = vmatprep.mubr.bf16.mxu0 0
        %2422 = vmatmul.mubr.bf16.gmra.mrb[0].mxu0 %v2387
        %v2423 = vpop.f32.mrb[0].mxu0
        %v2424 = vadd.f32 %v2372, %v2423
        %v2425 = vpop.f32.mrb[0].mxu0
        %v2426 = vpop.f32.mrb[0].mxu0
        %v2427 = vpop.f32.mrb[0].mxu0
        %2428 = vdwg.mxu0
        %v2429 = vmul.f32 %v2424, 0.5
        %v2430 = vmul.f32 %v2424, 0.70710677
        %v2431 = vand.u32 2147483647, %v2430
        %v2432 = vmul.f32 %v2431, 0.3275911
        %v2433 = vadd.f32 %v2432, 1.0
        %v2434 = vrcp.pop %v2433
        %v2435 = vmul.f32 1.0, %v2434
        %v2436 = vmul.f32 %v2435, 1.0614054
        %v2437 = vadd.f32 %v2436, -1.4531521
        %v2438 = vmul.f32 %v2437, %v2435
        %v2439 = vadd.f32 %v2438, 1.4214138
        %v2440 = vmul.f32 %v2439, %v2435
        %v2441 = vadd.f32 %v2440, -0.28449672
        %v2442 = vmul.f32 %v2441, %v2435
        %v2443 = vadd.f32 %v2442, 0.2548296
        %v2444 = vmul.f32 %v2443, %v2435
        %v2445 = vsub.f32 0.0, %v2431
        %v2446 = vmul.f32 %v2445, %v2431
        %v2447 = vmul.f32 %v2446, 1.442695
        %v2448 = vpow.pop %v2447
        %v2449 = vmul.f32 %v2444, %v2448
        %v2450 = vsub.f32 1.0, %v2449
        %vm2451 = vcmp.lt.f32.partialorder %v2430, 0.0
        %v2452 = vsub.f32 0.0, %v2450
        %v2453 = vsel %vm2451, %v2452, %v2450
        %v2454 = vadd.f32 %v2453, 1.0
        %v2455 = vmul.f32 %v2429, %v2454
        %v2456 = vpack.c.bf16 %v2455, %v2455
        %v2457 = vld [vmem:[#allocation28] sm:$0xf]
        %v2458 = vld [vmem:[#allocation28 + $0x4] sm:$0xf]
        %v2459 = vld [vmem:[#allocation28 + $0x8] sm:$0xf]
        %v2460 = vld [vmem:[#allocation28 + $0xc] sm:$0xf]
        %v2461 = vld [vmem:[#allocation28 + $0x10] sm:$0xf]
        %v2462 = vld [vmem:[#allocation28 + $0x14] sm:$0xf]
        %v2463 = vld [vmem:[#allocation28 + $0x18] sm:$0xf]
        %v2464 = vld [vmem:[#allocation28 + $0x1c] sm:$0xf]
        %v2465 = vld [vmem:[#allocation30] sm:$0x1]
        %v2467 = vlaneseq
        %v2468 = vshrl.u32 %v2467, 7
        %v2469 = vsub.s32 0, %v2468
        %v2470 = vrot.slane %v2465, %v2469
        %v2480 = vunpack.c.l.b16 %v2457
        %v2481 = vunpack.c.l.b16 %v2458
        %v2482 = vunpack.c.l.b16 %v2459
        %v2483 = vunpack.c.l.b16 %v2460
        %v2484 = vunpack.c.l.b16 %v2461
        %v2485 = vunpack.c.l.b16 %v2462
        %v2486 = vunpack.c.l.b16 %v2463
        %v2487 = vunpack.c.l.b16 %v2464
        %v2488 = vpack.c.b16 %v2481, %v2480
        %v2489 = vpack.c.b16 %v2483, %v2482
        %v2490 = vpack.c.b16 %v2485, %v2484
        %v2491 = vpack.c.b16 %v2487, %v2486
        %vm2496 = vcmask 523264
        %v2498 = vsel %vm2496, %v2456, 0
        %2500 = vmatprep.subr.bf16.mxu0 0
        %2501 = vmatpush1.bf16.msra.mxu0 %v2488
        %2502 = vmatprep.subr.bf16.mxu0 0
        %2503 = vmatpush1.bf16.msra.mxu0 %v2489
        %2504 = vmatprep.subr.bf16.mxu0 0
        %2505 = vmatpush1.bf16.msra.mxu0 %v2490
        %2506 = vmatprep.subr.bf16.mxu0 0
        %2507 = vmatpush1.bf16.msra.mxu0 %v2491
        %2508 = vmatprep.subr.bf16.mxu0 0
        %2509 = vmatpush1.bf16.msra.mxu0 0
        %2510 = vmatprep.subr.bf16.mxu0 0
        %2511 = vmatpush1.bf16.msra.mxu0 0
        %2512 = vmatprep.subr.bf16.mxu0 0
        %2513 = vmatpush1.bf16.msra.mxu0 0
        %2514 = vmatprep.subr.bf16.mxu0 0
        %2515 = vmatpush1.bf16.msra.mxu0 0
        %2516 = vmatprep.subr.bf16.mxu0 0
        %2517 = vmatpush1.bf16.msra.mxu0 0
        %2518 = vmatprep.subr.bf16.mxu0 0
        %2519 = vmatpush1.bf16.msra.mxu0 0
        %2520 = vmatprep.subr.bf16.mxu0 0
        %2521 = vmatpush1.bf16.msra.mxu0 0
        %2522 = vmatprep.subr.bf16.mxu0 0
        %2523 = vmatpush1.bf16.msra.mxu0 0
        %2524 = vmatprep.subr.bf16.mxu0 0
        %2525 = vmatpush1.bf16.msra.mxu0 0
        %2526 = vmatprep.subr.bf16.mxu0 0
        %2527 = vmatpush1.bf16.msra.mxu0 0
        %2528 = vmatprep.subr.bf16.mxu0 0
        %2529 = vmatpush1.bf16.msra.mxu0 0
        %2530 = vmatprep.subr.bf16.mxu0 0
        %2531 = vmatpush1.bf16.msra.mxu0 0
        %2532 = vmatprep.mubr.bf16.mxu0 0
        %2533 = vmatmul.mubr.bf16.gmra.mrb[0].mxu0 %v2498
        %v2534 = vpop.f32.mrb[0].mxu0
        %v2535 = vadd.f32 %v2470, %v2534
        %v2536 = vpop.f32.mrb[0].mxu0
        %v2537 = vpop.f32.mrb[0].mxu0
        %v2538 = vpop.f32.mrb[0].mxu0
        %2539 = vdwg.mxu0
        %v2540 = vadd.f32 %v2361, %v2535
        %v2541 = vld [vmem:[#allocation34] sm:$0x1]
        %v2542 = vld [vmem:[#allocation36] sm:$0x1]
        %v2543 = vsel %vm1311, %v2540, 0.0
        %2544 = vadd.xlane.f32.xlu0 %v2543
        %v2545 = vpop.xlane.xlu0 %2544
        %v2546 = vmul.f32 %v2545, %v2330
        %v2547 = vsub.f32 %v2540, %v2546
        %v2548 = vmul.f32 %v2547, %v2547
        %v2549 = vsel %vm1311, %v2548, 0.0
        %2550 = vadd.xlane.f32.xlu0 %v2549
        %v2551 = vpop.xlane.xlu0 %2550
        %v2552 = vmul.f32 %v2551, %v2330
        %v2553 = vadd.f32 %v2552, 1e-09
        %v2554 = vrsqrt.pop %v2553
        %v2555 = vmul.f32 %v2553, %v2554
        %vm2556 = vcmp.eq.f32.partialorder %v2553, inf
        %v2557 = vsel %vm2556, %v2553, %v2555
        %vm2558 = vcmp.eq.f32.partialorder %v2553, 0.0
        %v2559 = vand.u32 %v2553, 2147483648
        %v2560 = vsel %vm2558, %v2559, %v2557
        %v2561 = vrcp.pop %v2560
        %v2562 = vmul.f32 %v2547, %v2561
        %v2564 = vlaneseq
        %v2565 = vshrl.u32 %v2564, 7
        %v2566 = vsub.s32 0, %v2565
        %v2567 = vrot.slane %v2541, %v2566
        %v2569 = vmul.f32 %v2562, %v2567
        %v2571 = vlaneseq
        %v2572 = vshrl.u32 %v2571, 7
        %v2573 = vsub.s32 0, %v2572
        %v2574 = vrot.slane %v2542, %v2573
        %v2576 = vadd.f32 %v2569, %v2574
        %v2577 = vadd.f32 %v2247, %v2248
        %v2578 = vsel %vm1358, %v2577, 0.0
        %2579 = vadd.xlane.f32.xlu0 %v2578
        %v2580 = vpop.xlane.xlu0 %2579
        %v2581 = vrcp.pop %v2580
        %v2582 = vmul.f32 %v2577, %v2581
        %2583 = vst.msk [vmem:[%s1103] sm:$0xff] %vm1311, %v2576
        %2584 = vst.msk [vmem:[%s1110] sm:$0xff] %vm1311, %v2319
        %v2585 = vpack.c.bf16 %v2582, %v2582
        %vm2586 = vcmask 60416
        %2587 = vst.msk [vmem:[%s1117] sm:$0xf] %vm2586, %v2585
        %v2588 = vpack.c.bf16 %v2247, %v2247
        %2589 = vst.msk [vmem:[%s1124] sm:$0xf] %vm2586, %v2588
        %v2590 = vpack.c.bf16 %v2248, %v2248
        %2591 = vst.msk [vmem:[%s1131] sm:$0xf] %vm2586, %v2590
        %s2592 = sand.u32 %s539, 1
        %s2593 = scalar_lea.sflag [#allocation6], %s2592
        %s2594 = sand.u32 %s539, 1
        %s2595 = smul.addr %s2594, 8
        %s2596 = scalar_lea.vmem [#allocation37], %s2595
        %s2597 = sand.u32 %s61, 1
        %s2598 = scalar_lea.sflag [#allocation39], %s2597
        %s2599 = sand.u32 %s567, 1
        %s2600 = smul.addr %s2599, 8
        %s2601 = scalar_lea.vmem [#allocation38], %s2600
        %s2602 = sand.u32 %s61, 1
        %s2603 = scalar_lea.sflag [#allocation39], %s2602
        %s2604 = sand.u32 %s595, 1
        %s2605 = smul.addr %s2604, 4
        %s2606 = scalar_lea.vmem [#allocation40], %s2605
        %s2607 = sand.u32 %s61, 1
        %s2608 = scalar_lea.sflag [#allocation42], %s2607
        %s2609 = sand.u32 %s623, 1
        %s2610 = smul.addr %s2609, 4
        %s2611 = scalar_lea.vmem [#allocation41], %s2610
        %s2612 = sand.u32 %s61, 1
        %s2613 = scalar_lea.sflag [#allocation42], %s2612
        %s2614 = sand.u32 %s651, 1
        %s2615 = smul.addr %s2614, 4
        %s2616 = scalar_lea.vmem [#allocation43], %s2615
        // Predicated region
        $region193: #{tpu_custom_call.1} parent=103 // pred_check
          %p2617 = pneg %p549
        $region194: #{tpu_custom_call.1} parent=103 // pred_check_branch
          %2619 = sbr.rel (%p2617) target = $region196
        $region195: #{tpu_custom_call.1} parent=103 // pred_region
          %s2621 = ssub.s32 128, 128
          %2622 = vsyncadd %s2593, %s2621
          %s2623 = sadd.s32 %s66, %s65
          %s2624 = smul.addr %s2623, 128
          %s2625 = scalar_lea.hbm %s21, %s2624
          %s2627 = sshll.u32 %s2596, 4
          %s2628 = int_to_ptr.vmem [resolvable:$true] %s2627
          %2630 = dma.vmem_to_hbm [thread:$0]  %s2628, 128, %s2625, %s2593
        $region196: #{tpu_custom_call.1} parent=103 // pred_fallthru
          _
        // Predicated region
        $region197: #{tpu_custom_call.1} parent=103 // pred_check
          %p2631 = pneg %p577
        $region198: #{tpu_custom_call.1} parent=103 // pred_check_branch
          %2633 = sbr.rel (%p2631) target = $region200
        $region199: #{tpu_custom_call.1} parent=103 // pred_region
          %s2635 = ssub.s32 128, 128
          %2636 = vsyncadd %s2598, %s2635
          %s2637 = sadd.s32 %s66, %s65
          %s2638 = smul.addr %s2637, 128
          %s2639 = scalar_lea.hbm %s22, %s2638
          %s2641 = sshll.u32 %s2601, 4
          %s2642 = int_to_ptr.vmem [resolvable:$true] %s2641
          %2644 = dma.vmem_to_hbm [thread:$0]  %s2642, 128, %s2639, %s2598
        $region200: #{tpu_custom_call.1} parent=103 // pred_fallthru
          _
        // Predicated region
        $region201: #{tpu_custom_call.1} parent=103 // pred_check
          %p2645 = pneg %p605
        $region202: #{tpu_custom_call.1} parent=103 // pred_check_branch
          %2647 = sbr.rel (%p2645) target = $region204
        $region203: #{tpu_custom_call.1} parent=103 // pred_region
          %s2649 = ssub.s32 64, 64
          %2650 = vsyncadd %s2603, %s2649
          %s2651 = sadd.s32 %s66, %s65
          %s2652 = smul.addr %s2651, 64
          %s2653 = scalar_lea.hbm %s23, %s2652
          %s2655 = sshll.u32 %s2606, 4
          %s2656 = int_to_ptr.vmem [resolvable:$true] %s2655
          %2658 = dma.vmem_to_hbm [thread:$0]  %s2656, 64, %s2653, %s2603
        $region204: #{tpu_custom_call.1} parent=103 // pred_fallthru
          _
        // Predicated region
        $region205: #{tpu_custom_call.1} parent=103 // pred_check
          %p2659 = pneg %p633
        $region206: #{tpu_custom_call.1} parent=103 // pred_check_branch
          %2661 = sbr.rel (%p2659) target = $region208
        $region207: #{tpu_custom_call.1} parent=103 // pred_region
          %s2663 = ssub.s32 64, 64
          %2664 = vsyncadd %s2608, %s2663
          %s2665 = sadd.s32 %s66, %s65
          %s2666 = smul.addr %s2665, 64
          %s2667 = scalar_lea.hbm %s24, %s2666
          %s2669 = sshll.u32 %s2611, 4
          %s2670 = int_to_ptr.vmem [resolvable:$true] %s2669
          %2672 = dma.vmem_to_hbm [thread:$0]  %s2670, 64, %s2667, %s2608
        $region208: #{tpu_custom_call.1} parent=103 // pred_fallthru
          _
        // Predicated region
        $region209: #{tpu_custom_call.1} parent=103 // pred_check
          %p2673 = pneg %p661
        $region210: #{tpu_custom_call.1} parent=103 // pred_check_branch
          %2675 = sbr.rel (%p2673) target = $region212
        $region211: #{tpu_custom_call.1} parent=103 // pred_region
          %s2677 = ssub.s32 64, 64
          %2678 = vsyncadd %s2613, %s2677
          %s2679 = sadd.s32 %s66, %s65
          %s2680 = smul.addr %s2679, 64
          %s2681 = scalar_lea.hbm %s25, %s2680
          %s2683 = sshll.u32 %s2616, 4
          %s2684 = int_to_ptr.vmem [resolvable:$true] %s2683
          %2686 = dma.vmem_to_hbm [thread:$0]  %s2684, 64, %s2681, %s2613
        $region212: #{tpu_custom_call.1} parent=103 // pred_fallthru
          _
      $region104: #{tpu_custom_call.1} parent=5 // pred_fallthru
        _
      %p2687 = scmp.le.s32.totalorder 2, %s56
      // Predicated region
      $region213: #{tpu_custom_call.1} parent=5 // pred_check
        %p2688 = pneg %p2687
      $region214: #{tpu_custom_call.1} parent=5 // pred_check_branch
        %2690 = sbr.rel (%p2688) target = $region216
      $region215: #{tpu_custom_call.1} parent=5 // pred_region
        %s2691 = ssub.s32 %s56, 2
        // Predicated region
        $region217: #{tpu_custom_call.1} parent=215 // pred_check
          %p2692 = pneg %p555
        $region218: #{tpu_custom_call.1} parent=215 // pred_check_branch
          %2694 = sbr.rel (%p2692) target = $region220
        $region219: #{tpu_custom_call.1} parent=215 // pred_region
          %s2695 = sand.u32 %s540, 1
          %s2696 = scalar_lea.sflag [#allocation6], %s2695
          %s2697 = sand.u32 %s540, 1
          %s2698 = smul.addr %s2697, 8
          %s2699 = scalar_lea.vmem [#allocation37], %s2698
          %2700 = dma.done %s2696, 128
        $region220: #{tpu_custom_call.1} parent=215 // pred_fallthru
          _
        // Predicated region
        $region221: #{tpu_custom_call.1} parent=215 // pred_check
          %p2701 = pneg %p583
        $region222: #{tpu_custom_call.1} parent=215 // pred_check_branch
          %2703 = sbr.rel (%p2701) target = $region224
        $region223: #{tpu_custom_call.1} parent=215 // pred_region
          %s2704 = sand.u32 %s62, 1
          %s2705 = scalar_lea.sflag [#allocation39], %s2704
          %s2706 = sand.u32 %s568, 1
          %s2707 = smul.addr %s2706, 8
          %s2708 = scalar_lea.vmem [#allocation38], %s2707
          %2709 = dma.done %s2705, 128
        $region224: #{tpu_custom_call.1} parent=215 // pred_fallthru
          _
        // Predicated region
        $region225: #{tpu_custom_call.1} parent=215 // pred_check
          %p2710 = pneg %p611
        $region226: #{tpu_custom_call.1} parent=215 // pred_check_branch
          %2712 = sbr.rel (%p2710) target = $region228
        $region227: #{tpu_custom_call.1} parent=215 // pred_region
          %s2713 = sand.u32 %s62, 1
          %s2714 = scalar_lea.sflag [#allocation39], %s2713
          %s2715 = sand.u32 %s596, 1
          %s2716 = smul.addr %s2715, 4
          %s2717 = scalar_lea.vmem [#allocation40], %s2716
          %2718 = dma.done %s2714, 64
        $region228: #{tpu_custom_call.1} parent=215 // pred_fallthru
          _
        // Predicated region
        $region229: #{tpu_custom_call.1} parent=215 // pred_check
          %p2719 = pneg %p639
        $region230: #{tpu_custom_call.1} parent=215 // pred_check_branch
          %2721 = sbr.rel (%p2719) target = $region232
        $region231: #{tpu_custom_call.1} parent=215 // pred_region
          %s2722 = sand.u32 %s62, 1
          %s2723 = scalar_lea.sflag [#allocation42], %s2722
          %s2724 = sand.u32 %s624, 1
          %s2725 = smul.addr %s2724, 4
          %s2726 = scalar_lea.vmem [#allocation41], %s2725
          %2727 = dma.done %s2723, 64
        $region232: #{tpu_custom_call.1} parent=215 // pred_fallthru
          _
        // Predicated region
        $region233: #{tpu_custom_call.1} parent=215 // pred_check
          %p2728 = pneg %p667
        $region234: #{tpu_custom_call.1} parent=215 // pred_check_branch
          %2730 = sbr.rel (%p2728) target = $region236
        $region235: #{tpu_custom_call.1} parent=215 // pred_region
          %s2731 = sand.u32 %s62, 1
          %s2732 = scalar_lea.sflag [#allocation42], %s2731
          %s2733 = sand.u32 %s652, 1
          %s2734 = smul.addr %s2733, 4
          %s2735 = scalar_lea.vmem [#allocation43], %s2734
          %2736 = dma.done %s2732, 64
        $region236: #{tpu_custom_call.1} parent=215 // pred_fallthru
          _
      $region216: #{tpu_custom_call.1} parent=5 // pred_fallthru
        _
    $region6: #{tpu_custom_call.1} parent=1 // loop_footer
      %s60 = sadd.s32 1, %s56
    $region7: #{tpu_custom_call.1} parent=1 // loop_footer_branch
      %55 = sbr.rel target = $region3
    $region8: #{tpu_custom_call.1} parent=1 // loop_exit
      _
    %2737 = vsyncpa [#allocation5], 1
    %s2738 = scalar_lea.sflag [#allocation5], 1
    %2739 = vsyncpa %s2738, 1
    %2740 = vsyncpa [#allocation8], 1
    %s2741 = scalar_lea.sflag [#allocation8], 1
    %2742 = vsyncpa %s2741, 1
    %2743 = vsyncpa [#allocation11], 1
    %2744 = vsyncpa [#allocation14], 1
    %2745 = vsyncpa [#allocation17], 1
    %2746 = vsyncpa [#allocation20], 1
    %2747 = vsyncpa [#allocation23], 1
    %2748 = vsyncpa [#allocation26], 1
    %2749 = vsyncpa [#allocation29], 1
    %2750 = vsyncpa [#allocation32], 1
    %2751 = vsyncpa [#allocation35], 1
    %2752 = vsyncpa [#allocation6], 1
    %s2753 = scalar_lea.sflag [#allocation6], 1
    %2754 = vsyncpa %s2753, 1
    %2755 = vsyncpa [#allocation39], 1
    %s2756 = scalar_lea.sflag [#allocation39], 1
    %2757 = vsyncpa %s2756, 1
    %2758 = vsyncpa [#allocation42], 1
    %s2759 = scalar_lea.sflag [#allocation42], 1
    %2760 = vsyncpa %s2759, 1

</llo_original>
